<compile_context>
chip_gen: v6e
topology: v6e:2x2x1
jax: 0.10.0
libtpu: 0.0.40
codegen_flags: <defaults>
</compile_context>

<pallas_src>
import jax
import jax.numpy as jnp
from jax.experimental import pallas as pl
from jax.experimental.pallas import tpu as pltpu

EPS = 1e-5


def fused_block_kernel(x_ref, w1_ref, bn_ref, skip_hbm, w2_hbm, out_ref,
                       skip_vmem, w2_vmem, sem):
    # ---- kick off DMAs for operands not needed until after matmul1 ----
    skip_cp = pltpu.make_async_copy(skip_hbm, skip_vmem, sem.at[0])
    w2_cp = pltpu.make_async_copy(w2_hbm, w2_vmem, sem.at[1])
    skip_cp.start()
    w2_cp.start()

    inv_p = 1.0 / x_ref.shape[-1]          # static at trace time
    c_out = out_ref.shape[0]

    # ---- conv2d35 (1x1) as channel-major matmul: (Cmid,Cin)@(Cin,P) ----
    # bf16 MXU inputs (weights already stored bf16), f32 accumulation.
    y = jnp.dot(w1_ref[...], x_ref[...].astype(jnp.bfloat16),
                preferred_element_type=jnp.float32)          # (Cmid, P) f32

    # ---- batchnorm2d35: one-pass batch stats + folded affine ----
    bn = bn_ref[...]                                          # (Cmid, 4) packed
    m1 = jnp.sum(y, axis=-1, keepdims=True) * inv_p           # mean    (Cmid,1)
    q1 = jnp.sum(y * y, axis=-1, keepdims=True) * inv_p       # E[y^2]  (Cmid,1)
    a1 = bn[:, 0:1] * jax.lax.rsqrt(q1 - m1 * m1 + EPS)       # scale
    c1 = bn[:, 1:2] - m1 * a1                                 # shift

    # ---- BN1 + residual add + ReLU + bf16 cast fused (no f32 h buffer) ----
    skip_cp.wait()
    h = jnp.maximum(y * a1 + c1 + skip_vmem[...], 0.0).astype(jnp.bfloat16)

    # ---- conv2d36 (1x1): (Cout,Cmid)@(Cmid,P) ----
    w2_cp.wait()
    z = jnp.dot(w2_vmem[...], h, preferred_element_type=jnp.float32)   # (Cout,P)

    # ---- batchnorm2d36: one-pass stats + folded affine ----
    m2 = jnp.sum(z, axis=-1, keepdims=True) * inv_p
    q2 = jnp.sum(z * z, axis=-1, keepdims=True) * inv_p
    a2 = bn[:c_out, 2:3] * jax.lax.rsqrt(q2 - m2 * m2 + EPS)
    c2 = bn[:c_out, 3:4] - m2 * a2
    out_ref[...] = (z * a2 + c2).astype(out_ref.dtype)


def module_forward_pallas(x114, x108, params):
    """x114: (1,128,H,W) f32  x108: (1,512,H,W) f32  ->  (1,256,H,W) f32.

    params = (w1, g1, b1, w2, g2, b2) with conv weights *stored* in bf16
    (cast where the parameters are produced, not per-call in this wrapper).
    """
    w1, g1, b1, w2, g2, b2 = params
    n, c_in, h, w = x114.shape
    assert n == 1, "channel-major free-reshape path assumes N == 1 (as in the module)"
    p = h * w
    c_mid, c_out = w1.shape[0], w2.shape[0]

    # Free reshapes (no transposes): NCHW with N==1 is already channel-major.
    x_cp = x114.reshape(c_in, p)
    skip_cp = x108.reshape(c_mid, p)

    # Pack the 4 tiny BN vectors into one (Cmid, 4) array: 1 DMA instead of 4,
    # ~3x less VMEM lane padding.  (~8 KiB; in a real model this would simply
    # be the stored parameter layout.)
    bn = jnp.zeros((c_mid, 4), jnp.float32)
    bn = bn.at[:, 0].set(g1).at[:, 1].set(b1)
    bn = bn.at[:c_out, 2].set(g2).at[:c_out, 3].set(b2)

    vmem = pl.BlockSpec(memory_space=pltpu.MemorySpace.VMEM)
    anyspace = pl.BlockSpec(memory_space=pl.ANY)

    out_cp = pl.pallas_call(
        fused_block_kernel,
        out_shape=jax.ShapeDtypeStruct((c_out, p), jnp.float32),
        in_specs=[vmem, vmem, vmem, anyspace, anyspace],
        out_specs=vmem,
        scratch_shapes=[
            pltpu.VMEM((c_mid, p), x108.dtype),     # skip landing buffer
            pltpu.VMEM((c_out, c_mid), w2.dtype),   # w2 landing buffer
            pltpu.SemaphoreType.DMA((2,)),
        ],
        compiler_params=pltpu.CompilerParams(vmem_limit_bytes=32 * 1024 * 1024),
    )(x_cp, w1, bn, skip_cp, w2)

    return out_cp.reshape(n, c_out, h, w)


def module_forward_reference(x114, x108, params,
                             matmul_dtype=jnp.bfloat16,
                             precision=None):
    """Pure-JAX reference (two-pass BN, un-folded affine) for validation."""
    w1, g1, b1, w2, g2, b2 = params
    n, c_in, h, w = x114.shape
    p = h * w
    c_mid, c_out = w1.shape[0], w2.shape[0]

    x = x114.reshape(c_in, p)
    skip = x108.reshape(c_mid, p)

    y = jnp.dot(w1.astype(matmul_dtype), x.astype(matmul_dtype),
                preferred_element_type=jnp.float32, precision=precision)
    m1 = jnp.mean(y, axis=-1, keepdims=True)
    v1 = jnp.mean((y - m1) ** 2, axis=-1, keepdims=True)          # biased var
    y = (y - m1) / jnp.sqrt(v1 + EPS) * g1[:, None] + b1[:, None]
    hid = jnp.maximum(y + skip, 0.0)

    z = jnp.dot(w2.astype(matmul_dtype), hid.astype(matmul_dtype),
                preferred_element_type=jnp.float32, precision=precision)
    m2 = jnp.mean(z, axis=-1, keepdims=True)
    v2 = jnp.mean((z - m2) ** 2, axis=-1, keepdims=True)
    z = (z - m2) / jnp.sqrt(v2 + EPS) * g2[:, None] + b2[:, None]
    return z.reshape(n, c_out, h, w)


if __name__ == "__main__":
    # Shapes taken directly from the module:
    #   x114: (1, 128, 28, 28)   x108: (1, 512, 28, 28)   out: (1, 256, 28, 28)
    N, H, W = 1, 28, 28
    C_IN, C_MID, C_OUT = 128, 512, 256

    key = jax.random.PRNGKey(0)
    k_x114, k_x108, k_w1, k_g1, k_b1, k_w2, k_g2, k_b2 = jax.random.split(key, 8)

    x114 = jax.random.normal(k_x114, (N, C_IN, H, W), dtype=jnp.float32)
    x108 = jax.random.normal(k_x108, (N, C_MID, H, W), dtype=jnp.float32)

    # Conv weights stored as (Cout, Cin) == PyTorch (Cout, Cin, 1, 1) squeezed.
    w1_f32 = jax.random.normal(k_w1, (C_MID, C_IN), dtype=jnp.float32) * 0.05
    g1 = 1.0 + 0.1 * jax.random.normal(k_g1, (C_MID,), dtype=jnp.float32)
    b1 = 0.1 * jax.random.normal(k_b1, (C_MID,), dtype=jnp.float32)
    w2_f32 = jax.random.normal(k_w2, (C_OUT, C_MID), dtype=jnp.float32) * 0.05
    g2 = 1.0 + 0.1 * jax.random.normal(k_g2, (C_OUT,), dtype=jnp.float32)
    b2 = 0.1 * jax.random.normal(k_b2, (C_OUT,), dtype=jnp.float32)

    # Weights are stored in bf16 at the source (the MXU runs bf16 anyway).
    params_bf16 = (w1_f32.astype(jnp.bfloat16), g1, b1,
                   w2_f32.astype(jnp.bfloat16), g2, b2)
    params_f32 = (w1_f32, g1, b1, w2_f32, g2, b2)

    out = jax.block_until_ready(module_forward_pallas(x114, x108, params_bf16))
    assert out.shape == (N, C_OUT, H, W), out.shape

    # 1) Tight check against a reference using the same bf16-MXU math.
    ref_bf16 = jax.block_until_ready(
        module_forward_reference(x114, x108, params_f32, matmul_dtype=jnp.bfloat16))
    assert jnp.allclose(out, ref_bf16, rtol=1e-2, atol=1e-2), (
        float(jnp.max(jnp.abs(out - ref_bf16))))

    # 2) Loose sanity check against full-f32 (PyTorch-exact) math.
    ref_f32 = jax.block_until_ready(
        module_forward_reference(x114, x108, params_f32, matmul_dtype=jnp.float32,
                                 precision=jax.lax.Precision.HIGHEST))
    assert jnp.allclose(out, ref_f32, rtol=1e-1, atol=1e-1), (
        float(jnp.max(jnp.abs(out - ref_f32))))

    print("KERNEL_OK")
</pallas_src>

<mosaic_0001>
module attributes {stable_mosaic.version = 11 : i64} {
  func.func @fused_block_kernel(%arg0: memref<128x784xf32, #tpu.memory_space<vmem>>, %arg1: memref<512x128xbf16, #tpu.memory_space<vmem>>, %arg2: memref<512x4xf32, #tpu.memory_space<vmem>>, %arg3: memref<512x784xf32, #tpu.memory_space<any>>, %arg4: memref<256x512xbf16, #tpu.memory_space<any>>, %arg5: memref<256x784xf32, #tpu.memory_space<vmem>>, %arg6: memref<512x784xf32, #tpu.memory_space<vmem>>, %arg7: memref<256x512xbf16, #tpu.memory_space<vmem>>, %arg8: memref<2x!tpu.dma_semaphore, #tpu.memory_space<semaphore_mem>>) attributes {dimension_semantics = [], scalar_prefetch = 0 : i64, scratch_operands = 3 : i64, tpu.core_type = #tpu.core_type<tc>} {
    %c0_i32 = arith.constant 0 : i32
    %0 = tpu.memref_slice %arg8[%c0_i32] : memref<2x!tpu.dma_semaphore, #tpu.memory_space<semaphore_mem>> -> memref<1x!tpu.dma_semaphore, #tpu.memory_space<semaphore_mem>>
    %1 = tpu.memref_squeeze %0 : memref<1x!tpu.dma_semaphore, #tpu.memory_space<semaphore_mem>> -> memref<!tpu.dma_semaphore, #tpu.memory_space<semaphore_mem>>
    tpu.enqueue_dma source(%arg3 : memref<512x784xf32, #tpu.memory_space<any>>) target(%arg6 : memref<512x784xf32, #tpu.memory_space<vmem>>) target_semaphore(%1 : memref<!tpu.dma_semaphore, #tpu.memory_space<semaphore_mem>>)
    %c1_i32 = arith.constant 1 : i32
    %2 = tpu.memref_slice %arg8[%c1_i32] : memref<2x!tpu.dma_semaphore, #tpu.memory_space<semaphore_mem>> -> memref<1x!tpu.dma_semaphore, #tpu.memory_space<semaphore_mem>>
    %3 = tpu.memref_squeeze %2 : memref<1x!tpu.dma_semaphore, #tpu.memory_space<semaphore_mem>> -> memref<!tpu.dma_semaphore, #tpu.memory_space<semaphore_mem>>
    tpu.enqueue_dma source(%arg4 : memref<256x512xbf16, #tpu.memory_space<any>>) target(%arg7 : memref<256x512xbf16, #tpu.memory_space<vmem>>) target_semaphore(%3 : memref<!tpu.dma_semaphore, #tpu.memory_space<semaphore_mem>>)
    %c0 = arith.constant 0 : index
    %c0_0 = arith.constant 0 : index
    %4 = vector.load %arg1[%c0, %c0_0] : memref<512x128xbf16, #tpu.memory_space<vmem>>, vector<512x128xbf16>
    %c0_1 = arith.constant 0 : index
    %c0_2 = arith.constant 0 : index
    %5 = vector.load %arg0[%c0_1, %c0_2] : memref<128x784xf32, #tpu.memory_space<vmem>>, vector<128x784xf32>
    %6 = arith.truncf %5 : vector<128x784xf32> to vector<128x784xbf16>
    %cst = arith.constant dense<0.000000e+00> : vector<512x784xf32>
    %7 = tpu.matmul %4, %6, %cst {dimension_numbers = #tpu.dot_dimension_numbers<[1], [0], [0], [1], [0, 0, 1, 1], [], []>} : vector<512x128xbf16>, vector<128x784xbf16>, vector<512x784xf32> -> vector<512x784xf32>
    %c0_3 = arith.constant 0 : index
    %c0_4 = arith.constant 0 : index
    %8 = vector.load %arg2[%c0_3, %c0_4] : memref<512x4xf32, #tpu.memory_space<vmem>>, vector<512x4xf32>
    %cst_5 = arith.constant dense<0.000000e+00> : vector<512xf32>
    %9 = vector.multi_reduction <add>, %7, %cst_5 [1] : vector<512x784xf32> to vector<512xf32>
    %10 = vector.shape_cast %9 : vector<512xf32> to vector<512x1xf32>
    %cst_6 = arith.constant 0.00127551018 : f32
    %11 = vector.broadcast %cst_6 : f32 to vector<512x1xf32>
    %12 = arith.mulf %10, %11 : vector<512x1xf32>
    %13 = arith.mulf %7, %7 : vector<512x784xf32>
    %cst_7 = arith.constant dense<0.000000e+00> : vector<512xf32>
    %14 = vector.multi_reduction <add>, %13, %cst_7 [1] : vector<512x784xf32> to vector<512xf32>
    %15 = vector.shape_cast %14 : vector<512xf32> to vector<512x1xf32>
    %cst_8 = arith.constant 0.00127551018 : f32
    %16 = vector.broadcast %cst_8 : f32 to vector<512x1xf32>
    %17 = arith.mulf %15, %16 : vector<512x1xf32>
    %18 = vector.extract_strided_slice %8 {offsets = [0, 0], sizes = [512, 1], strides = [1, 1]} : vector<512x4xf32> to vector<512x1xf32>
    %19 = arith.mulf %12, %12 : vector<512x1xf32>
    %20 = arith.subf %17, %19 : vector<512x1xf32>
    %cst_9 = arith.constant 9.99999974E-6 : f32
    %21 = vector.broadcast %cst_9 : f32 to vector<512x1xf32>
    %22 = arith.addf %20, %21 : vector<512x1xf32>
    %23 = math.rsqrt %22 : vector<512x1xf32>
    %24 = arith.mulf %18, %23 : vector<512x1xf32>
    %25 = vector.extract_strided_slice %8 {offsets = [0, 1], sizes = [512, 1], strides = [1, 1]} : vector<512x4xf32> to vector<512x1xf32>
    %26 = arith.mulf %12, %24 : vector<512x1xf32>
    %27 = arith.subf %25, %26 : vector<512x1xf32>
    %c0_i32_10 = arith.constant 0 : i32
    %28 = tpu.memref_slice %arg8[%c0_i32_10] : memref<2x!tpu.dma_semaphore, #tpu.memory_space<semaphore_mem>> -> memref<1x!tpu.dma_semaphore, #tpu.memory_space<semaphore_mem>>
    %29 = tpu.memref_squeeze %28 : memref<1x!tpu.dma_semaphore, #tpu.memory_space<semaphore_mem>> -> memref<!tpu.dma_semaphore, #tpu.memory_space<semaphore_mem>>
    tpu.wait_dma2 semaphore(%29 : memref<!tpu.dma_semaphore, #tpu.memory_space<semaphore_mem>>) src(%arg3 : memref<512x784xf32, #tpu.memory_space<any>>) dst(%arg6 : memref<512x784xf32, #tpu.memory_space<vmem>>)
    %30 = vector.broadcast %24 : vector<512x1xf32> to vector<512x784xf32>
    %31 = arith.mulf %7, %30 : vector<512x784xf32>
    %32 = vector.broadcast %27 : vector<512x1xf32> to vector<512x784xf32>
    %33 = arith.addf %31, %32 : vector<512x784xf32>
    %c0_11 = arith.constant 0 : index
    %c0_12 = arith.constant 0 : index
    %34 = vector.load %arg6[%c0_11, %c0_12] : memref<512x784xf32, #tpu.memory_space<vmem>>, vector<512x784xf32>
    %35 = arith.addf %33, %34 : vector<512x784xf32>
    %cst_13 = arith.constant 0.000000e+00 : f32
    %36 = vector.broadcast %cst_13 : f32 to vector<512x784xf32>
    %37 = arith.maximumf %35, %36 : vector<512x784xf32>
    %38 = arith.truncf %37 : vector<512x784xf32> to vector<512x784xbf16>
    %c1_i32_14 = arith.constant 1 : i32
    %39 = tpu.memref_slice %arg8[%c1_i32_14] : memref<2x!tpu.dma_semaphore, #tpu.memory_space<semaphore_mem>> -> memref<1x!tpu.dma_semaphore, #tpu.memory_space<semaphore_mem>>
    %40 = tpu.memref_squeeze %39 : memref<1x!tpu.dma_semaphore, #tpu.memory_space<semaphore_mem>> -> memref<!tpu.dma_semaphore, #tpu.memory_space<semaphore_mem>>
    tpu.wait_dma2 semaphore(%40 : memref<!tpu.dma_semaphore, #tpu.memory_space<semaphore_mem>>) src(%arg4 : memref<256x512xbf16, #tpu.memory_space<any>>) dst(%arg7 : memref<256x512xbf16, #tpu.memory_space<vmem>>)
    %c0_15 = arith.constant 0 : index
    %c0_16 = arith.constant 0 : index
    %41 = vector.load %arg7[%c0_15, %c0_16] : memref<256x512xbf16, #tpu.memory_space<vmem>>, vector<256x512xbf16>
    %cst_17 = arith.constant dense<0.000000e+00> : vector<256x784xf32>
    %42 = tpu.matmul %41, %38, %cst_17 {dimension_numbers = #tpu.dot_dimension_numbers<[1], [0], [0], [1], [0, 0, 1, 1], [], []>} : vector<256x512xbf16>, vector<512x784xbf16>, vector<256x784xf32> -> vector<256x784xf32>
    %cst_18 = arith.constant dense<0.000000e+00> : vector<256xf32>
    %43 = vector.multi_reduction <add>, %42, %cst_18 [1] : vector<256x784xf32> to vector<256xf32>
    %44 = vector.shape_cast %43 : vector<256xf32> to vector<256x1xf32>
    %cst_19 = arith.constant 0.00127551018 : f32
    %45 = vector.broadcast %cst_19 : f32 to vector<256x1xf32>
    %46 = arith.mulf %44, %45 : vector<256x1xf32>
    %47 = arith.mulf %42, %42 : vector<256x784xf32>
    %cst_20 = arith.constant dense<0.000000e+00> : vector<256xf32>
    %48 = vector.multi_reduction <add>, %47, %cst_20 [1] : vector<256x784xf32> to vector<256xf32>
    %49 = vector.shape_cast %48 : vector<256xf32> to vector<256x1xf32>
    %cst_21 = arith.constant 0.00127551018 : f32
    %50 = vector.broadcast %cst_21 : f32 to vector<256x1xf32>
    %51 = arith.mulf %49, %50 : vector<256x1xf32>
    %52 = vector.extract_strided_slice %8 {offsets = [0, 2], sizes = [256, 1], strides = [1, 1]} : vector<512x4xf32> to vector<256x1xf32>
    %53 = arith.mulf %46, %46 : vector<256x1xf32>
    %54 = arith.subf %51, %53 : vector<256x1xf32>
    %cst_22 = arith.constant 9.99999974E-6 : f32
    %55 = vector.broadcast %cst_22 : f32 to vector<256x1xf32>
    %56 = arith.addf %54, %55 : vector<256x1xf32>
    %57 = math.rsqrt %56 : vector<256x1xf32>
    %58 = arith.mulf %52, %57 : vector<256x1xf32>
    %59 = vector.extract_strided_slice %8 {offsets = [0, 3], sizes = [256, 1], strides = [1, 1]} : vector<512x4xf32> to vector<256x1xf32>
    %60 = arith.mulf %46, %58 : vector<256x1xf32>
    %61 = arith.subf %59, %60 : vector<256x1xf32>
    %62 = vector.broadcast %58 : vector<256x1xf32> to vector<256x784xf32>
    %63 = arith.mulf %42, %62 : vector<256x784xf32>
    %64 = vector.broadcast %61 : vector<256x1xf32> to vector<256x784xf32>
    %65 = arith.addf %63, %64 : vector<256x784xf32>
    %c0_23 = arith.constant 0 : index
    %c0_24 = arith.constant 0 : index
    %66 = vector.load %arg5[%c0_23, %c0_24] : memref<256x784xf32, #tpu.memory_space<vmem>>, vector<256x784xf32>
    tpu.vector_store %arg5[%c0_23, %c0_24], %65 {strides = array<i32>} : memref<256x784xf32, #tpu.memory_space<vmem>>, vector<256x784xf32>,
    return
  }
}

</mosaic_0001>

<llo_original>
// kernel: tpu_custom_call.1
$region0: #{tpu_custom_call.1}
  #allocation0 [shape = 'u32[]', space=smem, size = 0x4, offset = 0x4, fixed_abs, tag = 'smem constant byte address 0x4 - core index']
  #allocation1 [shape = 'u32[144,128]{1,0:T(1,128)}', space=vmem, size = 0x12000, scoped, tag = 'internal scratch']
  #allocation2 [shape = 'f32[512,784]{1,0:T(8,128)}', space=vmem, size = 0x1c0000, scoped, tag = 'scratch operand']
  #allocation3 [shape = 'bf16[256,512]{1,0:T(8,128)(2,1)}', space=vmem, size = 0x40000, scoped, tag = 'scratch operand']
  #allocation4 [shape = 's32[2]{0}', space=sflag, size = 0x8, scoped, tag = 'scratch operand']
  #allocation5 [shape = 's32[]', space=sflag, size = 0x4, offset = 0, fixed_abs, tag = 'sflag constant byte address 0x0 - dummy sync flag']
  #allocation6 [shape = 's32[]', space=sflag, size = 0x4, offset = 0, fixed_abs, tag = 'sflag constant byte address 0x0 - dummy sync flag']
  %s0 = inlined_call_operand.vmem [shape: f32[128,784], index: 0, kind: input, shape index: {}]
  %s1 = inlined_call_operand.vmem [shape: bf16[512,128], index: 1, kind: input, shape index: {}]
  %s2 = inlined_call_operand.vmem [shape: f32[512,4], index: 2, kind: input, shape index: {}]
  %s3 = inlined_call_operand.vmem [shape: f32[512,784], index: 3, kind: input, shape index: {}]
  %s4 = inlined_call_operand.vmem [shape: bf16[256,512], index: 4, kind: input, shape index: {}]
  %s5 = inlined_call_operand.vmem [shape: f32[256,784], index: 5, kind: output, shape index: {}]
  %s6 = sld [smem:[#allocation0]]
  $region90: #{tpu_custom_call.1} parent=0
    _
  %s8 = ssub.s32 1, %s6
  %s9 = scalar_select 0, %s8, %s6
  // Predicated region
  $region2: #{tpu_custom_call.1} parent=0 // pred_check
    _
  $region3: #{tpu_custom_call.1} parent=0 // pred_check_branch
    %11 = sbr.rel (0) target = $region5
  $region4: #{tpu_custom_call.1} parent=0 // pred_region
    _
  $region5: #{tpu_custom_call.1} parent=0 // pred_fallthru
    _
  // Predicated region
  $region6: #{tpu_custom_call.1} parent=0 // pred_check
    _
  $region7: #{tpu_custom_call.1} parent=0 // pred_check_branch
    %13 = sbr.rel (0) target = $region9
  $region8: #{tpu_custom_call.1} parent=0 // pred_region
    _
  $region9: #{tpu_custom_call.1} parent=0 // pred_fallthru
    _
  // Predicated region
  $region10: #{tpu_custom_call.1} parent=0 // pred_check
    _
  $region11: #{tpu_custom_call.1} parent=0 // pred_check_branch
    %15 = sbr.rel (0) target = $region13
  $region12: #{tpu_custom_call.1} parent=0 // pred_region
    _
  $region13: #{tpu_custom_call.1} parent=0 // pred_fallthru
    _
  %p18 = scmp.lt.u32.totalorder 3584, 8
  %p19 = pneg %p18
  // Predicated region
  $region14: #{tpu_custom_call.1} parent=0 // pred_check
    _
  $region15: #{tpu_custom_call.1} parent=0 // pred_check_branch
    %21 = sbr.rel (%p18) target = $region17
  $region16: #{tpu_custom_call.1} parent=0 // pred_region
    %s37 = sand.u32 3584, 7
    %p38 = scmp.eq.s32.totalorder %s37, 0
    // Predicated region
    $region29: #{tpu_custom_call.1} parent=16 // pred_check
      %p39 = pneg %p38
    $region30: #{tpu_custom_call.1} parent=16 // pred_check_branch
      %41 = sbr.rel (%p39) target = $region32
    $region31: #{tpu_custom_call.1} parent=16 // pred_region
      loop: start=0, step=1, limit=1
      $region33: #{tpu_custom_call.1} parent=31 // loop_pre_header
        _
      $region34: #{tpu_custom_call.1} parent=31 // loop_header
        %s43 = sphi 0, %s47
        %p44 = scmp.ge.s32.totalorder %s43, 1
        %s48 = sphi %s3, %s3
        %s49 = sphi [#allocation2], [#allocation2]
      $region35: #{tpu_custom_call.1} parent=31 // loop_header_branch
        %46 = sbr.rel (%p44) target = $region39
      $region36: #{tpu_custom_call.1} parent=31 // loop_body
        %v50 = vld [vmem:[%s48] sm:$0xff]
        %51 = vst [vmem:[%s49] sm:$0xff] %v50
        %v52 = vld [vmem:[%s48 + $0x8] sm:$0xff]
        %53 = vst [vmem:[%s49 + $0x8] sm:$0xff] %v52
        %v54 = vld [vmem:[%s48 + $0x10] sm:$0xff]
        %55 = vst [vmem:[%s49 + $0x10] sm:$0xff] %v54
        %v56 = vld [vmem:[%s48 + $0x18] sm:$0xff]
        %57 = vst [vmem:[%s49 + $0x18] sm:$0xff] %v56
        %v58 = vld [vmem:[%s48 + $0x20] sm:$0xff]
        %59 = vst [vmem:[%s49 + $0x20] sm:$0xff] %v58
        %v60 = vld [vmem:[%s48 + $0x28] sm:$0xff]
        %61 = vst [vmem:[%s49 + $0x28] sm:$0xff] %v60
        %v62 = vld [vmem:[%s48 + $0x30] sm:$0xff]
        %63 = vst [vmem:[%s49 + $0x30] sm:$0xff] %v62
        %v64 = vld [vmem:[%s48 + $0x38] sm:$0xff]
        %65 = vst [vmem:[%s49 + $0x38] sm:$0xff] %v64
        %v66 = vld [vmem:[%s48 + $0x40] sm:$0xff]
        %67 = vst [vmem:[%s49 + $0x40] sm:$0xff] %v66
        %v68 = vld [vmem:[%s48 + $0x48] sm:$0xff]
        %69 = vst [vmem:[%s49 + $0x48] sm:$0xff] %v68
        %v70 = vld [vmem:[%s48 + $0x50] sm:$0xff]
        %71 = vst [vmem:[%s49 + $0x50] sm:$0xff] %v70
        %v72 = vld [vmem:[%s48 + $0x58] sm:$0xff]
        %73 = vst [vmem:[%s49 + $0x58] sm:$0xff] %v72
        %v74 = vld [vmem:[%s48 + $0x60] sm:$0xff]
        %75 = vst [vmem:[%s49 + $0x60] sm:$0xff] %v74
        %v76 = vld [vmem:[%s48 + $0x68] sm:$0xff]
        %77 = vst [vmem:[%s49 + $0x68] sm:$0xff] %v76
        %v78 = vld [vmem:[%s48 + $0x70] sm:$0xff]
        %79 = vst [vmem:[%s49 + $0x70] sm:$0xff] %v78
        %v80 = vld [vmem:[%s48 + $0x78] sm:$0xff]
        %81 = vst [vmem:[%s49 + $0x78] sm:$0xff] %v80
        %v82 = vld [vmem:[%s48 + $0x80] sm:$0xff]
        %83 = vst [vmem:[%s49 + $0x80] sm:$0xff] %v82
        %v84 = vld [vmem:[%s48 + $0x88] sm:$0xff]
        %85 = vst [vmem:[%s49 + $0x88] sm:$0xff] %v84
        %v86 = vld [vmem:[%s48 + $0x90] sm:$0xff]
        %87 = vst [vmem:[%s49 + $0x90] sm:$0xff] %v86
        %v88 = vld [vmem:[%s48 + $0x98] sm:$0xff]
        %89 = vst [vmem:[%s49 + $0x98] sm:$0xff] %v88
        %v90 = vld [vmem:[%s48 + $0xa0] sm:$0xff]
        %91 = vst [vmem:[%s49 + $0xa0] sm:$0xff] %v90
        %v92 = vld [vmem:[%s48 + $0xa8] sm:$0xff]
        %93 = vst [vmem:[%s49 + $0xa8] sm:$0xff] %v92
        %v94 = vld [vmem:[%s48 + $0xb0] sm:$0xff]
        %95 = vst [vmem:[%s49 + $0xb0] sm:$0xff] %v94
        %v96 = vld [vmem:[%s48 + $0xb8] sm:$0xff]
        %97 = vst [vmem:[%s49 + $0xb8] sm:$0xff] %v96
        %v98 = vld [vmem:[%s48 + $0xc0] sm:$0xff]
        %99 = vst [vmem:[%s49 + $0xc0] sm:$0xff] %v98
        %v100 = vld [vmem:[%s48 + $0xc8] sm:$0xff]
        %101 = vst [vmem:[%s49 + $0xc8] sm:$0xff] %v100
        %v102 = vld [vmem:[%s48 + $0xd0] sm:$0xff]
        %103 = vst [vmem:[%s49 + $0xd0] sm:$0xff] %v102
        %v104 = vld [vmem:[%s48 + $0xd8] sm:$0xff]
        %105 = vst [vmem:[%s49 + $0xd8] sm:$0xff] %v104
        %v106 = vld [vmem:[%s48 + $0xe0] sm:$0xff]
        %107 = vst [vmem:[%s49 + $0xe0] sm:$0xff] %v106
        %v108 = vld [vmem:[%s48 + $0xe8] sm:$0xff]
        %109 = vst [vmem:[%s49 + $0xe8] sm:$0xff] %v108
        %v110 = vld [vmem:[%s48 + $0xf0] sm:$0xff]
        %111 = vst [vmem:[%s49 + $0xf0] sm:$0xff] %v110
        %v112 = vld [vmem:[%s48 + $0xf8] sm:$0xff]
        %113 = vst [vmem:[%s49 + $0xf8] sm:$0xff] %v112
        %v114 = vld [vmem:[%s48 + $0x100] sm:$0xff]
        %115 = vst [vmem:[%s49 + $0x100] sm:$0xff] %v114
        %v116 = vld [vmem:[%s48 + $0x108] sm:$0xff]
        %117 = vst [vmem:[%s49 + $0x108] sm:$0xff] %v116
        %v118 = vld [vmem:[%s48 + $0x110] sm:$0xff]
        %119 = vst [vmem:[%s49 + $0x110] sm:$0xff] %v118
        %v120 = vld [vmem:[%s48 + $0x118] sm:$0xff]
        %121 = vst [vmem:[%s49 + $0x118] sm:$0xff] %v120
        %v122 = vld [vmem:[%s48 + $0x120] sm:$0xff]
        %123 = vst [vmem:[%s49 + $0x120] sm:$0xff] %v122
        %v124 = vld [vmem:[%s48 + $0x128] sm:$0xff]
        %125 = vst [vmem:[%s49 + $0x128] sm:$0xff] %v124
        %v126 = vld [vmem:[%s48 + $0x130] sm:$0xff]
        %127 = vst [vmem:[%s49 + $0x130] sm:$0xff] %v126
        %v128 = vld [vmem:[%s48 + $0x138] sm:$0xff]
        %129 = vst [vmem:[%s49 + $0x138] sm:$0xff] %v128
        %v130 = vld [vmem:[%s48 + $0x140] sm:$0xff]
        %131 = vst [vmem:[%s49 + $0x140] sm:$0xff] %v130
        %v132 = vld [vmem:[%s48 + $0x148] sm:$0xff]
        %133 = vst [vmem:[%s49 + $0x148] sm:$0xff] %v132
        %v134 = vld [vmem:[%s48 + $0x150] sm:$0xff]
        %135 = vst [vmem:[%s49 + $0x150] sm:$0xff] %v134
        %v136 = vld [vmem:[%s48 + $0x158] sm:$0xff]
        %137 = vst [vmem:[%s49 + $0x158] sm:$0xff] %v136
        %v138 = vld [vmem:[%s48 + $0x160] sm:$0xff]
        %139 = vst [vmem:[%s49 + $0x160] sm:$0xff] %v138
        %v140 = vld [vmem:[%s48 + $0x168] sm:$0xff]
        %141 = vst [vmem:[%s49 + $0x168] sm:$0xff] %v140
        %v142 = vld [vmem:[%s48 + $0x170] sm:$0xff]
        %143 = vst [vmem:[%s49 + $0x170] sm:$0xff] %v142
        %v144 = vld [vmem:[%s48 + $0x178] sm:$0xff]
        %145 = vst [vmem:[%s49 + $0x178] sm:$0xff] %v144
        %v146 = vld [vmem:[%s48 + $0x180] sm:$0xff]
        %147 = vst [vmem:[%s49 + $0x180] sm:$0xff] %v146
        %v148 = vld [vmem:[%s48 + $0x188] sm:$0xff]
        %149 = vst [vmem:[%s49 + $0x188] sm:$0xff] %v148
        %v150 = vld [vmem:[%s48 + $0x190] sm:$0xff]
        %151 = vst [vmem:[%s49 + $0x190] sm:$0xff] %v150
        %v152 = vld [vmem:[%s48 + $0x198] sm:$0xff]
        %153 = vst [vmem:[%s49 + $0x198] sm:$0xff] %v152
        %v154 = vld [vmem:[%s48 + $0x1a0] sm:$0xff]
        %155 = vst [vmem:[%s49 + $0x1a0] sm:$0xff] %v154
        %v156 = vld [vmem:[%s48 + $0x1a8] sm:$0xff]
        %157 = vst [vmem:[%s49 + $0x1a8] sm:$0xff] %v156
        %v158 = vld [vmem:[%s48 + $0x1b0] sm:$0xff]
        %159 = vst [vmem:[%s49 + $0x1b0] sm:$0xff] %v158
        %v160 = vld [vmem:[%s48 + $0x1b8] sm:$0xff]
        %161 = vst [vmem:[%s49 + $0x1b8] sm:$0xff] %v160
        %v162 = vld [vmem:[%s48 + $0x1c0] sm:$0xff]
        %163 = vst [vmem:[%s49 + $0x1c0] sm:$0xff] %v162
        %v164 = vld [vmem:[%s48 + $0x1c8] sm:$0xff]
        %165 = vst [vmem:[%s49 + $0x1c8] sm:$0xff] %v164
        %v166 = vld [vmem:[%s48 + $0x1d0] sm:$0xff]
        %167 = vst [vmem:[%s49 + $0x1d0] sm:$0xff] %v166
        %v168 = vld [vmem:[%s48 + $0x1d8] sm:$0xff]
        %169 = vst [vmem:[%s49 + $0x1d8] sm:$0xff] %v168
        %v170 = vld [vmem:[%s48 + $0x1e0] sm:$0xff]
        %171 = vst [vmem:[%s49 + $0x1e0] sm:$0xff] %v170
        %v172 = vld [vmem:[%s48 + $0x1e8] sm:$0xff]
        %173 = vst [vmem:[%s49 + $0x1e8] sm:$0xff] %v172
        %v174 = vld [vmem:[%s48 + $0x1f0] sm:$0xff]
        %175 = vst [vmem:[%s49 + $0x1f0] sm:$0xff] %v174
        %v176 = vld [vmem:[%s48 + $0x1f8] sm:$0xff]
        %177 = vst [vmem:[%s49 + $0x1f8] sm:$0xff] %v176
        %v178 = vld [vmem:[%s48 + $0x200] sm:$0xff]
        %179 = vst [vmem:[%s49 + $0x200] sm:$0xff] %v178
        %v180 = vld [vmem:[%s48 + $0x208] sm:$0xff]
        %181 = vst [vmem:[%s49 + $0x208] sm:$0xff] %v180
        %v182 = vld [vmem:[%s48 + $0x210] sm:$0xff]
        %183 = vst [vmem:[%s49 + $0x210] sm:$0xff] %v182
        %v184 = vld [vmem:[%s48 + $0x218] sm:$0xff]
        %185 = vst [vmem:[%s49 + $0x218] sm:$0xff] %v184
        %v186 = vld [vmem:[%s48 + $0x220] sm:$0xff]
        %187 = vst [vmem:[%s49 + $0x220] sm:$0xff] %v186
        %v188 = vld [vmem:[%s48 + $0x228] sm:$0xff]
        %189 = vst [vmem:[%s49 + $0x228] sm:$0xff] %v188
        %v190 = vld [vmem:[%s48 + $0x230] sm:$0xff]
        %191 = vst [vmem:[%s49 + $0x230] sm:$0xff] %v190
        %v192 = vld [vmem:[%s48 + $0x238] sm:$0xff]
        %193 = vst [vmem:[%s49 + $0x238] sm:$0xff] %v192
        %v194 = vld [vmem:[%s48 + $0x240] sm:$0xff]
        %195 = vst [vmem:[%s49 + $0x240] sm:$0xff] %v194
        %v196 = vld [vmem:[%s48 + $0x248] sm:$0xff]
        %197 = vst [vmem:[%s49 + $0x248] sm:$0xff] %v196
        %v198 = vld [vmem:[%s48 + $0x250] sm:$0xff]
        %199 = vst [vmem:[%s49 + $0x250] sm:$0xff] %v198
        %v200 = vld [vmem:[%s48 + $0x258] sm:$0xff]
        %201 = vst [vmem:[%s49 + $0x258] sm:$0xff] %v200
        %v202 = vld [vmem:[%s48 + $0x260] sm:$0xff]
        %203 = vst [vmem:[%s49 + $0x260] sm:$0xff] %v202
        %v204 = vld [vmem:[%s48 + $0x268] sm:$0xff]
        %205 = vst [vmem:[%s49 + $0x268] sm:$0xff] %v204
        %v206 = vld [vmem:[%s48 + $0x270] sm:$0xff]
        %207 = vst [vmem:[%s49 + $0x270] sm:$0xff] %v206
        %v208 = vld [vmem:[%s48 + $0x278] sm:$0xff]
        %209 = vst [vmem:[%s49 + $0x278] sm:$0xff] %v208
        %v210 = vld [vmem:[%s48 + $0x280] sm:$0xff]
        %211 = vst [vmem:[%s49 + $0x280] sm:$0xff] %v210
        %v212 = vld [vmem:[%s48 + $0x288] sm:$0xff]
        %213 = vst [vmem:[%s49 + $0x288] sm:$0xff] %v212
        %v214 = vld [vmem:[%s48 + $0x290] sm:$0xff]
        %215 = vst [vmem:[%s49 + $0x290] sm:$0xff] %v214
        %v216 = vld [vmem:[%s48 + $0x298] sm:$0xff]
        %217 = vst [vmem:[%s49 + $0x298] sm:$0xff] %v216
        %v218 = vld [vmem:[%s48 + $0x2a0] sm:$0xff]
        %219 = vst [vmem:[%s49 + $0x2a0] sm:$0xff] %v218
        %v220 = vld [vmem:[%s48 + $0x2a8] sm:$0xff]
        %221 = vst [vmem:[%s49 + $0x2a8] sm:$0xff] %v220
        %v222 = vld [vmem:[%s48 + $0x2b0] sm:$0xff]
        %223 = vst [vmem:[%s49 + $0x2b0] sm:$0xff] %v222
        %v224 = vld [vmem:[%s48 + $0x2b8] sm:$0xff]
        %225 = vst [vmem:[%s49 + $0x2b8] sm:$0xff] %v224
        %v226 = vld [vmem:[%s48 + $0x2c0] sm:$0xff]
        %227 = vst [vmem:[%s49 + $0x2c0] sm:$0xff] %v226
        %v228 = vld [vmem:[%s48 + $0x2c8] sm:$0xff]
        %229 = vst [vmem:[%s49 + $0x2c8] sm:$0xff] %v228
        %v230 = vld [vmem:[%s48 + $0x2d0] sm:$0xff]
        %231 = vst [vmem:[%s49 + $0x2d0] sm:$0xff] %v230
        %v232 = vld [vmem:[%s48 + $0x2d8] sm:$0xff]
        %233 = vst [vmem:[%s49 + $0x2d8] sm:$0xff] %v232
        %v234 = vld [vmem:[%s48 + $0x2e0] sm:$0xff]
        %235 = vst [vmem:[%s49 + $0x2e0] sm:$0xff] %v234
        %v236 = vld [vmem:[%s48 + $0x2e8] sm:$0xff]
        %237 = vst [vmem:[%s49 + $0x2e8] sm:$0xff] %v236
        %v238 = vld [vmem:[%s48 + $0x2f0] sm:$0xff]
        %239 = vst [vmem:[%s49 + $0x2f0] sm:$0xff] %v238
        %v240 = vld [vmem:[%s48 + $0x2f8] sm:$0xff]
        %241 = vst [vmem:[%s49 + $0x2f8] sm:$0xff] %v240
        %v242 = vld [vmem:[%s48 + $0x300] sm:$0xff]
        %243 = vst [vmem:[%s49 + $0x300] sm:$0xff] %v242
        %v244 = vld [vmem:[%s48 + $0x308] sm:$0xff]
        %245 = vst [vmem:[%s49 + $0x308] sm:$0xff] %v244
        %v246 = vld [vmem:[%s48 + $0x310] sm:$0xff]
        %247 = vst [vmem:[%s49 + $0x310] sm:$0xff] %v246
        %v248 = vld [vmem:[%s48 + $0x318] sm:$0xff]
        %249 = vst [vmem:[%s49 + $0x318] sm:$0xff] %v248
        %v250 = vld [vmem:[%s48 + $0x320] sm:$0xff]
        %251 = vst [vmem:[%s49 + $0x320] sm:$0xff] %v250
        %v252 = vld [vmem:[%s48 + $0x328] sm:$0xff]
        %253 = vst [vmem:[%s49 + $0x328] sm:$0xff] %v252
        %v254 = vld [vmem:[%s48 + $0x330] sm:$0xff]
        %255 = vst [vmem:[%s49 + $0x330] sm:$0xff] %v254
        %v256 = vld [vmem:[%s48 + $0x338] sm:$0xff]
        %257 = vst [vmem:[%s49 + $0x338] sm:$0xff] %v256
        %v258 = vld [vmem:[%s48 + $0x340] sm:$0xff]
        %259 = vst [vmem:[%s49 + $0x340] sm:$0xff] %v258
        %v260 = vld [vmem:[%s48 + $0x348] sm:$0xff]
        %261 = vst [vmem:[%s49 + $0x348] sm:$0xff] %v260
        %v262 = vld [vmem:[%s48 + $0x350] sm:$0xff]
        %263 = vst [vmem:[%s49 + $0x350] sm:$0xff] %v262
        %v264 = vld [vmem:[%s48 + $0x358] sm:$0xff]
        %265 = vst [vmem:[%s49 + $0x358] sm:$0xff] %v264
        %v266 = vld [vmem:[%s48 + $0x360] sm:$0xff]
        %267 = vst [vmem:[%s49 + $0x360] sm:$0xff] %v266
        %v268 = vld [vmem:[%s48 + $0x368] sm:$0xff]
        %269 = vst [vmem:[%s49 + $0x368] sm:$0xff] %v268
        %v270 = vld [vmem:[%s48 + $0x370] sm:$0xff]
        %271 = vst [vmem:[%s49 + $0x370] sm:$0xff] %v270
        %v272 = vld [vmem:[%s48 + $0x378] sm:$0xff]
        %273 = vst [vmem:[%s49 + $0x378] sm:$0xff] %v272
        %v274 = vld [vmem:[%s48 + $0x380] sm:$0xff]
        %275 = vst [vmem:[%s49 + $0x380] sm:$0xff] %v274
        %v276 = vld [vmem:[%s48 + $0x388] sm:$0xff]
        %277 = vst [vmem:[%s49 + $0x388] sm:$0xff] %v276
        %v278 = vld [vmem:[%s48 + $0x390] sm:$0xff]
        %279 = vst [vmem:[%s49 + $0x390] sm:$0xff] %v278
        %v280 = vld [vmem:[%s48 + $0x398] sm:$0xff]
        %281 = vst [vmem:[%s49 + $0x398] sm:$0xff] %v280
        %v282 = vld [vmem:[%s48 + $0x3a0] sm:$0xff]
        %283 = vst [vmem:[%s49 + $0x3a0] sm:$0xff] %v282
        %v284 = vld [vmem:[%s48 + $0x3a8] sm:$0xff]
        %285 = vst [vmem:[%s49 + $0x3a8] sm:$0xff] %v284
        %v286 = vld [vmem:[%s48 + $0x3b0] sm:$0xff]
        %287 = vst [vmem:[%s49 + $0x3b0] sm:$0xff] %v286
        %v288 = vld [vmem:[%s48 + $0x3b8] sm:$0xff]
        %289 = vst [vmem:[%s49 + $0x3b8] sm:$0xff] %v288
        %v290 = vld [vmem:[%s48 + $0x3c0] sm:$0xff]
        %291 = vst [vmem:[%s49 + $0x3c0] sm:$0xff] %v290
        %v292 = vld [vmem:[%s48 + $0x3c8] sm:$0xff]
        %293 = vst [vmem:[%s49 + $0x3c8] sm:$0xff] %v292
        %v294 = vld [vmem:[%s48 + $0x3d0] sm:$0xff]
        %295 = vst [vmem:[%s49 + $0x3d0] sm:$0xff] %v294
        %v296 = vld [vmem:[%s48 + $0x3d8] sm:$0xff]
        %297 = vst [vmem:[%s49 + $0x3d8] sm:$0xff] %v296
        %v298 = vld [vmem:[%s48 + $0x3e0] sm:$0xff]
        %299 = vst [vmem:[%s49 + $0x3e0] sm:$0xff] %v298
        %v300 = vld [vmem:[%s48 + $0x3e8] sm:$0xff]
        %301 = vst [vmem:[%s49 + $0x3e8] sm:$0xff] %v300
        %v302 = vld [vmem:[%s48 + $0x3f0] sm:$0xff]
        %303 = vst [vmem:[%s49 + $0x3f0] sm:$0xff] %v302
        %v304 = vld [vmem:[%s48 + $0x3f8] sm:$0xff]
        %305 = vst [vmem:[%s49 + $0x3f8] sm:$0xff] %v304
        %v306 = vld [vmem:[%s48 + $0x400] sm:$0xff]
        %307 = vst [vmem:[%s49 + $0x400] sm:$0xff] %v306
        %v308 = vld [vmem:[%s48 + $0x408] sm:$0xff]
        %309 = vst [vmem:[%s49 + $0x408] sm:$0xff] %v308
        %v310 = vld [vmem:[%s48 + $0x410] sm:$0xff]
        %311 = vst [vmem:[%s49 + $0x410] sm:$0xff] %v310
        %v312 = vld [vmem:[%s48 + $0x418] sm:$0xff]
        %313 = vst [vmem:[%s49 + $0x418] sm:$0xff] %v312
        %v314 = vld [vmem:[%s48 + $0x420] sm:$0xff]
        %315 = vst [vmem:[%s49 + $0x420] sm:$0xff] %v314
        %v316 = vld [vmem:[%s48 + $0x428] sm:$0xff]
        %317 = vst [vmem:[%s49 + $0x428] sm:$0xff] %v316
        %v318 = vld [vmem:[%s48 + $0x430] sm:$0xff]
        %319 = vst [vmem:[%s49 + $0x430] sm:$0xff] %v318
        %v320 = vld [vmem:[%s48 + $0x438] sm:$0xff]
        %321 = vst [vmem:[%s49 + $0x438] sm:$0xff] %v320
        %v322 = vld [vmem:[%s48 + $0x440] sm:$0xff]
        %323 = vst [vmem:[%s49 + $0x440] sm:$0xff] %v322
        %v324 = vld [vmem:[%s48 + $0x448] sm:$0xff]
        %325 = vst [vmem:[%s49 + $0x448] sm:$0xff] %v324
        %v326 = vld [vmem:[%s48 + $0x450] sm:$0xff]
        %327 = vst [vmem:[%s49 + $0x450] sm:$0xff] %v326
        %v328 = vld [vmem:[%s48 + $0x458] sm:$0xff]
        %329 = vst [vmem:[%s49 + $0x458] sm:$0xff] %v328
        %v330 = vld [vmem:[%s48 + $0x460] sm:$0xff]
        %331 = vst [vmem:[%s49 + $0x460] sm:$0xff] %v330
        %v332 = vld [vmem:[%s48 + $0x468] sm:$0xff]
        %333 = vst [vmem:[%s49 + $0x468] sm:$0xff] %v332
        %v334 = vld [vmem:[%s48 + $0x470] sm:$0xff]
        %335 = vst [vmem:[%s49 + $0x470] sm:$0xff] %v334
        %v336 = vld [vmem:[%s48 + $0x478] sm:$0xff]
        %337 = vst [vmem:[%s49 + $0x478] sm:$0xff] %v336
        %v338 = vld [vmem:[%s48 + $0x480] sm:$0xff]
        %339 = vst [vmem:[%s49 + $0x480] sm:$0xff] %v338
        %v340 = vld [vmem:[%s48 + $0x488] sm:$0xff]
        %341 = vst [vmem:[%s49 + $0x488] sm:$0xff] %v340
        %v342 = vld [vmem:[%s48 + $0x490] sm:$0xff]
        %343 = vst [vmem:[%s49 + $0x490] sm:$0xff] %v342
        %v344 = vld [vmem:[%s48 + $0x498] sm:$0xff]
        %345 = vst [vmem:[%s49 + $0x498] sm:$0xff] %v344
        %v346 = vld [vmem:[%s48 + $0x4a0] sm:$0xff]
        %347 = vst [vmem:[%s49 + $0x4a0] sm:$0xff] %v346
        %v348 = vld [vmem:[%s48 + $0x4a8] sm:$0xff]
        %349 = vst [vmem:[%s49 + $0x4a8] sm:$0xff] %v348
        %v350 = vld [vmem:[%s48 + $0x4b0] sm:$0xff]
        %351 = vst [vmem:[%s49 + $0x4b0] sm:$0xff] %v350
        %v352 = vld [vmem:[%s48 + $0x4b8] sm:$0xff]
        %353 = vst [vmem:[%s49 + $0x4b8] sm:$0xff] %v352
        %v354 = vld [vmem:[%s48 + $0x4c0] sm:$0xff]
        %355 = vst [vmem:[%s49 + $0x4c0] sm:$0xff] %v354
        %v356 = vld [vmem:[%s48 + $0x4c8] sm:$0xff]
        %357 = vst [vmem:[%s49 + $0x4c8] sm:$0xff] %v356
        %v358 = vld [vmem:[%s48 + $0x4d0] sm:$0xff]
        %359 = vst [vmem:[%s49 + $0x4d0] sm:$0xff] %v358
        %v360 = vld [vmem:[%s48 + $0x4d8] sm:$0xff]
        %361 = vst [vmem:[%s49 + $0x4d8] sm:$0xff] %v360
        %v362 = vld [vmem:[%s48 + $0x4e0] sm:$0xff]
        %363 = vst [vmem:[%s49 + $0x4e0] sm:$0xff] %v362
        %v364 = vld [vmem:[%s48 + $0x4e8] sm:$0xff]
        %365 = vst [vmem:[%s49 + $0x4e8] sm:$0xff] %v364
        %v366 = vld [vmem:[%s48 + $0x4f0] sm:$0xff]
        %367 = vst [vmem:[%s49 + $0x4f0] sm:$0xff] %v366
        %v368 = vld [vmem:[%s48 + $0x4f8] sm:$0xff]
        %369 = vst [vmem:[%s49 + $0x4f8] sm:$0xff] %v368
        %v370 = vld [vmem:[%s48 + $0x500] sm:$0xff]
        %371 = vst [vmem:[%s49 + $0x500] sm:$0xff] %v370
        %v372 = vld [vmem:[%s48 + $0x508] sm:$0xff]
        %373 = vst [vmem:[%s49 + $0x508] sm:$0xff] %v372
        %v374 = vld [vmem:[%s48 + $0x510] sm:$0xff]
        %375 = vst [vmem:[%s49 + $0x510] sm:$0xff] %v374
        %v376 = vld [vmem:[%s48 + $0x518] sm:$0xff]
        %377 = vst [vmem:[%s49 + $0x518] sm:$0xff] %v376
        %v378 = vld [vmem:[%s48 + $0x520] sm:$0xff]
        %379 = vst [vmem:[%s49 + $0x520] sm:$0xff] %v378
        %v380 = vld [vmem:[%s48 + $0x528] sm:$0xff]
        %381 = vst [vmem:[%s49 + $0x528] sm:$0xff] %v380
        %v382 = vld [vmem:[%s48 + $0x530] sm:$0xff]
        %383 = vst [vmem:[%s49 + $0x530] sm:$0xff] %v382
        %v384 = vld [vmem:[%s48 + $0x538] sm:$0xff]
        %385 = vst [vmem:[%s49 + $0x538] sm:$0xff] %v384
        %v386 = vld [vmem:[%s48 + $0x540] sm:$0xff]
        %387 = vst [vmem:[%s49 + $0x540] sm:$0xff] %v386
        %v388 = vld [vmem:[%s48 + $0x548] sm:$0xff]
        %389 = vst [vmem:[%s49 + $0x548] sm:$0xff] %v388
        %v390 = vld [vmem:[%s48 + $0x550] sm:$0xff]
        %391 = vst [vmem:[%s49 + $0x550] sm:$0xff] %v390
        %v392 = vld [vmem:[%s48 + $0x558] sm:$0xff]
        %393 = vst [vmem:[%s49 + $0x558] sm:$0xff] %v392
        %v394 = vld [vmem:[%s48 + $0x560] sm:$0xff]
        %395 = vst [vmem:[%s49 + $0x560] sm:$0xff] %v394
        %v396 = vld [vmem:[%s48 + $0x568] sm:$0xff]
        %397 = vst [vmem:[%s49 + $0x568] sm:$0xff] %v396
        %v398 = vld [vmem:[%s48 + $0x570] sm:$0xff]
        %399 = vst [vmem:[%s49 + $0x570] sm:$0xff] %v398
        %v400 = vld [vmem:[%s48 + $0x578] sm:$0xff]
        %401 = vst [vmem:[%s49 + $0x578] sm:$0xff] %v400
        %v402 = vld [vmem:[%s48 + $0x580] sm:$0xff]
        %403 = vst [vmem:[%s49 + $0x580] sm:$0xff] %v402
        %v404 = vld [vmem:[%s48 + $0x588] sm:$0xff]
        %405 = vst [vmem:[%s49 + $0x588] sm:$0xff] %v404
        %v406 = vld [vmem:[%s48 + $0x590] sm:$0xff]
        %407 = vst [vmem:[%s49 + $0x590] sm:$0xff] %v406
        %v408 = vld [vmem:[%s48 + $0x598] sm:$0xff]
        %409 = vst [vmem:[%s49 + $0x598] sm:$0xff] %v408
        %v410 = vld [vmem:[%s48 + $0x5a0] sm:$0xff]
        %411 = vst [vmem:[%s49 + $0x5a0] sm:$0xff] %v410
        %v412 = vld [vmem:[%s48 + $0x5a8] sm:$0xff]
        %413 = vst [vmem:[%s49 + $0x5a8] sm:$0xff] %v412
        %v414 = vld [vmem:[%s48 + $0x5b0] sm:$0xff]
        %415 = vst [vmem:[%s49 + $0x5b0] sm:$0xff] %v414
        %v416 = vld [vmem:[%s48 + $0x5b8] sm:$0xff]
        %417 = vst [vmem:[%s49 + $0x5b8] sm:$0xff] %v416
        %v418 = vld [vmem:[%s48 + $0x5c0] sm:$0xff]
        %419 = vst [vmem:[%s49 + $0x5c0] sm:$0xff] %v418
        %v420 = vld [vmem:[%s48 + $0x5c8] sm:$0xff]
        %421 = vst [vmem:[%s49 + $0x5c8] sm:$0xff] %v420
        %v422 = vld [vmem:[%s48 + $0x5d0] sm:$0xff]
        %423 = vst [vmem:[%s49 + $0x5d0] sm:$0xff] %v422
        %v424 = vld [vmem:[%s48 + $0x5d8] sm:$0xff]
        %425 = vst [vmem:[%s49 + $0x5d8] sm:$0xff] %v424
        %v426 = vld [vmem:[%s48 + $0x5e0] sm:$0xff]
        %427 = vst [vmem:[%s49 + $0x5e0] sm:$0xff] %v426
        %v428 = vld [vmem:[%s48 + $0x5e8] sm:$0xff]
        %429 = vst [vmem:[%s49 + $0x5e8] sm:$0xff] %v428
        %v430 = vld [vmem:[%s48 + $0x5f0] sm:$0xff]
        %431 = vst [vmem:[%s49 + $0x5f0] sm:$0xff] %v430
        %v432 = vld [vmem:[%s48 + $0x5f8] sm:$0xff]
        %433 = vst [vmem:[%s49 + $0x5f8] sm:$0xff] %v432
        %v434 = vld [vmem:[%s48 + $0x600] sm:$0xff]
        %435 = vst [vmem:[%s49 + $0x600] sm:$0xff] %v434
        %v436 = vld [vmem:[%s48 + $0x608] sm:$0xff]
        %437 = vst [vmem:[%s49 + $0x608] sm:$0xff] %v436
        %v438 = vld [vmem:[%s48 + $0x610] sm:$0xff]
        %439 = vst [vmem:[%s49 + $0x610] sm:$0xff] %v438
        %v440 = vld [vmem:[%s48 + $0x618] sm:$0xff]
        %441 = vst [vmem:[%s49 + $0x618] sm:$0xff] %v440
        %v442 = vld [vmem:[%s48 + $0x620] sm:$0xff]
        %443 = vst [vmem:[%s49 + $0x620] sm:$0xff] %v442
        %v444 = vld [vmem:[%s48 + $0x628] sm:$0xff]
        %445 = vst [vmem:[%s49 + $0x628] sm:$0xff] %v444
        %v446 = vld [vmem:[%s48 + $0x630] sm:$0xff]
        %447 = vst [vmem:[%s49 + $0x630] sm:$0xff] %v446
        %v448 = vld [vmem:[%s48 + $0x638] sm:$0xff]
        %449 = vst [vmem:[%s49 + $0x638] sm:$0xff] %v448
        %v450 = vld [vmem:[%s48 + $0x640] sm:$0xff]
        %451 = vst [vmem:[%s49 + $0x640] sm:$0xff] %v450
        %v452 = vld [vmem:[%s48 + $0x648] sm:$0xff]
        %453 = vst [vmem:[%s49 + $0x648] sm:$0xff] %v452
        %v454 = vld [vmem:[%s48 + $0x650] sm:$0xff]
        %455 = vst [vmem:[%s49 + $0x650] sm:$0xff] %v454
        %v456 = vld [vmem:[%s48 + $0x658] sm:$0xff]
        %457 = vst [vmem:[%s49 + $0x658] sm:$0xff] %v456
        %v458 = vld [vmem:[%s48 + $0x660] sm:$0xff]
        %459 = vst [vmem:[%s49 + $0x660] sm:$0xff] %v458
        %v460 = vld [vmem:[%s48 + $0x668] sm:$0xff]
        %461 = vst [vmem:[%s49 + $0x668] sm:$0xff] %v460
        %v462 = vld [vmem:[%s48 + $0x670] sm:$0xff]
        %463 = vst [vmem:[%s49 + $0x670] sm:$0xff] %v462
        %v464 = vld [vmem:[%s48 + $0x678] sm:$0xff]
        %465 = vst [vmem:[%s49 + $0x678] sm:$0xff] %v464
        %v466 = vld [vmem:[%s48 + $0x680] sm:$0xff]
        %467 = vst [vmem:[%s49 + $0x680] sm:$0xff] %v466
        %v468 = vld [vmem:[%s48 + $0x688] sm:$0xff]
        %469 = vst [vmem:[%s49 + $0x688] sm:$0xff] %v468
        %v470 = vld [vmem:[%s48 + $0x690] sm:$0xff]
        %471 = vst [vmem:[%s49 + $0x690] sm:$0xff] %v470
        %v472 = vld [vmem:[%s48 + $0x698] sm:$0xff]
        %473 = vst [vmem:[%s49 + $0x698] sm:$0xff] %v472
        %v474 = vld [vmem:[%s48 + $0x6a0] sm:$0xff]
        %475 = vst [vmem:[%s49 + $0x6a0] sm:$0xff] %v474
        %v476 = vld [vmem:[%s48 + $0x6a8] sm:$0xff]
        %477 = vst [vmem:[%s49 + $0x6a8] sm:$0xff] %v476
        %v478 = vld [vmem:[%s48 + $0x6b0] sm:$0xff]
        %479 = vst [vmem:[%s49 + $0x6b0] sm:$0xff] %v478
        %v480 = vld [vmem:[%s48 + $0x6b8] sm:$0xff]
        %481 = vst [vmem:[%s49 + $0x6b8] sm:$0xff] %v480
        %v482 = vld [vmem:[%s48 + $0x6c0] sm:$0xff]
        %483 = vst [vmem:[%s49 + $0x6c0] sm:$0xff] %v482
        %v484 = vld [vmem:[%s48 + $0x6c8] sm:$0xff]
        %485 = vst [vmem:[%s49 + $0x6c8] sm:$0xff] %v484
        %v486 = vld [vmem:[%s48 + $0x6d0] sm:$0xff]
        %487 = vst [vmem:[%s49 + $0x6d0] sm:$0xff] %v486
        %v488 = vld [vmem:[%s48 + $0x6d8] sm:$0xff]
        %489 = vst [vmem:[%s49 + $0x6d8] sm:$0xff] %v488
        %v490 = vld [vmem:[%s48 + $0x6e0] sm:$0xff]
        %491 = vst [vmem:[%s49 + $0x6e0] sm:$0xff] %v490
        %v492 = vld [vmem:[%s48 + $0x6e8] sm:$0xff]
        %493 = vst [vmem:[%s49 + $0x6e8] sm:$0xff] %v492
        %v494 = vld [vmem:[%s48 + $0x6f0] sm:$0xff]
        %495 = vst [vmem:[%s49 + $0x6f0] sm:$0xff] %v494
        %v496 = vld [vmem:[%s48 + $0x6f8] sm:$0xff]
        %497 = vst [vmem:[%s49 + $0x6f8] sm:$0xff] %v496
        %v498 = vld [vmem:[%s48 + $0x700] sm:$0xff]
        %499 = vst [vmem:[%s49 + $0x700] sm:$0xff] %v498
        %v500 = vld [vmem:[%s48 + $0x708] sm:$0xff]
        %501 = vst [vmem:[%s49 + $0x708] sm:$0xff] %v500
        %v502 = vld [vmem:[%s48 + $0x710] sm:$0xff]
        %503 = vst [vmem:[%s49 + $0x710] sm:$0xff] %v502
        %v504 = vld [vmem:[%s48 + $0x718] sm:$0xff]
        %505 = vst [vmem:[%s49 + $0x718] sm:$0xff] %v504
        %v506 = vld [vmem:[%s48 + $0x720] sm:$0xff]
        %507 = vst [vmem:[%s49 + $0x720] sm:$0xff] %v506
        %v508 = vld [vmem:[%s48 + $0x728] sm:$0xff]
        %509 = vst [vmem:[%s49 + $0x728] sm:$0xff] %v508
        %v510 = vld [vmem:[%s48 + $0x730] sm:$0xff]
        %511 = vst [vmem:[%s49 + $0x730] sm:$0xff] %v510
        %v512 = vld [vmem:[%s48 + $0x738] sm:$0xff]
        %513 = vst [vmem:[%s49 + $0x738] sm:$0xff] %v512
        %v514 = vld [vmem:[%s48 + $0x740] sm:$0xff]
        %515 = vst [vmem:[%s49 + $0x740] sm:$0xff] %v514
        %v516 = vld [vmem:[%s48 + $0x748] sm:$0xff]
        %517 = vst [vmem:[%s49 + $0x748] sm:$0xff] %v516
        %v518 = vld [vmem:[%s48 + $0x750] sm:$0xff]
        %519 = vst [vmem:[%s49 + $0x750] sm:$0xff] %v518
        %v520 = vld [vmem:[%s48 + $0x758] sm:$0xff]
        %521 = vst [vmem:[%s49 + $0x758] sm:$0xff] %v520
        %v522 = vld [vmem:[%s48 + $0x760] sm:$0xff]
        %523 = vst [vmem:[%s49 + $0x760] sm:$0xff] %v522
        %v524 = vld [vmem:[%s48 + $0x768] sm:$0xff]
        %525 = vst [vmem:[%s49 + $0x768] sm:$0xff] %v524
        %v526 = vld [vmem:[%s48 + $0x770] sm:$0xff]
        %527 = vst [vmem:[%s49 + $0x770] sm:$0xff] %v526
        %v528 = vld [vmem:[%s48 + $0x778] sm:$0xff]
        %529 = vst [vmem:[%s49 + $0x778] sm:$0xff] %v528
        %v530 = vld [vmem:[%s48 + $0x780] sm:$0xff]
        %531 = vst [vmem:[%s49 + $0x780] sm:$0xff] %v530
        %v532 = vld [vmem:[%s48 + $0x788] sm:$0xff]
        %533 = vst [vmem:[%s49 + $0x788] sm:$0xff] %v532
        %v534 = vld [vmem:[%s48 + $0x790] sm:$0xff]
        %535 = vst [vmem:[%s49 + $0x790] sm:$0xff] %v534
        %v536 = vld [vmem:[%s48 + $0x798] sm:$0xff]
        %537 = vst [vmem:[%s49 + $0x798] sm:$0xff] %v536
        %v538 = vld [vmem:[%s48 + $0x7a0] sm:$0xff]
        %539 = vst [vmem:[%s49 + $0x7a0] sm:$0xff] %v538
        %v540 = vld [vmem:[%s48 + $0x7a8] sm:$0xff]
        %541 = vst [vmem:[%s49 + $0x7a8] sm:$0xff] %v540
        %v542 = vld [vmem:[%s48 + $0x7b0] sm:$0xff]
        %543 = vst [vmem:[%s49 + $0x7b0] sm:$0xff] %v542
        %v544 = vld [vmem:[%s48 + $0x7b8] sm:$0xff]
        %545 = vst [vmem:[%s49 + $0x7b8] sm:$0xff] %v544
        %v546 = vld [vmem:[%s48 + $0x7c0] sm:$0xff]
        %547 = vst [vmem:[%s49 + $0x7c0] sm:$0xff] %v546
        %v548 = vld [vmem:[%s48 + $0x7c8] sm:$0xff]
        %549 = vst [vmem:[%s49 + $0x7c8] sm:$0xff] %v548
        %v550 = vld [vmem:[%s48 + $0x7d0] sm:$0xff]
        %551 = vst [vmem:[%s49 + $0x7d0] sm:$0xff] %v550
        %v552 = vld [vmem:[%s48 + $0x7d8] sm:$0xff]
        %553 = vst [vmem:[%s49 + $0x7d8] sm:$0xff] %v552
        %v554 = vld [vmem:[%s48 + $0x7e0] sm:$0xff]
        %555 = vst [vmem:[%s49 + $0x7e0] sm:$0xff] %v554
        %v556 = vld [vmem:[%s48 + $0x7e8] sm:$0xff]
        %557 = vst [vmem:[%s49 + $0x7e8] sm:$0xff] %v556
        %v558 = vld [vmem:[%s48 + $0x7f0] sm:$0xff]
        %559 = vst [vmem:[%s49 + $0x7f0] sm:$0xff] %v558
        %v560 = vld [vmem:[%s48 + $0x7f8] sm:$0xff]
        %561 = vst [vmem:[%s49 + $0x7f8] sm:$0xff] %v560
        %v562 = vld [vmem:[%s48 + $0x800] sm:$0xff]
        %563 = vst [vmem:[%s49 + $0x800] sm:$0xff] %v562
        %v564 = vld [vmem:[%s48 + $0x808] sm:$0xff]
        %565 = vst [vmem:[%s49 + $0x808] sm:$0xff] %v564
        %v566 = vld [vmem:[%s48 + $0x810] sm:$0xff]
        %567 = vst [vmem:[%s49 + $0x810] sm:$0xff] %v566
        %v568 = vld [vmem:[%s48 + $0x818] sm:$0xff]
        %569 = vst [vmem:[%s49 + $0x818] sm:$0xff] %v568
        %v570 = vld [vmem:[%s48 + $0x820] sm:$0xff]
        %571 = vst [vmem:[%s49 + $0x820] sm:$0xff] %v570
        %v572 = vld [vmem:[%s48 + $0x828] sm:$0xff]
        %573 = vst [vmem:[%s49 + $0x828] sm:$0xff] %v572
        %v574 = vld [vmem:[%s48 + $0x830] sm:$0xff]
        %575 = vst [vmem:[%s49 + $0x830] sm:$0xff] %v574
        %v576 = vld [vmem:[%s48 + $0x838] sm:$0xff]
        %577 = vst [vmem:[%s49 + $0x838] sm:$0xff] %v576
        %v578 = vld [vmem:[%s48 + $0x840] sm:$0xff]
        %579 = vst [vmem:[%s49 + $0x840] sm:$0xff] %v578
        %v580 = vld [vmem:[%s48 + $0x848] sm:$0xff]
        %581 = vst [vmem:[%s49 + $0x848] sm:$0xff] %v580
        %v582 = vld [vmem:[%s48 + $0x850] sm:$0xff]
        %583 = vst [vmem:[%s49 + $0x850] sm:$0xff] %v582
        %v584 = vld [vmem:[%s48 + $0x858] sm:$0xff]
        %585 = vst [vmem:[%s49 + $0x858] sm:$0xff] %v584
        %v586 = vld [vmem:[%s48 + $0x860] sm:$0xff]
        %587 = vst [vmem:[%s49 + $0x860] sm:$0xff] %v586
        %v588 = vld [vmem:[%s48 + $0x868] sm:$0xff]
        %589 = vst [vmem:[%s49 + $0x868] sm:$0xff] %v588
        %v590 = vld [vmem:[%s48 + $0x870] sm:$0xff]
        %591 = vst [vmem:[%s49 + $0x870] sm:$0xff] %v590
        %v592 = vld [vmem:[%s48 + $0x878] sm:$0xff]
        %593 = vst [vmem:[%s49 + $0x878] sm:$0xff] %v592
        %v594 = vld [vmem:[%s48 + $0x880] sm:$0xff]
        %595 = vst [vmem:[%s49 + $0x880] sm:$0xff] %v594
        %v596 = vld [vmem:[%s48 + $0x888] sm:$0xff]
        %597 = vst [vmem:[%s49 + $0x888] sm:$0xff] %v596
        %v598 = vld [vmem:[%s48 + $0x890] sm:$0xff]
        %599 = vst [vmem:[%s49 + $0x890] sm:$0xff] %v598
        %v600 = vld [vmem:[%s48 + $0x898] sm:$0xff]
        %601 = vst [vmem:[%s49 + $0x898] sm:$0xff] %v600
        %v602 = vld [vmem:[%s48 + $0x8a0] sm:$0xff]
        %603 = vst [vmem:[%s49 + $0x8a0] sm:$0xff] %v602
        %v604 = vld [vmem:[%s48 + $0x8a8] sm:$0xff]
        %605 = vst [vmem:[%s49 + $0x8a8] sm:$0xff] %v604
        %v606 = vld [vmem:[%s48 + $0x8b0] sm:$0xff]
        %607 = vst [vmem:[%s49 + $0x8b0] sm:$0xff] %v606
        %v608 = vld [vmem:[%s48 + $0x8b8] sm:$0xff]
        %609 = vst [vmem:[%s49 + $0x8b8] sm:$0xff] %v608
        %v610 = vld [vmem:[%s48 + $0x8c0] sm:$0xff]
        %611 = vst [vmem:[%s49 + $0x8c0] sm:$0xff] %v610
        %v612 = vld [vmem:[%s48 + $0x8c8] sm:$0xff]
        %613 = vst [vmem:[%s49 + $0x8c8] sm:$0xff] %v612
        %v614 = vld [vmem:[%s48 + $0x8d0] sm:$0xff]
        %615 = vst [vmem:[%s49 + $0x8d0] sm:$0xff] %v614
        %v616 = vld [vmem:[%s48 + $0x8d8] sm:$0xff]
        %617 = vst [vmem:[%s49 + $0x8d8] sm:$0xff] %v616
        %v618 = vld [vmem:[%s48 + $0x8e0] sm:$0xff]
        %619 = vst [vmem:[%s49 + $0x8e0] sm:$0xff] %v618
        %v620 = vld [vmem:[%s48 + $0x8e8] sm:$0xff]
        %621 = vst [vmem:[%s49 + $0x8e8] sm:$0xff] %v620
        %v622 = vld [vmem:[%s48 + $0x8f0] sm:$0xff]
        %623 = vst [vmem:[%s49 + $0x8f0] sm:$0xff] %v622
        %v624 = vld [vmem:[%s48 + $0x8f8] sm:$0xff]
        %625 = vst [vmem:[%s49 + $0x8f8] sm:$0xff] %v624
        %v626 = vld [vmem:[%s48 + $0x900] sm:$0xff]
        %627 = vst [vmem:[%s49 + $0x900] sm:$0xff] %v626
        %v628 = vld [vmem:[%s48 + $0x908] sm:$0xff]
        %629 = vst [vmem:[%s49 + $0x908] sm:$0xff] %v628
        %v630 = vld [vmem:[%s48 + $0x910] sm:$0xff]
        %631 = vst [vmem:[%s49 + $0x910] sm:$0xff] %v630
        %v632 = vld [vmem:[%s48 + $0x918] sm:$0xff]
        %633 = vst [vmem:[%s49 + $0x918] sm:$0xff] %v632
        %v634 = vld [vmem:[%s48 + $0x920] sm:$0xff]
        %635 = vst [vmem:[%s49 + $0x920] sm:$0xff] %v634
        %v636 = vld [vmem:[%s48 + $0x928] sm:$0xff]
        %637 = vst [vmem:[%s49 + $0x928] sm:$0xff] %v636
        %v638 = vld [vmem:[%s48 + $0x930] sm:$0xff]
        %639 = vst [vmem:[%s49 + $0x930] sm:$0xff] %v638
        %v640 = vld [vmem:[%s48 + $0x938] sm:$0xff]
        %641 = vst [vmem:[%s49 + $0x938] sm:$0xff] %v640
        %v642 = vld [vmem:[%s48 + $0x940] sm:$0xff]
        %643 = vst [vmem:[%s49 + $0x940] sm:$0xff] %v642
        %v644 = vld [vmem:[%s48 + $0x948] sm:$0xff]
        %645 = vst [vmem:[%s49 + $0x948] sm:$0xff] %v644
        %v646 = vld [vmem:[%s48 + $0x950] sm:$0xff]
        %647 = vst [vmem:[%s49 + $0x950] sm:$0xff] %v646
        %v648 = vld [vmem:[%s48 + $0x958] sm:$0xff]
        %649 = vst [vmem:[%s49 + $0x958] sm:$0xff] %v648
        %v650 = vld [vmem:[%s48 + $0x960] sm:$0xff]
        %651 = vst [vmem:[%s49 + $0x960] sm:$0xff] %v650
        %v652 = vld [vmem:[%s48 + $0x968] sm:$0xff]
        %653 = vst [vmem:[%s49 + $0x968] sm:$0xff] %v652
        %v654 = vld [vmem:[%s48 + $0x970] sm:$0xff]
        %655 = vst [vmem:[%s49 + $0x970] sm:$0xff] %v654
        %v656 = vld [vmem:[%s48 + $0x978] sm:$0xff]
        %657 = vst [vmem:[%s49 + $0x978] sm:$0xff] %v656
        %v658 = vld [vmem:[%s48 + $0x980] sm:$0xff]
        %659 = vst [vmem:[%s49 + $0x980] sm:$0xff] %v658
        %v660 = vld [vmem:[%s48 + $0x988] sm:$0xff]
        %661 = vst [vmem:[%s49 + $0x988] sm:$0xff] %v660
        %v662 = vld [vmem:[%s48 + $0x990] sm:$0xff]
        %663 = vst [vmem:[%s49 + $0x990] sm:$0xff] %v662
        %v664 = vld [vmem:[%s48 + $0x998] sm:$0xff]
        %665 = vst [vmem:[%s49 + $0x998] sm:$0xff] %v664
        %v666 = vld [vmem:[%s48 + $0x9a0] sm:$0xff]
        %667 = vst [vmem:[%s49 + $0x9a0] sm:$0xff] %v666
        %v668 = vld [vmem:[%s48 + $0x9a8] sm:$0xff]
        %669 = vst [vmem:[%s49 + $0x9a8] sm:$0xff] %v668
        %v670 = vld [vmem:[%s48 + $0x9b0] sm:$0xff]
        %671 = vst [vmem:[%s49 + $0x9b0] sm:$0xff] %v670
        %v672 = vld [vmem:[%s48 + $0x9b8] sm:$0xff]
        %673 = vst [vmem:[%s49 + $0x9b8] sm:$0xff] %v672
        %v674 = vld [vmem:[%s48 + $0x9c0] sm:$0xff]
        %675 = vst [vmem:[%s49 + $0x9c0] sm:$0xff] %v674
        %v676 = vld [vmem:[%s48 + $0x9c8] sm:$0xff]
        %677 = vst [vmem:[%s49 + $0x9c8] sm:$0xff] %v676
        %v678 = vld [vmem:[%s48 + $0x9d0] sm:$0xff]
        %679 = vst [vmem:[%s49 + $0x9d0] sm:$0xff] %v678
        %v680 = vld [vmem:[%s48 + $0x9d8] sm:$0xff]
        %681 = vst [vmem:[%s49 + $0x9d8] sm:$0xff] %v680
        %v682 = vld [vmem:[%s48 + $0x9e0] sm:$0xff]
        %683 = vst [vmem:[%s49 + $0x9e0] sm:$0xff] %v682
        %v684 = vld [vmem:[%s48 + $0x9e8] sm:$0xff]
        %685 = vst [vmem:[%s49 + $0x9e8] sm:$0xff] %v684
        %v686 = vld [vmem:[%s48 + $0x9f0] sm:$0xff]
        %687 = vst [vmem:[%s49 + $0x9f0] sm:$0xff] %v686
        %v688 = vld [vmem:[%s48 + $0x9f8] sm:$0xff]
        %689 = vst [vmem:[%s49 + $0x9f8] sm:$0xff] %v688
        %v690 = vld [vmem:[%s48 + $0xa00] sm:$0xff]
        %691 = vst [vmem:[%s49 + $0xa00] sm:$0xff] %v690
        %v692 = vld [vmem:[%s48 + $0xa08] sm:$0xff]
        %693 = vst [vmem:[%s49 + $0xa08] sm:$0xff] %v692
        %v694 = vld [vmem:[%s48 + $0xa10] sm:$0xff]
        %695 = vst [vmem:[%s49 + $0xa10] sm:$0xff] %v694
        %v696 = vld [vmem:[%s48 + $0xa18] sm:$0xff]
        %697 = vst [vmem:[%s49 + $0xa18] sm:$0xff] %v696
        %v698 = vld [vmem:[%s48 + $0xa20] sm:$0xff]
        %699 = vst [vmem:[%s49 + $0xa20] sm:$0xff] %v698
        %v700 = vld [vmem:[%s48 + $0xa28] sm:$0xff]
        %701 = vst [vmem:[%s49 + $0xa28] sm:$0xff] %v700
        %v702 = vld [vmem:[%s48 + $0xa30] sm:$0xff]
        %703 = vst [vmem:[%s49 + $0xa30] sm:$0xff] %v702
        %v704 = vld [vmem:[%s48 + $0xa38] sm:$0xff]
        %705 = vst [vmem:[%s49 + $0xa38] sm:$0xff] %v704
        %v706 = vld [vmem:[%s48 + $0xa40] sm:$0xff]
        %707 = vst [vmem:[%s49 + $0xa40] sm:$0xff] %v706
        %v708 = vld [vmem:[%s48 + $0xa48] sm:$0xff]
        %709 = vst [vmem:[%s49 + $0xa48] sm:$0xff] %v708
        %v710 = vld [vmem:[%s48 + $0xa50] sm:$0xff]
        %711 = vst [vmem:[%s49 + $0xa50] sm:$0xff] %v710
        %v712 = vld [vmem:[%s48 + $0xa58] sm:$0xff]
        %713 = vst [vmem:[%s49 + $0xa58] sm:$0xff] %v712
        %v714 = vld [vmem:[%s48 + $0xa60] sm:$0xff]
        %715 = vst [vmem:[%s49 + $0xa60] sm:$0xff] %v714
        %v716 = vld [vmem:[%s48 + $0xa68] sm:$0xff]
        %717 = vst [vmem:[%s49 + $0xa68] sm:$0xff] %v716
        %v718 = vld [vmem:[%s48 + $0xa70] sm:$0xff]
        %719 = vst [vmem:[%s49 + $0xa70] sm:$0xff] %v718
        %v720 = vld [vmem:[%s48 + $0xa78] sm:$0xff]
        %721 = vst [vmem:[%s49 + $0xa78] sm:$0xff] %v720
        %v722 = vld [vmem:[%s48 + $0xa80] sm:$0xff]
        %723 = vst [vmem:[%s49 + $0xa80] sm:$0xff] %v722
        %v724 = vld [vmem:[%s48 + $0xa88] sm:$0xff]
        %725 = vst [vmem:[%s49 + $0xa88] sm:$0xff] %v724
        %v726 = vld [vmem:[%s48 + $0xa90] sm:$0xff]
        %727 = vst [vmem:[%s49 + $0xa90] sm:$0xff] %v726
        %v728 = vld [vmem:[%s48 + $0xa98] sm:$0xff]
        %729 = vst [vmem:[%s49 + $0xa98] sm:$0xff] %v728
        %v730 = vld [vmem:[%s48 + $0xaa0] sm:$0xff]
        %731 = vst [vmem:[%s49 + $0xaa0] sm:$0xff] %v730
        %v732 = vld [vmem:[%s48 + $0xaa8] sm:$0xff]
        %733 = vst [vmem:[%s49 + $0xaa8] sm:$0xff] %v732
        %v734 = vld [vmem:[%s48 + $0xab0] sm:$0xff]
        %735 = vst [vmem:[%s49 + $0xab0] sm:$0xff] %v734
        %v736 = vld [vmem:[%s48 + $0xab8] sm:$0xff]
        %737 = vst [vmem:[%s49 + $0xab8] sm:$0xff] %v736
        %v738 = vld [vmem:[%s48 + $0xac0] sm:$0xff]
        %739 = vst [vmem:[%s49 + $0xac0] sm:$0xff] %v738
        %v740 = vld [vmem:[%s48 + $0xac8] sm:$0xff]
        %741 = vst [vmem:[%s49 + $0xac8] sm:$0xff] %v740
        %v742 = vld [vmem:[%s48 + $0xad0] sm:$0xff]
        %743 = vst [vmem:[%s49 + $0xad0] sm:$0xff] %v742
        %v744 = vld [vmem:[%s48 + $0xad8] sm:$0xff]
        %745 = vst [vmem:[%s49 + $0xad8] sm:$0xff] %v744
        %v746 = vld [vmem:[%s48 + $0xae0] sm:$0xff]
        %747 = vst [vmem:[%s49 + $0xae0] sm:$0xff] %v746
        %v748 = vld [vmem:[%s48 + $0xae8] sm:$0xff]
        %749 = vst [vmem:[%s49 + $0xae8] sm:$0xff] %v748
        %v750 = vld [vmem:[%s48 + $0xaf0] sm:$0xff]
        %751 = vst [vmem:[%s49 + $0xaf0] sm:$0xff] %v750
        %v752 = vld [vmem:[%s48 + $0xaf8] sm:$0xff]
        %753 = vst [vmem:[%s49 + $0xaf8] sm:$0xff] %v752
        %v754 = vld [vmem:[%s48 + $0xb00] sm:$0xff]
        %755 = vst [vmem:[%s49 + $0xb00] sm:$0xff] %v754
        %v756 = vld [vmem:[%s48 + $0xb08] sm:$0xff]
        %757 = vst [vmem:[%s49 + $0xb08] sm:$0xff] %v756
        %v758 = vld [vmem:[%s48 + $0xb10] sm:$0xff]
        %759 = vst [vmem:[%s49 + $0xb10] sm:$0xff] %v758
        %v760 = vld [vmem:[%s48 + $0xb18] sm:$0xff]
        %761 = vst [vmem:[%s49 + $0xb18] sm:$0xff] %v760
        %v762 = vld [vmem:[%s48 + $0xb20] sm:$0xff]
        %763 = vst [vmem:[%s49 + $0xb20] sm:$0xff] %v762
        %v764 = vld [vmem:[%s48 + $0xb28] sm:$0xff]
        %765 = vst [vmem:[%s49 + $0xb28] sm:$0xff] %v764
        %v766 = vld [vmem:[%s48 + $0xb30] sm:$0xff]
        %767 = vst [vmem:[%s49 + $0xb30] sm:$0xff] %v766
        %v768 = vld [vmem:[%s48 + $0xb38] sm:$0xff]
        %769 = vst [vmem:[%s49 + $0xb38] sm:$0xff] %v768
        %v770 = vld [vmem:[%s48 + $0xb40] sm:$0xff]
        %771 = vst [vmem:[%s49 + $0xb40] sm:$0xff] %v770
        %v772 = vld [vmem:[%s48 + $0xb48] sm:$0xff]
        %773 = vst [vmem:[%s49 + $0xb48] sm:$0xff] %v772
        %v774 = vld [vmem:[%s48 + $0xb50] sm:$0xff]
        %775 = vst [vmem:[%s49 + $0xb50] sm:$0xff] %v774
        %v776 = vld [vmem:[%s48 + $0xb58] sm:$0xff]
        %777 = vst [vmem:[%s49 + $0xb58] sm:$0xff] %v776
        %v778 = vld [vmem:[%s48 + $0xb60] sm:$0xff]
        %779 = vst [vmem:[%s49 + $0xb60] sm:$0xff] %v778
        %v780 = vld [vmem:[%s48 + $0xb68] sm:$0xff]
        %781 = vst [vmem:[%s49 + $0xb68] sm:$0xff] %v780
        %v782 = vld [vmem:[%s48 + $0xb70] sm:$0xff]
        %783 = vst [vmem:[%s49 + $0xb70] sm:$0xff] %v782
        %v784 = vld [vmem:[%s48 + $0xb78] sm:$0xff]
        %785 = vst [vmem:[%s49 + $0xb78] sm:$0xff] %v784
        %v786 = vld [vmem:[%s48 + $0xb80] sm:$0xff]
        %787 = vst [vmem:[%s49 + $0xb80] sm:$0xff] %v786
        %v788 = vld [vmem:[%s48 + $0xb88] sm:$0xff]
        %789 = vst [vmem:[%s49 + $0xb88] sm:$0xff] %v788
        %v790 = vld [vmem:[%s48 + $0xb90] sm:$0xff]
        %791 = vst [vmem:[%s49 + $0xb90] sm:$0xff] %v790
        %v792 = vld [vmem:[%s48 + $0xb98] sm:$0xff]
        %793 = vst [vmem:[%s49 + $0xb98] sm:$0xff] %v792
        %v794 = vld [vmem:[%s48 + $0xba0] sm:$0xff]
        %795 = vst [vmem:[%s49 + $0xba0] sm:$0xff] %v794
        %v796 = vld [vmem:[%s48 + $0xba8] sm:$0xff]
        %797 = vst [vmem:[%s49 + $0xba8] sm:$0xff] %v796
        %v798 = vld [vmem:[%s48 + $0xbb0] sm:$0xff]
        %799 = vst [vmem:[%s49 + $0xbb0] sm:$0xff] %v798
        %v800 = vld [vmem:[%s48 + $0xbb8] sm:$0xff]
        %801 = vst [vmem:[%s49 + $0xbb8] sm:$0xff] %v800
        %v802 = vld [vmem:[%s48 + $0xbc0] sm:$0xff]
        %803 = vst [vmem:[%s49 + $0xbc0] sm:$0xff] %v802
        %v804 = vld [vmem:[%s48 + $0xbc8] sm:$0xff]
        %805 = vst [vmem:[%s49 + $0xbc8] sm:$0xff] %v804
        %v806 = vld [vmem:[%s48 + $0xbd0] sm:$0xff]
        %807 = vst [vmem:[%s49 + $0xbd0] sm:$0xff] %v806
        %v808 = vld [vmem:[%s48 + $0xbd8] sm:$0xff]
        %809 = vst [vmem:[%s49 + $0xbd8] sm:$0xff] %v808
        %v810 = vld [vmem:[%s48 + $0xbe0] sm:$0xff]
        %811 = vst [vmem:[%s49 + $0xbe0] sm:$0xff] %v810
        %v812 = vld [vmem:[%s48 + $0xbe8] sm:$0xff]
        %813 = vst [vmem:[%s49 + $0xbe8] sm:$0xff] %v812
        %v814 = vld [vmem:[%s48 + $0xbf0] sm:$0xff]
        %815 = vst [vmem:[%s49 + $0xbf0] sm:$0xff] %v814
        %v816 = vld [vmem:[%s48 + $0xbf8] sm:$0xff]
        %817 = vst [vmem:[%s49 + $0xbf8] sm:$0xff] %v816
        %v818 = vld [vmem:[%s48 + $0xc00] sm:$0xff]
        %819 = vst [vmem:[%s49 + $0xc00] sm:$0xff] %v818
        %v820 = vld [vmem:[%s48 + $0xc08] sm:$0xff]
        %821 = vst [vmem:[%s49 + $0xc08] sm:$0xff] %v820
        %v822 = vld [vmem:[%s48 + $0xc10] sm:$0xff]
        %823 = vst [vmem:[%s49 + $0xc10] sm:$0xff] %v822
        %v824 = vld [vmem:[%s48 + $0xc18] sm:$0xff]
        %825 = vst [vmem:[%s49 + $0xc18] sm:$0xff] %v824
        %v826 = vld [vmem:[%s48 + $0xc20] sm:$0xff]
        %827 = vst [vmem:[%s49 + $0xc20] sm:$0xff] %v826
        %v828 = vld [vmem:[%s48 + $0xc28] sm:$0xff]
        %829 = vst [vmem:[%s49 + $0xc28] sm:$0xff] %v828
        %v830 = vld [vmem:[%s48 + $0xc30] sm:$0xff]
        %831 = vst [vmem:[%s49 + $0xc30] sm:$0xff] %v830
        %v832 = vld [vmem:[%s48 + $0xc38] sm:$0xff]
        %833 = vst [vmem:[%s49 + $0xc38] sm:$0xff] %v832
        %v834 = vld [vmem:[%s48 + $0xc40] sm:$0xff]
        %835 = vst [vmem:[%s49 + $0xc40] sm:$0xff] %v834
        %v836 = vld [vmem:[%s48 + $0xc48] sm:$0xff]
        %837 = vst [vmem:[%s49 + $0xc48] sm:$0xff] %v836
        %v838 = vld [vmem:[%s48 + $0xc50] sm:$0xff]
        %839 = vst [vmem:[%s49 + $0xc50] sm:$0xff] %v838
        %v840 = vld [vmem:[%s48 + $0xc58] sm:$0xff]
        %841 = vst [vmem:[%s49 + $0xc58] sm:$0xff] %v840
        %v842 = vld [vmem:[%s48 + $0xc60] sm:$0xff]
        %843 = vst [vmem:[%s49 + $0xc60] sm:$0xff] %v842
        %v844 = vld [vmem:[%s48 + $0xc68] sm:$0xff]
        %845 = vst [vmem:[%s49 + $0xc68] sm:$0xff] %v844
        %v846 = vld [vmem:[%s48 + $0xc70] sm:$0xff]
        %847 = vst [vmem:[%s49 + $0xc70] sm:$0xff] %v846
        %v848 = vld [vmem:[%s48 + $0xc78] sm:$0xff]
        %849 = vst [vmem:[%s49 + $0xc78] sm:$0xff] %v848
        %v850 = vld [vmem:[%s48 + $0xc80] sm:$0xff]
        %851 = vst [vmem:[%s49 + $0xc80] sm:$0xff] %v850
        %v852 = vld [vmem:[%s48 + $0xc88] sm:$0xff]
        %853 = vst [vmem:[%s49 + $0xc88] sm:$0xff] %v852
        %v854 = vld [vmem:[%s48 + $0xc90] sm:$0xff]
        %855 = vst [vmem:[%s49 + $0xc90] sm:$0xff] %v854
        %v856 = vld [vmem:[%s48 + $0xc98] sm:$0xff]
        %857 = vst [vmem:[%s49 + $0xc98] sm:$0xff] %v856
        %v858 = vld [vmem:[%s48 + $0xca0] sm:$0xff]
        %859 = vst [vmem:[%s49 + $0xca0] sm:$0xff] %v858
        %v860 = vld [vmem:[%s48 + $0xca8] sm:$0xff]
        %861 = vst [vmem:[%s49 + $0xca8] sm:$0xff] %v860
        %v862 = vld [vmem:[%s48 + $0xcb0] sm:$0xff]
        %863 = vst [vmem:[%s49 + $0xcb0] sm:$0xff] %v862
        %v864 = vld [vmem:[%s48 + $0xcb8] sm:$0xff]
        %865 = vst [vmem:[%s49 + $0xcb8] sm:$0xff] %v864
        %v866 = vld [vmem:[%s48 + $0xcc0] sm:$0xff]
        %867 = vst [vmem:[%s49 + $0xcc0] sm:$0xff] %v866
        %v868 = vld [vmem:[%s48 + $0xcc8] sm:$0xff]
        %869 = vst [vmem:[%s49 + $0xcc8] sm:$0xff] %v868
        %v870 = vld [vmem:[%s48 + $0xcd0] sm:$0xff]
        %871 = vst [vmem:[%s49 + $0xcd0] sm:$0xff] %v870
        %v872 = vld [vmem:[%s48 + $0xcd8] sm:$0xff]
        %873 = vst [vmem:[%s49 + $0xcd8] sm:$0xff] %v872
        %v874 = vld [vmem:[%s48 + $0xce0] sm:$0xff]
        %875 = vst [vmem:[%s49 + $0xce0] sm:$0xff] %v874
        %v876 = vld [vmem:[%s48 + $0xce8] sm:$0xff]
        %877 = vst [vmem:[%s49 + $0xce8] sm:$0xff] %v876
        %v878 = vld [vmem:[%s48 + $0xcf0] sm:$0xff]
        %879 = vst [vmem:[%s49 + $0xcf0] sm:$0xff] %v878
        %v880 = vld [vmem:[%s48 + $0xcf8] sm:$0xff]
        %881 = vst [vmem:[%s49 + $0xcf8] sm:$0xff] %v880
        %v882 = vld [vmem:[%s48 + $0xd00] sm:$0xff]
        %883 = vst [vmem:[%s49 + $0xd00] sm:$0xff] %v882
        %v884 = vld [vmem:[%s48 + $0xd08] sm:$0xff]
        %885 = vst [vmem:[%s49 + $0xd08] sm:$0xff] %v884
        %v886 = vld [vmem:[%s48 + $0xd10] sm:$0xff]
        %887 = vst [vmem:[%s49 + $0xd10] sm:$0xff] %v886
        %v888 = vld [vmem:[%s48 + $0xd18] sm:$0xff]
        %889 = vst [vmem:[%s49 + $0xd18] sm:$0xff] %v888
        %v890 = vld [vmem:[%s48 + $0xd20] sm:$0xff]
        %891 = vst [vmem:[%s49 + $0xd20] sm:$0xff] %v890
        %v892 = vld [vmem:[%s48 + $0xd28] sm:$0xff]
        %893 = vst [vmem:[%s49 + $0xd28] sm:$0xff] %v892
        %v894 = vld [vmem:[%s48 + $0xd30] sm:$0xff]
        %895 = vst [vmem:[%s49 + $0xd30] sm:$0xff] %v894
        %v896 = vld [vmem:[%s48 + $0xd38] sm:$0xff]
        %897 = vst [vmem:[%s49 + $0xd38] sm:$0xff] %v896
        %v898 = vld [vmem:[%s48 + $0xd40] sm:$0xff]
        %899 = vst [vmem:[%s49 + $0xd40] sm:$0xff] %v898
        %v900 = vld [vmem:[%s48 + $0xd48] sm:$0xff]
        %901 = vst [vmem:[%s49 + $0xd48] sm:$0xff] %v900
        %v902 = vld [vmem:[%s48 + $0xd50] sm:$0xff]
        %903 = vst [vmem:[%s49 + $0xd50] sm:$0xff] %v902
        %v904 = vld [vmem:[%s48 + $0xd58] sm:$0xff]
        %905 = vst [vmem:[%s49 + $0xd58] sm:$0xff] %v904
        %v906 = vld [vmem:[%s48 + $0xd60] sm:$0xff]
        %907 = vst [vmem:[%s49 + $0xd60] sm:$0xff] %v906
        %v908 = vld [vmem:[%s48 + $0xd68] sm:$0xff]
        %909 = vst [vmem:[%s49 + $0xd68] sm:$0xff] %v908
        %v910 = vld [vmem:[%s48 + $0xd70] sm:$0xff]
        %911 = vst [vmem:[%s49 + $0xd70] sm:$0xff] %v910
        %v912 = vld [vmem:[%s48 + $0xd78] sm:$0xff]
        %913 = vst [vmem:[%s49 + $0xd78] sm:$0xff] %v912
        %v914 = vld [vmem:[%s48 + $0xd80] sm:$0xff]
        %915 = vst [vmem:[%s49 + $0xd80] sm:$0xff] %v914
        %v916 = vld [vmem:[%s48 + $0xd88] sm:$0xff]
        %917 = vst [vmem:[%s49 + $0xd88] sm:$0xff] %v916
        %v918 = vld [vmem:[%s48 + $0xd90] sm:$0xff]
        %919 = vst [vmem:[%s49 + $0xd90] sm:$0xff] %v918
        %v920 = vld [vmem:[%s48 + $0xd98] sm:$0xff]
        %921 = vst [vmem:[%s49 + $0xd98] sm:$0xff] %v920
        %v922 = vld [vmem:[%s48 + $0xda0] sm:$0xff]
        %923 = vst [vmem:[%s49 + $0xda0] sm:$0xff] %v922
        %v924 = vld [vmem:[%s48 + $0xda8] sm:$0xff]
        %925 = vst [vmem:[%s49 + $0xda8] sm:$0xff] %v924
        %v926 = vld [vmem:[%s48 + $0xdb0] sm:$0xff]
        %927 = vst [vmem:[%s49 + $0xdb0] sm:$0xff] %v926
        %v928 = vld [vmem:[%s48 + $0xdb8] sm:$0xff]
        %929 = vst [vmem:[%s49 + $0xdb8] sm:$0xff] %v928
        %v930 = vld [vmem:[%s48 + $0xdc0] sm:$0xff]
        %931 = vst [vmem:[%s49 + $0xdc0] sm:$0xff] %v930
        %v932 = vld [vmem:[%s48 + $0xdc8] sm:$0xff]
        %933 = vst [vmem:[%s49 + $0xdc8] sm:$0xff] %v932
        %v934 = vld [vmem:[%s48 + $0xdd0] sm:$0xff]
        %935 = vst [vmem:[%s49 + $0xdd0] sm:$0xff] %v934
        %v936 = vld [vmem:[%s48 + $0xdd8] sm:$0xff]
        %937 = vst [vmem:[%s49 + $0xdd8] sm:$0xff] %v936
        %v938 = vld [vmem:[%s48 + $0xde0] sm:$0xff]
        %939 = vst [vmem:[%s49 + $0xde0] sm:$0xff] %v938
        %v940 = vld [vmem:[%s48 + $0xde8] sm:$0xff]
        %941 = vst [vmem:[%s49 + $0xde8] sm:$0xff] %v940
        %v942 = vld [vmem:[%s48 + $0xdf0] sm:$0xff]
        %943 = vst [vmem:[%s49 + $0xdf0] sm:$0xff] %v942
        %v944 = vld [vmem:[%s48 + $0xdf8] sm:$0xff]
        %945 = vst [vmem:[%s49 + $0xdf8] sm:$0xff] %v944
      $region37: #{tpu_custom_call.1} parent=31 // loop_footer
        %s47 = sadd.s32 1, %s43
      $region38: #{tpu_custom_call.1} parent=31 // loop_footer_branch
        %42 = sbr.rel target = $region34
      $region39: #{tpu_custom_call.1} parent=31 // loop_exit
        _
    $region32: #{tpu_custom_call.1} parent=16 // pred_fallthru
      _
    %p946 = pneg %p38
    // Predicated region
    $region40: #{tpu_custom_call.1} parent=16 // pred_check
      _
    $region41: #{tpu_custom_call.1} parent=16 // pred_check_branch
      %948 = sbr.rel (%p38) target = $region43
    $region42: #{tpu_custom_call.1} parent=16 // pred_region
      %s949 = sand.u32 3584, 7
    $region43: #{tpu_custom_call.1} parent=16 // pred_fallthru
      _
  $region17: #{tpu_custom_call.1} parent=0 // pred_fallthru
    _
  // Predicated region
  $region18: #{tpu_custom_call.1} parent=0 // pred_check
    %p22 = pneg %p18
  $region19: #{tpu_custom_call.1} parent=0 // pred_check_branch
    %24 = sbr.rel (%p22) target = $region21
  $region20: #{tpu_custom_call.1} parent=0 // pred_region
    %s25 = sshll.u32 1, 3584
    %s26 = ssub.s32 %s25, 1
    loop: start=0, step=1, limit=1
    $region22: #{tpu_custom_call.1} parent=20 // loop_pre_header
      _
    $region23: #{tpu_custom_call.1} parent=20 // loop_header
      %s28 = sphi 0, %s32
      %p29 = scmp.ge.s32.totalorder %s28, 1
      %s33 = sphi %s3, %s3
      %s34 = sphi [#allocation2], [#allocation2]
    $region24: #{tpu_custom_call.1} parent=20 // loop_header_branch
      %31 = sbr.rel (%p29) target = $region28
    $region25: #{tpu_custom_call.1} parent=20 // loop_body
      %v35 = vld [vmem:[%s33] sm:%s26]
      %36 = vst [vmem:[%s34] sm:%s26] %v35
    $region26: #{tpu_custom_call.1} parent=20 // loop_footer
      %s32 = sadd.s32 1, %s28
    $region27: #{tpu_custom_call.1} parent=20 // loop_footer_branch
      %27 = sbr.rel target = $region23
    $region28: #{tpu_custom_call.1} parent=20 // loop_exit
      _
  $region21: #{tpu_custom_call.1} parent=0 // pred_fallthru
    _
  // Predicated region
  $region44: #{tpu_custom_call.1} parent=0 // pred_check
    _
  $region45: #{tpu_custom_call.1} parent=0 // pred_check_branch
    %952 = sbr.rel (0) target = $region47
  $region46: #{tpu_custom_call.1} parent=0 // pred_region
    %953 = vsyncadd [#allocation4], 57344
  $region47: #{tpu_custom_call.1} parent=0 // pred_fallthru
    _
  %s954 = scalar_lea.sflag [#allocation4], 1
  %p956 = scmp.lt.u32.totalorder 512, 8
  %p957 = pneg %p956
  // Predicated region
  $region48: #{tpu_custom_call.1} parent=0 // pred_check
    _
  $region49: #{tpu_custom_call.1} parent=0 // pred_check_branch
    %959 = sbr.rel (%p956) target = $region51
  $region50: #{tpu_custom_call.1} parent=0 // pred_region
    %s975 = sand.u32 512, 7
    %p976 = scmp.eq.s32.totalorder %s975, 0
    // Predicated region
    $region63: #{tpu_custom_call.1} parent=50 // pred_check
      %p977 = pneg %p976
    $region64: #{tpu_custom_call.1} parent=50 // pred_check_branch
      %979 = sbr.rel (%p977) target = $region66
    $region65: #{tpu_custom_call.1} parent=50 // pred_region
      loop: start=0, step=1, limit=1
      $region67: #{tpu_custom_call.1} parent=65 // loop_pre_header
        _
      $region68: #{tpu_custom_call.1} parent=65 // loop_header
        %s981 = sphi 0, %s985
        %p982 = scmp.ge.s32.totalorder %s981, 1
        %s986 = sphi %s4, %s4
        %s987 = sphi [#allocation3], [#allocation3]
      $region69: #{tpu_custom_call.1} parent=65 // loop_header_branch
        %984 = sbr.rel (%p982) target = $region73
      $region70: #{tpu_custom_call.1} parent=65 // loop_body
        %v988 = vld [vmem:[%s986] sm:$0xff]
        %989 = vst [vmem:[%s987] sm:$0xff] %v988
        %v990 = vld [vmem:[%s986 + $0x8] sm:$0xff]
        %991 = vst [vmem:[%s987 + $0x8] sm:$0xff] %v990
        %v992 = vld [vmem:[%s986 + $0x10] sm:$0xff]
        %993 = vst [vmem:[%s987 + $0x10] sm:$0xff] %v992
        %v994 = vld [vmem:[%s986 + $0x18] sm:$0xff]
        %995 = vst [vmem:[%s987 + $0x18] sm:$0xff] %v994
        %v996 = vld [vmem:[%s986 + $0x20] sm:$0xff]
        %997 = vst [vmem:[%s987 + $0x20] sm:$0xff] %v996
        %v998 = vld [vmem:[%s986 + $0x28] sm:$0xff]
        %999 = vst [vmem:[%s987 + $0x28] sm:$0xff] %v998
        %v1000 = vld [vmem:[%s986 + $0x30] sm:$0xff]
        %1001 = vst [vmem:[%s987 + $0x30] sm:$0xff] %v1000
        %v1002 = vld [vmem:[%s986 + $0x38] sm:$0xff]
        %1003 = vst [vmem:[%s987 + $0x38] sm:$0xff] %v1002
        %v1004 = vld [vmem:[%s986 + $0x40] sm:$0xff]
        %1005 = vst [vmem:[%s987 + $0x40] sm:$0xff] %v1004
        %v1006 = vld [vmem:[%s986 + $0x48] sm:$0xff]
        %1007 = vst [vmem:[%s987 + $0x48] sm:$0xff] %v1006
        %v1008 = vld [vmem:[%s986 + $0x50] sm:$0xff]
        %1009 = vst [vmem:[%s987 + $0x50] sm:$0xff] %v1008
        %v1010 = vld [vmem:[%s986 + $0x58] sm:$0xff]
        %1011 = vst [vmem:[%s987 + $0x58] sm:$0xff] %v1010
        %v1012 = vld [vmem:[%s986 + $0x60] sm:$0xff]
        %1013 = vst [vmem:[%s987 + $0x60] sm:$0xff] %v1012
        %v1014 = vld [vmem:[%s986 + $0x68] sm:$0xff]
        %1015 = vst [vmem:[%s987 + $0x68] sm:$0xff] %v1014
        %v1016 = vld [vmem:[%s986 + $0x70] sm:$0xff]
        %1017 = vst [vmem:[%s987 + $0x70] sm:$0xff] %v1016
        %v1018 = vld [vmem:[%s986 + $0x78] sm:$0xff]
        %1019 = vst [vmem:[%s987 + $0x78] sm:$0xff] %v1018
        %v1020 = vld [vmem:[%s986 + $0x80] sm:$0xff]
        %1021 = vst [vmem:[%s987 + $0x80] sm:$0xff] %v1020
        %v1022 = vld [vmem:[%s986 + $0x88] sm:$0xff]
        %1023 = vst [vmem:[%s987 + $0x88] sm:$0xff] %v1022
        %v1024 = vld [vmem:[%s986 + $0x90] sm:$0xff]
        %1025 = vst [vmem:[%s987 + $0x90] sm:$0xff] %v1024
        %v1026 = vld [vmem:[%s986 + $0x98] sm:$0xff]
        %1027 = vst [vmem:[%s987 + $0x98] sm:$0xff] %v1026
        %v1028 = vld [vmem:[%s986 + $0xa0] sm:$0xff]
        %1029 = vst [vmem:[%s987 + $0xa0] sm:$0xff] %v1028
        %v1030 = vld [vmem:[%s986 + $0xa8] sm:$0xff]
        %1031 = vst [vmem:[%s987 + $0xa8] sm:$0xff] %v1030
        %v1032 = vld [vmem:[%s986 + $0xb0] sm:$0xff]
        %1033 = vst [vmem:[%s987 + $0xb0] sm:$0xff] %v1032
        %v1034 = vld [vmem:[%s986 + $0xb8] sm:$0xff]
        %1035 = vst [vmem:[%s987 + $0xb8] sm:$0xff] %v1034
        %v1036 = vld [vmem:[%s986 + $0xc0] sm:$0xff]
        %1037 = vst [vmem:[%s987 + $0xc0] sm:$0xff] %v1036
        %v1038 = vld [vmem:[%s986 + $0xc8] sm:$0xff]
        %1039 = vst [vmem:[%s987 + $0xc8] sm:$0xff] %v1038
        %v1040 = vld [vmem:[%s986 + $0xd0] sm:$0xff]
        %1041 = vst [vmem:[%s987 + $0xd0] sm:$0xff] %v1040
        %v1042 = vld [vmem:[%s986 + $0xd8] sm:$0xff]
        %1043 = vst [vmem:[%s987 + $0xd8] sm:$0xff] %v1042
        %v1044 = vld [vmem:[%s986 + $0xe0] sm:$0xff]
        %1045 = vst [vmem:[%s987 + $0xe0] sm:$0xff] %v1044
        %v1046 = vld [vmem:[%s986 + $0xe8] sm:$0xff]
        %1047 = vst [vmem:[%s987 + $0xe8] sm:$0xff] %v1046
        %v1048 = vld [vmem:[%s986 + $0xf0] sm:$0xff]
        %1049 = vst [vmem:[%s987 + $0xf0] sm:$0xff] %v1048
        %v1050 = vld [vmem:[%s986 + $0xf8] sm:$0xff]
        %1051 = vst [vmem:[%s987 + $0xf8] sm:$0xff] %v1050
        %v1052 = vld [vmem:[%s986 + $0x100] sm:$0xff]
        %1053 = vst [vmem:[%s987 + $0x100] sm:$0xff] %v1052
        %v1054 = vld [vmem:[%s986 + $0x108] sm:$0xff]
        %1055 = vst [vmem:[%s987 + $0x108] sm:$0xff] %v1054
        %v1056 = vld [vmem:[%s986 + $0x110] sm:$0xff]
        %1057 = vst [vmem:[%s987 + $0x110] sm:$0xff] %v1056
        %v1058 = vld [vmem:[%s986 + $0x118] sm:$0xff]
        %1059 = vst [vmem:[%s987 + $0x118] sm:$0xff] %v1058
        %v1060 = vld [vmem:[%s986 + $0x120] sm:$0xff]
        %1061 = vst [vmem:[%s987 + $0x120] sm:$0xff] %v1060
        %v1062 = vld [vmem:[%s986 + $0x128] sm:$0xff]
        %1063 = vst [vmem:[%s987 + $0x128] sm:$0xff] %v1062
        %v1064 = vld [vmem:[%s986 + $0x130] sm:$0xff]
        %1065 = vst [vmem:[%s987 + $0x130] sm:$0xff] %v1064
        %v1066 = vld [vmem:[%s986 + $0x138] sm:$0xff]
        %1067 = vst [vmem:[%s987 + $0x138] sm:$0xff] %v1066
        %v1068 = vld [vmem:[%s986 + $0x140] sm:$0xff]
        %1069 = vst [vmem:[%s987 + $0x140] sm:$0xff] %v1068
        %v1070 = vld [vmem:[%s986 + $0x148] sm:$0xff]
        %1071 = vst [vmem:[%s987 + $0x148] sm:$0xff] %v1070
        %v1072 = vld [vmem:[%s986 + $0x150] sm:$0xff]
        %1073 = vst [vmem:[%s987 + $0x150] sm:$0xff] %v1072
        %v1074 = vld [vmem:[%s986 + $0x158] sm:$0xff]
        %1075 = vst [vmem:[%s987 + $0x158] sm:$0xff] %v1074
        %v1076 = vld [vmem:[%s986 + $0x160] sm:$0xff]
        %1077 = vst [vmem:[%s987 + $0x160] sm:$0xff] %v1076
        %v1078 = vld [vmem:[%s986 + $0x168] sm:$0xff]
        %1079 = vst [vmem:[%s987 + $0x168] sm:$0xff] %v1078
        %v1080 = vld [vmem:[%s986 + $0x170] sm:$0xff]
        %1081 = vst [vmem:[%s987 + $0x170] sm:$0xff] %v1080
        %v1082 = vld [vmem:[%s986 + $0x178] sm:$0xff]
        %1083 = vst [vmem:[%s987 + $0x178] sm:$0xff] %v1082
        %v1084 = vld [vmem:[%s986 + $0x180] sm:$0xff]
        %1085 = vst [vmem:[%s987 + $0x180] sm:$0xff] %v1084
        %v1086 = vld [vmem:[%s986 + $0x188] sm:$0xff]
        %1087 = vst [vmem:[%s987 + $0x188] sm:$0xff] %v1086
        %v1088 = vld [vmem:[%s986 + $0x190] sm:$0xff]
        %1089 = vst [vmem:[%s987 + $0x190] sm:$0xff] %v1088
        %v1090 = vld [vmem:[%s986 + $0x198] sm:$0xff]
        %1091 = vst [vmem:[%s987 + $0x198] sm:$0xff] %v1090
        %v1092 = vld [vmem:[%s986 + $0x1a0] sm:$0xff]
        %1093 = vst [vmem:[%s987 + $0x1a0] sm:$0xff] %v1092
        %v1094 = vld [vmem:[%s986 + $0x1a8] sm:$0xff]
        %1095 = vst [vmem:[%s987 + $0x1a8] sm:$0xff] %v1094
        %v1096 = vld [vmem:[%s986 + $0x1b0] sm:$0xff]
        %1097 = vst [vmem:[%s987 + $0x1b0] sm:$0xff] %v1096
        %v1098 = vld [vmem:[%s986 + $0x1b8] sm:$0xff]
        %1099 = vst [vmem:[%s987 + $0x1b8] sm:$0xff] %v1098
        %v1100 = vld [vmem:[%s986 + $0x1c0] sm:$0xff]
        %1101 = vst [vmem:[%s987 + $0x1c0] sm:$0xff] %v1100
        %v1102 = vld [vmem:[%s986 + $0x1c8] sm:$0xff]
        %1103 = vst [vmem:[%s987 + $0x1c8] sm:$0xff] %v1102
        %v1104 = vld [vmem:[%s986 + $0x1d0] sm:$0xff]
        %1105 = vst [vmem:[%s987 + $0x1d0] sm:$0xff] %v1104
        %v1106 = vld [vmem:[%s986 + $0x1d8] sm:$0xff]
        %1107 = vst [vmem:[%s987 + $0x1d8] sm:$0xff] %v1106
        %v1108 = vld [vmem:[%s986 + $0x1e0] sm:$0xff]
        %1109 = vst [vmem:[%s987 + $0x1e0] sm:$0xff] %v1108
        %v1110 = vld [vmem:[%s986 + $0x1e8] sm:$0xff]
        %1111 = vst [vmem:[%s987 + $0x1e8] sm:$0xff] %v1110
        %v1112 = vld [vmem:[%s986 + $0x1f0] sm:$0xff]
        %1113 = vst [vmem:[%s987 + $0x1f0] sm:$0xff] %v1112
        %v1114 = vld [vmem:[%s986 + $0x1f8] sm:$0xff]
        %1115 = vst [vmem:[%s987 + $0x1f8] sm:$0xff] %v1114
      $region71: #{tpu_custom_call.1} parent=65 // loop_footer
        %s985 = sadd.s32 1, %s981
      $region72: #{tpu_custom_call.1} parent=65 // loop_footer_branch
        %980 = sbr.rel target = $region68
      $region73: #{tpu_custom_call.1} parent=65 // loop_exit
        _
    $region66: #{tpu_custom_call.1} parent=50 // pred_fallthru
      _
    %p1116 = pneg %p976
    // Predicated region
    $region74: #{tpu_custom_call.1} parent=50 // pred_check
      _
    $region75: #{tpu_custom_call.1} parent=50 // pred_check_branch
      %1118 = sbr.rel (%p976) target = $region77
    $region76: #{tpu_custom_call.1} parent=50 // pred_region
      %s1119 = sand.u32 512, 7
    $region77: #{tpu_custom_call.1} parent=50 // pred_fallthru
      _
  $region51: #{tpu_custom_call.1} parent=0 // pred_fallthru
    _
  // Predicated region
  $region52: #{tpu_custom_call.1} parent=0 // pred_check
    %p960 = pneg %p956
  $region53: #{tpu_custom_call.1} parent=0 // pred_check_branch
    %962 = sbr.rel (%p960) target = $region55
  $region54: #{tpu_custom_call.1} parent=0 // pred_region
    %s963 = sshll.u32 1, 512
    %s964 = ssub.s32 %s963, 1
    loop: start=0, step=1, limit=1
    $region56: #{tpu_custom_call.1} parent=54 // loop_pre_header
      _
    $region57: #{tpu_custom_call.1} parent=54 // loop_header
      %s966 = sphi 0, %s970
      %p967 = scmp.ge.s32.totalorder %s966, 1
      %s971 = sphi %s4, %s4
      %s972 = sphi [#allocation3], [#allocation3]
    $region58: #{tpu_custom_call.1} parent=54 // loop_header_branch
      %969 = sbr.rel (%p967) target = $region62
    $region59: #{tpu_custom_call.1} parent=54 // loop_body
      %v973 = vld [vmem:[%s971] sm:%s964]
      %974 = vst [vmem:[%s972] sm:%s964] %v973
    $region60: #{tpu_custom_call.1} parent=54 // loop_footer
      %s970 = sadd.s32 1, %s966
    $region61: #{tpu_custom_call.1} parent=54 // loop_footer_branch
      %965 = sbr.rel target = $region57
    $region62: #{tpu_custom_call.1} parent=54 // loop_exit
      _
  $region55: #{tpu_custom_call.1} parent=0 // pred_fallthru
    _
  // Predicated region
  $region78: #{tpu_custom_call.1} parent=0 // pred_check
    _
  $region79: #{tpu_custom_call.1} parent=0 // pred_check_branch
    %1122 = sbr.rel (0) target = $region81
  $region80: #{tpu_custom_call.1} parent=0 // pred_region
    %1123 = vsyncadd %s954, 8192
  $region81: #{tpu_custom_call.1} parent=0 // pred_fallthru
    _
  %v1124 = vld [vmem:[%s1] sm:$0xf]
  %v1125 = vld [vmem:[%s1 + $0x4] sm:$0xf]
  %v1126 = vld [vmem:[%s1 + $0x8] sm:$0xf]
  %v1127 = vld [vmem:[%s1 + $0xc] sm:$0xf]
  %v1128 = vld [vmem:[%s1 + $0x10] sm:$0xf]
  %v1129 = vld [vmem:[%s1 + $0x14] sm:$0xf]
  %v1130 = vld [vmem:[%s1 + $0x18] sm:$0xf]
  %v1131 = vld [vmem:[%s1 + $0x1c] sm:$0xf]
  %v1132 = vld [vmem:[%s1 + $0x20] sm:$0xf]
  %v1133 = vld [vmem:[%s1 + $0x24] sm:$0xf]
  %v1134 = vld [vmem:[%s1 + $0x28] sm:$0xf]
  %v1135 = vld [vmem:[%s1 + $0x2c] sm:$0xf]
  %v1136 = vld [vmem:[%s1 + $0x30] sm:$0xf]
  %v1137 = vld [vmem:[%s1 + $0x34] sm:$0xf]
  %v1138 = vld [vmem:[%s1 + $0x38] sm:$0xf]
  %v1139 = vld [vmem:[%s1 + $0x3c] sm:$0xf]
  %v1140 = vld [vmem:[%s1 + $0x40] sm:$0xf]
  %v1141 = vld [vmem:[%s1 + $0x44] sm:$0xf]
  %v1142 = vld [vmem:[%s1 + $0x48] sm:$0xf]
  %v1143 = vld [vmem:[%s1 + $0x4c] sm:$0xf]
  %v1144 = vld [vmem:[%s1 + $0x50] sm:$0xf]
  %v1145 = vld [vmem:[%s1 + $0x54] sm:$0xf]
  %v1146 = vld [vmem:[%s1 + $0x58] sm:$0xf]
  %v1147 = vld [vmem:[%s1 + $0x5c] sm:$0xf]
  %v1148 = vld [vmem:[%s1 + $0x60] sm:$0xf]
  %v1149 = vld [vmem:[%s1 + $0x64] sm:$0xf]
  %v1150 = vld [vmem:[%s1 + $0x68] sm:$0xf]
  %v1151 = vld [vmem:[%s1 + $0x6c] sm:$0xf]
  %v1152 = vld [vmem:[%s1 + $0x70] sm:$0xf]
  %v1153 = vld [vmem:[%s1 + $0x74] sm:$0xf]
  %v1154 = vld [vmem:[%s1 + $0x78] sm:$0xf]
  %v1155 = vld [vmem:[%s1 + $0x7c] sm:$0xf]
  %v1156 = vld [vmem:[%s1 + $0x80] sm:$0xf]
  %v1157 = vld [vmem:[%s1 + $0x84] sm:$0xf]
  %v1158 = vld [vmem:[%s1 + $0x88] sm:$0xf]
  %v1159 = vld [vmem:[%s1 + $0x8c] sm:$0xf]
  %v1160 = vld [vmem:[%s1 + $0x90] sm:$0xf]
  %v1161 = vld [vmem:[%s1 + $0x94] sm:$0xf]
  %v1162 = vld [vmem:[%s1 + $0x98] sm:$0xf]
  %v1163 = vld [vmem:[%s1 + $0x9c] sm:$0xf]
  %v1164 = vld [vmem:[%s1 + $0xa0] sm:$0xf]
  %v1165 = vld [vmem:[%s1 + $0xa4] sm:$0xf]
  %v1166 = vld [vmem:[%s1 + $0xa8] sm:$0xf]
  %v1167 = vld [vmem:[%s1 + $0xac] sm:$0xf]
  %v1168 = vld [vmem:[%s1 + $0xb0] sm:$0xf]
  %v1169 = vld [vmem:[%s1 + $0xb4] sm:$0xf]
  %v1170 = vld [vmem:[%s1 + $0xb8] sm:$0xf]
  %v1171 = vld [vmem:[%s1 + $0xbc] sm:$0xf]
  %v1172 = vld [vmem:[%s1 + $0xc0] sm:$0xf]
  %v1173 = vld [vmem:[%s1 + $0xc4] sm:$0xf]
  %v1174 = vld [vmem:[%s1 + $0xc8] sm:$0xf]
  %v1175 = vld [vmem:[%s1 + $0xcc] sm:$0xf]
  %v1176 = vld [vmem:[%s1 + $0xd0] sm:$0xf]
  %v1177 = vld [vmem:[%s1 + $0xd4] sm:$0xf]
  %v1178 = vld [vmem:[%s1 + $0xd8] sm:$0xf]
  %v1179 = vld [vmem:[%s1 + $0xdc] sm:$0xf]
  %v1180 = vld [vmem:[%s1 + $0xe0] sm:$0xf]
  %v1181 = vld [vmem:[%s1 + $0xe4] sm:$0xf]
  %v1182 = vld [vmem:[%s1 + $0xe8] sm:$0xf]
  %v1183 = vld [vmem:[%s1 + $0xec] sm:$0xf]
  %v1184 = vld [vmem:[%s1 + $0xf0] sm:$0xf]
  %v1185 = vld [vmem:[%s1 + $0xf4] sm:$0xf]
  %v1186 = vld [vmem:[%s1 + $0xf8] sm:$0xf]
  %v1187 = vld [vmem:[%s1 + $0xfc] sm:$0xf]
  %v1188 = vld [vmem:[%s0] sm:$0xff]
  %v1189 = vld [vmem:[%s0 + $0x8] sm:$0xff]
  %v1190 = vld [vmem:[%s0 + $0x10] sm:$0xff]
  %v1191 = vld [vmem:[%s0 + $0x18] sm:$0xff]
  %v1192 = vld [vmem:[%s0 + $0x20] sm:$0xff]
  %v1193 = vld [vmem:[%s0 + $0x28] sm:$0xff]
  %v1194 = vld [vmem:[%s0 + $0x30] sm:$0xff]
  %v1195 = vld [vmem:[%s0 + $0x38] sm:$0xff]
  %v1196 = vld [vmem:[%s0 + $0x40] sm:$0xff]
  %v1197 = vld [vmem:[%s0 + $0x48] sm:$0xff]
  %v1198 = vld [vmem:[%s0 + $0x50] sm:$0xff]
  %v1199 = vld [vmem:[%s0 + $0x58] sm:$0xff]
  %v1200 = vld [vmem:[%s0 + $0x60] sm:$0xff]
  %v1201 = vld [vmem:[%s0 + $0x68] sm:$0xff]
  %v1202 = vld [vmem:[%s0 + $0x70] sm:$0xff]
  %v1203 = vld [vmem:[%s0 + $0x78] sm:$0xff]
  %v1204 = vld [vmem:[%s0 + $0x80] sm:$0xff]
  %v1205 = vld [vmem:[%s0 + $0x88] sm:$0xff]
  %v1206 = vld [vmem:[%s0 + $0x90] sm:$0xff]
  %v1207 = vld [vmem:[%s0 + $0x98] sm:$0xff]
  %v1208 = vld [vmem:[%s0 + $0xa0] sm:$0xff]
  %v1209 = vld [vmem:[%s0 + $0xa8] sm:$0xff]
  %v1210 = vld [vmem:[%s0 + $0xb0] sm:$0xff]
  %v1211 = vld [vmem:[%s0 + $0xb8] sm:$0xff]
  %v1212 = vld [vmem:[%s0 + $0xc0] sm:$0xff]
  %v1213 = vld [vmem:[%s0 + $0xc8] sm:$0xff]
  %v1214 = vld [vmem:[%s0 + $0xd0] sm:$0xff]
  %v1215 = vld [vmem:[%s0 + $0xd8] sm:$0xff]
  %v1216 = vld [vmem:[%s0 + $0xe0] sm:$0xff]
  %v1217 = vld [vmem:[%s0 + $0xe8] sm:$0xff]
  %v1218 = vld [vmem:[%s0 + $0xf0] sm:$0xff]
  %v1219 = vld [vmem:[%s0 + $0xf8] sm:$0xff]
  %v1220 = vld [vmem:[%s0 + $0x100] sm:$0xff]
  %v1221 = vld [vmem:[%s0 + $0x108] sm:$0xff]
  %v1222 = vld [vmem:[%s0 + $0x110] sm:$0xff]
  %v1223 = vld [vmem:[%s0 + $0x118] sm:$0xff]
  %v1224 = vld [vmem:[%s0 + $0x120] sm:$0xff]
  %v1225 = vld [vmem:[%s0 + $0x128] sm:$0xff]
  %v1226 = vld [vmem:[%s0 + $0x130] sm:$0xff]
  %v1227 = vld [vmem:[%s0 + $0x138] sm:$0xff]
  %v1228 = vld [vmem:[%s0 + $0x140] sm:$0xff]
  %v1229 = vld [vmem:[%s0 + $0x148] sm:$0xff]
  %v1230 = vld [vmem:[%s0 + $0x150] sm:$0xff]
  %v1231 = vld [vmem:[%s0 + $0x158] sm:$0xff]
  %v1232 = vld [vmem:[%s0 + $0x160] sm:$0xff]
  %v1233 = vld [vmem:[%s0 + $0x168] sm:$0xff]
  %v1234 = vld [vmem:[%s0 + $0x170] sm:$0xff]
  %v1235 = vld [vmem:[%s0 + $0x178] sm:$0xff]
  %v1236 = vld [vmem:[%s0 + $0x180] sm:$0xff]
  %v1237 = vld [vmem:[%s0 + $0x188] sm:$0xff]
  %v1238 = vld [vmem:[%s0 + $0x190] sm:$0xff]
  %v1239 = vld [vmem:[%s0 + $0x198] sm:$0xff]
  %v1240 = vld [vmem:[%s0 + $0x1a0] sm:$0xff]
  %v1241 = vld [vmem:[%s0 + $0x1a8] sm:$0xff]
  %v1242 = vld [vmem:[%s0 + $0x1b0] sm:$0xff]
  %v1243 = vld [vmem:[%s0 + $0x1b8] sm:$0xff]
  %v1244 = vld [vmem:[%s0 + $0x1c0] sm:$0xff]
  %v1245 = vld [vmem:[%s0 + $0x1c8] sm:$0xff]
  %v1246 = vld [vmem:[%s0 + $0x1d0] sm:$0xff]
  %v1247 = vld [vmem:[%s0 + $0x1d8] sm:$0xff]
  %v1248 = vld [vmem:[%s0 + $0x1e0] sm:$0xff]
  %v1249 = vld [vmem:[%s0 + $0x1e8] sm:$0xff]
  %v1250 = vld [vmem:[%s0 + $0x1f0] sm:$0xff]
  %v1251 = vld [vmem:[%s0 + $0x1f8] sm:$0xff]
  %v1252 = vld [vmem:[%s0 + $0x200] sm:$0xff]
  %v1253 = vld [vmem:[%s0 + $0x208] sm:$0xff]
  %v1254 = vld [vmem:[%s0 + $0x210] sm:$0xff]
  %v1255 = vld [vmem:[%s0 + $0x218] sm:$0xff]
  %v1256 = vld [vmem:[%s0 + $0x220] sm:$0xff]
  %v1257 = vld [vmem:[%s0 + $0x228] sm:$0xff]
  %v1258 = vld [vmem:[%s0 + $0x230] sm:$0xff]
  %v1259 = vld [vmem:[%s0 + $0x238] sm:$0xff]
  %v1260 = vld [vmem:[%s0 + $0x240] sm:$0xff]
  %v1261 = vld [vmem:[%s0 + $0x248] sm:$0xff]
  %v1262 = vld [vmem:[%s0 + $0x250] sm:$0xff]
  %v1263 = vld [vmem:[%s0 + $0x258] sm:$0xff]
  %v1264 = vld [vmem:[%s0 + $0x260] sm:$0xff]
  %v1265 = vld [vmem:[%s0 + $0x268] sm:$0xff]
  %v1266 = vld [vmem:[%s0 + $0x270] sm:$0xff]
  %v1267 = vld [vmem:[%s0 + $0x278] sm:$0xff]
  %v1268 = vld [vmem:[%s0 + $0x280] sm:$0xff]
  %v1269 = vld [vmem:[%s0 + $0x288] sm:$0xff]
  %v1270 = vld [vmem:[%s0 + $0x290] sm:$0xff]
  %v1271 = vld [vmem:[%s0 + $0x298] sm:$0xff]
  %v1272 = vld [vmem:[%s0 + $0x2a0] sm:$0xff]
  %v1273 = vld [vmem:[%s0 + $0x2a8] sm:$0xff]
  %v1274 = vld [vmem:[%s0 + $0x2b0] sm:$0xff]
  %v1275 = vld [vmem:[%s0 + $0x2b8] sm:$0xff]
  %v1276 = vld [vmem:[%s0 + $0x2c0] sm:$0xff]
  %v1277 = vld [vmem:[%s0 + $0x2c8] sm:$0xff]
  %v1278 = vld [vmem:[%s0 + $0x2d0] sm:$0xff]
  %v1279 = vld [vmem:[%s0 + $0x2d8] sm:$0xff]
  %v1280 = vld [vmem:[%s0 + $0x2e0] sm:$0xff]
  %v1281 = vld [vmem:[%s0 + $0x2e8] sm:$0xff]
  %v1282 = vld [vmem:[%s0 + $0x2f0] sm:$0xff]
  %v1283 = vld [vmem:[%s0 + $0x2f8] sm:$0xff]
  %v1284 = vld [vmem:[%s0 + $0x300] sm:$0xff]
  %v1285 = vld [vmem:[%s0 + $0x308] sm:$0xff]
  %v1286 = vld [vmem:[%s0 + $0x310] sm:$0xff]
  %v1287 = vld [vmem:[%s0 + $0x318] sm:$0xff]
  %v1288 = vld [vmem:[%s0 + $0x320] sm:$0xff]
  %v1289 = vld [vmem:[%s0 + $0x328] sm:$0xff]
  %v1290 = vld [vmem:[%s0 + $0x330] sm:$0xff]
  %v1291 = vld [vmem:[%s0 + $0x338] sm:$0xff]
  %v1292 = vld [vmem:[%s0 + $0x340] sm:$0xff]
  %v1293 = vld [vmem:[%s0 + $0x348] sm:$0xff]
  %v1294 = vld [vmem:[%s0 + $0x350] sm:$0xff]
  %v1295 = vld [vmem:[%s0 + $0x358] sm:$0xff]
  %v1296 = vld [vmem:[%s0 + $0x360] sm:$0xff]
  %v1297 = vld [vmem:[%s0 + $0x368] sm:$0xff]
  %v1298 = vld [vmem:[%s0 + $0x370] sm:$0xff]
  %v1299 = vld [vmem:[%s0 + $0x378] sm:$0xff]
  %v1300 = vpack.c.bf16 %v1195, %v1188
  %v1301 = vpack.c.bf16 %v1196, %v1189
  %v1302 = vpack.c.bf16 %v1197, %v1190
  %v1303 = vpack.c.bf16 %v1198, %v1191
  %v1304 = vpack.c.bf16 %v1199, %v1192
  %v1305 = vpack.c.bf16 %v1200, %v1193
  %v1306 = vpack.c.bf16 %v1201, %v1194
  %v1307 = vpack.c.bf16 %v1209, %v1202
  %v1308 = vpack.c.bf16 %v1210, %v1203
  %v1309 = vpack.c.bf16 %v1211, %v1204
  %v1310 = vpack.c.bf16 %v1212, %v1205
  %v1311 = vpack.c.bf16 %v1213, %v1206
  %v1312 = vpack.c.bf16 %v1214, %v1207
  %v1313 = vpack.c.bf16 %v1215, %v1208
  %v1314 = vpack.c.bf16 %v1223, %v1216
  %v1315 = vpack.c.bf16 %v1224, %v1217
  %v1316 = vpack.c.bf16 %v1225, %v1218
  %v1317 = vpack.c.bf16 %v1226, %v1219
  %v1318 = vpack.c.bf16 %v1227, %v1220
  %v1319 = vpack.c.bf16 %v1228, %v1221
  %v1320 = vpack.c.bf16 %v1229, %v1222
  %v1321 = vpack.c.bf16 %v1237, %v1230
  %v1322 = vpack.c.bf16 %v1238, %v1231
  %v1323 = vpack.c.bf16 %v1239, %v1232
  %v1324 = vpack.c.bf16 %v1240, %v1233
  %v1325 = vpack.c.bf16 %v1241, %v1234
  %v1326 = vpack.c.bf16 %v1242, %v1235
  %v1327 = vpack.c.bf16 %v1243, %v1236
  %v1328 = vpack.c.bf16 %v1251, %v1244
  %v1329 = vpack.c.bf16 %v1252, %v1245
  %v1330 = vpack.c.bf16 %v1253, %v1246
  %v1331 = vpack.c.bf16 %v1254, %v1247
  %v1332 = vpack.c.bf16 %v1255, %v1248
  %v1333 = vpack.c.bf16 %v1256, %v1249
  %v1334 = vpack.c.bf16 %v1257, %v1250
  %v1335 = vpack.c.bf16 %v1265, %v1258
  %v1336 = vpack.c.bf16 %v1266, %v1259
  %v1337 = vpack.c.bf16 %v1267, %v1260
  %v1338 = vpack.c.bf16 %v1268, %v1261
  %v1339 = vpack.c.bf16 %v1269, %v1262
  %v1340 = vpack.c.bf16 %v1270, %v1263
  %v1341 = vpack.c.bf16 %v1271, %v1264
  %v1342 = vpack.c.bf16 %v1279, %v1272
  %v1343 = vpack.c.bf16 %v1280, %v1273
  %v1344 = vpack.c.bf16 %v1281, %v1274
  %v1345 = vpack.c.bf16 %v1282, %v1275
  %v1346 = vpack.c.bf16 %v1283, %v1276
  %v1347 = vpack.c.bf16 %v1284, %v1277
  %v1348 = vpack.c.bf16 %v1285, %v1278
  %v1349 = vpack.c.bf16 %v1293, %v1286
  %v1350 = vpack.c.bf16 %v1294, %v1287
  %v1351 = vpack.c.bf16 %v1295, %v1288
  %v1352 = vpack.c.bf16 %v1296, %v1289
  %v1353 = vpack.c.bf16 %v1297, %v1290
  %v1354 = vpack.c.bf16 %v1298, %v1291
  %v1355 = vpack.c.bf16 %v1299, %v1292
  %v1420 = vunpack.c.l.b16 %v1124
  %v1421 = vunpack.c.l.b16 %v1125
  %v1422 = vunpack.c.l.b16 %v1126
  %v1423 = vunpack.c.l.b16 %v1127
  %v1424 = vunpack.c.l.b16 %v1128
  %v1425 = vunpack.c.l.b16 %v1129
  %v1426 = vunpack.c.l.b16 %v1130
  %v1427 = vunpack.c.l.b16 %v1131
  %v1428 = vunpack.c.l.b16 %v1132
  %v1429 = vunpack.c.l.b16 %v1133
  %v1430 = vunpack.c.l.b16 %v1134
  %v1431 = vunpack.c.l.b16 %v1135
  %v1432 = vunpack.c.l.b16 %v1136
  %v1433 = vunpack.c.l.b16 %v1137
  %v1434 = vunpack.c.l.b16 %v1138
  %v1435 = vunpack.c.l.b16 %v1139
  %v1436 = vunpack.c.l.b16 %v1140
  %v1437 = vunpack.c.l.b16 %v1141
  %v1438 = vunpack.c.l.b16 %v1142
  %v1439 = vunpack.c.l.b16 %v1143
  %v1440 = vunpack.c.l.b16 %v1144
  %v1441 = vunpack.c.l.b16 %v1145
  %v1442 = vunpack.c.l.b16 %v1146
  %v1443 = vunpack.c.l.b16 %v1147
  %v1444 = vunpack.c.l.b16 %v1148
  %v1445 = vunpack.c.l.b16 %v1149
  %v1446 = vunpack.c.l.b16 %v1150
  %v1447 = vunpack.c.l.b16 %v1151
  %v1448 = vunpack.c.l.b16 %v1152
  %v1449 = vunpack.c.l.b16 %v1153
  %v1450 = vunpack.c.l.b16 %v1154
  %v1451 = vunpack.c.l.b16 %v1155
  %v1452 = vunpack.c.l.b16 %v1156
  %v1453 = vunpack.c.l.b16 %v1157
  %v1454 = vunpack.c.l.b16 %v1158
  %v1455 = vunpack.c.l.b16 %v1159
  %v1456 = vunpack.c.l.b16 %v1160
  %v1457 = vunpack.c.l.b16 %v1161
  %v1458 = vunpack.c.l.b16 %v1162
  %v1459 = vunpack.c.l.b16 %v1163
  %v1460 = vunpack.c.l.b16 %v1164
  %v1461 = vunpack.c.l.b16 %v1165
  %v1462 = vunpack.c.l.b16 %v1166
  %v1463 = vunpack.c.l.b16 %v1167
  %v1464 = vunpack.c.l.b16 %v1168
  %v1465 = vunpack.c.l.b16 %v1169
  %v1466 = vunpack.c.l.b16 %v1170
  %v1467 = vunpack.c.l.b16 %v1171
  %v1468 = vunpack.c.l.b16 %v1172
  %v1469 = vunpack.c.l.b16 %v1173
  %v1470 = vunpack.c.l.b16 %v1174
  %v1471 = vunpack.c.l.b16 %v1175
  %v1472 = vunpack.c.l.b16 %v1176
  %v1473 = vunpack.c.l.b16 %v1177
  %v1474 = vunpack.c.l.b16 %v1178
  %v1475 = vunpack.c.l.b16 %v1179
  %v1476 = vunpack.c.l.b16 %v1180
  %v1477 = vunpack.c.l.b16 %v1181
  %v1478 = vunpack.c.l.b16 %v1182
  %v1479 = vunpack.c.l.b16 %v1183
  %v1480 = vunpack.c.l.b16 %v1184
  %v1481 = vunpack.c.l.b16 %v1185
  %v1482 = vunpack.c.l.b16 %v1186
  %v1483 = vunpack.c.l.b16 %v1187
  %v1484 = vpack.c.b16 %v1421, %v1420
  %v1485 = vpack.c.b16 %v1423, %v1422
  %v1486 = vpack.c.b16 %v1425, %v1424
  %v1487 = vpack.c.b16 %v1427, %v1426
  %v1488 = vpack.c.b16 %v1429, %v1428
  %v1489 = vpack.c.b16 %v1431, %v1430
  %v1490 = vpack.c.b16 %v1433, %v1432
  %v1491 = vpack.c.b16 %v1435, %v1434
  %v1492 = vpack.c.b16 %v1437, %v1436
  %v1493 = vpack.c.b16 %v1439, %v1438
  %v1494 = vpack.c.b16 %v1441, %v1440
  %v1495 = vpack.c.b16 %v1443, %v1442
  %v1496 = vpack.c.b16 %v1445, %v1444
  %v1497 = vpack.c.b16 %v1447, %v1446
  %v1498 = vpack.c.b16 %v1449, %v1448
  %v1499 = vpack.c.b16 %v1451, %v1450
  %v1500 = vpack.c.b16 %v1453, %v1452
  %v1501 = vpack.c.b16 %v1455, %v1454
  %v1502 = vpack.c.b16 %v1457, %v1456
  %v1503 = vpack.c.b16 %v1459, %v1458
  %v1504 = vpack.c.b16 %v1461, %v1460
  %v1505 = vpack.c.b16 %v1463, %v1462
  %v1506 = vpack.c.b16 %v1465, %v1464
  %v1507 = vpack.c.b16 %v1467, %v1466
  %v1508 = vpack.c.b16 %v1469, %v1468
  %v1509 = vpack.c.b16 %v1471, %v1470
  %v1510 = vpack.c.b16 %v1473, %v1472
  %v1511 = vpack.c.b16 %v1475, %v1474
  %v1512 = vpack.c.b16 %v1477, %v1476
  %v1513 = vpack.c.b16 %v1479, %v1478
  %v1514 = vpack.c.b16 %v1481, %v1480
  %v1515 = vpack.c.b16 %v1483, %v1482
  %1548 = vmatprep.subr.bf16.mxu0 %v1350
  %1549 = vmatpush1.bf16.msra.mxu0 %v1349
  %1550 = vmatprep.subr.bf16.mxu0 %v1343
  %1551 = vmatpush1.bf16.msra.mxu0 %v1342
  %1552 = vmatprep.subr.bf16.mxu0 %v1336
  %1553 = vmatpush1.bf16.msra.mxu0 %v1335
  %1554 = vmatprep.subr.bf16.mxu0 %v1329
  %1555 = vmatpush1.bf16.msra.mxu0 %v1328
  %1556 = vmatprep.subr.bf16.mxu0 %v1322
  %1557 = vmatpush1.bf16.msra.mxu0 %v1321
  %1558 = vmatprep.subr.bf16.mxu0 %v1315
  %1559 = vmatpush1.bf16.msra.mxu0 %v1314
  %1560 = vmatprep.subr.bf16.mxu0 %v1308
  %1561 = vmatpush1.bf16.msra.mxu0 %v1307
  %1562 = vmatprep.subr.bf16.mxu0 %v1301
  %1563 = vmatpush1.bf16.msra.mxu0 %v1300
  %1564 = vmatprep.subr.bf16.mxu0 0
  %1565 = vmatpush2.bf16.msra.mxu0 0
  %1566 = vmatprep.subr.bf16.mxu0 0
  %1567 = vmatpush2.bf16.msra.mxu0 0
  %1568 = vmatprep.subr.bf16.mxu0 0
  %1569 = vmatpush2.bf16.msra.mxu0 0
  %1570 = vmatprep.subr.bf16.mxu0 0
  %1571 = vmatpush2.bf16.msra.mxu0 0
  %1572 = vmatprep.subr.bf16.mxu0 0
  %1573 = vmatpush2.bf16.msra.mxu0 0
  %1574 = vmatprep.subr.bf16.mxu0 0
  %1575 = vmatpush2.bf16.msra.mxu0 0
  %1576 = vmatprep.subr.bf16.mxu0 0
  %1577 = vmatpush2.bf16.msra.mxu0 0
  %1578 = vmatprep.subr.bf16.mxu0 0
  %1579 = vmatpush2.bf16.msra.mxu0 0
  %1580 = vmatprep.mubr.bf16.mxu0 0
  %1581 = vmatmul.mubr.bf16.gmra.mxu0 %v1484
  %v1582 = vpop.f32.mrf.mxu0
  %v1583 = vadd.f32 0.0, %v1582
  %v1584 = vpop.f32.mrf.mxu0
  %v1585 = vadd.f32 0.0, %v1584
  %v1586 = vpop.f32.mrf.mxu0
  %v1587 = vadd.f32 0.0, %v1586
  %v1588 = vpop.f32.mrf.mxu0
  %v1589 = vadd.f32 0.0, %v1588
  %1590 = vmatprep.mubr.bf16.mxu0 0
  %1591 = vmatmul.mubr.bf16.gmra.mxu0 %v1485
  %v1592 = vpop.f32.mrf.mxu0
  %v1593 = vadd.f32 0.0, %v1592
  %v1594 = vpop.f32.mrf.mxu0
  %v1595 = vadd.f32 0.0, %v1594
  %v1596 = vpop.f32.mrf.mxu0
  %v1597 = vadd.f32 0.0, %v1596
  %v1598 = vpop.f32.mrf.mxu0
  %v1599 = vadd.f32 0.0, %v1598
  %1600 = vmatprep.mubr.bf16.mxu0 0
  %1601 = vmatmul.mubr.bf16.gmra.mxu0 %v1486
  %v1602 = vpop.f32.mrf.mxu0
  %v1603 = vadd.f32 0.0, %v1602
  %v1604 = vpop.f32.mrf.mxu0
  %v1605 = vadd.f32 0.0, %v1604
  %v1606 = vpop.f32.mrf.mxu0
  %v1607 = vadd.f32 0.0, %v1606
  %v1608 = vpop.f32.mrf.mxu0
  %v1609 = vadd.f32 0.0, %v1608
  %1610 = vmatprep.mubr.bf16.mxu0 0
  %1611 = vmatmul.mubr.bf16.gmra.mxu0 %v1487
  %v1612 = vpop.f32.mrf.mxu0
  %v1613 = vadd.f32 0.0, %v1612
  %v1614 = vpop.f32.mrf.mxu0
  %v1615 = vadd.f32 0.0, %v1614
  %v1616 = vpop.f32.mrf.mxu0
  %v1617 = vadd.f32 0.0, %v1616
  %v1618 = vpop.f32.mrf.mxu0
  %v1619 = vadd.f32 0.0, %v1618
  %1620 = vmatprep.mubr.bf16.mxu0 0
  %1621 = vmatmul.mubr.bf16.gmra.mxu0 %v1488
  %v1622 = vpop.f32.mrf.mxu0
  %v1623 = vadd.f32 0.0, %v1622
  %v1624 = vpop.f32.mrf.mxu0
  %v1625 = vadd.f32 0.0, %v1624
  %v1626 = vpop.f32.mrf.mxu0
  %v1627 = vadd.f32 0.0, %v1626
  %v1628 = vpop.f32.mrf.mxu0
  %v1629 = vadd.f32 0.0, %v1628
  %1630 = vmatprep.mubr.bf16.mxu0 0
  %1631 = vmatmul.mubr.bf16.gmra.mxu0 %v1489
  %v1632 = vpop.f32.mrf.mxu0
  %v1633 = vadd.f32 0.0, %v1632
  %v1634 = vpop.f32.mrf.mxu0
  %v1635 = vadd.f32 0.0, %v1634
  %v1636 = vpop.f32.mrf.mxu0
  %v1637 = vadd.f32 0.0, %v1636
  %v1638 = vpop.f32.mrf.mxu0
  %v1639 = vadd.f32 0.0, %v1638
  %1640 = vmatprep.mubr.bf16.mxu0 0
  %1641 = vmatmul.mubr.bf16.gmra.mxu0 %v1490
  %v1642 = vpop.f32.mrf.mxu0
  %v1643 = vadd.f32 0.0, %v1642
  %v1644 = vpop.f32.mrf.mxu0
  %v1645 = vadd.f32 0.0, %v1644
  %v1646 = vpop.f32.mrf.mxu0
  %v1647 = vadd.f32 0.0, %v1646
  %v1648 = vpop.f32.mrf.mxu0
  %v1649 = vadd.f32 0.0, %v1648
  %1650 = vmatprep.mubr.bf16.mxu0 0
  %1651 = vmatmul.mubr.bf16.gmra.mxu0 %v1491
  %v1652 = vpop.f32.mrf.mxu0
  %v1653 = vadd.f32 0.0, %v1652
  %v1654 = vpop.f32.mrf.mxu0
  %v1655 = vadd.f32 0.0, %v1654
  %v1656 = vpop.f32.mrf.mxu0
  %v1657 = vadd.f32 0.0, %v1656
  %v1658 = vpop.f32.mrf.mxu0
  %v1659 = vadd.f32 0.0, %v1658
  %1660 = vmatprep.mubr.bf16.mxu0 0
  %1661 = vmatmul.mubr.bf16.gmra.mxu0 %v1492
  %v1662 = vpop.f32.mrf.mxu0
  %v1663 = vadd.f32 0.0, %v1662
  %v1664 = vpop.f32.mrf.mxu0
  %v1665 = vadd.f32 0.0, %v1664
  %v1666 = vpop.f32.mrf.mxu0
  %v1667 = vadd.f32 0.0, %v1666
  %v1668 = vpop.f32.mrf.mxu0
  %v1669 = vadd.f32 0.0, %v1668
  %1670 = vmatprep.mubr.bf16.mxu0 0
  %1671 = vmatmul.mubr.bf16.gmra.mxu0 %v1493
  %v1672 = vpop.f32.mrf.mxu0
  %v1673 = vadd.f32 0.0, %v1672
  %v1674 = vpop.f32.mrf.mxu0
  %v1675 = vadd.f32 0.0, %v1674
  %v1676 = vpop.f32.mrf.mxu0
  %v1677 = vadd.f32 0.0, %v1676
  %v1678 = vpop.f32.mrf.mxu0
  %v1679 = vadd.f32 0.0, %v1678
  %1680 = vmatprep.mubr.bf16.mxu0 0
  %1681 = vmatmul.mubr.bf16.gmra.mxu0 %v1494
  %v1682 = vpop.f32.mrf.mxu0
  %v1683 = vadd.f32 0.0, %v1682
  %v1684 = vpop.f32.mrf.mxu0
  %v1685 = vadd.f32 0.0, %v1684
  %v1686 = vpop.f32.mrf.mxu0
  %v1687 = vadd.f32 0.0, %v1686
  %v1688 = vpop.f32.mrf.mxu0
  %v1689 = vadd.f32 0.0, %v1688
  %1690 = vmatprep.mubr.bf16.mxu0 0
  %1691 = vmatmul.mubr.bf16.gmra.mxu0 %v1495
  %v1692 = vpop.f32.mrf.mxu0
  %v1693 = vadd.f32 0.0, %v1692
  %v1694 = vpop.f32.mrf.mxu0
  %v1695 = vadd.f32 0.0, %v1694
  %v1696 = vpop.f32.mrf.mxu0
  %v1697 = vadd.f32 0.0, %v1696
  %v1698 = vpop.f32.mrf.mxu0
  %v1699 = vadd.f32 0.0, %v1698
  %1700 = vmatprep.mubr.bf16.mxu0 0
  %1701 = vmatmul.mubr.bf16.gmra.mxu0 %v1496
  %v1702 = vpop.f32.mrf.mxu0
  %v1703 = vadd.f32 0.0, %v1702
  %v1704 = vpop.f32.mrf.mxu0
  %v1705 = vadd.f32 0.0, %v1704
  %v1706 = vpop.f32.mrf.mxu0
  %v1707 = vadd.f32 0.0, %v1706
  %v1708 = vpop.f32.mrf.mxu0
  %v1709 = vadd.f32 0.0, %v1708
  %1710 = vmatprep.mubr.bf16.mxu0 0
  %1711 = vmatmul.mubr.bf16.gmra.mxu0 %v1497
  %v1712 = vpop.f32.mrf.mxu0
  %v1713 = vadd.f32 0.0, %v1712
  %v1714 = vpop.f32.mrf.mxu0
  %v1715 = vadd.f32 0.0, %v1714
  %v1716 = vpop.f32.mrf.mxu0
  %v1717 = vadd.f32 0.0, %v1716
  %v1718 = vpop.f32.mrf.mxu0
  %v1719 = vadd.f32 0.0, %v1718
  %1720 = vmatprep.mubr.bf16.mxu0 0
  %1721 = vmatmul.mubr.bf16.gmra.mxu0 %v1498
  %v1722 = vpop.f32.mrf.mxu0
  %v1723 = vadd.f32 0.0, %v1722
  %v1724 = vpop.f32.mrf.mxu0
  %v1725 = vadd.f32 0.0, %v1724
  %v1726 = vpop.f32.mrf.mxu0
  %v1727 = vadd.f32 0.0, %v1726
  %v1728 = vpop.f32.mrf.mxu0
  %v1729 = vadd.f32 0.0, %v1728
  %1730 = vmatprep.mubr.bf16.mxu0 0
  %1731 = vmatmul.mubr.bf16.gmra.mxu0 %v1499
  %v1732 = vpop.f32.mrf.mxu0
  %v1733 = vadd.f32 0.0, %v1732
  %v1734 = vpop.f32.mrf.mxu0
  %v1735 = vadd.f32 0.0, %v1734
  %v1736 = vpop.f32.mrf.mxu0
  %v1737 = vadd.f32 0.0, %v1736
  %v1738 = vpop.f32.mrf.mxu0
  %v1739 = vadd.f32 0.0, %v1738
  %1740 = vmatprep.mubr.bf16.mxu0 0
  %1741 = vmatmul.mubr.bf16.gmra.mxu0 %v1500
  %v1742 = vpop.f32.mrf.mxu0
  %v1743 = vadd.f32 0.0, %v1742
  %v1744 = vpop.f32.mrf.mxu0
  %v1745 = vadd.f32 0.0, %v1744
  %v1746 = vpop.f32.mrf.mxu0
  %v1747 = vadd.f32 0.0, %v1746
  %v1748 = vpop.f32.mrf.mxu0
  %v1749 = vadd.f32 0.0, %v1748
  %1750 = vmatprep.mubr.bf16.mxu0 0
  %1751 = vmatmul.mubr.bf16.gmra.mxu0 %v1501
  %v1752 = vpop.f32.mrf.mxu0
  %v1753 = vadd.f32 0.0, %v1752
  %v1754 = vpop.f32.mrf.mxu0
  %v1755 = vadd.f32 0.0, %v1754
  %v1756 = vpop.f32.mrf.mxu0
  %v1757 = vadd.f32 0.0, %v1756
  %v1758 = vpop.f32.mrf.mxu0
  %v1759 = vadd.f32 0.0, %v1758
  %1760 = vmatprep.mubr.bf16.mxu0 0
  %1761 = vmatmul.mubr.bf16.gmra.mxu0 %v1502
  %v1762 = vpop.f32.mrf.mxu0
  %v1763 = vadd.f32 0.0, %v1762
  %v1764 = vpop.f32.mrf.mxu0
  %v1765 = vadd.f32 0.0, %v1764
  %v1766 = vpop.f32.mrf.mxu0
  %v1767 = vadd.f32 0.0, %v1766
  %v1768 = vpop.f32.mrf.mxu0
  %v1769 = vadd.f32 0.0, %v1768
  %1770 = vmatprep.mubr.bf16.mxu0 0
  %1771 = vmatmul.mubr.bf16.gmra.mxu0 %v1503
  %v1772 = vpop.f32.mrf.mxu0
  %v1773 = vadd.f32 0.0, %v1772
  %v1774 = vpop.f32.mrf.mxu0
  %v1775 = vadd.f32 0.0, %v1774
  %v1776 = vpop.f32.mrf.mxu0
  %v1777 = vadd.f32 0.0, %v1776
  %v1778 = vpop.f32.mrf.mxu0
  %v1779 = vadd.f32 0.0, %v1778
  %1780 = vmatprep.mubr.bf16.mxu0 0
  %1781 = vmatmul.mubr.bf16.gmra.mxu0 %v1504
  %v1782 = vpop.f32.mrf.mxu0
  %v1783 = vadd.f32 0.0, %v1782
  %v1784 = vpop.f32.mrf.mxu0
  %v1785 = vadd.f32 0.0, %v1784
  %v1786 = vpop.f32.mrf.mxu0
  %v1787 = vadd.f32 0.0, %v1786
  %v1788 = vpop.f32.mrf.mxu0
  %v1789 = vadd.f32 0.0, %v1788
  %1790 = vmatprep.mubr.bf16.mxu0 0
  %1791 = vmatmul.mubr.bf16.gmra.mxu0 %v1505
  %v1792 = vpop.f32.mrf.mxu0
  %v1793 = vadd.f32 0.0, %v1792
  %v1794 = vpop.f32.mrf.mxu0
  %v1795 = vadd.f32 0.0, %v1794
  %v1796 = vpop.f32.mrf.mxu0
  %v1797 = vadd.f32 0.0, %v1796
  %v1798 = vpop.f32.mrf.mxu0
  %v1799 = vadd.f32 0.0, %v1798
  %1800 = vmatprep.mubr.bf16.mxu0 0
  %1801 = vmatmul.mubr.bf16.gmra.mxu0 %v1506
  %v1802 = vpop.f32.mrf.mxu0
  %v1803 = vadd.f32 0.0, %v1802
  %v1804 = vpop.f32.mrf.mxu0
  %v1805 = vadd.f32 0.0, %v1804
  %v1806 = vpop.f32.mrf.mxu0
  %v1807 = vadd.f32 0.0, %v1806
  %v1808 = vpop.f32.mrf.mxu0
  %v1809 = vadd.f32 0.0, %v1808
  %1810 = vmatprep.mubr.bf16.mxu0 0
  %1811 = vmatmul.mubr.bf16.gmra.mxu0 %v1507
  %v1812 = vpop.f32.mrf.mxu0
  %v1813 = vadd.f32 0.0, %v1812
  %v1814 = vpop.f32.mrf.mxu0
  %v1815 = vadd.f32 0.0, %v1814
  %v1816 = vpop.f32.mrf.mxu0
  %v1817 = vadd.f32 0.0, %v1816
  %v1818 = vpop.f32.mrf.mxu0
  %v1819 = vadd.f32 0.0, %v1818
  %1820 = vmatprep.mubr.bf16.mxu0 0
  %1821 = vmatmul.mubr.bf16.gmra.mxu0 %v1508
  %v1822 = vpop.f32.mrf.mxu0
  %v1823 = vadd.f32 0.0, %v1822
  %v1824 = vpop.f32.mrf.mxu0
  %v1825 = vadd.f32 0.0, %v1824
  %v1826 = vpop.f32.mrf.mxu0
  %v1827 = vadd.f32 0.0, %v1826
  %v1828 = vpop.f32.mrf.mxu0
  %v1829 = vadd.f32 0.0, %v1828
  %1830 = vmatprep.mubr.bf16.mxu0 0
  %1831 = vmatmul.mubr.bf16.gmra.mxu0 %v1509
  %v1832 = vpop.f32.mrf.mxu0
  %v1833 = vadd.f32 0.0, %v1832
  %v1834 = vpop.f32.mrf.mxu0
  %v1835 = vadd.f32 0.0, %v1834
  %v1836 = vpop.f32.mrf.mxu0
  %v1837 = vadd.f32 0.0, %v1836
  %v1838 = vpop.f32.mrf.mxu0
  %v1839 = vadd.f32 0.0, %v1838
  %1840 = vmatprep.mubr.bf16.mxu0 0
  %1841 = vmatmul.mubr.bf16.gmra.mxu0 %v1510
  %v1842 = vpop.f32.mrf.mxu0
  %v1843 = vadd.f32 0.0, %v1842
  %v1844 = vpop.f32.mrf.mxu0
  %v1845 = vadd.f32 0.0, %v1844
  %v1846 = vpop.f32.mrf.mxu0
  %v1847 = vadd.f32 0.0, %v1846
  %v1848 = vpop.f32.mrf.mxu0
  %v1849 = vadd.f32 0.0, %v1848
  %1850 = vmatprep.mubr.bf16.mxu0 0
  %1851 = vmatmul.mubr.bf16.gmra.mxu0 %v1511
  %v1852 = vpop.f32.mrf.mxu0
  %v1853 = vadd.f32 0.0, %v1852
  %v1854 = vpop.f32.mrf.mxu0
  %v1855 = vadd.f32 0.0, %v1854
  %v1856 = vpop.f32.mrf.mxu0
  %v1857 = vadd.f32 0.0, %v1856
  %v1858 = vpop.f32.mrf.mxu0
  %v1859 = vadd.f32 0.0, %v1858
  %1860 = vmatprep.mubr.bf16.mxu0 0
  %1861 = vmatmul.mubr.bf16.gmra.mxu0 %v1512
  %v1862 = vpop.f32.mrf.mxu0
  %v1863 = vadd.f32 0.0, %v1862
  %v1864 = vpop.f32.mrf.mxu0
  %v1865 = vadd.f32 0.0, %v1864
  %v1866 = vpop.f32.mrf.mxu0
  %v1867 = vadd.f32 0.0, %v1866
  %v1868 = vpop.f32.mrf.mxu0
  %v1869 = vadd.f32 0.0, %v1868
  %1870 = vmatprep.mubr.bf16.mxu0 0
  %1871 = vmatmul.mubr.bf16.gmra.mxu0 %v1513
  %v1872 = vpop.f32.mrf.mxu0
  %v1873 = vadd.f32 0.0, %v1872
  %v1874 = vpop.f32.mrf.mxu0
  %v1875 = vadd.f32 0.0, %v1874
  %v1876 = vpop.f32.mrf.mxu0
  %v1877 = vadd.f32 0.0, %v1876
  %v1878 = vpop.f32.mrf.mxu0
  %v1879 = vadd.f32 0.0, %v1878
  %1880 = vmatprep.mubr.bf16.mxu0 0
  %1881 = vmatmul.mubr.bf16.gmra.mxu0 %v1514
  %v1882 = vpop.f32.mrf.mxu0
  %v1883 = vadd.f32 0.0, %v1882
  %v1884 = vpop.f32.mrf.mxu0
  %v1885 = vadd.f32 0.0, %v1884
  %v1886 = vpop.f32.mrf.mxu0
  %v1887 = vadd.f32 0.0, %v1886
  %v1888 = vpop.f32.mrf.mxu0
  %v1889 = vadd.f32 0.0, %v1888
  %1890 = vmatprep.mubr.bf16.mxu0 0
  %1891 = vmatmul.mubr.bf16.gmra.mxu0 %v1515
  %v1892 = vpop.f32.mrf.mxu0
  %v1893 = vadd.f32 0.0, %v1892
  %v1894 = vpop.f32.mrf.mxu0
  %v1895 = vadd.f32 0.0, %v1894
  %v1896 = vpop.f32.mrf.mxu0
  %v1897 = vadd.f32 0.0, %v1896
  %v1898 = vpop.f32.mrf.mxu0
  %v1899 = vadd.f32 0.0, %v1898
  %1900 = vdwg.mxu0
  %1901 = vmatprep.subr.bf16.mxu0 %v1352
  %1902 = vmatpush1.bf16.msra.mxu0 %v1351
  %1903 = vmatprep.subr.bf16.mxu0 %v1345
  %1904 = vmatpush1.bf16.msra.mxu0 %v1344
  %1905 = vmatprep.subr.bf16.mxu0 %v1338
  %1906 = vmatpush1.bf16.msra.mxu0 %v1337
  %1907 = vmatprep.subr.bf16.mxu0 %v1331
  %1908 = vmatpush1.bf16.msra.mxu0 %v1330
  %1909 = vmatprep.subr.bf16.mxu0 %v1324
  %1910 = vmatpush1.bf16.msra.mxu0 %v1323
  %1911 = vmatprep.subr.bf16.mxu0 %v1317
  %1912 = vmatpush1.bf16.msra.mxu0 %v1316
  %1913 = vmatprep.subr.bf16.mxu0 %v1310
  %1914 = vmatpush1.bf16.msra.mxu0 %v1309
  %1915 = vmatprep.subr.bf16.mxu0 %v1303
  %1916 = vmatpush1.bf16.msra.mxu0 %v1302
  %1917 = vmatprep.subr.bf16.mxu0 0
  %1918 = vmatpush2.bf16.msra.mxu0 0
  %1919 = vmatprep.subr.bf16.mxu0 0
  %1920 = vmatpush2.bf16.msra.mxu0 0
  %1921 = vmatprep.subr.bf16.mxu0 0
  %1922 = vmatpush2.bf16.msra.mxu0 0
  %1923 = vmatprep.subr.bf16.mxu0 0
  %1924 = vmatpush2.bf16.msra.mxu0 0
  %1925 = vmatprep.subr.bf16.mxu0 0
  %1926 = vmatpush2.bf16.msra.mxu0 0
  %1927 = vmatprep.subr.bf16.mxu0 0
  %1928 = vmatpush2.bf16.msra.mxu0 0
  %1929 = vmatprep.subr.bf16.mxu0 0
  %1930 = vmatpush2.bf16.msra.mxu0 0
  %1931 = vmatprep.subr.bf16.mxu0 0
  %1932 = vmatpush2.bf16.msra.mxu0 0
  %1933 = vmatprep.mubr.bf16.mxu0 0
  %1934 = vmatmul.mubr.bf16.gmra.mxu0 %v1484
  %v1935 = vpop.f32.mrf.mxu0
  %v1936 = vadd.f32 0.0, %v1935
  %v1937 = vpop.f32.mrf.mxu0
  %v1938 = vadd.f32 0.0, %v1937
  %v1939 = vpop.f32.mrf.mxu0
  %v1940 = vadd.f32 0.0, %v1939
  %v1941 = vpop.f32.mrf.mxu0
  %v1942 = vadd.f32 0.0, %v1941
  %1943 = vmatprep.mubr.bf16.mxu0 0
  %1944 = vmatmul.mubr.bf16.gmra.mxu0 %v1485
  %v1945 = vpop.f32.mrf.mxu0
  %v1946 = vadd.f32 0.0, %v1945
  %v1947 = vpop.f32.mrf.mxu0
  %v1948 = vadd.f32 0.0, %v1947
  %v1949 = vpop.f32.mrf.mxu0
  %v1950 = vadd.f32 0.0, %v1949
  %v1951 = vpop.f32.mrf.mxu0
  %v1952 = vadd.f32 0.0, %v1951
  %1953 = vmatprep.mubr.bf16.mxu0 0
  %1954 = vmatmul.mubr.bf16.gmra.mxu0 %v1486
  %v1955 = vpop.f32.mrf.mxu0
  %v1956 = vadd.f32 0.0, %v1955
  %v1957 = vpop.f32.mrf.mxu0
  %v1958 = vadd.f32 0.0, %v1957
  %v1959 = vpop.f32.mrf.mxu0
  %v1960 = vadd.f32 0.0, %v1959
  %v1961 = vpop.f32.mrf.mxu0
  %v1962 = vadd.f32 0.0, %v1961
  %1963 = vmatprep.mubr.bf16.mxu0 0
  %1964 = vmatmul.mubr.bf16.gmra.mxu0 %v1487
  %v1965 = vpop.f32.mrf.mxu0
  %v1966 = vadd.f32 0.0, %v1965
  %v1967 = vpop.f32.mrf.mxu0
  %v1968 = vadd.f32 0.0, %v1967
  %v1969 = vpop.f32.mrf.mxu0
  %v1970 = vadd.f32 0.0, %v1969
  %v1971 = vpop.f32.mrf.mxu0
  %v1972 = vadd.f32 0.0, %v1971
  %1973 = vmatprep.mubr.bf16.mxu0 0
  %1974 = vmatmul.mubr.bf16.gmra.mxu0 %v1488
  %v1975 = vpop.f32.mrf.mxu0
  %v1976 = vadd.f32 0.0, %v1975
  %v1977 = vpop.f32.mrf.mxu0
  %v1978 = vadd.f32 0.0, %v1977
  %v1979 = vpop.f32.mrf.mxu0
  %v1980 = vadd.f32 0.0, %v1979
  %v1981 = vpop.f32.mrf.mxu0
  %v1982 = vadd.f32 0.0, %v1981
  %1983 = vmatprep.mubr.bf16.mxu0 0
  %1984 = vmatmul.mubr.bf16.gmra.mxu0 %v1489
  %v1985 = vpop.f32.mrf.mxu0
  %v1986 = vadd.f32 0.0, %v1985
  %v1987 = vpop.f32.mrf.mxu0
  %v1988 = vadd.f32 0.0, %v1987
  %v1989 = vpop.f32.mrf.mxu0
  %v1990 = vadd.f32 0.0, %v1989
  %v1991 = vpop.f32.mrf.mxu0
  %v1992 = vadd.f32 0.0, %v1991
  %1993 = vmatprep.mubr.bf16.mxu0 0
  %1994 = vmatmul.mubr.bf16.gmra.mxu0 %v1490
  %v1995 = vpop.f32.mrf.mxu0
  %v1996 = vadd.f32 0.0, %v1995
  %v1997 = vpop.f32.mrf.mxu0
  %v1998 = vadd.f32 0.0, %v1997
  %v1999 = vpop.f32.mrf.mxu0
  %v2000 = vadd.f32 0.0, %v1999
  %v2001 = vpop.f32.mrf.mxu0
  %v2002 = vadd.f32 0.0, %v2001
  %2003 = vmatprep.mubr.bf16.mxu0 0
  %2004 = vmatmul.mubr.bf16.gmra.mxu0 %v1491
  %v2005 = vpop.f32.mrf.mxu0
  %v2006 = vadd.f32 0.0, %v2005
  %v2007 = vpop.f32.mrf.mxu0
  %v2008 = vadd.f32 0.0, %v2007
  %v2009 = vpop.f32.mrf.mxu0
  %v2010 = vadd.f32 0.0, %v2009
  %v2011 = vpop.f32.mrf.mxu0
  %v2012 = vadd.f32 0.0, %v2011
  %2013 = vmatprep.mubr.bf16.mxu0 0
  %2014 = vmatmul.mubr.bf16.gmra.mxu0 %v1492
  %v2015 = vpop.f32.mrf.mxu0
  %v2016 = vadd.f32 0.0, %v2015
  %v2017 = vpop.f32.mrf.mxu0
  %v2018 = vadd.f32 0.0, %v2017
  %v2019 = vpop.f32.mrf.mxu0
  %v2020 = vadd.f32 0.0, %v2019
  %v2021 = vpop.f32.mrf.mxu0
  %v2022 = vadd.f32 0.0, %v2021
  %2023 = vmatprep.mubr.bf16.mxu0 0
  %2024 = vmatmul.mubr.bf16.gmra.mxu0 %v1493
  %v2025 = vpop.f32.mrf.mxu0
  %v2026 = vadd.f32 0.0, %v2025
  %v2027 = vpop.f32.mrf.mxu0
  %v2028 = vadd.f32 0.0, %v2027
  %v2029 = vpop.f32.mrf.mxu0
  %v2030 = vadd.f32 0.0, %v2029
  %v2031 = vpop.f32.mrf.mxu0
  %v2032 = vadd.f32 0.0, %v2031
  %2033 = vmatprep.mubr.bf16.mxu0 0
  %2034 = vmatmul.mubr.bf16.gmra.mxu0 %v1494
  %v2035 = vpop.f32.mrf.mxu0
  %v2036 = vadd.f32 0.0, %v2035
  %v2037 = vpop.f32.mrf.mxu0
  %v2038 = vadd.f32 0.0, %v2037
  %v2039 = vpop.f32.mrf.mxu0
  %v2040 = vadd.f32 0.0, %v2039
  %v2041 = vpop.f32.mrf.mxu0
  %v2042 = vadd.f32 0.0, %v2041
  %2043 = vmatprep.mubr.bf16.mxu0 0
  %2044 = vmatmul.mubr.bf16.gmra.mxu0 %v1495
  %v2045 = vpop.f32.mrf.mxu0
  %v2046 = vadd.f32 0.0, %v2045
  %v2047 = vpop.f32.mrf.mxu0
  %v2048 = vadd.f32 0.0, %v2047
  %v2049 = vpop.f32.mrf.mxu0
  %v2050 = vadd.f32 0.0, %v2049
  %v2051 = vpop.f32.mrf.mxu0
  %v2052 = vadd.f32 0.0, %v2051
  %2053 = vmatprep.mubr.bf16.mxu0 0
  %2054 = vmatmul.mubr.bf16.gmra.mxu0 %v1496
  %v2055 = vpop.f32.mrf.mxu0
  %v2056 = vadd.f32 0.0, %v2055
  %v2057 = vpop.f32.mrf.mxu0
  %v2058 = vadd.f32 0.0, %v2057
  %v2059 = vpop.f32.mrf.mxu0
  %v2060 = vadd.f32 0.0, %v2059
  %v2061 = vpop.f32.mrf.mxu0
  %v2062 = vadd.f32 0.0, %v2061
  %2063 = vmatprep.mubr.bf16.mxu0 0
  %2064 = vmatmul.mubr.bf16.gmra.mxu0 %v1497
  %v2065 = vpop.f32.mrf.mxu0
  %v2066 = vadd.f32 0.0, %v2065
  %v2067 = vpop.f32.mrf.mxu0
  %v2068 = vadd.f32 0.0, %v2067
  %v2069 = vpop.f32.mrf.mxu0
  %v2070 = vadd.f32 0.0, %v2069
  %v2071 = vpop.f32.mrf.mxu0
  %v2072 = vadd.f32 0.0, %v2071
  %2073 = vmatprep.mubr.bf16.mxu0 0
  %2074 = vmatmul.mubr.bf16.gmra.mxu0 %v1498
  %v2075 = vpop.f32.mrf.mxu0
  %v2076 = vadd.f32 0.0, %v2075
  %v2077 = vpop.f32.mrf.mxu0
  %v2078 = vadd.f32 0.0, %v2077
  %v2079 = vpop.f32.mrf.mxu0
  %v2080 = vadd.f32 0.0, %v2079
  %v2081 = vpop.f32.mrf.mxu0
  %v2082 = vadd.f32 0.0, %v2081
  %2083 = vmatprep.mubr.bf16.mxu0 0
  %2084 = vmatmul.mubr.bf16.gmra.mxu0 %v1499
  %v2085 = vpop.f32.mrf.mxu0
  %v2086 = vadd.f32 0.0, %v2085
  %v2087 = vpop.f32.mrf.mxu0
  %v2088 = vadd.f32 0.0, %v2087
  %v2089 = vpop.f32.mrf.mxu0
  %v2090 = vadd.f32 0.0, %v2089
  %v2091 = vpop.f32.mrf.mxu0
  %v2092 = vadd.f32 0.0, %v2091
  %2093 = vmatprep.mubr.bf16.mxu0 0
  %2094 = vmatmul.mubr.bf16.gmra.mxu0 %v1500
  %v2095 = vpop.f32.mrf.mxu0
  %v2096 = vadd.f32 0.0, %v2095
  %v2097 = vpop.f32.mrf.mxu0
  %v2098 = vadd.f32 0.0, %v2097
  %v2099 = vpop.f32.mrf.mxu0
  %v2100 = vadd.f32 0.0, %v2099
  %v2101 = vpop.f32.mrf.mxu0
  %v2102 = vadd.f32 0.0, %v2101
  %2103 = vmatprep.mubr.bf16.mxu0 0
  %2104 = vmatmul.mubr.bf16.gmra.mxu0 %v1501
  %v2105 = vpop.f32.mrf.mxu0
  %v2106 = vadd.f32 0.0, %v2105
  %v2107 = vpop.f32.mrf.mxu0
  %v2108 = vadd.f32 0.0, %v2107
  %v2109 = vpop.f32.mrf.mxu0
  %v2110 = vadd.f32 0.0, %v2109
  %v2111 = vpop.f32.mrf.mxu0
  %v2112 = vadd.f32 0.0, %v2111
  %2113 = vmatprep.mubr.bf16.mxu0 0
  %2114 = vmatmul.mubr.bf16.gmra.mxu0 %v1502
  %v2115 = vpop.f32.mrf.mxu0
  %v2116 = vadd.f32 0.0, %v2115
  %v2117 = vpop.f32.mrf.mxu0
  %v2118 = vadd.f32 0.0, %v2117
  %v2119 = vpop.f32.mrf.mxu0
  %v2120 = vadd.f32 0.0, %v2119
  %v2121 = vpop.f32.mrf.mxu0
  %v2122 = vadd.f32 0.0, %v2121
  %2123 = vmatprep.mubr.bf16.mxu0 0
  %2124 = vmatmul.mubr.bf16.gmra.mxu0 %v1503
  %v2125 = vpop.f32.mrf.mxu0
  %v2126 = vadd.f32 0.0, %v2125
  %v2127 = vpop.f32.mrf.mxu0
  %v2128 = vadd.f32 0.0, %v2127
  %v2129 = vpop.f32.mrf.mxu0
  %v2130 = vadd.f32 0.0, %v2129
  %v2131 = vpop.f32.mrf.mxu0
  %v2132 = vadd.f32 0.0, %v2131
  %2133 = vmatprep.mubr.bf16.mxu0 0
  %2134 = vmatmul.mubr.bf16.gmra.mxu0 %v1504
  %v2135 = vpop.f32.mrf.mxu0
  %v2136 = vadd.f32 0.0, %v2135
  %v2137 = vpop.f32.mrf.mxu0
  %v2138 = vadd.f32 0.0, %v2137
  %v2139 = vpop.f32.mrf.mxu0
  %v2140 = vadd.f32 0.0, %v2139
  %v2141 = vpop.f32.mrf.mxu0
  %v2142 = vadd.f32 0.0, %v2141
  %2143 = vmatprep.mubr.bf16.mxu0 0
  %2144 = vmatmul.mubr.bf16.gmra.mxu0 %v1505
  %v2145 = vpop.f32.mrf.mxu0
  %v2146 = vadd.f32 0.0, %v2145
  %v2147 = vpop.f32.mrf.mxu0
  %v2148 = vadd.f32 0.0, %v2147
  %v2149 = vpop.f32.mrf.mxu0
  %v2150 = vadd.f32 0.0, %v2149
  %v2151 = vpop.f32.mrf.mxu0
  %v2152 = vadd.f32 0.0, %v2151
  %2153 = vmatprep.mubr.bf16.mxu0 0
  %2154 = vmatmul.mubr.bf16.gmra.mxu0 %v1506
  %v2155 = vpop.f32.mrf.mxu0
  %v2156 = vadd.f32 0.0, %v2155
  %v2157 = vpop.f32.mrf.mxu0
  %v2158 = vadd.f32 0.0, %v2157
  %v2159 = vpop.f32.mrf.mxu0
  %v2160 = vadd.f32 0.0, %v2159
  %v2161 = vpop.f32.mrf.mxu0
  %v2162 = vadd.f32 0.0, %v2161
  %2163 = vmatprep.mubr.bf16.mxu0 0
  %2164 = vmatmul.mubr.bf16.gmra.mxu0 %v1507
  %v2165 = vpop.f32.mrf.mxu0
  %v2166 = vadd.f32 0.0, %v2165
  %v2167 = vpop.f32.mrf.mxu0
  %v2168 = vadd.f32 0.0, %v2167
  %v2169 = vpop.f32.mrf.mxu0
  %v2170 = vadd.f32 0.0, %v2169
  %v2171 = vpop.f32.mrf.mxu0
  %v2172 = vadd.f32 0.0, %v2171
  %2173 = vmatprep.mubr.bf16.mxu0 0
  %2174 = vmatmul.mubr.bf16.gmra.mxu0 %v1508
  %v2175 = vpop.f32.mrf.mxu0
  %v2176 = vadd.f32 0.0, %v2175
  %v2177 = vpop.f32.mrf.mxu0
  %v2178 = vadd.f32 0.0, %v2177
  %v2179 = vpop.f32.mrf.mxu0
  %v2180 = vadd.f32 0.0, %v2179
  %v2181 = vpop.f32.mrf.mxu0
  %v2182 = vadd.f32 0.0, %v2181
  %2183 = vmatprep.mubr.bf16.mxu0 0
  %2184 = vmatmul.mubr.bf16.gmra.mxu0 %v1509
  %v2185 = vpop.f32.mrf.mxu0
  %v2186 = vadd.f32 0.0, %v2185
  %v2187 = vpop.f32.mrf.mxu0
  %v2188 = vadd.f32 0.0, %v2187
  %v2189 = vpop.f32.mrf.mxu0
  %v2190 = vadd.f32 0.0, %v2189
  %v2191 = vpop.f32.mrf.mxu0
  %v2192 = vadd.f32 0.0, %v2191
  %2193 = vmatprep.mubr.bf16.mxu0 0
  %2194 = vmatmul.mubr.bf16.gmra.mxu0 %v1510
  %v2195 = vpop.f32.mrf.mxu0
  %v2196 = vadd.f32 0.0, %v2195
  %v2197 = vpop.f32.mrf.mxu0
  %v2198 = vadd.f32 0.0, %v2197
  %v2199 = vpop.f32.mrf.mxu0
  %v2200 = vadd.f32 0.0, %v2199
  %v2201 = vpop.f32.mrf.mxu0
  %v2202 = vadd.f32 0.0, %v2201
  %2203 = vmatprep.mubr.bf16.mxu0 0
  %2204 = vmatmul.mubr.bf16.gmra.mxu0 %v1511
  %v2205 = vpop.f32.mrf.mxu0
  %v2206 = vadd.f32 0.0, %v2205
  %v2207 = vpop.f32.mrf.mxu0
  %v2208 = vadd.f32 0.0, %v2207
  %v2209 = vpop.f32.mrf.mxu0
  %v2210 = vadd.f32 0.0, %v2209
  %v2211 = vpop.f32.mrf.mxu0
  %v2212 = vadd.f32 0.0, %v2211
  %2213 = vmatprep.mubr.bf16.mxu0 0
  %2214 = vmatmul.mubr.bf16.gmra.mxu0 %v1512
  %v2215 = vpop.f32.mrf.mxu0
  %v2216 = vadd.f32 0.0, %v2215
  %v2217 = vpop.f32.mrf.mxu0
  %v2218 = vadd.f32 0.0, %v2217
  %v2219 = vpop.f32.mrf.mxu0
  %v2220 = vadd.f32 0.0, %v2219
  %v2221 = vpop.f32.mrf.mxu0
  %v2222 = vadd.f32 0.0, %v2221
  %2223 = vmatprep.mubr.bf16.mxu0 0
  %2224 = vmatmul.mubr.bf16.gmra.mxu0 %v1513
  %v2225 = vpop.f32.mrf.mxu0
  %v2226 = vadd.f32 0.0, %v2225
  %v2227 = vpop.f32.mrf.mxu0
  %v2228 = vadd.f32 0.0, %v2227
  %v2229 = vpop.f32.mrf.mxu0
  %v2230 = vadd.f32 0.0, %v2229
  %v2231 = vpop.f32.mrf.mxu0
  %v2232 = vadd.f32 0.0, %v2231
  %2233 = vmatprep.mubr.bf16.mxu0 0
  %2234 = vmatmul.mubr.bf16.gmra.mxu0 %v1514
  %v2235 = vpop.f32.mrf.mxu0
  %v2236 = vadd.f32 0.0, %v2235
  %v2237 = vpop.f32.mrf.mxu0
  %v2238 = vadd.f32 0.0, %v2237
  %v2239 = vpop.f32.mrf.mxu0
  %v2240 = vadd.f32 0.0, %v2239
  %v2241 = vpop.f32.mrf.mxu0
  %v2242 = vadd.f32 0.0, %v2241
  %2243 = vmatprep.mubr.bf16.mxu0 0
  %2244 = vmatmul.mubr.bf16.gmra.mxu0 %v1515
  %v2245 = vpop.f32.mrf.mxu0
  %v2246 = vadd.f32 0.0, %v2245
  %v2247 = vpop.f32.mrf.mxu0
  %v2248 = vadd.f32 0.0, %v2247
  %v2249 = vpop.f32.mrf.mxu0
  %v2250 = vadd.f32 0.0, %v2249
  %v2251 = vpop.f32.mrf.mxu0
  %v2252 = vadd.f32 0.0, %v2251
  %2253 = vdwg.mxu0
  %2254 = vmatprep.subr.bf16.mxu0 %v1354
  %2255 = vmatpush1.bf16.msra.mxu0 %v1353
  %2256 = vmatprep.subr.bf16.mxu0 %v1347
  %2257 = vmatpush1.bf16.msra.mxu0 %v1346
  %2258 = vmatprep.subr.bf16.mxu0 %v1340
  %2259 = vmatpush1.bf16.msra.mxu0 %v1339
  %2260 = vmatprep.subr.bf16.mxu0 %v1333
  %2261 = vmatpush1.bf16.msra.mxu0 %v1332
  %2262 = vmatprep.subr.bf16.mxu0 %v1326
  %2263 = vmatpush1.bf16.msra.mxu0 %v1325
  %2264 = vmatprep.subr.bf16.mxu0 %v1319
  %2265 = vmatpush1.bf16.msra.mxu0 %v1318
  %2266 = vmatprep.subr.bf16.mxu0 %v1312
  %2267 = vmatpush1.bf16.msra.mxu0 %v1311
  %2268 = vmatprep.subr.bf16.mxu0 %v1305
  %2269 = vmatpush1.bf16.msra.mxu0 %v1304
  %2270 = vmatprep.subr.bf16.mxu0 0
  %2271 = vmatpush2.bf16.msra.mxu0 0
  %2272 = vmatprep.subr.bf16.mxu0 0
  %2273 = vmatpush2.bf16.msra.mxu0 0
  %2274 = vmatprep.subr.bf16.mxu0 0
  %2275 = vmatpush2.bf16.msra.mxu0 0
  %2276 = vmatprep.subr.bf16.mxu0 0
  %2277 = vmatpush2.bf16.msra.mxu0 0
  %2278 = vmatprep.subr.bf16.mxu0 0
  %2279 = vmatpush2.bf16.msra.mxu0 0
  %2280 = vmatprep.subr.bf16.mxu0 0
  %2281 = vmatpush2.bf16.msra.mxu0 0
  %2282 = vmatprep.subr.bf16.mxu0 0
  %2283 = vmatpush2.bf16.msra.mxu0 0
  %2284 = vmatprep.subr.bf16.mxu0 0
  %2285 = vmatpush2.bf16.msra.mxu0 0
  %2286 = vmatprep.mubr.bf16.mxu0 0
  %2287 = vmatmul.mubr.bf16.gmra.mxu0 %v1484
  %v2288 = vpop.f32.mrf.mxu0
  %v2289 = vadd.f32 0.0, %v2288
  %v2290 = vpop.f32.mrf.mxu0
  %v2291 = vadd.f32 0.0, %v2290
  %v2292 = vpop.f32.mrf.mxu0
  %v2293 = vadd.f32 0.0, %v2292
  %v2294 = vpop.f32.mrf.mxu0
  %v2295 = vadd.f32 0.0, %v2294
  %2296 = vmatprep.mubr.bf16.mxu0 0
  %2297 = vmatmul.mubr.bf16.gmra.mxu0 %v1485
  %v2298 = vpop.f32.mrf.mxu0
  %v2299 = vadd.f32 0.0, %v2298
  %v2300 = vpop.f32.mrf.mxu0
  %v2301 = vadd.f32 0.0, %v2300
  %v2302 = vpop.f32.mrf.mxu0
  %v2303 = vadd.f32 0.0, %v2302
  %v2304 = vpop.f32.mrf.mxu0
  %v2305 = vadd.f32 0.0, %v2304
  %2306 = vmatprep.mubr.bf16.mxu0 0
  %2307 = vmatmul.mubr.bf16.gmra.mxu0 %v1486
  %v2308 = vpop.f32.mrf.mxu0
  %v2309 = vadd.f32 0.0, %v2308
  %v2310 = vpop.f32.mrf.mxu0
  %v2311 = vadd.f32 0.0, %v2310
  %v2312 = vpop.f32.mrf.mxu0
  %v2313 = vadd.f32 0.0, %v2312
  %v2314 = vpop.f32.mrf.mxu0
  %v2315 = vadd.f32 0.0, %v2314
  %2316 = vmatprep.mubr.bf16.mxu0 0
  %2317 = vmatmul.mubr.bf16.gmra.mxu0 %v1487
  %v2318 = vpop.f32.mrf.mxu0
  %v2319 = vadd.f32 0.0, %v2318
  %v2320 = vpop.f32.mrf.mxu0
  %v2321 = vadd.f32 0.0, %v2320
  %v2322 = vpop.f32.mrf.mxu0
  %v2323 = vadd.f32 0.0, %v2322
  %v2324 = vpop.f32.mrf.mxu0
  %v2325 = vadd.f32 0.0, %v2324
  %2326 = vmatprep.mubr.bf16.mxu0 0
  %2327 = vmatmul.mubr.bf16.gmra.mxu0 %v1488
  %v2328 = vpop.f32.mrf.mxu0
  %v2329 = vadd.f32 0.0, %v2328
  %v2330 = vpop.f32.mrf.mxu0
  %v2331 = vadd.f32 0.0, %v2330
  %v2332 = vpop.f32.mrf.mxu0
  %v2333 = vadd.f32 0.0, %v2332
  %v2334 = vpop.f32.mrf.mxu0
  %v2335 = vadd.f32 0.0, %v2334
  %2336 = vmatprep.mubr.bf16.mxu0 0
  %2337 = vmatmul.mubr.bf16.gmra.mxu0 %v1489
  %v2338 = vpop.f32.mrf.mxu0
  %v2339 = vadd.f32 0.0, %v2338
  %v2340 = vpop.f32.mrf.mxu0
  %v2341 = vadd.f32 0.0, %v2340
  %v2342 = vpop.f32.mrf.mxu0
  %v2343 = vadd.f32 0.0, %v2342
  %v2344 = vpop.f32.mrf.mxu0
  %v2345 = vadd.f32 0.0, %v2344
  %2346 = vmatprep.mubr.bf16.mxu0 0
  %2347 = vmatmul.mubr.bf16.gmra.mxu0 %v1490
  %v2348 = vpop.f32.mrf.mxu0
  %v2349 = vadd.f32 0.0, %v2348
  %v2350 = vpop.f32.mrf.mxu0
  %v2351 = vadd.f32 0.0, %v2350
  %v2352 = vpop.f32.mrf.mxu0
  %v2353 = vadd.f32 0.0, %v2352
  %v2354 = vpop.f32.mrf.mxu0
  %v2355 = vadd.f32 0.0, %v2354
  %2356 = vmatprep.mubr.bf16.mxu0 0
  %2357 = vmatmul.mubr.bf16.gmra.mxu0 %v1491
  %v2358 = vpop.f32.mrf.mxu0
  %v2359 = vadd.f32 0.0, %v2358
  %v2360 = vpop.f32.mrf.mxu0
  %v2361 = vadd.f32 0.0, %v2360
  %v2362 = vpop.f32.mrf.mxu0
  %v2363 = vadd.f32 0.0, %v2362
  %v2364 = vpop.f32.mrf.mxu0
  %v2365 = vadd.f32 0.0, %v2364
  %2366 = vmatprep.mubr.bf16.mxu0 0
  %2367 = vmatmul.mubr.bf16.gmra.mxu0 %v1492
  %v2368 = vpop.f32.mrf.mxu0
  %v2369 = vadd.f32 0.0, %v2368
  %v2370 = vpop.f32.mrf.mxu0
  %v2371 = vadd.f32 0.0, %v2370
  %v2372 = vpop.f32.mrf.mxu0
  %v2373 = vadd.f32 0.0, %v2372
  %v2374 = vpop.f32.mrf.mxu0
  %v2375 = vadd.f32 0.0, %v2374
  %2376 = vmatprep.mubr.bf16.mxu0 0
  %2377 = vmatmul.mubr.bf16.gmra.mxu0 %v1493
  %v2378 = vpop.f32.mrf.mxu0
  %v2379 = vadd.f32 0.0, %v2378
  %v2380 = vpop.f32.mrf.mxu0
  %v2381 = vadd.f32 0.0, %v2380
  %v2382 = vpop.f32.mrf.mxu0
  %v2383 = vadd.f32 0.0, %v2382
  %v2384 = vpop.f32.mrf.mxu0
  %v2385 = vadd.f32 0.0, %v2384
  %2386 = vmatprep.mubr.bf16.mxu0 0
  %2387 = vmatmul.mubr.bf16.gmra.mxu0 %v1494
  %v2388 = vpop.f32.mrf.mxu0
  %v2389 = vadd.f32 0.0, %v2388
  %v2390 = vpop.f32.mrf.mxu0
  %v2391 = vadd.f32 0.0, %v2390
  %v2392 = vpop.f32.mrf.mxu0
  %v2393 = vadd.f32 0.0, %v2392
  %v2394 = vpop.f32.mrf.mxu0
  %v2395 = vadd.f32 0.0, %v2394
  %2396 = vmatprep.mubr.bf16.mxu0 0
  %2397 = vmatmul.mubr.bf16.gmra.mxu0 %v1495
  %v2398 = vpop.f32.mrf.mxu0
  %v2399 = vadd.f32 0.0, %v2398
  %v2400 = vpop.f32.mrf.mxu0
  %v2401 = vadd.f32 0.0, %v2400
  %v2402 = vpop.f32.mrf.mxu0
  %v2403 = vadd.f32 0.0, %v2402
  %v2404 = vpop.f32.mrf.mxu0
  %v2405 = vadd.f32 0.0, %v2404
  %2406 = vmatprep.mubr.bf16.mxu0 0
  %2407 = vmatmul.mubr.bf16.gmra.mxu0 %v1496
  %v2408 = vpop.f32.mrf.mxu0
  %v2409 = vadd.f32 0.0, %v2408
  %v2410 = vpop.f32.mrf.mxu0
  %v2411 = vadd.f32 0.0, %v2410
  %v2412 = vpop.f32.mrf.mxu0
  %v2413 = vadd.f32 0.0, %v2412
  %v2414 = vpop.f32.mrf.mxu0
  %v2415 = vadd.f32 0.0, %v2414
  %2416 = vmatprep.mubr.bf16.mxu0 0
  %2417 = vmatmul.mubr.bf16.gmra.mxu0 %v1497
  %v2418 = vpop.f32.mrf.mxu0
  %v2419 = vadd.f32 0.0, %v2418
  %v2420 = vpop.f32.mrf.mxu0
  %v2421 = vadd.f32 0.0, %v2420
  %v2422 = vpop.f32.mrf.mxu0
  %v2423 = vadd.f32 0.0, %v2422
  %v2424 = vpop.f32.mrf.mxu0
  %v2425 = vadd.f32 0.0, %v2424
  %2426 = vmatprep.mubr.bf16.mxu0 0
  %2427 = vmatmul.mubr.bf16.gmra.mxu0 %v1498
  %v2428 = vpop.f32.mrf.mxu0
  %v2429 = vadd.f32 0.0, %v2428
  %v2430 = vpop.f32.mrf.mxu0
  %v2431 = vadd.f32 0.0, %v2430
  %v2432 = vpop.f32.mrf.mxu0
  %v2433 = vadd.f32 0.0, %v2432
  %v2434 = vpop.f32.mrf.mxu0
  %v2435 = vadd.f32 0.0, %v2434
  %2436 = vmatprep.mubr.bf16.mxu0 0
  %2437 = vmatmul.mubr.bf16.gmra.mxu0 %v1499
  %v2438 = vpop.f32.mrf.mxu0
  %v2439 = vadd.f32 0.0, %v2438
  %v2440 = vpop.f32.mrf.mxu0
  %v2441 = vadd.f32 0.0, %v2440
  %v2442 = vpop.f32.mrf.mxu0
  %v2443 = vadd.f32 0.0, %v2442
  %v2444 = vpop.f32.mrf.mxu0
  %v2445 = vadd.f32 0.0, %v2444
  %2446 = vmatprep.mubr.bf16.mxu0 0
  %2447 = vmatmul.mubr.bf16.gmra.mxu0 %v1500
  %v2448 = vpop.f32.mrf.mxu0
  %v2449 = vadd.f32 0.0, %v2448
  %v2450 = vpop.f32.mrf.mxu0
  %v2451 = vadd.f32 0.0, %v2450
  %v2452 = vpop.f32.mrf.mxu0
  %v2453 = vadd.f32 0.0, %v2452
  %v2454 = vpop.f32.mrf.mxu0
  %v2455 = vadd.f32 0.0, %v2454
  %2456 = vmatprep.mubr.bf16.mxu0 0
  %2457 = vmatmul.mubr.bf16.gmra.mxu0 %v1501
  %v2458 = vpop.f32.mrf.mxu0
  %v2459 = vadd.f32 0.0, %v2458
  %v2460 = vpop.f32.mrf.mxu0
  %v2461 = vadd.f32 0.0, %v2460
  %v2462 = vpop.f32.mrf.mxu0
  %v2463 = vadd.f32 0.0, %v2462
  %v2464 = vpop.f32.mrf.mxu0
  %v2465 = vadd.f32 0.0, %v2464
  %2466 = vmatprep.mubr.bf16.mxu0 0
  %2467 = vmatmul.mubr.bf16.gmra.mxu0 %v1502
  %v2468 = vpop.f32.mrf.mxu0
  %v2469 = vadd.f32 0.0, %v2468
  %v2470 = vpop.f32.mrf.mxu0
  %v2471 = vadd.f32 0.0, %v2470
  %v2472 = vpop.f32.mrf.mxu0
  %v2473 = vadd.f32 0.0, %v2472
  %v2474 = vpop.f32.mrf.mxu0
  %v2475 = vadd.f32 0.0, %v2474
  %2476 = vmatprep.mubr.bf16.mxu0 0
  %2477 = vmatmul.mubr.bf16.gmra.mxu0 %v1503
  %v2478 = vpop.f32.mrf.mxu0
  %v2479 = vadd.f32 0.0, %v2478
  %v2480 = vpop.f32.mrf.mxu0
  %v2481 = vadd.f32 0.0, %v2480
  %v2482 = vpop.f32.mrf.mxu0
  %v2483 = vadd.f32 0.0, %v2482
  %v2484 = vpop.f32.mrf.mxu0
  %v2485 = vadd.f32 0.0, %v2484
  %2486 = vmatprep.mubr.bf16.mxu0 0
  %2487 = vmatmul.mubr.bf16.gmra.mxu0 %v1504
  %v2488 = vpop.f32.mrf.mxu0
  %v2489 = vadd.f32 0.0, %v2488
  %v2490 = vpop.f32.mrf.mxu0
  %v2491 = vadd.f32 0.0, %v2490
  %v2492 = vpop.f32.mrf.mxu0
  %v2493 = vadd.f32 0.0, %v2492
  %v2494 = vpop.f32.mrf.mxu0
  %v2495 = vadd.f32 0.0, %v2494
  %2496 = vmatprep.mubr.bf16.mxu0 0
  %2497 = vmatmul.mubr.bf16.gmra.mxu0 %v1505
  %v2498 = vpop.f32.mrf.mxu0
  %v2499 = vadd.f32 0.0, %v2498
  %v2500 = vpop.f32.mrf.mxu0
  %v2501 = vadd.f32 0.0, %v2500
  %v2502 = vpop.f32.mrf.mxu0
  %v2503 = vadd.f32 0.0, %v2502
  %v2504 = vpop.f32.mrf.mxu0
  %v2505 = vadd.f32 0.0, %v2504
  %2506 = vmatprep.mubr.bf16.mxu0 0
  %2507 = vmatmul.mubr.bf16.gmra.mxu0 %v1506
  %v2508 = vpop.f32.mrf.mxu0
  %v2509 = vadd.f32 0.0, %v2508
  %v2510 = vpop.f32.mrf.mxu0
  %v2511 = vadd.f32 0.0, %v2510
  %v2512 = vpop.f32.mrf.mxu0
  %v2513 = vadd.f32 0.0, %v2512
  %v2514 = vpop.f32.mrf.mxu0
  %v2515 = vadd.f32 0.0, %v2514
  %2516 = vmatprep.mubr.bf16.mxu0 0
  %2517 = vmatmul.mubr.bf16.gmra.mxu0 %v1507
  %v2518 = vpop.f32.mrf.mxu0
  %v2519 = vadd.f32 0.0, %v2518
  %v2520 = vpop.f32.mrf.mxu0
  %v2521 = vadd.f32 0.0, %v2520
  %v2522 = vpop.f32.mrf.mxu0
  %v2523 = vadd.f32 0.0, %v2522
  %v2524 = vpop.f32.mrf.mxu0
  %v2525 = vadd.f32 0.0, %v2524
  %2526 = vmatprep.mubr.bf16.mxu0 0
  %2527 = vmatmul.mubr.bf16.gmra.mxu0 %v1508
  %v2528 = vpop.f32.mrf.mxu0
  %v2529 = vadd.f32 0.0, %v2528
  %v2530 = vpop.f32.mrf.mxu0
  %v2531 = vadd.f32 0.0, %v2530
  %v2532 = vpop.f32.mrf.mxu0
  %v2533 = vadd.f32 0.0, %v2532
  %v2534 = vpop.f32.mrf.mxu0
  %v2535 = vadd.f32 0.0, %v2534
  %2536 = vmatprep.mubr.bf16.mxu0 0
  %2537 = vmatmul.mubr.bf16.gmra.mxu0 %v1509
  %v2538 = vpop.f32.mrf.mxu0
  %v2539 = vadd.f32 0.0, %v2538
  %v2540 = vpop.f32.mrf.mxu0
  %v2541 = vadd.f32 0.0, %v2540
  %v2542 = vpop.f32.mrf.mxu0
  %v2543 = vadd.f32 0.0, %v2542
  %v2544 = vpop.f32.mrf.mxu0
  %v2545 = vadd.f32 0.0, %v2544
  %2546 = vmatprep.mubr.bf16.mxu0 0
  %2547 = vmatmul.mubr.bf16.gmra.mxu0 %v1510
  %v2548 = vpop.f32.mrf.mxu0
  %v2549 = vadd.f32 0.0, %v2548
  %v2550 = vpop.f32.mrf.mxu0
  %v2551 = vadd.f32 0.0, %v2550
  %v2552 = vpop.f32.mrf.mxu0
  %v2553 = vadd.f32 0.0, %v2552
  %v2554 = vpop.f32.mrf.mxu0
  %v2555 = vadd.f32 0.0, %v2554
  %2556 = vmatprep.mubr.bf16.mxu0 0
  %2557 = vmatmul.mubr.bf16.gmra.mxu0 %v1511
  %v2558 = vpop.f32.mrf.mxu0
  %v2559 = vadd.f32 0.0, %v2558
  %v2560 = vpop.f32.mrf.mxu0
  %v2561 = vadd.f32 0.0, %v2560
  %v2562 = vpop.f32.mrf.mxu0
  %v2563 = vadd.f32 0.0, %v2562
  %v2564 = vpop.f32.mrf.mxu0
  %v2565 = vadd.f32 0.0, %v2564
  %2566 = vmatprep.mubr.bf16.mxu0 0
  %2567 = vmatmul.mubr.bf16.gmra.mxu0 %v1512
  %v2568 = vpop.f32.mrf.mxu0
  %v2569 = vadd.f32 0.0, %v2568
  %v2570 = vpop.f32.mrf.mxu0
  %v2571 = vadd.f32 0.0, %v2570
  %v2572 = vpop.f32.mrf.mxu0
  %v2573 = vadd.f32 0.0, %v2572
  %v2574 = vpop.f32.mrf.mxu0
  %v2575 = vadd.f32 0.0, %v2574
  %2576 = vmatprep.mubr.bf16.mxu0 0
  %2577 = vmatmul.mubr.bf16.gmra.mxu0 %v1513
  %v2578 = vpop.f32.mrf.mxu0
  %v2579 = vadd.f32 0.0, %v2578
  %v2580 = vpop.f32.mrf.mxu0
  %v2581 = vadd.f32 0.0, %v2580
  %v2582 = vpop.f32.mrf.mxu0
  %v2583 = vadd.f32 0.0, %v2582
  %v2584 = vpop.f32.mrf.mxu0
  %v2585 = vadd.f32 0.0, %v2584
  %2586 = vmatprep.mubr.bf16.mxu0 0
  %2587 = vmatmul.mubr.bf16.gmra.mxu0 %v1514
  %v2588 = vpop.f32.mrf.mxu0
  %v2589 = vadd.f32 0.0, %v2588
  %v2590 = vpop.f32.mrf.mxu0
  %v2591 = vadd.f32 0.0, %v2590
  %v2592 = vpop.f32.mrf.mxu0
  %v2593 = vadd.f32 0.0, %v2592
  %v2594 = vpop.f32.mrf.mxu0
  %v2595 = vadd.f32 0.0, %v2594
  %2596 = vmatprep.mubr.bf16.mxu0 0
  %2597 = vmatmul.mubr.bf16.gmra.mxu0 %v1515
  %v2598 = vpop.f32.mrf.mxu0
  %v2599 = vadd.f32 0.0, %v2598
  %v2600 = vpop.f32.mrf.mxu0
  %v2601 = vadd.f32 0.0, %v2600
  %v2602 = vpop.f32.mrf.mxu0
  %v2603 = vadd.f32 0.0, %v2602
  %v2604 = vpop.f32.mrf.mxu0
  %v2605 = vadd.f32 0.0, %v2604
  %2606 = vdwg.mxu0
  %2607 = vmatprep.subr.bf16.mxu0 0
  %2608 = vmatpush1.bf16.msra.mxu0 %v1355
  %2609 = vmatprep.subr.bf16.mxu0 0
  %2610 = vmatpush1.bf16.msra.mxu0 %v1348
  %2611 = vmatprep.subr.bf16.mxu0 0
  %2612 = vmatpush1.bf16.msra.mxu0 %v1341
  %2613 = vmatprep.subr.bf16.mxu0 0
  %2614 = vmatpush1.bf16.msra.mxu0 %v1334
  %2615 = vmatprep.subr.bf16.mxu0 0
  %2616 = vmatpush1.bf16.msra.mxu0 %v1327
  %2617 = vmatprep.subr.bf16.mxu0 0
  %2618 = vmatpush1.bf16.msra.mxu0 %v1320
  %2619 = vmatprep.subr.bf16.mxu0 0
  %2620 = vmatpush1.bf16.msra.mxu0 %v1313
  %2621 = vmatprep.subr.bf16.mxu0 0
  %2622 = vmatpush1.bf16.msra.mxu0 %v1306
  %2623 = vmatprep.subr.bf16.mxu0 0
  %2624 = vmatpush2.bf16.msra.mxu0 0
  %2625 = vmatprep.subr.bf16.mxu0 0
  %2626 = vmatpush2.bf16.msra.mxu0 0
  %2627 = vmatprep.subr.bf16.mxu0 0
  %2628 = vmatpush2.bf16.msra.mxu0 0
  %2629 = vmatprep.subr.bf16.mxu0 0
  %2630 = vmatpush2.bf16.msra.mxu0 0
  %2631 = vmatprep.subr.bf16.mxu0 0
  %2632 = vmatpush2.bf16.msra.mxu0 0
  %2633 = vmatprep.subr.bf16.mxu0 0
  %2634 = vmatpush2.bf16.msra.mxu0 0
  %2635 = vmatprep.subr.bf16.mxu0 0
  %2636 = vmatpush2.bf16.msra.mxu0 0
  %2637 = vmatprep.subr.bf16.mxu0 0
  %2638 = vmatpush2.bf16.msra.mxu0 0
  %2639 = vmatprep.mubr.bf16.mxu0 0
  %2640 = vmatmul.mubr.bf16.gmra.mxu0 %v1484
  %v2641 = vpop.f32.mrf.mxu0
  %v2642 = vadd.f32 0.0, %v2641
  %v2643 = vpop.f32.mrf.mxu0
  %v2644 = vpop.f32.mrf.mxu0
  %v2645 = vadd.f32 0.0, %v2644
  %v2646 = vpop.f32.mrf.mxu0
  %2647 = vmatprep.mubr.bf16.mxu0 0
  %2648 = vmatmul.mubr.bf16.gmra.mxu0 %v1485
  %v2649 = vpop.f32.mrf.mxu0
  %v2650 = vadd.f32 0.0, %v2649
  %v2651 = vpop.f32.mrf.mxu0
  %v2652 = vpop.f32.mrf.mxu0
  %v2653 = vadd.f32 0.0, %v2652
  %v2654 = vpop.f32.mrf.mxu0
  %2655 = vmatprep.mubr.bf16.mxu0 0
  %2656 = vmatmul.mubr.bf16.gmra.mxu0 %v1486
  %v2657 = vpop.f32.mrf.mxu0
  %v2658 = vadd.f32 0.0, %v2657
  %v2659 = vpop.f32.mrf.mxu0
  %v2660 = vpop.f32.mrf.mxu0
  %v2661 = vadd.f32 0.0, %v2660
  %v2662 = vpop.f32.mrf.mxu0
  %2663 = vmatprep.mubr.bf16.mxu0 0
  %2664 = vmatmul.mubr.bf16.gmra.mxu0 %v1487
  %v2665 = vpop.f32.mrf.mxu0
  %v2666 = vadd.f32 0.0, %v2665
  %v2667 = vpop.f32.mrf.mxu0
  %v2668 = vpop.f32.mrf.mxu0
  %v2669 = vadd.f32 0.0, %v2668
  %v2670 = vpop.f32.mrf.mxu0
  %2671 = vmatprep.mubr.bf16.mxu0 0
  %2672 = vmatmul.mubr.bf16.gmra.mxu0 %v1488
  %v2673 = vpop.f32.mrf.mxu0
  %v2674 = vadd.f32 0.0, %v2673
  %v2675 = vpop.f32.mrf.mxu0
  %v2676 = vpop.f32.mrf.mxu0
  %v2677 = vadd.f32 0.0, %v2676
  %v2678 = vpop.f32.mrf.mxu0
  %2679 = vmatprep.mubr.bf16.mxu0 0
  %2680 = vmatmul.mubr.bf16.gmra.mxu0 %v1489
  %v2681 = vpop.f32.mrf.mxu0
  %v2682 = vadd.f32 0.0, %v2681
  %v2683 = vpop.f32.mrf.mxu0
  %v2684 = vpop.f32.mrf.mxu0
  %v2685 = vadd.f32 0.0, %v2684
  %v2686 = vpop.f32.mrf.mxu0
  %2687 = vmatprep.mubr.bf16.mxu0 0
  %2688 = vmatmul.mubr.bf16.gmra.mxu0 %v1490
  %v2689 = vpop.f32.mrf.mxu0
  %v2690 = vadd.f32 0.0, %v2689
  %v2691 = vpop.f32.mrf.mxu0
  %v2692 = vpop.f32.mrf.mxu0
  %v2693 = vadd.f32 0.0, %v2692
  %v2694 = vpop.f32.mrf.mxu0
  %2695 = vmatprep.mubr.bf16.mxu0 0
  %2696 = vmatmul.mubr.bf16.gmra.mxu0 %v1491
  %v2697 = vpop.f32.mrf.mxu0
  %v2698 = vadd.f32 0.0, %v2697
  %v2699 = vpop.f32.mrf.mxu0
  %v2700 = vpop.f32.mrf.mxu0
  %v2701 = vadd.f32 0.0, %v2700
  %v2702 = vpop.f32.mrf.mxu0
  %2703 = vmatprep.mubr.bf16.mxu0 0
  %2704 = vmatmul.mubr.bf16.gmra.mxu0 %v1492
  %v2705 = vpop.f32.mrf.mxu0
  %v2706 = vadd.f32 0.0, %v2705
  %v2707 = vpop.f32.mrf.mxu0
  %v2708 = vpop.f32.mrf.mxu0
  %v2709 = vadd.f32 0.0, %v2708
  %v2710 = vpop.f32.mrf.mxu0
  %2711 = vmatprep.mubr.bf16.mxu0 0
  %2712 = vmatmul.mubr.bf16.gmra.mxu0 %v1493
  %v2713 = vpop.f32.mrf.mxu0
  %v2714 = vadd.f32 0.0, %v2713
  %v2715 = vpop.f32.mrf.mxu0
  %v2716 = vpop.f32.mrf.mxu0
  %v2717 = vadd.f32 0.0, %v2716
  %v2718 = vpop.f32.mrf.mxu0
  %2719 = vmatprep.mubr.bf16.mxu0 0
  %2720 = vmatmul.mubr.bf16.gmra.mxu0 %v1494
  %v2721 = vpop.f32.mrf.mxu0
  %v2722 = vadd.f32 0.0, %v2721
  %v2723 = vpop.f32.mrf.mxu0
  %v2724 = vpop.f32.mrf.mxu0
  %v2725 = vadd.f32 0.0, %v2724
  %v2726 = vpop.f32.mrf.mxu0
  %2727 = vmatprep.mubr.bf16.mxu0 0
  %2728 = vmatmul.mubr.bf16.gmra.mxu0 %v1495
  %v2729 = vpop.f32.mrf.mxu0
  %v2730 = vadd.f32 0.0, %v2729
  %v2731 = vpop.f32.mrf.mxu0
  %v2732 = vpop.f32.mrf.mxu0
  %v2733 = vadd.f32 0.0, %v2732
  %v2734 = vpop.f32.mrf.mxu0
  %2735 = vmatprep.mubr.bf16.mxu0 0
  %2736 = vmatmul.mubr.bf16.gmra.mxu0 %v1496
  %v2737 = vpop.f32.mrf.mxu0
  %v2738 = vadd.f32 0.0, %v2737
  %v2739 = vpop.f32.mrf.mxu0
  %v2740 = vpop.f32.mrf.mxu0
  %v2741 = vadd.f32 0.0, %v2740
  %v2742 = vpop.f32.mrf.mxu0
  %2743 = vmatprep.mubr.bf16.mxu0 0
  %2744 = vmatmul.mubr.bf16.gmra.mxu0 %v1497
  %v2745 = vpop.f32.mrf.mxu0
  %v2746 = vadd.f32 0.0, %v2745
  %v2747 = vpop.f32.mrf.mxu0
  %v2748 = vpop.f32.mrf.mxu0
  %v2749 = vadd.f32 0.0, %v2748
  %v2750 = vpop.f32.mrf.mxu0
  %2751 = vmatprep.mubr.bf16.mxu0 0
  %2752 = vmatmul.mubr.bf16.gmra.mxu0 %v1498
  %v2753 = vpop.f32.mrf.mxu0
  %v2754 = vadd.f32 0.0, %v2753
  %v2755 = vpop.f32.mrf.mxu0
  %v2756 = vpop.f32.mrf.mxu0
  %v2757 = vadd.f32 0.0, %v2756
  %v2758 = vpop.f32.mrf.mxu0
  %2759 = vmatprep.mubr.bf16.mxu0 0
  %2760 = vmatmul.mubr.bf16.gmra.mxu0 %v1499
  %v2761 = vpop.f32.mrf.mxu0
  %v2762 = vadd.f32 0.0, %v2761
  %v2763 = vpop.f32.mrf.mxu0
  %v2764 = vpop.f32.mrf.mxu0
  %v2765 = vadd.f32 0.0, %v2764
  %v2766 = vpop.f32.mrf.mxu0
  %2767 = vmatprep.mubr.bf16.mxu0 0
  %2768 = vmatmul.mubr.bf16.gmra.mxu0 %v1500
  %v2769 = vpop.f32.mrf.mxu0
  %v2770 = vadd.f32 0.0, %v2769
  %v2771 = vpop.f32.mrf.mxu0
  %v2772 = vpop.f32.mrf.mxu0
  %v2773 = vadd.f32 0.0, %v2772
  %v2774 = vpop.f32.mrf.mxu0
  %2775 = vmatprep.mubr.bf16.mxu0 0
  %2776 = vmatmul.mubr.bf16.gmra.mxu0 %v1501
  %v2777 = vpop.f32.mrf.mxu0
  %v2778 = vadd.f32 0.0, %v2777
  %v2779 = vpop.f32.mrf.mxu0
  %v2780 = vpop.f32.mrf.mxu0
  %v2781 = vadd.f32 0.0, %v2780
  %v2782 = vpop.f32.mrf.mxu0
  %2783 = vmatprep.mubr.bf16.mxu0 0
  %2784 = vmatmul.mubr.bf16.gmra.mxu0 %v1502
  %v2785 = vpop.f32.mrf.mxu0
  %v2786 = vadd.f32 0.0, %v2785
  %v2787 = vpop.f32.mrf.mxu0
  %v2788 = vpop.f32.mrf.mxu0
  %v2789 = vadd.f32 0.0, %v2788
  %v2790 = vpop.f32.mrf.mxu0
  %2791 = vmatprep.mubr.bf16.mxu0 0
  %2792 = vmatmul.mubr.bf16.gmra.mxu0 %v1503
  %v2793 = vpop.f32.mrf.mxu0
  %v2794 = vadd.f32 0.0, %v2793
  %v2795 = vpop.f32.mrf.mxu0
  %v2796 = vpop.f32.mrf.mxu0
  %v2797 = vadd.f32 0.0, %v2796
  %v2798 = vpop.f32.mrf.mxu0
  %2799 = vmatprep.mubr.bf16.mxu0 0
  %2800 = vmatmul.mubr.bf16.gmra.mxu0 %v1504
  %v2801 = vpop.f32.mrf.mxu0
  %v2802 = vadd.f32 0.0, %v2801
  %v2803 = vpop.f32.mrf.mxu0
  %v2804 = vpop.f32.mrf.mxu0
  %v2805 = vadd.f32 0.0, %v2804
  %v2806 = vpop.f32.mrf.mxu0
  %2807 = vmatprep.mubr.bf16.mxu0 0
  %2808 = vmatmul.mubr.bf16.gmra.mxu0 %v1505
  %v2809 = vpop.f32.mrf.mxu0
  %v2810 = vadd.f32 0.0, %v2809
  %v2811 = vpop.f32.mrf.mxu0
  %v2812 = vpop.f32.mrf.mxu0
  %v2813 = vadd.f32 0.0, %v2812
  %v2814 = vpop.f32.mrf.mxu0
  %2815 = vmatprep.mubr.bf16.mxu0 0
  %2816 = vmatmul.mubr.bf16.gmra.mxu0 %v1506
  %v2817 = vpop.f32.mrf.mxu0
  %v2818 = vadd.f32 0.0, %v2817
  %v2819 = vpop.f32.mrf.mxu0
  %v2820 = vpop.f32.mrf.mxu0
  %v2821 = vadd.f32 0.0, %v2820
  %v2822 = vpop.f32.mrf.mxu0
  %2823 = vmatprep.mubr.bf16.mxu0 0
  %2824 = vmatmul.mubr.bf16.gmra.mxu0 %v1507
  %v2825 = vpop.f32.mrf.mxu0
  %v2826 = vadd.f32 0.0, %v2825
  %v2827 = vpop.f32.mrf.mxu0
  %v2828 = vpop.f32.mrf.mxu0
  %v2829 = vadd.f32 0.0, %v2828
  %v2830 = vpop.f32.mrf.mxu0
  %2831 = vmatprep.mubr.bf16.mxu0 0
  %2832 = vmatmul.mubr.bf16.gmra.mxu0 %v1508
  %v2833 = vpop.f32.mrf.mxu0
  %v2834 = vadd.f32 0.0, %v2833
  %v2835 = vpop.f32.mrf.mxu0
  %v2836 = vpop.f32.mrf.mxu0
  %v2837 = vadd.f32 0.0, %v2836
  %v2838 = vpop.f32.mrf.mxu0
  %2839 = vmatprep.mubr.bf16.mxu0 0
  %2840 = vmatmul.mubr.bf16.gmra.mxu0 %v1509
  %v2841 = vpop.f32.mrf.mxu0
  %v2842 = vadd.f32 0.0, %v2841
  %v2843 = vpop.f32.mrf.mxu0
  %v2844 = vpop.f32.mrf.mxu0
  %v2845 = vadd.f32 0.0, %v2844
  %v2846 = vpop.f32.mrf.mxu0
  %2847 = vmatprep.mubr.bf16.mxu0 0
  %2848 = vmatmul.mubr.bf16.gmra.mxu0 %v1510
  %v2849 = vpop.f32.mrf.mxu0
  %v2850 = vadd.f32 0.0, %v2849
  %v2851 = vpop.f32.mrf.mxu0
  %v2852 = vpop.f32.mrf.mxu0
  %v2853 = vadd.f32 0.0, %v2852
  %v2854 = vpop.f32.mrf.mxu0
  %2855 = vmatprep.mubr.bf16.mxu0 0
  %2856 = vmatmul.mubr.bf16.gmra.mxu0 %v1511
  %v2857 = vpop.f32.mrf.mxu0
  %v2858 = vadd.f32 0.0, %v2857
  %v2859 = vpop.f32.mrf.mxu0
  %v2860 = vpop.f32.mrf.mxu0
  %v2861 = vadd.f32 0.0, %v2860
  %v2862 = vpop.f32.mrf.mxu0
  %2863 = vmatprep.mubr.bf16.mxu0 0
  %2864 = vmatmul.mubr.bf16.gmra.mxu0 %v1512
  %v2865 = vpop.f32.mrf.mxu0
  %v2866 = vadd.f32 0.0, %v2865
  %v2867 = vpop.f32.mrf.mxu0
  %v2868 = vpop.f32.mrf.mxu0
  %v2869 = vadd.f32 0.0, %v2868
  %v2870 = vpop.f32.mrf.mxu0
  %2871 = vmatprep.mubr.bf16.mxu0 0
  %2872 = vmatmul.mubr.bf16.gmra.mxu0 %v1513
  %v2873 = vpop.f32.mrf.mxu0
  %v2874 = vadd.f32 0.0, %v2873
  %v2875 = vpop.f32.mrf.mxu0
  %v2876 = vpop.f32.mrf.mxu0
  %v2877 = vadd.f32 0.0, %v2876
  %v2878 = vpop.f32.mrf.mxu0
  %2879 = vmatprep.mubr.bf16.mxu0 0
  %2880 = vmatmul.mubr.bf16.gmra.mxu0 %v1514
  %v2881 = vpop.f32.mrf.mxu0
  %v2882 = vadd.f32 0.0, %v2881
  %v2883 = vpop.f32.mrf.mxu0
  %v2884 = vpop.f32.mrf.mxu0
  %v2885 = vadd.f32 0.0, %v2884
  %v2886 = vpop.f32.mrf.mxu0
  %2887 = vmatprep.mubr.bf16.mxu0 0
  %2888 = vmatmul.mubr.bf16.gmra.mxu0 %v1515
  %v2889 = vpop.f32.mrf.mxu0
  %v2890 = vadd.f32 0.0, %v2889
  %v2891 = vpop.f32.mrf.mxu0
  %v2892 = vpop.f32.mrf.mxu0
  %v2893 = vadd.f32 0.0, %v2892
  %v2894 = vpop.f32.mrf.mxu0
  %2895 = vdwg.mxu0
  %v2896 = vld [vmem:[%s2] sm:$0xff]
  %v2897 = vld [vmem:[%s2 + $0x8] sm:$0xff]
  %v2898 = vld [vmem:[%s2 + $0x10] sm:$0xff]
  %v2899 = vld [vmem:[%s2 + $0x18] sm:$0xff]
  %v2900 = vld [vmem:[%s2 + $0x20] sm:$0xff]
  %v2901 = vld [vmem:[%s2 + $0x28] sm:$0xff]
  %v2902 = vld [vmem:[%s2 + $0x30] sm:$0xff]
  %v2903 = vld [vmem:[%s2 + $0x38] sm:$0xff]
  %v2904 = vld [vmem:[%s2 + $0x40] sm:$0xff]
  %v2905 = vld [vmem:[%s2 + $0x48] sm:$0xff]
  %v2906 = vld [vmem:[%s2 + $0x50] sm:$0xff]
  %v2907 = vld [vmem:[%s2 + $0x58] sm:$0xff]
  %v2908 = vld [vmem:[%s2 + $0x60] sm:$0xff]
  %v2909 = vld [vmem:[%s2 + $0x68] sm:$0xff]
  %v2910 = vld [vmem:[%s2 + $0x70] sm:$0xff]
  %v2911 = vld [vmem:[%s2 + $0x78] sm:$0xff]
  %v2912 = vld [vmem:[%s2 + $0x80] sm:$0xff]
  %v2913 = vld [vmem:[%s2 + $0x88] sm:$0xff]
  %v2914 = vld [vmem:[%s2 + $0x90] sm:$0xff]
  %v2915 = vld [vmem:[%s2 + $0x98] sm:$0xff]
  %v2916 = vld [vmem:[%s2 + $0xa0] sm:$0xff]
  %v2917 = vld [vmem:[%s2 + $0xa8] sm:$0xff]
  %v2918 = vld [vmem:[%s2 + $0xb0] sm:$0xff]
  %v2919 = vld [vmem:[%s2 + $0xb8] sm:$0xff]
  %v2920 = vld [vmem:[%s2 + $0xc0] sm:$0xff]
  %v2921 = vld [vmem:[%s2 + $0xc8] sm:$0xff]
  %v2922 = vld [vmem:[%s2 + $0xd0] sm:$0xff]
  %v2923 = vld [vmem:[%s2 + $0xd8] sm:$0xff]
  %v2924 = vld [vmem:[%s2 + $0xe0] sm:$0xff]
  %v2925 = vld [vmem:[%s2 + $0xe8] sm:$0xff]
  %v2926 = vld [vmem:[%s2 + $0xf0] sm:$0xff]
  %v2927 = vld [vmem:[%s2 + $0xf8] sm:$0xff]
  %v2928 = vld [vmem:[%s2 + $0x100] sm:$0xff]
  %v2929 = vld [vmem:[%s2 + $0x108] sm:$0xff]
  %v2930 = vld [vmem:[%s2 + $0x110] sm:$0xff]
  %v2931 = vld [vmem:[%s2 + $0x118] sm:$0xff]
  %v2932 = vld [vmem:[%s2 + $0x120] sm:$0xff]
  %v2933 = vld [vmem:[%s2 + $0x128] sm:$0xff]
  %v2934 = vld [vmem:[%s2 + $0x130] sm:$0xff]
  %v2935 = vld [vmem:[%s2 + $0x138] sm:$0xff]
  %v2936 = vld [vmem:[%s2 + $0x140] sm:$0xff]
  %v2937 = vld [vmem:[%s2 + $0x148] sm:$0xff]
  %v2938 = vld [vmem:[%s2 + $0x150] sm:$0xff]
  %v2939 = vld [vmem:[%s2 + $0x158] sm:$0xff]
  %v2940 = vld [vmem:[%s2 + $0x160] sm:$0xff]
  %v2941 = vld [vmem:[%s2 + $0x168] sm:$0xff]
  %v2942 = vld [vmem:[%s2 + $0x170] sm:$0xff]
  %v2943 = vld [vmem:[%s2 + $0x178] sm:$0xff]
  %v2944 = vld [vmem:[%s2 + $0x180] sm:$0xff]
  %v2945 = vld [vmem:[%s2 + $0x188] sm:$0xff]
  %v2946 = vld [vmem:[%s2 + $0x190] sm:$0xff]
  %v2947 = vld [vmem:[%s2 + $0x198] sm:$0xff]
  %v2948 = vld [vmem:[%s2 + $0x1a0] sm:$0xff]
  %v2949 = vld [vmem:[%s2 + $0x1a8] sm:$0xff]
  %v2950 = vld [vmem:[%s2 + $0x1b0] sm:$0xff]
  %v2951 = vld [vmem:[%s2 + $0x1b8] sm:$0xff]
  %v2952 = vld [vmem:[%s2 + $0x1c0] sm:$0xff]
  %v2953 = vld [vmem:[%s2 + $0x1c8] sm:$0xff]
  %v2954 = vld [vmem:[%s2 + $0x1d0] sm:$0xff]
  %v2955 = vld [vmem:[%s2 + $0x1d8] sm:$0xff]
  %v2956 = vld [vmem:[%s2 + $0x1e0] sm:$0xff]
  %v2957 = vld [vmem:[%s2 + $0x1e8] sm:$0xff]
  %v2958 = vld [vmem:[%s2 + $0x1f0] sm:$0xff]
  %v2959 = vld [vmem:[%s2 + $0x1f8] sm:$0xff]
  %v2960 = vadd.f32 %v1583, %v1585
  %v2961 = vadd.f32 %v2960, %v1936
  %v2962 = vadd.f32 %v2961, %v1938
  %v2963 = vadd.f32 %v2962, %v2289
  %v2964 = vadd.f32 %v2963, %v2291
  %vm2965 = vcmask 130048
  %v2966 = vsel %vm2965, %v2642, 0.0
  %v2967 = vadd.f32 %v2964, %v2966
  %2968 = vadd.xlane.f32.xlu0 %v2967
  %v2969 = vpop.xlane.xlu0 %2968
  %v2970 = vadd.f32 %v1587, %v1589
  %v2971 = vadd.f32 %v2970, %v1940
  %v2972 = vadd.f32 %v2971, %v1942
  %v2973 = vadd.f32 %v2972, %v2293
  %v2974 = vadd.f32 %v2973, %v2295
  %v2975 = vsel %vm2965, %v2645, 0.0
  %v2976 = vadd.f32 %v2974, %v2975
  %2977 = vadd.xlane.f32.xlu0 %v2976
  %v2978 = vpop.xlane.xlu0 %2977
  %v2979 = vadd.f32 %v1593, %v1595
  %v2980 = vadd.f32 %v2979, %v1946
  %v2981 = vadd.f32 %v2980, %v1948
  %v2982 = vadd.f32 %v2981, %v2299
  %v2983 = vadd.f32 %v2982, %v2301
  %v2984 = vsel %vm2965, %v2650, 0.0
  %v2985 = vadd.f32 %v2983, %v2984
  %2986 = vadd.xlane.f32.xlu0 %v2985
  %v2987 = vpop.xlane.xlu0 %2986
  %v2988 = vadd.f32 %v1597, %v1599
  %v2989 = vadd.f32 %v2988, %v1950
  %v2990 = vadd.f32 %v2989, %v1952
  %v2991 = vadd.f32 %v2990, %v2303
  %v2992 = vadd.f32 %v2991, %v2305
  %v2993 = vsel %vm2965, %v2653, 0.0
  %v2994 = vadd.f32 %v2992, %v2993
  %2995 = vadd.xlane.f32.xlu0 %v2994
  %v2996 = vpop.xlane.xlu0 %2995
  %v2997 = vadd.f32 %v1603, %v1605
  %v2998 = vadd.f32 %v2997, %v1956
  %v2999 = vadd.f32 %v2998, %v1958
  %v3000 = vadd.f32 %v2999, %v2309
  %v3001 = vadd.f32 %v3000, %v2311
  %v3002 = vsel %vm2965, %v2658, 0.0
  %v3003 = vadd.f32 %v3001, %v3002
  %3004 = vadd.xlane.f32.xlu0 %v3003
  %v3005 = vpop.xlane.xlu0 %3004
  %v3006 = vadd.f32 %v1607, %v1609
  %v3007 = vadd.f32 %v3006, %v1960
  %v3008 = vadd.f32 %v3007, %v1962
  %v3009 = vadd.f32 %v3008, %v2313
  %v3010 = vadd.f32 %v3009, %v2315
  %v3011 = vsel %vm2965, %v2661, 0.0
  %v3012 = vadd.f32 %v3010, %v3011
  %3013 = vadd.xlane.f32.xlu0 %v3012
  %v3014 = vpop.xlane.xlu0 %3013
  %v3015 = vadd.f32 %v1613, %v1615
  %v3016 = vadd.f32 %v3015, %v1966
  %v3017 = vadd.f32 %v3016, %v1968
  %v3018 = vadd.f32 %v3017, %v2319
  %v3019 = vadd.f32 %v3018, %v2321
  %v3020 = vsel %vm2965, %v2666, 0.0
  %v3021 = vadd.f32 %v3019, %v3020
  %3022 = vadd.xlane.f32.xlu0 %v3021
  %v3023 = vpop.xlane.xlu0 %3022
  %v3024 = vadd.f32 %v1617, %v1619
  %v3025 = vadd.f32 %v3024, %v1970
  %v3026 = vadd.f32 %v3025, %v1972
  %v3027 = vadd.f32 %v3026, %v2323
  %v3028 = vadd.f32 %v3027, %v2325
  %v3029 = vsel %vm2965, %v2669, 0.0
  %v3030 = vadd.f32 %v3028, %v3029
  %3031 = vadd.xlane.f32.xlu0 %v3030
  %v3032 = vpop.xlane.xlu0 %3031
  %v3033 = vadd.f32 %v1623, %v1625
  %v3034 = vadd.f32 %v3033, %v1976
  %v3035 = vadd.f32 %v3034, %v1978
  %v3036 = vadd.f32 %v3035, %v2329
  %v3037 = vadd.f32 %v3036, %v2331
  %v3038 = vsel %vm2965, %v2674, 0.0
  %v3039 = vadd.f32 %v3037, %v3038
  %3040 = vadd.xlane.f32.xlu0 %v3039
  %v3041 = vpop.xlane.xlu0 %3040
  %v3042 = vadd.f32 %v1627, %v1629
  %v3043 = vadd.f32 %v3042, %v1980
  %v3044 = vadd.f32 %v3043, %v1982
  %v3045 = vadd.f32 %v3044, %v2333
  %v3046 = vadd.f32 %v3045, %v2335
  %v3047 = vsel %vm2965, %v2677, 0.0
  %v3048 = vadd.f32 %v3046, %v3047
  %3049 = vadd.xlane.f32.xlu0 %v3048
  %v3050 = vpop.xlane.xlu0 %3049
  %v3051 = vadd.f32 %v1633, %v1635
  %v3052 = vadd.f32 %v3051, %v1986
  %v3053 = vadd.f32 %v3052, %v1988
  %v3054 = vadd.f32 %v3053, %v2339
  %v3055 = vadd.f32 %v3054, %v2341
  %v3056 = vsel %vm2965, %v2682, 0.0
  %v3057 = vadd.f32 %v3055, %v3056
  %3058 = vadd.xlane.f32.xlu0 %v3057
  %v3059 = vpop.xlane.xlu0 %3058
  %v3060 = vadd.f32 %v1637, %v1639
  %v3061 = vadd.f32 %v3060, %v1990
  %v3062 = vadd.f32 %v3061, %v1992
  %v3063 = vadd.f32 %v3062, %v2343
  %v3064 = vadd.f32 %v3063, %v2345
  %v3065 = vsel %vm2965, %v2685, 0.0
  %v3066 = vadd.f32 %v3064, %v3065
  %3067 = vadd.xlane.f32.xlu0 %v3066
  %v3068 = vpop.xlane.xlu0 %3067
  %v3069 = vadd.f32 %v1643, %v1645
  %v3070 = vadd.f32 %v3069, %v1996
  %v3071 = vadd.f32 %v3070, %v1998
  %v3072 = vadd.f32 %v3071, %v2349
  %v3073 = vadd.f32 %v3072, %v2351
  %v3074 = vsel %vm2965, %v2690, 0.0
  %v3075 = vadd.f32 %v3073, %v3074
  %3076 = vadd.xlane.f32.xlu0 %v3075
  %v3077 = vpop.xlane.xlu0 %3076
  %v3078 = vadd.f32 %v1647, %v1649
  %v3079 = vadd.f32 %v3078, %v2000
  %v3080 = vadd.f32 %v3079, %v2002
  %v3081 = vadd.f32 %v3080, %v2353
  %v3082 = vadd.f32 %v3081, %v2355
  %v3083 = vsel %vm2965, %v2693, 0.0
  %v3084 = vadd.f32 %v3082, %v3083
  %3085 = vadd.xlane.f32.xlu0 %v3084
  %v3086 = vpop.xlane.xlu0 %3085
  %v3087 = vadd.f32 %v1653, %v1655
  %v3088 = vadd.f32 %v3087, %v2006
  %v3089 = vadd.f32 %v3088, %v2008
  %v3090 = vadd.f32 %v3089, %v2359
  %v3091 = vadd.f32 %v3090, %v2361
  %v3092 = vsel %vm2965, %v2698, 0.0
  %v3093 = vadd.f32 %v3091, %v3092
  %3094 = vadd.xlane.f32.xlu0 %v3093
  %v3095 = vpop.xlane.xlu0 %3094
  %v3096 = vadd.f32 %v1657, %v1659
  %v3097 = vadd.f32 %v3096, %v2010
  %v3098 = vadd.f32 %v3097, %v2012
  %v3099 = vadd.f32 %v3098, %v2363
  %v3100 = vadd.f32 %v3099, %v2365
  %v3101 = vsel %vm2965, %v2701, 0.0
  %v3102 = vadd.f32 %v3100, %v3101
  %3103 = vadd.xlane.f32.xlu0 %v3102
  %v3104 = vpop.xlane.xlu0 %3103
  %v3105 = vadd.f32 %v1663, %v1665
  %v3106 = vadd.f32 %v3105, %v2016
  %v3107 = vadd.f32 %v3106, %v2018
  %v3108 = vadd.f32 %v3107, %v2369
  %v3109 = vadd.f32 %v3108, %v2371
  %v3110 = vsel %vm2965, %v2706, 0.0
  %v3111 = vadd.f32 %v3109, %v3110
  %3112 = vadd.xlane.f32.xlu0 %v3111
  %v3113 = vpop.xlane.xlu0 %3112
  %v3114 = vadd.f32 %v1667, %v1669
  %v3115 = vadd.f32 %v3114, %v2020
  %v3116 = vadd.f32 %v3115, %v2022
  %v3117 = vadd.f32 %v3116, %v2373
  %v3118 = vadd.f32 %v3117, %v2375
  %v3119 = vsel %vm2965, %v2709, 0.0
  %v3120 = vadd.f32 %v3118, %v3119
  %3121 = vadd.xlane.f32.xlu0 %v3120
  %v3122 = vpop.xlane.xlu0 %3121
  %v3123 = vadd.f32 %v1673, %v1675
  %v3124 = vadd.f32 %v3123, %v2026
  %v3125 = vadd.f32 %v3124, %v2028
  %v3126 = vadd.f32 %v3125, %v2379
  %v3127 = vadd.f32 %v3126, %v2381
  %v3128 = vsel %vm2965, %v2714, 0.0
  %v3129 = vadd.f32 %v3127, %v3128
  %3130 = vadd.xlane.f32.xlu0 %v3129
  %v3131 = vpop.xlane.xlu0 %3130
  %v3132 = vadd.f32 %v1677, %v1679
  %v3133 = vadd.f32 %v3132, %v2030
  %v3134 = vadd.f32 %v3133, %v2032
  %v3135 = vadd.f32 %v3134, %v2383
  %v3136 = vadd.f32 %v3135, %v2385
  %v3137 = vsel %vm2965, %v2717, 0.0
  %v3138 = vadd.f32 %v3136, %v3137
  %3139 = vadd.xlane.f32.xlu0 %v3138
  %v3140 = vpop.xlane.xlu0 %3139
  %v3141 = vadd.f32 %v1683, %v1685
  %v3142 = vadd.f32 %v3141, %v2036
  %v3143 = vadd.f32 %v3142, %v2038
  %v3144 = vadd.f32 %v3143, %v2389
  %v3145 = vadd.f32 %v3144, %v2391
  %v3146 = vsel %vm2965, %v2722, 0.0
  %v3147 = vadd.f32 %v3145, %v3146
  %3148 = vadd.xlane.f32.xlu0 %v3147
  %v3149 = vpop.xlane.xlu0 %3148
  %v3150 = vadd.f32 %v1687, %v1689
  %v3151 = vadd.f32 %v3150, %v2040
  %v3152 = vadd.f32 %v3151, %v2042
  %v3153 = vadd.f32 %v3152, %v2393
  %v3154 = vadd.f32 %v3153, %v2395
  %v3155 = vsel %vm2965, %v2725, 0.0
  %v3156 = vadd.f32 %v3154, %v3155
  %3157 = vadd.xlane.f32.xlu0 %v3156
  %v3158 = vpop.xlane.xlu0 %3157
  %v3159 = vadd.f32 %v1693, %v1695
  %v3160 = vadd.f32 %v3159, %v2046
  %v3161 = vadd.f32 %v3160, %v2048
  %v3162 = vadd.f32 %v3161, %v2399
  %v3163 = vadd.f32 %v3162, %v2401
  %v3164 = vsel %vm2965, %v2730, 0.0
  %v3165 = vadd.f32 %v3163, %v3164
  %3166 = vadd.xlane.f32.xlu0 %v3165
  %v3167 = vpop.xlane.xlu0 %3166
  %v3168 = vadd.f32 %v1697, %v1699
  %v3169 = vadd.f32 %v3168, %v2050
  %v3170 = vadd.f32 %v3169, %v2052
  %v3171 = vadd.f32 %v3170, %v2403
  %v3172 = vadd.f32 %v3171, %v2405
  %v3173 = vsel %vm2965, %v2733, 0.0
  %v3174 = vadd.f32 %v3172, %v3173
  %3175 = vadd.xlane.f32.xlu0 %v3174
  %v3176 = vpop.xlane.xlu0 %3175
  %v3177 = vadd.f32 %v1703, %v1705
  %v3178 = vadd.f32 %v3177, %v2056
  %v3179 = vadd.f32 %v3178, %v2058
  %v3180 = vadd.f32 %v3179, %v2409
  %v3181 = vadd.f32 %v3180, %v2411
  %v3182 = vsel %vm2965, %v2738, 0.0
  %v3183 = vadd.f32 %v3181, %v3182
  %3184 = vadd.xlane.f32.xlu0 %v3183
  %v3185 = vpop.xlane.xlu0 %3184
  %v3186 = vadd.f32 %v1707, %v1709
  %v3187 = vadd.f32 %v3186, %v2060
  %v3188 = vadd.f32 %v3187, %v2062
  %v3189 = vadd.f32 %v3188, %v2413
  %v3190 = vadd.f32 %v3189, %v2415
  %v3191 = vsel %vm2965, %v2741, 0.0
  %v3192 = vadd.f32 %v3190, %v3191
  %3193 = vadd.xlane.f32.xlu0 %v3192
  %v3194 = vpop.xlane.xlu0 %3193
  %v3195 = vadd.f32 %v1713, %v1715
  %v3196 = vadd.f32 %v3195, %v2066
  %v3197 = vadd.f32 %v3196, %v2068
  %v3198 = vadd.f32 %v3197, %v2419
  %v3199 = vadd.f32 %v3198, %v2421
  %v3200 = vsel %vm2965, %v2746, 0.0
  %v3201 = vadd.f32 %v3199, %v3200
  %3202 = vadd.xlane.f32.xlu0 %v3201
  %v3203 = vpop.xlane.xlu0 %3202
  %v3204 = vadd.f32 %v1717, %v1719
  %v3205 = vadd.f32 %v3204, %v2070
  %v3206 = vadd.f32 %v3205, %v2072
  %v3207 = vadd.f32 %v3206, %v2423
  %v3208 = vadd.f32 %v3207, %v2425
  %v3209 = vsel %vm2965, %v2749, 0.0
  %v3210 = vadd.f32 %v3208, %v3209
  %3211 = vadd.xlane.f32.xlu0 %v3210
  %v3212 = vpop.xlane.xlu0 %3211
  %v3213 = vadd.f32 %v1723, %v1725
  %v3214 = vadd.f32 %v3213, %v2076
  %v3215 = vadd.f32 %v3214, %v2078
  %v3216 = vadd.f32 %v3215, %v2429
  %v3217 = vadd.f32 %v3216, %v2431
  %v3218 = vsel %vm2965, %v2754, 0.0
  %v3219 = vadd.f32 %v3217, %v3218
  %3220 = vadd.xlane.f32.xlu0 %v3219
  %v3221 = vpop.xlane.xlu0 %3220
  %v3222 = vadd.f32 %v1727, %v1729
  %v3223 = vadd.f32 %v3222, %v2080
  %v3224 = vadd.f32 %v3223, %v2082
  %v3225 = vadd.f32 %v3224, %v2433
  %v3226 = vadd.f32 %v3225, %v2435
  %v3227 = vsel %vm2965, %v2757, 0.0
  %v3228 = vadd.f32 %v3226, %v3227
  %3229 = vadd.xlane.f32.xlu0 %v3228
  %v3230 = vpop.xlane.xlu0 %3229
  %v3231 = vadd.f32 %v1733, %v1735
  %v3232 = vadd.f32 %v3231, %v2086
  %v3233 = vadd.f32 %v3232, %v2088
  %v3234 = vadd.f32 %v3233, %v2439
  %v3235 = vadd.f32 %v3234, %v2441
  %v3236 = vsel %vm2965, %v2762, 0.0
  %v3237 = vadd.f32 %v3235, %v3236
  %3238 = vadd.xlane.f32.xlu0 %v3237
  %v3239 = vpop.xlane.xlu0 %3238
  %v3240 = vadd.f32 %v1737, %v1739
  %v3241 = vadd.f32 %v3240, %v2090
  %v3242 = vadd.f32 %v3241, %v2092
  %v3243 = vadd.f32 %v3242, %v2443
  %v3244 = vadd.f32 %v3243, %v2445
  %v3245 = vsel %vm2965, %v2765, 0.0
  %v3246 = vadd.f32 %v3244, %v3245
  %3247 = vadd.xlane.f32.xlu0 %v3246
  %v3248 = vpop.xlane.xlu0 %3247
  %v3249 = vadd.f32 %v1743, %v1745
  %v3250 = vadd.f32 %v3249, %v2096
  %v3251 = vadd.f32 %v3250, %v2098
  %v3252 = vadd.f32 %v3251, %v2449
  %v3253 = vadd.f32 %v3252, %v2451
  %v3254 = vsel %vm2965, %v2770, 0.0
  %v3255 = vadd.f32 %v3253, %v3254
  %3256 = vadd.xlane.f32.xlu0 %v3255
  %v3257 = vpop.xlane.xlu0 %3256
  %v3258 = vadd.f32 %v1747, %v1749
  %v3259 = vadd.f32 %v3258, %v2100
  %v3260 = vadd.f32 %v3259, %v2102
  %v3261 = vadd.f32 %v3260, %v2453
  %v3262 = vadd.f32 %v3261, %v2455
  %v3263 = vsel %vm2965, %v2773, 0.0
  %v3264 = vadd.f32 %v3262, %v3263
  %3265 = vadd.xlane.f32.xlu0 %v3264
  %v3266 = vpop.xlane.xlu0 %3265
  %v3267 = vadd.f32 %v1753, %v1755
  %v3268 = vadd.f32 %v3267, %v2106
  %v3269 = vadd.f32 %v3268, %v2108
  %v3270 = vadd.f32 %v3269, %v2459
  %v3271 = vadd.f32 %v3270, %v2461
  %v3272 = vsel %vm2965, %v2778, 0.0
  %v3273 = vadd.f32 %v3271, %v3272
  %3274 = vadd.xlane.f32.xlu0 %v3273
  %v3275 = vpop.xlane.xlu0 %3274
  %v3276 = vadd.f32 %v1757, %v1759
  %v3277 = vadd.f32 %v3276, %v2110
  %v3278 = vadd.f32 %v3277, %v2112
  %v3279 = vadd.f32 %v3278, %v2463
  %v3280 = vadd.f32 %v3279, %v2465
  %v3281 = vsel %vm2965, %v2781, 0.0
  %v3282 = vadd.f32 %v3280, %v3281
  %3283 = vadd.xlane.f32.xlu0 %v3282
  %v3284 = vpop.xlane.xlu0 %3283
  %v3285 = vadd.f32 %v1763, %v1765
  %v3286 = vadd.f32 %v3285, %v2116
  %v3287 = vadd.f32 %v3286, %v2118
  %v3288 = vadd.f32 %v3287, %v2469
  %v3289 = vadd.f32 %v3288, %v2471
  %v3290 = vsel %vm2965, %v2786, 0.0
  %v3291 = vadd.f32 %v3289, %v3290
  %3292 = vadd.xlane.f32.xlu0 %v3291
  %v3293 = vpop.xlane.xlu0 %3292
  %v3294 = vadd.f32 %v1767, %v1769
  %v3295 = vadd.f32 %v3294, %v2120
  %v3296 = vadd.f32 %v3295, %v2122
  %v3297 = vadd.f32 %v3296, %v2473
  %v3298 = vadd.f32 %v3297, %v2475
  %v3299 = vsel %vm2965, %v2789, 0.0
  %v3300 = vadd.f32 %v3298, %v3299
  %3301 = vadd.xlane.f32.xlu0 %v3300
  %v3302 = vpop.xlane.xlu0 %3301
  %v3303 = vadd.f32 %v1773, %v1775
  %v3304 = vadd.f32 %v3303, %v2126
  %v3305 = vadd.f32 %v3304, %v2128
  %v3306 = vadd.f32 %v3305, %v2479
  %v3307 = vadd.f32 %v3306, %v2481
  %v3308 = vsel %vm2965, %v2794, 0.0
  %v3309 = vadd.f32 %v3307, %v3308
  %3310 = vadd.xlane.f32.xlu0 %v3309
  %v3311 = vpop.xlane.xlu0 %3310
  %v3312 = vadd.f32 %v1777, %v1779
  %v3313 = vadd.f32 %v3312, %v2130
  %v3314 = vadd.f32 %v3313, %v2132
  %v3315 = vadd.f32 %v3314, %v2483
  %v3316 = vadd.f32 %v3315, %v2485
  %v3317 = vsel %vm2965, %v2797, 0.0
  %v3318 = vadd.f32 %v3316, %v3317
  %3319 = vadd.xlane.f32.xlu0 %v3318
  %v3320 = vpop.xlane.xlu0 %3319
  %v3321 = vadd.f32 %v1783, %v1785
  %v3322 = vadd.f32 %v3321, %v2136
  %v3323 = vadd.f32 %v3322, %v2138
  %v3324 = vadd.f32 %v3323, %v2489
  %v3325 = vadd.f32 %v3324, %v2491
  %v3326 = vsel %vm2965, %v2802, 0.0
  %v3327 = vadd.f32 %v3325, %v3326
  %3328 = vadd.xlane.f32.xlu0 %v3327
  %v3329 = vpop.xlane.xlu0 %3328
  %v3330 = vadd.f32 %v1787, %v1789
  %v3331 = vadd.f32 %v3330, %v2140
  %v3332 = vadd.f32 %v3331, %v2142
  %v3333 = vadd.f32 %v3332, %v2493
  %v3334 = vadd.f32 %v3333, %v2495
  %v3335 = vsel %vm2965, %v2805, 0.0
  %v3336 = vadd.f32 %v3334, %v3335
  %3337 = vadd.xlane.f32.xlu0 %v3336
  %v3338 = vpop.xlane.xlu0 %3337
  %v3339 = vadd.f32 %v1793, %v1795
  %v3340 = vadd.f32 %v3339, %v2146
  %v3341 = vadd.f32 %v3340, %v2148
  %v3342 = vadd.f32 %v3341, %v2499
  %v3343 = vadd.f32 %v3342, %v2501
  %v3344 = vsel %vm2965, %v2810, 0.0
  %v3345 = vadd.f32 %v3343, %v3344
  %3346 = vadd.xlane.f32.xlu0 %v3345
  %v3347 = vpop.xlane.xlu0 %3346
  %v3348 = vadd.f32 %v1797, %v1799
  %v3349 = vadd.f32 %v3348, %v2150
  %v3350 = vadd.f32 %v3349, %v2152
  %v3351 = vadd.f32 %v3350, %v2503
  %v3352 = vadd.f32 %v3351, %v2505
  %v3353 = vsel %vm2965, %v2813, 0.0
  %v3354 = vadd.f32 %v3352, %v3353
  %3355 = vadd.xlane.f32.xlu0 %v3354
  %v3356 = vpop.xlane.xlu0 %3355
  %v3357 = vadd.f32 %v1803, %v1805
  %v3358 = vadd.f32 %v3357, %v2156
  %v3359 = vadd.f32 %v3358, %v2158
  %v3360 = vadd.f32 %v3359, %v2509
  %v3361 = vadd.f32 %v3360, %v2511
  %v3362 = vsel %vm2965, %v2818, 0.0
  %v3363 = vadd.f32 %v3361, %v3362
  %3364 = vadd.xlane.f32.xlu0 %v3363
  %v3365 = vpop.xlane.xlu0 %3364
  %v3366 = vadd.f32 %v1807, %v1809
  %v3367 = vadd.f32 %v3366, %v2160
  %v3368 = vadd.f32 %v3367, %v2162
  %v3369 = vadd.f32 %v3368, %v2513
  %v3370 = vadd.f32 %v3369, %v2515
  %v3371 = vsel %vm2965, %v2821, 0.0
  %v3372 = vadd.f32 %v3370, %v3371
  %3373 = vadd.xlane.f32.xlu0 %v3372
  %v3374 = vpop.xlane.xlu0 %3373
  %v3375 = vadd.f32 %v1813, %v1815
  %v3376 = vadd.f32 %v3375, %v2166
  %v3377 = vadd.f32 %v3376, %v2168
  %v3378 = vadd.f32 %v3377, %v2519
  %v3379 = vadd.f32 %v3378, %v2521
  %v3380 = vsel %vm2965, %v2826, 0.0
  %v3381 = vadd.f32 %v3379, %v3380
  %3382 = vadd.xlane.f32.xlu0 %v3381
  %v3383 = vpop.xlane.xlu0 %3382
  %v3384 = vadd.f32 %v1817, %v1819
  %v3385 = vadd.f32 %v3384, %v2170
  %v3386 = vadd.f32 %v3385, %v2172
  %v3387 = vadd.f32 %v3386, %v2523
  %v3388 = vadd.f32 %v3387, %v2525
  %v3389 = vsel %vm2965, %v2829, 0.0
  %v3390 = vadd.f32 %v3388, %v3389
  %3391 = vadd.xlane.f32.xlu0 %v3390
  %v3392 = vpop.xlane.xlu0 %3391
  %v3393 = vadd.f32 %v1823, %v1825
  %v3394 = vadd.f32 %v3393, %v2176
  %v3395 = vadd.f32 %v3394, %v2178
  %v3396 = vadd.f32 %v3395, %v2529
  %v3397 = vadd.f32 %v3396, %v2531
  %v3398 = vsel %vm2965, %v2834, 0.0
  %v3399 = vadd.f32 %v3397, %v3398
  %3400 = vadd.xlane.f32.xlu0 %v3399
  %v3401 = vpop.xlane.xlu0 %3400
  %v3402 = vadd.f32 %v1827, %v1829
  %v3403 = vadd.f32 %v3402, %v2180
  %v3404 = vadd.f32 %v3403, %v2182
  %v3405 = vadd.f32 %v3404, %v2533
  %v3406 = vadd.f32 %v3405, %v2535
  %v3407 = vsel %vm2965, %v2837, 0.0
  %v3408 = vadd.f32 %v3406, %v3407
  %3409 = vadd.xlane.f32.xlu0 %v3408
  %v3410 = vpop.xlane.xlu0 %3409
  %v3411 = vadd.f32 %v1833, %v1835
  %v3412 = vadd.f32 %v3411, %v2186
  %v3413 = vadd.f32 %v3412, %v2188
  %v3414 = vadd.f32 %v3413, %v2539
  %v3415 = vadd.f32 %v3414, %v2541
  %v3416 = vsel %vm2965, %v2842, 0.0
  %v3417 = vadd.f32 %v3415, %v3416
  %3418 = vadd.xlane.f32.xlu0 %v3417
  %v3419 = vpop.xlane.xlu0 %3418
  %v3420 = vadd.f32 %v1837, %v1839
  %v3421 = vadd.f32 %v3420, %v2190
  %v3422 = vadd.f32 %v3421, %v2192
  %v3423 = vadd.f32 %v3422, %v2543
  %v3424 = vadd.f32 %v3423, %v2545
  %v3425 = vsel %vm2965, %v2845, 0.0
  %v3426 = vadd.f32 %v3424, %v3425
  %3427 = vadd.xlane.f32.xlu0 %v3426
  %v3428 = vpop.xlane.xlu0 %3427
  %v3429 = vadd.f32 %v1843, %v1845
  %v3430 = vadd.f32 %v3429, %v2196
  %v3431 = vadd.f32 %v3430, %v2198
  %v3432 = vadd.f32 %v3431, %v2549
  %v3433 = vadd.f32 %v3432, %v2551
  %v3434 = vsel %vm2965, %v2850, 0.0
  %v3435 = vadd.f32 %v3433, %v3434
  %3436 = vadd.xlane.f32.xlu0 %v3435
  %v3437 = vpop.xlane.xlu0 %3436
  %v3438 = vadd.f32 %v1847, %v1849
  %v3439 = vadd.f32 %v3438, %v2200
  %v3440 = vadd.f32 %v3439, %v2202
  %v3441 = vadd.f32 %v3440, %v2553
  %v3442 = vadd.f32 %v3441, %v2555
  %v3443 = vsel %vm2965, %v2853, 0.0
  %v3444 = vadd.f32 %v3442, %v3443
  %3445 = vadd.xlane.f32.xlu0 %v3444
  %v3446 = vpop.xlane.xlu0 %3445
  %v3447 = vadd.f32 %v1853, %v1855
  %v3448 = vadd.f32 %v3447, %v2206
  %v3449 = vadd.f32 %v3448, %v2208
  %v3450 = vadd.f32 %v3449, %v2559
  %v3451 = vadd.f32 %v3450, %v2561
  %v3452 = vsel %vm2965, %v2858, 0.0
  %v3453 = vadd.f32 %v3451, %v3452
  %3454 = vadd.xlane.f32.xlu0 %v3453
  %v3455 = vpop.xlane.xlu0 %3454
  %v3456 = vadd.f32 %v1857, %v1859
  %v3457 = vadd.f32 %v3456, %v2210
  %v3458 = vadd.f32 %v3457, %v2212
  %v3459 = vadd.f32 %v3458, %v2563
  %v3460 = vadd.f32 %v3459, %v2565
  %v3461 = vsel %vm2965, %v2861, 0.0
  %v3462 = vadd.f32 %v3460, %v3461
  %3463 = vadd.xlane.f32.xlu0 %v3462
  %v3464 = vpop.xlane.xlu0 %3463
  %v3465 = vadd.f32 %v1863, %v1865
  %v3466 = vadd.f32 %v3465, %v2216
  %v3467 = vadd.f32 %v3466, %v2218
  %v3468 = vadd.f32 %v3467, %v2569
  %v3469 = vadd.f32 %v3468, %v2571
  %v3470 = vsel %vm2965, %v2866, 0.0
  %v3471 = vadd.f32 %v3469, %v3470
  %3472 = vadd.xlane.f32.xlu0 %v3471
  %v3473 = vpop.xlane.xlu0 %3472
  %v3474 = vadd.f32 %v1867, %v1869
  %v3475 = vadd.f32 %v3474, %v2220
  %v3476 = vadd.f32 %v3475, %v2222
  %v3477 = vadd.f32 %v3476, %v2573
  %v3478 = vadd.f32 %v3477, %v2575
  %v3479 = vsel %vm2965, %v2869, 0.0
  %v3480 = vadd.f32 %v3478, %v3479
  %3481 = vadd.xlane.f32.xlu0 %v3480
  %v3482 = vpop.xlane.xlu0 %3481
  %v3483 = vadd.f32 %v1873, %v1875
  %v3484 = vadd.f32 %v3483, %v2226
  %v3485 = vadd.f32 %v3484, %v2228
  %v3486 = vadd.f32 %v3485, %v2579
  %v3487 = vadd.f32 %v3486, %v2581
  %v3488 = vsel %vm2965, %v2874, 0.0
  %v3489 = vadd.f32 %v3487, %v3488
  %3490 = vadd.xlane.f32.xlu0 %v3489
  %v3491 = vpop.xlane.xlu0 %3490
  %v3492 = vadd.f32 %v1877, %v1879
  %v3493 = vadd.f32 %v3492, %v2230
  %v3494 = vadd.f32 %v3493, %v2232
  %v3495 = vadd.f32 %v3494, %v2583
  %v3496 = vadd.f32 %v3495, %v2585
  %v3497 = vsel %vm2965, %v2877, 0.0
  %v3498 = vadd.f32 %v3496, %v3497
  %3499 = vadd.xlane.f32.xlu0 %v3498
  %v3500 = vpop.xlane.xlu0 %3499
  %v3501 = vadd.f32 %v1883, %v1885
  %v3502 = vadd.f32 %v3501, %v2236
  %v3503 = vadd.f32 %v3502, %v2238
  %v3504 = vadd.f32 %v3503, %v2589
  %v3505 = vadd.f32 %v3504, %v2591
  %v3506 = vsel %vm2965, %v2882, 0.0
  %v3507 = vadd.f32 %v3505, %v3506
  %3508 = vadd.xlane.f32.xlu0 %v3507
  %v3509 = vpop.xlane.xlu0 %3508
  %v3510 = vadd.f32 %v1887, %v1889
  %v3511 = vadd.f32 %v3510, %v2240
  %v3512 = vadd.f32 %v3511, %v2242
  %v3513 = vadd.f32 %v3512, %v2593
  %v3514 = vadd.f32 %v3513, %v2595
  %v3515 = vsel %vm2965, %v2885, 0.0
  %v3516 = vadd.f32 %v3514, %v3515
  %3517 = vadd.xlane.f32.xlu0 %v3516
  %v3518 = vpop.xlane.xlu0 %3517
  %v3519 = vadd.f32 %v1893, %v1895
  %v3520 = vadd.f32 %v3519, %v2246
  %v3521 = vadd.f32 %v3520, %v2248
  %v3522 = vadd.f32 %v3521, %v2599
  %v3523 = vadd.f32 %v3522, %v2601
  %v3524 = vsel %vm2965, %v2890, 0.0
  %v3525 = vadd.f32 %v3523, %v3524
  %3526 = vadd.xlane.f32.xlu0 %v3525
  %v3527 = vpop.xlane.xlu0 %3526
  %v3528 = vadd.f32 %v1897, %v1899
  %v3529 = vadd.f32 %v3528, %v2250
  %v3530 = vadd.f32 %v3529, %v2252
  %v3531 = vadd.f32 %v3530, %v2603
  %v3532 = vadd.f32 %v3531, %v2605
  %v3533 = vsel %vm2965, %v2893, 0.0
  %v3534 = vadd.f32 %v3532, %v3533
  %3535 = vadd.xlane.f32.xlu0 %v3534
  %v3536 = vpop.xlane.xlu0 %3535
  %v3537 = vmul.f32 %v2969, 0.0012755102
  %v3538 = vmul.f32 %v2978, 0.0012755102
  %v3539 = vmul.f32 %v2987, 0.0012755102
  %v3540 = vmul.f32 %v2996, 0.0012755102
  %v3541 = vmul.f32 %v3005, 0.0012755102
  %v3542 = vmul.f32 %v3014, 0.0012755102
  %v3543 = vmul.f32 %v3023, 0.0012755102
  %v3544 = vmul.f32 %v3032, 0.0012755102
  %v3545 = vmul.f32 %v3041, 0.0012755102
  %v3546 = vmul.f32 %v3050, 0.0012755102
  %v3547 = vmul.f32 %v3059, 0.0012755102
  %v3548 = vmul.f32 %v3068, 0.0012755102
  %v3549 = vmul.f32 %v3077, 0.0012755102
  %v3550 = vmul.f32 %v3086, 0.0012755102
  %v3551 = vmul.f32 %v3095, 0.0012755102
  %v3552 = vmul.f32 %v3104, 0.0012755102
  %v3553 = vmul.f32 %v3113, 0.0012755102
  %v3554 = vmul.f32 %v3122, 0.0012755102
  %v3555 = vmul.f32 %v3131, 0.0012755102
  %v3556 = vmul.f32 %v3140, 0.0012755102
  %v3557 = vmul.f32 %v3149, 0.0012755102
  %v3558 = vmul.f32 %v3158, 0.0012755102
  %v3559 = vmul.f32 %v3167, 0.0012755102
  %v3560 = vmul.f32 %v3176, 0.0012755102
  %v3561 = vmul.f32 %v3185, 0.0012755102
  %v3562 = vmul.f32 %v3194, 0.0012755102
  %v3563 = vmul.f32 %v3203, 0.0012755102
  %v3564 = vmul.f32 %v3212, 0.0012755102
  %v3565 = vmul.f32 %v3221, 0.0012755102
  %v3566 = vmul.f32 %v3230, 0.0012755102
  %v3567 = vmul.f32 %v3239, 0.0012755102
  %v3568 = vmul.f32 %v3248, 0.0012755102
  %v3569 = vmul.f32 %v3257, 0.0012755102
  %v3570 = vmul.f32 %v3266, 0.0012755102
  %v3571 = vmul.f32 %v3275, 0.0012755102
  %v3572 = vmul.f32 %v3284, 0.0012755102
  %v3573 = vmul.f32 %v3293, 0.0012755102
  %v3574 = vmul.f32 %v3302, 0.0012755102
  %v3575 = vmul.f32 %v3311, 0.0012755102
  %v3576 = vmul.f32 %v3320, 0.0012755102
  %v3577 = vmul.f32 %v3329, 0.0012755102
  %v3578 = vmul.f32 %v3338, 0.0012755102
  %v3579 = vmul.f32 %v3347, 0.0012755102
  %v3580 = vmul.f32 %v3356, 0.0012755102
  %v3581 = vmul.f32 %v3365, 0.0012755102
  %v3582 = vmul.f32 %v3374, 0.0012755102
  %v3583 = vmul.f32 %v3383, 0.0012755102
  %v3584 = vmul.f32 %v3392, 0.0012755102
  %v3585 = vmul.f32 %v3401, 0.0012755102
  %v3586 = vmul.f32 %v3410, 0.0012755102
  %v3587 = vmul.f32 %v3419, 0.0012755102
  %v3588 = vmul.f32 %v3428, 0.0012755102
  %v3589 = vmul.f32 %v3437, 0.0012755102
  %v3590 = vmul.f32 %v3446, 0.0012755102
  %v3591 = vmul.f32 %v3455, 0.0012755102
  %v3592 = vmul.f32 %v3464, 0.0012755102
  %v3593 = vmul.f32 %v3473, 0.0012755102
  %v3594 = vmul.f32 %v3482, 0.0012755102
  %v3595 = vmul.f32 %v3491, 0.0012755102
  %v3596 = vmul.f32 %v3500, 0.0012755102
  %v3597 = vmul.f32 %v3509, 0.0012755102
  %v3598 = vmul.f32 %v3518, 0.0012755102
  %v3599 = vmul.f32 %v3527, 0.0012755102
  %v3600 = vmul.f32 %v3536, 0.0012755102
  %v3601 = vmul.f32 %v1583, %v1583
  %v3602 = vmul.f32 %v1585, %v1585
  %v3603 = vmul.f32 %v1936, %v1936
  %v3604 = vmul.f32 %v1938, %v1938
  %v3605 = vmul.f32 %v2289, %v2289
  %v3606 = vmul.f32 %v2291, %v2291
  %v3607 = vmul.f32 %v2642, %v2642
  %v3608 = vmul.f32 %v1587, %v1587
  %v3609 = vmul.f32 %v1589, %v1589
  %v3610 = vmul.f32 %v1940, %v1940
  %v3611 = vmul.f32 %v1942, %v1942
  %v3612 = vmul.f32 %v2293, %v2293
  %v3613 = vmul.f32 %v2295, %v2295
  %v3614 = vmul.f32 %v2645, %v2645
  %v3615 = vmul.f32 %v1593, %v1593
  %v3616 = vmul.f32 %v1595, %v1595
  %v3617 = vmul.f32 %v1946, %v1946
  %v3618 = vmul.f32 %v1948, %v1948
  %v3619 = vmul.f32 %v2299, %v2299
  %v3620 = vmul.f32 %v2301, %v2301
  %v3621 = vmul.f32 %v2650, %v2650
  %v3622 = vmul.f32 %v1597, %v1597
  %v3623 = vmul.f32 %v1599, %v1599
  %v3624 = vmul.f32 %v1950, %v1950
  %v3625 = vmul.f32 %v1952, %v1952
  %v3626 = vmul.f32 %v2303, %v2303
  %v3627 = vmul.f32 %v2305, %v2305
  %v3628 = vmul.f32 %v2653, %v2653
  %v3629 = vmul.f32 %v1603, %v1603
  %v3630 = vmul.f32 %v1605, %v1605
  %v3631 = vmul.f32 %v1956, %v1956
  %v3632 = vmul.f32 %v1958, %v1958
  %v3633 = vmul.f32 %v2309, %v2309
  %v3634 = vmul.f32 %v2311, %v2311
  %v3635 = vmul.f32 %v2658, %v2658
  %v3636 = vmul.f32 %v1607, %v1607
  %v3637 = vmul.f32 %v1609, %v1609
  %v3638 = vmul.f32 %v1960, %v1960
  %v3639 = vmul.f32 %v1962, %v1962
  %v3640 = vmul.f32 %v2313, %v2313
  %v3641 = vmul.f32 %v2315, %v2315
  %v3642 = vmul.f32 %v2661, %v2661
  %v3643 = vmul.f32 %v1613, %v1613
  %v3644 = vmul.f32 %v1615, %v1615
  %v3645 = vmul.f32 %v1966, %v1966
  %v3646 = vmul.f32 %v1968, %v1968
  %v3647 = vmul.f32 %v2319, %v2319
  %v3648 = vmul.f32 %v2321, %v2321
  %v3649 = vmul.f32 %v2666, %v2666
  %v3650 = vmul.f32 %v1617, %v1617
  %v3651 = vmul.f32 %v1619, %v1619
  %v3652 = vmul.f32 %v1970, %v1970
  %v3653 = vmul.f32 %v1972, %v1972
  %v3654 = vmul.f32 %v2323, %v2323
  %v3655 = vmul.f32 %v2325, %v2325
  %v3656 = vmul.f32 %v2669, %v2669
  %v3657 = vmul.f32 %v1623, %v1623
  %v3658 = vmul.f32 %v1625, %v1625
  %v3659 = vmul.f32 %v1976, %v1976
  %v3660 = vmul.f32 %v1978, %v1978
  %v3661 = vmul.f32 %v2329, %v2329
  %v3662 = vmul.f32 %v2331, %v2331
  %v3663 = vmul.f32 %v2674, %v2674
  %v3664 = vmul.f32 %v1627, %v1627
  %v3665 = vmul.f32 %v1629, %v1629
  %v3666 = vmul.f32 %v1980, %v1980
  %v3667 = vmul.f32 %v1982, %v1982
  %v3668 = vmul.f32 %v2333, %v2333
  %v3669 = vmul.f32 %v2335, %v2335
  %v3670 = vmul.f32 %v2677, %v2677
  %v3671 = vmul.f32 %v1633, %v1633
  %v3672 = vmul.f32 %v1635, %v1635
  %v3673 = vmul.f32 %v1986, %v1986
  %v3674 = vmul.f32 %v1988, %v1988
  %v3675 = vmul.f32 %v2339, %v2339
  %v3676 = vmul.f32 %v2341, %v2341
  %v3677 = vmul.f32 %v2682, %v2682
  %v3678 = vmul.f32 %v1637, %v1637
  %v3679 = vmul.f32 %v1639, %v1639
  %v3680 = vmul.f32 %v1990, %v1990
  %v3681 = vmul.f32 %v1992, %v1992
  %v3682 = vmul.f32 %v2343, %v2343
  %v3683 = vmul.f32 %v2345, %v2345
  %v3684 = vmul.f32 %v2685, %v2685
  %v3685 = vmul.f32 %v1643, %v1643
  %v3686 = vmul.f32 %v1645, %v1645
  %v3687 = vmul.f32 %v1996, %v1996
  %v3688 = vmul.f32 %v1998, %v1998
  %v3689 = vmul.f32 %v2349, %v2349
  %v3690 = vmul.f32 %v2351, %v2351
  %v3691 = vmul.f32 %v2690, %v2690
  %v3692 = vmul.f32 %v1647, %v1647
  %v3693 = vmul.f32 %v1649, %v1649
  %v3694 = vmul.f32 %v2000, %v2000
  %v3695 = vmul.f32 %v2002, %v2002
  %v3696 = vmul.f32 %v2353, %v2353
  %v3697 = vmul.f32 %v2355, %v2355
  %v3698 = vmul.f32 %v2693, %v2693
  %v3699 = vmul.f32 %v1653, %v1653
  %v3700 = vmul.f32 %v1655, %v1655
  %v3701 = vmul.f32 %v2006, %v2006
  %v3702 = vmul.f32 %v2008, %v2008
  %v3703 = vmul.f32 %v2359, %v2359
  %v3704 = vmul.f32 %v2361, %v2361
  %v3705 = vmul.f32 %v2698, %v2698
  %v3706 = vmul.f32 %v1657, %v1657
  %v3707 = vmul.f32 %v1659, %v1659
  %v3708 = vmul.f32 %v2010, %v2010
  %v3709 = vmul.f32 %v2012, %v2012
  %v3710 = vmul.f32 %v2363, %v2363
  %v3711 = vmul.f32 %v2365, %v2365
  %v3712 = vmul.f32 %v2701, %v2701
  %v3713 = vmul.f32 %v1663, %v1663
  %v3714 = vmul.f32 %v1665, %v1665
  %v3715 = vmul.f32 %v2016, %v2016
  %v3716 = vmul.f32 %v2018, %v2018
  %v3717 = vmul.f32 %v2369, %v2369
  %v3718 = vmul.f32 %v2371, %v2371
  %v3719 = vmul.f32 %v2706, %v2706
  %v3720 = vmul.f32 %v1667, %v1667
  %v3721 = vmul.f32 %v1669, %v1669
  %v3722 = vmul.f32 %v2020, %v2020
  %v3723 = vmul.f32 %v2022, %v2022
  %v3724 = vmul.f32 %v2373, %v2373
  %v3725 = vmul.f32 %v2375, %v2375
  %v3726 = vmul.f32 %v2709, %v2709
  %v3727 = vmul.f32 %v1673, %v1673
  %v3728 = vmul.f32 %v1675, %v1675
  %v3729 = vmul.f32 %v2026, %v2026
  %v3730 = vmul.f32 %v2028, %v2028
  %v3731 = vmul.f32 %v2379, %v2379
  %v3732 = vmul.f32 %v2381, %v2381
  %v3733 = vmul.f32 %v2714, %v2714
  %v3734 = vmul.f32 %v1677, %v1677
  %v3735 = vmul.f32 %v1679, %v1679
  %v3736 = vmul.f32 %v2030, %v2030
  %v3737 = vmul.f32 %v2032, %v2032
  %v3738 = vmul.f32 %v2383, %v2383
  %v3739 = vmul.f32 %v2385, %v2385
  %v3740 = vmul.f32 %v2717, %v2717
  %v3741 = vmul.f32 %v1683, %v1683
  %v3742 = vmul.f32 %v1685, %v1685
  %v3743 = vmul.f32 %v2036, %v2036
  %v3744 = vmul.f32 %v2038, %v2038
  %v3745 = vmul.f32 %v2389, %v2389
  %v3746 = vmul.f32 %v2391, %v2391
  %v3747 = vmul.f32 %v2722, %v2722
  %v3748 = vmul.f32 %v1687, %v1687
  %v3749 = vmul.f32 %v1689, %v1689
  %v3750 = vmul.f32 %v2040, %v2040
  %v3751 = vmul.f32 %v2042, %v2042
  %v3752 = vmul.f32 %v2393, %v2393
  %v3753 = vmul.f32 %v2395, %v2395
  %v3754 = vmul.f32 %v2725, %v2725
  %v3755 = vmul.f32 %v1693, %v1693
  %v3756 = vmul.f32 %v1695, %v1695
  %v3757 = vmul.f32 %v2046, %v2046
  %v3758 = vmul.f32 %v2048, %v2048
  %v3759 = vmul.f32 %v2399, %v2399
  %v3760 = vmul.f32 %v2401, %v2401
  %v3761 = vmul.f32 %v2730, %v2730
  %v3762 = vmul.f32 %v1697, %v1697
  %v3763 = vmul.f32 %v1699, %v1699
  %v3764 = vmul.f32 %v2050, %v2050
  %v3765 = vmul.f32 %v2052, %v2052
  %v3766 = vmul.f32 %v2403, %v2403
  %v3767 = vmul.f32 %v2405, %v2405
  %v3768 = vmul.f32 %v2733, %v2733
  %v3769 = vmul.f32 %v1703, %v1703
  %v3770 = vmul.f32 %v1705, %v1705
  %v3771 = vmul.f32 %v2056, %v2056
  %v3772 = vmul.f32 %v2058, %v2058
  %v3773 = vmul.f32 %v2409, %v2409
  %v3774 = vmul.f32 %v2411, %v2411
  %v3775 = vmul.f32 %v2738, %v2738
  %v3776 = vmul.f32 %v1707, %v1707
  %v3777 = vmul.f32 %v1709, %v1709
  %v3778 = vmul.f32 %v2060, %v2060
  %v3779 = vmul.f32 %v2062, %v2062
  %v3780 = vmul.f32 %v2413, %v2413
  %v3781 = vmul.f32 %v2415, %v2415
  %v3782 = vmul.f32 %v2741, %v2741
  %v3783 = vmul.f32 %v1713, %v1713
  %v3784 = vmul.f32 %v1715, %v1715
  %v3785 = vmul.f32 %v2066, %v2066
  %v3786 = vmul.f32 %v2068, %v2068
  %v3787 = vmul.f32 %v2419, %v2419
  %v3788 = vmul.f32 %v2421, %v2421
  %v3789 = vmul.f32 %v2746, %v2746
  %v3790 = vmul.f32 %v1717, %v1717
  %v3791 = vmul.f32 %v1719, %v1719
  %v3792 = vmul.f32 %v2070, %v2070
  %v3793 = vmul.f32 %v2072, %v2072
  %v3794 = vmul.f32 %v2423, %v2423
  %v3795 = vmul.f32 %v2425, %v2425
  %v3796 = vmul.f32 %v2749, %v2749
  %v3797 = vmul.f32 %v1723, %v1723
  %v3798 = vmul.f32 %v1725, %v1725
  %v3799 = vmul.f32 %v2076, %v2076
  %v3800 = vmul.f32 %v2078, %v2078
  %v3801 = vmul.f32 %v2429, %v2429
  %v3802 = vmul.f32 %v2431, %v2431
  %v3803 = vmul.f32 %v2754, %v2754
  %v3804 = vmul.f32 %v1727, %v1727
  %v3805 = vmul.f32 %v1729, %v1729
  %v3806 = vmul.f32 %v2080, %v2080
  %v3807 = vmul.f32 %v2082, %v2082
  %v3808 = vmul.f32 %v2433, %v2433
  %v3809 = vmul.f32 %v2435, %v2435
  %v3810 = vmul.f32 %v2757, %v2757
  %v3811 = vmul.f32 %v1733, %v1733
  %v3812 = vmul.f32 %v1735, %v1735
  %v3813 = vmul.f32 %v2086, %v2086
  %v3814 = vmul.f32 %v2088, %v2088
  %v3815 = vmul.f32 %v2439, %v2439
  %v3816 = vmul.f32 %v2441, %v2441
  %v3817 = vmul.f32 %v2762, %v2762
  %v3818 = vmul.f32 %v1737, %v1737
  %v3819 = vmul.f32 %v1739, %v1739
  %v3820 = vmul.f32 %v2090, %v2090
  %v3821 = vmul.f32 %v2092, %v2092
  %v3822 = vmul.f32 %v2443, %v2443
  %v3823 = vmul.f32 %v2445, %v2445
  %v3824 = vmul.f32 %v2765, %v2765
  %v3825 = vmul.f32 %v1743, %v1743
  %v3826 = vmul.f32 %v1745, %v1745
  %v3827 = vmul.f32 %v2096, %v2096
  %v3828 = vmul.f32 %v2098, %v2098
  %v3829 = vmul.f32 %v2449, %v2449
  %v3830 = vmul.f32 %v2451, %v2451
  %v3831 = vmul.f32 %v2770, %v2770
  %v3832 = vmul.f32 %v1747, %v1747
  %v3833 = vmul.f32 %v1749, %v1749
  %v3834 = vmul.f32 %v2100, %v2100
  %v3835 = vmul.f32 %v2102, %v2102
  %v3836 = vmul.f32 %v2453, %v2453
  %v3837 = vmul.f32 %v2455, %v2455
  %v3838 = vmul.f32 %v2773, %v2773
  %v3839 = vmul.f32 %v1753, %v1753
  %v3840 = vmul.f32 %v1755, %v1755
  %v3841 = vmul.f32 %v2106, %v2106
  %v3842 = vmul.f32 %v2108, %v2108
  %v3843 = vmul.f32 %v2459, %v2459
  %v3844 = vmul.f32 %v2461, %v2461
  %v3845 = vmul.f32 %v2778, %v2778
  %v3846 = vmul.f32 %v1757, %v1757
  %v3847 = vmul.f32 %v1759, %v1759
  %v3848 = vmul.f32 %v2110, %v2110
  %v3849 = vmul.f32 %v2112, %v2112
  %v3850 = vmul.f32 %v2463, %v2463
  %v3851 = vmul.f32 %v2465, %v2465
  %v3852 = vmul.f32 %v2781, %v2781
  %v3853 = vmul.f32 %v1763, %v1763
  %v3854 = vmul.f32 %v1765, %v1765
  %v3855 = vmul.f32 %v2116, %v2116
  %v3856 = vmul.f32 %v2118, %v2118
  %v3857 = vmul.f32 %v2469, %v2469
  %v3858 = vmul.f32 %v2471, %v2471
  %v3859 = vmul.f32 %v2786, %v2786
  %v3860 = vmul.f32 %v1767, %v1767
  %v3861 = vmul.f32 %v1769, %v1769
  %v3862 = vmul.f32 %v2120, %v2120
  %v3863 = vmul.f32 %v2122, %v2122
  %v3864 = vmul.f32 %v2473, %v2473
  %v3865 = vmul.f32 %v2475, %v2475
  %v3866 = vmul.f32 %v2789, %v2789
  %v3867 = vmul.f32 %v1773, %v1773
  %v3868 = vmul.f32 %v1775, %v1775
  %v3869 = vmul.f32 %v2126, %v2126
  %v3870 = vmul.f32 %v2128, %v2128
  %v3871 = vmul.f32 %v2479, %v2479
  %v3872 = vmul.f32 %v2481, %v2481
  %v3873 = vmul.f32 %v2794, %v2794
  %v3874 = vmul.f32 %v1777, %v1777
  %v3875 = vmul.f32 %v1779, %v1779
  %v3876 = vmul.f32 %v2130, %v2130
  %v3877 = vmul.f32 %v2132, %v2132
  %v3878 = vmul.f32 %v2483, %v2483
  %v3879 = vmul.f32 %v2485, %v2485
  %v3880 = vmul.f32 %v2797, %v2797
  %v3881 = vmul.f32 %v1783, %v1783
  %v3882 = vmul.f32 %v1785, %v1785
  %v3883 = vmul.f32 %v2136, %v2136
  %v3884 = vmul.f32 %v2138, %v2138
  %v3885 = vmul.f32 %v2489, %v2489
  %v3886 = vmul.f32 %v2491, %v2491
  %v3887 = vmul.f32 %v2802, %v2802
  %v3888 = vmul.f32 %v1787, %v1787
  %v3889 = vmul.f32 %v1789, %v1789
  %v3890 = vmul.f32 %v2140, %v2140
  %v3891 = vmul.f32 %v2142, %v2142
  %v3892 = vmul.f32 %v2493, %v2493
  %v3893 = vmul.f32 %v2495, %v2495
  %v3894 = vmul.f32 %v2805, %v2805
  %v3895 = vmul.f32 %v1793, %v1793
  %v3896 = vmul.f32 %v1795, %v1795
  %v3897 = vmul.f32 %v2146, %v2146
  %v3898 = vmul.f32 %v2148, %v2148
  %v3899 = vmul.f32 %v2499, %v2499
  %v3900 = vmul.f32 %v2501, %v2501
  %v3901 = vmul.f32 %v2810, %v2810
  %v3902 = vmul.f32 %v1797, %v1797
  %v3903 = vmul.f32 %v1799, %v1799
  %v3904 = vmul.f32 %v2150, %v2150
  %v3905 = vmul.f32 %v2152, %v2152
  %v3906 = vmul.f32 %v2503, %v2503
  %v3907 = vmul.f32 %v2505, %v2505
  %v3908 = vmul.f32 %v2813, %v2813
  %v3909 = vmul.f32 %v1803, %v1803
  %v3910 = vmul.f32 %v1805, %v1805
  %v3911 = vmul.f32 %v2156, %v2156
  %v3912 = vmul.f32 %v2158, %v2158
  %v3913 = vmul.f32 %v2509, %v2509
  %v3914 = vmul.f32 %v2511, %v2511
  %v3915 = vmul.f32 %v2818, %v2818
  %v3916 = vmul.f32 %v1807, %v1807
  %v3917 = vmul.f32 %v1809, %v1809
  %v3918 = vmul.f32 %v2160, %v2160
  %v3919 = vmul.f32 %v2162, %v2162
  %v3920 = vmul.f32 %v2513, %v2513
  %v3921 = vmul.f32 %v2515, %v2515
  %v3922 = vmul.f32 %v2821, %v2821
  %v3923 = vmul.f32 %v1813, %v1813
  %v3924 = vmul.f32 %v1815, %v1815
  %v3925 = vmul.f32 %v2166, %v2166
  %v3926 = vmul.f32 %v2168, %v2168
  %v3927 = vmul.f32 %v2519, %v2519
  %v3928 = vmul.f32 %v2521, %v2521
  %v3929 = vmul.f32 %v2826, %v2826
  %v3930 = vmul.f32 %v1817, %v1817
  %v3931 = vmul.f32 %v1819, %v1819
  %v3932 = vmul.f32 %v2170, %v2170
  %v3933 = vmul.f32 %v2172, %v2172
  %v3934 = vmul.f32 %v2523, %v2523
  %v3935 = vmul.f32 %v2525, %v2525
  %v3936 = vmul.f32 %v2829, %v2829
  %v3937 = vmul.f32 %v1823, %v1823
  %v3938 = vmul.f32 %v1825, %v1825
  %v3939 = vmul.f32 %v2176, %v2176
  %v3940 = vmul.f32 %v2178, %v2178
  %v3941 = vmul.f32 %v2529, %v2529
  %v3942 = vmul.f32 %v2531, %v2531
  %v3943 = vmul.f32 %v2834, %v2834
  %v3944 = vmul.f32 %v1827, %v1827
  %v3945 = vmul.f32 %v1829, %v1829
  %v3946 = vmul.f32 %v2180, %v2180
  %v3947 = vmul.f32 %v2182, %v2182
  %v3948 = vmul.f32 %v2533, %v2533
  %v3949 = vmul.f32 %v2535, %v2535
  %v3950 = vmul.f32 %v2837, %v2837
  %v3951 = vmul.f32 %v1833, %v1833
  %v3952 = vmul.f32 %v1835, %v1835
  %v3953 = vmul.f32 %v2186, %v2186
  %v3954 = vmul.f32 %v2188, %v2188
  %v3955 = vmul.f32 %v2539, %v2539
  %v3956 = vmul.f32 %v2541, %v2541
  %v3957 = vmul.f32 %v2842, %v2842
  %v3958 = vmul.f32 %v1837, %v1837
  %v3959 = vmul.f32 %v1839, %v1839
  %v3960 = vmul.f32 %v2190, %v2190
  %v3961 = vmul.f32 %v2192, %v2192
  %v3962 = vmul.f32 %v2543, %v2543
  %v3963 = vmul.f32 %v2545, %v2545
  %v3964 = vmul.f32 %v2845, %v2845
  %v3965 = vmul.f32 %v1843, %v1843
  %v3966 = vmul.f32 %v1845, %v1845
  %v3967 = vmul.f32 %v2196, %v2196
  %v3968 = vmul.f32 %v2198, %v2198
  %v3969 = vmul.f32 %v2549, %v2549
  %v3970 = vmul.f32 %v2551, %v2551
  %v3971 = vmul.f32 %v2850, %v2850
  %v3972 = vmul.f32 %v1847, %v1847
  %v3973 = vmul.f32 %v1849, %v1849
  %v3974 = vmul.f32 %v2200, %v2200
  %v3975 = vmul.f32 %v2202, %v2202
  %v3976 = vmul.f32 %v2553, %v2553
  %v3977 = vmul.f32 %v2555, %v2555
  %v3978 = vmul.f32 %v2853, %v2853
  %v3979 = vmul.f32 %v1853, %v1853
  %v3980 = vmul.f32 %v1855, %v1855
  %v3981 = vmul.f32 %v2206, %v2206
  %v3982 = vmul.f32 %v2208, %v2208
  %v3983 = vmul.f32 %v2559, %v2559
  %v3984 = vmul.f32 %v2561, %v2561
  %v3985 = vmul.f32 %v2858, %v2858
  %v3986 = vmul.f32 %v1857, %v1857
  %v3987 = vmul.f32 %v1859, %v1859
  %v3988 = vmul.f32 %v2210, %v2210
  %v3989 = vmul.f32 %v2212, %v2212
  %v3990 = vmul.f32 %v2563, %v2563
  %v3991 = vmul.f32 %v2565, %v2565
  %v3992 = vmul.f32 %v2861, %v2861
  %v3993 = vmul.f32 %v1863, %v1863
  %v3994 = vmul.f32 %v1865, %v1865
  %v3995 = vmul.f32 %v2216, %v2216
  %v3996 = vmul.f32 %v2218, %v2218
  %v3997 = vmul.f32 %v2569, %v2569
  %v3998 = vmul.f32 %v2571, %v2571
  %v3999 = vmul.f32 %v2866, %v2866
  %v4000 = vmul.f32 %v1867, %v1867
  %v4001 = vmul.f32 %v1869, %v1869
  %v4002 = vmul.f32 %v2220, %v2220
  %v4003 = vmul.f32 %v2222, %v2222
  %v4004 = vmul.f32 %v2573, %v2573
  %v4005 = vmul.f32 %v2575, %v2575
  %v4006 = vmul.f32 %v2869, %v2869
  %v4007 = vmul.f32 %v1873, %v1873
  %v4008 = vmul.f32 %v1875, %v1875
  %v4009 = vmul.f32 %v2226, %v2226
  %v4010 = vmul.f32 %v2228, %v2228
  %v4011 = vmul.f32 %v2579, %v2579
  %v4012 = vmul.f32 %v2581, %v2581
  %v4013 = vmul.f32 %v2874, %v2874
  %v4014 = vmul.f32 %v1877, %v1877
  %v4015 = vmul.f32 %v1879, %v1879
  %v4016 = vmul.f32 %v2230, %v2230
  %v4017 = vmul.f32 %v2232, %v2232
  %v4018 = vmul.f32 %v2583, %v2583
  %v4019 = vmul.f32 %v2585, %v2585
  %v4020 = vmul.f32 %v2877, %v2877
  %v4021 = vmul.f32 %v1883, %v1883
  %v4022 = vmul.f32 %v1885, %v1885
  %v4023 = vmul.f32 %v2236, %v2236
  %v4024 = vmul.f32 %v2238, %v2238
  %v4025 = vmul.f32 %v2589, %v2589
  %v4026 = vmul.f32 %v2591, %v2591
  %v4027 = vmul.f32 %v2882, %v2882
  %v4028 = vmul.f32 %v1887, %v1887
  %v4029 = vmul.f32 %v1889, %v1889
  %v4030 = vmul.f32 %v2240, %v2240
  %v4031 = vmul.f32 %v2242, %v2242
  %v4032 = vmul.f32 %v2593, %v2593
  %v4033 = vmul.f32 %v2595, %v2595
  %v4034 = vmul.f32 %v2885, %v2885
  %v4035 = vmul.f32 %v1893, %v1893
  %v4036 = vmul.f32 %v1895, %v1895
  %v4037 = vmul.f32 %v2246, %v2246
  %v4038 = vmul.f32 %v2248, %v2248
  %v4039 = vmul.f32 %v2599, %v2599
  %v4040 = vmul.f32 %v2601, %v2601
  %v4041 = vmul.f32 %v2890, %v2890
  %v4042 = vmul.f32 %v1897, %v1897
  %v4043 = vmul.f32 %v1899, %v1899
  %v4044 = vmul.f32 %v2250, %v2250
  %v4045 = vmul.f32 %v2252, %v2252
  %v4046 = vmul.f32 %v2603, %v2603
  %v4047 = vmul.f32 %v2605, %v2605
  %v4048 = vmul.f32 %v2893, %v2893
  %v4049 = vadd.f32 %v3601, %v3602
  %v4050 = vadd.f32 %v4049, %v3603
  %v4051 = vadd.f32 %v4050, %v3604
  %v4052 = vadd.f32 %v4051, %v3605
  %v4053 = vadd.f32 %v4052, %v3606
  %v4054 = vsel %vm2965, %v3607, 0.0
  %v4055 = vadd.f32 %v4053, %v4054
  %4056 = vadd.xlane.f32.xlu0 %v4055
  %v4057 = vpop.xlane.xlu0 %4056
  %v4058 = vadd.f32 %v3608, %v3609
  %v4059 = vadd.f32 %v4058, %v3610
  %v4060 = vadd.f32 %v4059, %v3611
  %v4061 = vadd.f32 %v4060, %v3612
  %v4062 = vadd.f32 %v4061, %v3613
  %v4063 = vsel %vm2965, %v3614, 0.0
  %v4064 = vadd.f32 %v4062, %v4063
  %4065 = vadd.xlane.f32.xlu0 %v4064
  %v4066 = vpop.xlane.xlu0 %4065
  %v4067 = vadd.f32 %v3615, %v3616
  %v4068 = vadd.f32 %v4067, %v3617
  %v4069 = vadd.f32 %v4068, %v3618
  %v4070 = vadd.f32 %v4069, %v3619
  %v4071 = vadd.f32 %v4070, %v3620
  %v4072 = vsel %vm2965, %v3621, 0.0
  %v4073 = vadd.f32 %v4071, %v4072
  %4074 = vadd.xlane.f32.xlu0 %v4073
  %v4075 = vpop.xlane.xlu0 %4074
  %v4076 = vadd.f32 %v3622, %v3623
  %v4077 = vadd.f32 %v4076, %v3624
  %v4078 = vadd.f32 %v4077, %v3625
  %v4079 = vadd.f32 %v4078, %v3626
  %v4080 = vadd.f32 %v4079, %v3627
  %v4081 = vsel %vm2965, %v3628, 0.0
  %v4082 = vadd.f32 %v4080, %v4081
  %4083 = vadd.xlane.f32.xlu0 %v4082
  %v4084 = vpop.xlane.xlu0 %4083
  %v4085 = vadd.f32 %v3629, %v3630
  %v4086 = vadd.f32 %v4085, %v3631
  %v4087 = vadd.f32 %v4086, %v3632
  %v4088 = vadd.f32 %v4087, %v3633
  %v4089 = vadd.f32 %v4088, %v3634
  %v4090 = vsel %vm2965, %v3635, 0.0
  %v4091 = vadd.f32 %v4089, %v4090
  %4092 = vadd.xlane.f32.xlu0 %v4091
  %v4093 = vpop.xlane.xlu0 %4092
  %v4094 = vadd.f32 %v3636, %v3637
  %v4095 = vadd.f32 %v4094, %v3638
  %v4096 = vadd.f32 %v4095, %v3639
  %v4097 = vadd.f32 %v4096, %v3640
  %v4098 = vadd.f32 %v4097, %v3641
  %v4099 = vsel %vm2965, %v3642, 0.0
  %v4100 = vadd.f32 %v4098, %v4099
  %4101 = vadd.xlane.f32.xlu0 %v4100
  %v4102 = vpop.xlane.xlu0 %4101
  %v4103 = vadd.f32 %v3643, %v3644
  %v4104 = vadd.f32 %v4103, %v3645
  %v4105 = vadd.f32 %v4104, %v3646
  %v4106 = vadd.f32 %v4105, %v3647
  %v4107 = vadd.f32 %v4106, %v3648
  %v4108 = vsel %vm2965, %v3649, 0.0
  %v4109 = vadd.f32 %v4107, %v4108
  %4110 = vadd.xlane.f32.xlu0 %v4109
  %v4111 = vpop.xlane.xlu0 %4110
  %v4112 = vadd.f32 %v3650, %v3651
  %v4113 = vadd.f32 %v4112, %v3652
  %v4114 = vadd.f32 %v4113, %v3653
  %v4115 = vadd.f32 %v4114, %v3654
  %v4116 = vadd.f32 %v4115, %v3655
  %v4117 = vsel %vm2965, %v3656, 0.0
  %v4118 = vadd.f32 %v4116, %v4117
  %4119 = vadd.xlane.f32.xlu0 %v4118
  %v4120 = vpop.xlane.xlu0 %4119
  %v4121 = vadd.f32 %v3657, %v3658
  %v4122 = vadd.f32 %v4121, %v3659
  %v4123 = vadd.f32 %v4122, %v3660
  %v4124 = vadd.f32 %v4123, %v3661
  %v4125 = vadd.f32 %v4124, %v3662
  %v4126 = vsel %vm2965, %v3663, 0.0
  %v4127 = vadd.f32 %v4125, %v4126
  %4128 = vadd.xlane.f32.xlu0 %v4127
  %v4129 = vpop.xlane.xlu0 %4128
  %v4130 = vadd.f32 %v3664, %v3665
  %v4131 = vadd.f32 %v4130, %v3666
  %v4132 = vadd.f32 %v4131, %v3667
  %v4133 = vadd.f32 %v4132, %v3668
  %v4134 = vadd.f32 %v4133, %v3669
  %v4135 = vsel %vm2965, %v3670, 0.0
  %v4136 = vadd.f32 %v4134, %v4135
  %4137 = vadd.xlane.f32.xlu0 %v4136
  %v4138 = vpop.xlane.xlu0 %4137
  %v4139 = vadd.f32 %v3671, %v3672
  %v4140 = vadd.f32 %v4139, %v3673
  %v4141 = vadd.f32 %v4140, %v3674
  %v4142 = vadd.f32 %v4141, %v3675
  %v4143 = vadd.f32 %v4142, %v3676
  %v4144 = vsel %vm2965, %v3677, 0.0
  %v4145 = vadd.f32 %v4143, %v4144
  %4146 = vadd.xlane.f32.xlu0 %v4145
  %v4147 = vpop.xlane.xlu0 %4146
  %v4148 = vadd.f32 %v3678, %v3679
  %v4149 = vadd.f32 %v4148, %v3680
  %v4150 = vadd.f32 %v4149, %v3681
  %v4151 = vadd.f32 %v4150, %v3682
  %v4152 = vadd.f32 %v4151, %v3683
  %v4153 = vsel %vm2965, %v3684, 0.0
  %v4154 = vadd.f32 %v4152, %v4153
  %4155 = vadd.xlane.f32.xlu0 %v4154
  %v4156 = vpop.xlane.xlu0 %4155
  %v4157 = vadd.f32 %v3685, %v3686
  %v4158 = vadd.f32 %v4157, %v3687
  %v4159 = vadd.f32 %v4158, %v3688
  %v4160 = vadd.f32 %v4159, %v3689
  %v4161 = vadd.f32 %v4160, %v3690
  %v4162 = vsel %vm2965, %v3691, 0.0
  %v4163 = vadd.f32 %v4161, %v4162
  %4164 = vadd.xlane.f32.xlu0 %v4163
  %v4165 = vpop.xlane.xlu0 %4164
  %v4166 = vadd.f32 %v3692, %v3693
  %v4167 = vadd.f32 %v4166, %v3694
  %v4168 = vadd.f32 %v4167, %v3695
  %v4169 = vadd.f32 %v4168, %v3696
  %v4170 = vadd.f32 %v4169, %v3697
  %v4171 = vsel %vm2965, %v3698, 0.0
  %v4172 = vadd.f32 %v4170, %v4171
  %4173 = vadd.xlane.f32.xlu0 %v4172
  %v4174 = vpop.xlane.xlu0 %4173
  %v4175 = vadd.f32 %v3699, %v3700
  %v4176 = vadd.f32 %v4175, %v3701
  %v4177 = vadd.f32 %v4176, %v3702
  %v4178 = vadd.f32 %v4177, %v3703
  %v4179 = vadd.f32 %v4178, %v3704
  %v4180 = vsel %vm2965, %v3705, 0.0
  %v4181 = vadd.f32 %v4179, %v4180
  %4182 = vadd.xlane.f32.xlu0 %v4181
  %v4183 = vpop.xlane.xlu0 %4182
  %v4184 = vadd.f32 %v3706, %v3707
  %v4185 = vadd.f32 %v4184, %v3708
  %v4186 = vadd.f32 %v4185, %v3709
  %v4187 = vadd.f32 %v4186, %v3710
  %v4188 = vadd.f32 %v4187, %v3711
  %v4189 = vsel %vm2965, %v3712, 0.0
  %v4190 = vadd.f32 %v4188, %v4189
  %4191 = vadd.xlane.f32.xlu0 %v4190
  %v4192 = vpop.xlane.xlu0 %4191
  %v4193 = vadd.f32 %v3713, %v3714
  %v4194 = vadd.f32 %v4193, %v3715
  %v4195 = vadd.f32 %v4194, %v3716
  %v4196 = vadd.f32 %v4195, %v3717
  %v4197 = vadd.f32 %v4196, %v3718
  %v4198 = vsel %vm2965, %v3719, 0.0
  %v4199 = vadd.f32 %v4197, %v4198
  %4200 = vadd.xlane.f32.xlu0 %v4199
  %v4201 = vpop.xlane.xlu0 %4200
  %v4202 = vadd.f32 %v3720, %v3721
  %v4203 = vadd.f32 %v4202, %v3722
  %v4204 = vadd.f32 %v4203, %v3723
  %v4205 = vadd.f32 %v4204, %v3724
  %v4206 = vadd.f32 %v4205, %v3725
  %v4207 = vsel %vm2965, %v3726, 0.0
  %v4208 = vadd.f32 %v4206, %v4207
  %4209 = vadd.xlane.f32.xlu0 %v4208
  %v4210 = vpop.xlane.xlu0 %4209
  %v4211 = vadd.f32 %v3727, %v3728
  %v4212 = vadd.f32 %v4211, %v3729
  %v4213 = vadd.f32 %v4212, %v3730
  %v4214 = vadd.f32 %v4213, %v3731
  %v4215 = vadd.f32 %v4214, %v3732
  %v4216 = vsel %vm2965, %v3733, 0.0
  %v4217 = vadd.f32 %v4215, %v4216
  %4218 = vadd.xlane.f32.xlu0 %v4217
  %v4219 = vpop.xlane.xlu0 %4218
  %v4220 = vadd.f32 %v3734, %v3735
  %v4221 = vadd.f32 %v4220, %v3736
  %v4222 = vadd.f32 %v4221, %v3737
  %v4223 = vadd.f32 %v4222, %v3738
  %v4224 = vadd.f32 %v4223, %v3739
  %v4225 = vsel %vm2965, %v3740, 0.0
  %v4226 = vadd.f32 %v4224, %v4225
  %4227 = vadd.xlane.f32.xlu0 %v4226
  %v4228 = vpop.xlane.xlu0 %4227
  %v4229 = vadd.f32 %v3741, %v3742
  %v4230 = vadd.f32 %v4229, %v3743
  %v4231 = vadd.f32 %v4230, %v3744
  %v4232 = vadd.f32 %v4231, %v3745
  %v4233 = vadd.f32 %v4232, %v3746
  %v4234 = vsel %vm2965, %v3747, 0.0
  %v4235 = vadd.f32 %v4233, %v4234
  %4236 = vadd.xlane.f32.xlu0 %v4235
  %v4237 = vpop.xlane.xlu0 %4236
  %v4238 = vadd.f32 %v3748, %v3749
  %v4239 = vadd.f32 %v4238, %v3750
  %v4240 = vadd.f32 %v4239, %v3751
  %v4241 = vadd.f32 %v4240, %v3752
  %v4242 = vadd.f32 %v4241, %v3753
  %v4243 = vsel %vm2965, %v3754, 0.0
  %v4244 = vadd.f32 %v4242, %v4243
  %4245 = vadd.xlane.f32.xlu0 %v4244
  %v4246 = vpop.xlane.xlu0 %4245
  %v4247 = vadd.f32 %v3755, %v3756
  %v4248 = vadd.f32 %v4247, %v3757
  %v4249 = vadd.f32 %v4248, %v3758
  %v4250 = vadd.f32 %v4249, %v3759
  %v4251 = vadd.f32 %v4250, %v3760
  %v4252 = vsel %vm2965, %v3761, 0.0
  %v4253 = vadd.f32 %v4251, %v4252
  %4254 = vadd.xlane.f32.xlu0 %v4253
  %v4255 = vpop.xlane.xlu0 %4254
  %v4256 = vadd.f32 %v3762, %v3763
  %v4257 = vadd.f32 %v4256, %v3764
  %v4258 = vadd.f32 %v4257, %v3765
  %v4259 = vadd.f32 %v4258, %v3766
  %v4260 = vadd.f32 %v4259, %v3767
  %v4261 = vsel %vm2965, %v3768, 0.0
  %v4262 = vadd.f32 %v4260, %v4261
  %4263 = vadd.xlane.f32.xlu0 %v4262
  %v4264 = vpop.xlane.xlu0 %4263
  %v4265 = vadd.f32 %v3769, %v3770
  %v4266 = vadd.f32 %v4265, %v3771
  %v4267 = vadd.f32 %v4266, %v3772
  %v4268 = vadd.f32 %v4267, %v3773
  %v4269 = vadd.f32 %v4268, %v3774
  %v4270 = vsel %vm2965, %v3775, 0.0
  %v4271 = vadd.f32 %v4269, %v4270
  %4272 = vadd.xlane.f32.xlu0 %v4271
  %v4273 = vpop.xlane.xlu0 %4272
  %v4274 = vadd.f32 %v3776, %v3777
  %v4275 = vadd.f32 %v4274, %v3778
  %v4276 = vadd.f32 %v4275, %v3779
  %v4277 = vadd.f32 %v4276, %v3780
  %v4278 = vadd.f32 %v4277, %v3781
  %v4279 = vsel %vm2965, %v3782, 0.0
  %v4280 = vadd.f32 %v4278, %v4279
  %4281 = vadd.xlane.f32.xlu0 %v4280
  %v4282 = vpop.xlane.xlu0 %4281
  %v4283 = vadd.f32 %v3783, %v3784
  %v4284 = vadd.f32 %v4283, %v3785
  %v4285 = vadd.f32 %v4284, %v3786
  %v4286 = vadd.f32 %v4285, %v3787
  %v4287 = vadd.f32 %v4286, %v3788
  %v4288 = vsel %vm2965, %v3789, 0.0
  %v4289 = vadd.f32 %v4287, %v4288
  %4290 = vadd.xlane.f32.xlu0 %v4289
  %v4291 = vpop.xlane.xlu0 %4290
  %v4292 = vadd.f32 %v3790, %v3791
  %v4293 = vadd.f32 %v4292, %v3792
  %v4294 = vadd.f32 %v4293, %v3793
  %v4295 = vadd.f32 %v4294, %v3794
  %v4296 = vadd.f32 %v4295, %v3795
  %v4297 = vsel %vm2965, %v3796, 0.0
  %v4298 = vadd.f32 %v4296, %v4297
  %4299 = vadd.xlane.f32.xlu0 %v4298
  %v4300 = vpop.xlane.xlu0 %4299
  %v4301 = vadd.f32 %v3797, %v3798
  %v4302 = vadd.f32 %v4301, %v3799
  %v4303 = vadd.f32 %v4302, %v3800
  %v4304 = vadd.f32 %v4303, %v3801
  %v4305 = vadd.f32 %v4304, %v3802
  %v4306 = vsel %vm2965, %v3803, 0.0
  %v4307 = vadd.f32 %v4305, %v4306
  %4308 = vadd.xlane.f32.xlu0 %v4307
  %v4309 = vpop.xlane.xlu0 %4308
  %v4310 = vadd.f32 %v3804, %v3805
  %v4311 = vadd.f32 %v4310, %v3806
  %v4312 = vadd.f32 %v4311, %v3807
  %v4313 = vadd.f32 %v4312, %v3808
  %v4314 = vadd.f32 %v4313, %v3809
  %v4315 = vsel %vm2965, %v3810, 0.0
  %v4316 = vadd.f32 %v4314, %v4315
  %4317 = vadd.xlane.f32.xlu0 %v4316
  %v4318 = vpop.xlane.xlu0 %4317
  %v4319 = vadd.f32 %v3811, %v3812
  %v4320 = vadd.f32 %v4319, %v3813
  %v4321 = vadd.f32 %v4320, %v3814
  %v4322 = vadd.f32 %v4321, %v3815
  %v4323 = vadd.f32 %v4322, %v3816
  %v4324 = vsel %vm2965, %v3817, 0.0
  %v4325 = vadd.f32 %v4323, %v4324
  %4326 = vadd.xlane.f32.xlu0 %v4325
  %v4327 = vpop.xlane.xlu0 %4326
  %v4328 = vadd.f32 %v3818, %v3819
  %v4329 = vadd.f32 %v4328, %v3820
  %v4330 = vadd.f32 %v4329, %v3821
  %v4331 = vadd.f32 %v4330, %v3822
  %v4332 = vadd.f32 %v4331, %v3823
  %v4333 = vsel %vm2965, %v3824, 0.0
  %v4334 = vadd.f32 %v4332, %v4333
  %4335 = vadd.xlane.f32.xlu0 %v4334
  %v4336 = vpop.xlane.xlu0 %4335
  %v4337 = vadd.f32 %v3825, %v3826
  %v4338 = vadd.f32 %v4337, %v3827
  %v4339 = vadd.f32 %v4338, %v3828
  %v4340 = vadd.f32 %v4339, %v3829
  %v4341 = vadd.f32 %v4340, %v3830
  %v4342 = vsel %vm2965, %v3831, 0.0
  %v4343 = vadd.f32 %v4341, %v4342
  %4344 = vadd.xlane.f32.xlu0 %v4343
  %v4345 = vpop.xlane.xlu0 %4344
  %v4346 = vadd.f32 %v3832, %v3833
  %v4347 = vadd.f32 %v4346, %v3834
  %v4348 = vadd.f32 %v4347, %v3835
  %v4349 = vadd.f32 %v4348, %v3836
  %v4350 = vadd.f32 %v4349, %v3837
  %v4351 = vsel %vm2965, %v3838, 0.0
  %v4352 = vadd.f32 %v4350, %v4351
  %4353 = vadd.xlane.f32.xlu0 %v4352
  %v4354 = vpop.xlane.xlu0 %4353
  %v4355 = vadd.f32 %v3839, %v3840
  %v4356 = vadd.f32 %v4355, %v3841
  %v4357 = vadd.f32 %v4356, %v3842
  %v4358 = vadd.f32 %v4357, %v3843
  %v4359 = vadd.f32 %v4358, %v3844
  %v4360 = vsel %vm2965, %v3845, 0.0
  %v4361 = vadd.f32 %v4359, %v4360
  %4362 = vadd.xlane.f32.xlu0 %v4361
  %v4363 = vpop.xlane.xlu0 %4362
  %v4364 = vadd.f32 %v3846, %v3847
  %v4365 = vadd.f32 %v4364, %v3848
  %v4366 = vadd.f32 %v4365, %v3849
  %v4367 = vadd.f32 %v4366, %v3850
  %v4368 = vadd.f32 %v4367, %v3851
  %v4369 = vsel %vm2965, %v3852, 0.0
  %v4370 = vadd.f32 %v4368, %v4369
  %4371 = vadd.xlane.f32.xlu0 %v4370
  %v4372 = vpop.xlane.xlu0 %4371
  %v4373 = vadd.f32 %v3853, %v3854
  %v4374 = vadd.f32 %v4373, %v3855
  %v4375 = vadd.f32 %v4374, %v3856
  %v4376 = vadd.f32 %v4375, %v3857
  %v4377 = vadd.f32 %v4376, %v3858
  %v4378 = vsel %vm2965, %v3859, 0.0
  %v4379 = vadd.f32 %v4377, %v4378
  %4380 = vadd.xlane.f32.xlu0 %v4379
  %v4381 = vpop.xlane.xlu0 %4380
  %v4382 = vadd.f32 %v3860, %v3861
  %v4383 = vadd.f32 %v4382, %v3862
  %v4384 = vadd.f32 %v4383, %v3863
  %v4385 = vadd.f32 %v4384, %v3864
  %v4386 = vadd.f32 %v4385, %v3865
  %v4387 = vsel %vm2965, %v3866, 0.0
  %v4388 = vadd.f32 %v4386, %v4387
  %4389 = vadd.xlane.f32.xlu0 %v4388
  %v4390 = vpop.xlane.xlu0 %4389
  %v4391 = vadd.f32 %v3867, %v3868
  %v4392 = vadd.f32 %v4391, %v3869
  %v4393 = vadd.f32 %v4392, %v3870
  %v4394 = vadd.f32 %v4393, %v3871
  %v4395 = vadd.f32 %v4394, %v3872
  %v4396 = vsel %vm2965, %v3873, 0.0
  %v4397 = vadd.f32 %v4395, %v4396
  %4398 = vadd.xlane.f32.xlu0 %v4397
  %v4399 = vpop.xlane.xlu0 %4398
  %v4400 = vadd.f32 %v3874, %v3875
  %v4401 = vadd.f32 %v4400, %v3876
  %v4402 = vadd.f32 %v4401, %v3877
  %v4403 = vadd.f32 %v4402, %v3878
  %v4404 = vadd.f32 %v4403, %v3879
  %v4405 = vsel %vm2965, %v3880, 0.0
  %v4406 = vadd.f32 %v4404, %v4405
  %4407 = vadd.xlane.f32.xlu0 %v4406
  %v4408 = vpop.xlane.xlu0 %4407
  %v4409 = vadd.f32 %v3881, %v3882
  %v4410 = vadd.f32 %v4409, %v3883
  %v4411 = vadd.f32 %v4410, %v3884
  %v4412 = vadd.f32 %v4411, %v3885
  %v4413 = vadd.f32 %v4412, %v3886
  %v4414 = vsel %vm2965, %v3887, 0.0
  %v4415 = vadd.f32 %v4413, %v4414
  %4416 = vadd.xlane.f32.xlu0 %v4415
  %v4417 = vpop.xlane.xlu0 %4416
  %v4418 = vadd.f32 %v3888, %v3889
  %v4419 = vadd.f32 %v4418, %v3890
  %v4420 = vadd.f32 %v4419, %v3891
  %v4421 = vadd.f32 %v4420, %v3892
  %v4422 = vadd.f32 %v4421, %v3893
  %v4423 = vsel %vm2965, %v3894, 0.0
  %v4424 = vadd.f32 %v4422, %v4423
  %4425 = vadd.xlane.f32.xlu0 %v4424
  %v4426 = vpop.xlane.xlu0 %4425
  %v4427 = vadd.f32 %v3895, %v3896
  %v4428 = vadd.f32 %v4427, %v3897
  %v4429 = vadd.f32 %v4428, %v3898
  %v4430 = vadd.f32 %v4429, %v3899
  %v4431 = vadd.f32 %v4430, %v3900
  %v4432 = vsel %vm2965, %v3901, 0.0
  %v4433 = vadd.f32 %v4431, %v4432
  %4434 = vadd.xlane.f32.xlu0 %v4433
  %v4435 = vpop.xlane.xlu0 %4434
  %v4436 = vadd.f32 %v3902, %v3903
  %v4437 = vadd.f32 %v4436, %v3904
  %v4438 = vadd.f32 %v4437, %v3905
  %v4439 = vadd.f32 %v4438, %v3906
  %v4440 = vadd.f32 %v4439, %v3907
  %v4441 = vsel %vm2965, %v3908, 0.0
  %v4442 = vadd.f32 %v4440, %v4441
  %4443 = vadd.xlane.f32.xlu0 %v4442
  %v4444 = vpop.xlane.xlu0 %4443
  %v4445 = vadd.f32 %v3909, %v3910
  %v4446 = vadd.f32 %v4445, %v3911
  %v4447 = vadd.f32 %v4446, %v3912
  %v4448 = vadd.f32 %v4447, %v3913
  %v4449 = vadd.f32 %v4448, %v3914
  %v4450 = vsel %vm2965, %v3915, 0.0
  %v4451 = vadd.f32 %v4449, %v4450
  %4452 = vadd.xlane.f32.xlu0 %v4451
  %v4453 = vpop.xlane.xlu0 %4452
  %v4454 = vadd.f32 %v3916, %v3917
  %v4455 = vadd.f32 %v4454, %v3918
  %v4456 = vadd.f32 %v4455, %v3919
  %v4457 = vadd.f32 %v4456, %v3920
  %v4458 = vadd.f32 %v4457, %v3921
  %v4459 = vsel %vm2965, %v3922, 0.0
  %v4460 = vadd.f32 %v4458, %v4459
  %4461 = vadd.xlane.f32.xlu0 %v4460
  %v4462 = vpop.xlane.xlu0 %4461
  %v4463 = vadd.f32 %v3923, %v3924
  %v4464 = vadd.f32 %v4463, %v3925
  %v4465 = vadd.f32 %v4464, %v3926
  %v4466 = vadd.f32 %v4465, %v3927
  %v4467 = vadd.f32 %v4466, %v3928
  %v4468 = vsel %vm2965, %v3929, 0.0
  %v4469 = vadd.f32 %v4467, %v4468
  %4470 = vadd.xlane.f32.xlu0 %v4469
  %v4471 = vpop.xlane.xlu0 %4470
  %v4472 = vadd.f32 %v3930, %v3931
  %v4473 = vadd.f32 %v4472, %v3932
  %v4474 = vadd.f32 %v4473, %v3933
  %v4475 = vadd.f32 %v4474, %v3934
  %v4476 = vadd.f32 %v4475, %v3935
  %v4477 = vsel %vm2965, %v3936, 0.0
  %v4478 = vadd.f32 %v4476, %v4477
  %4479 = vadd.xlane.f32.xlu0 %v4478
  %v4480 = vpop.xlane.xlu0 %4479
  %v4481 = vadd.f32 %v3937, %v3938
  %v4482 = vadd.f32 %v4481, %v3939
  %v4483 = vadd.f32 %v4482, %v3940
  %v4484 = vadd.f32 %v4483, %v3941
  %v4485 = vadd.f32 %v4484, %v3942
  %v4486 = vsel %vm2965, %v3943, 0.0
  %v4487 = vadd.f32 %v4485, %v4486
  %4488 = vadd.xlane.f32.xlu0 %v4487
  %v4489 = vpop.xlane.xlu0 %4488
  %v4490 = vadd.f32 %v3944, %v3945
  %v4491 = vadd.f32 %v4490, %v3946
  %v4492 = vadd.f32 %v4491, %v3947
  %v4493 = vadd.f32 %v4492, %v3948
  %v4494 = vadd.f32 %v4493, %v3949
  %v4495 = vsel %vm2965, %v3950, 0.0
  %v4496 = vadd.f32 %v4494, %v4495
  %4497 = vadd.xlane.f32.xlu0 %v4496
  %v4498 = vpop.xlane.xlu0 %4497
  %v4499 = vadd.f32 %v3951, %v3952
  %v4500 = vadd.f32 %v4499, %v3953
  %v4501 = vadd.f32 %v4500, %v3954
  %v4502 = vadd.f32 %v4501, %v3955
  %v4503 = vadd.f32 %v4502, %v3956
  %v4504 = vsel %vm2965, %v3957, 0.0
  %v4505 = vadd.f32 %v4503, %v4504
  %4506 = vadd.xlane.f32.xlu0 %v4505
  %v4507 = vpop.xlane.xlu0 %4506
  %v4508 = vadd.f32 %v3958, %v3959
  %v4509 = vadd.f32 %v4508, %v3960
  %v4510 = vadd.f32 %v4509, %v3961
  %v4511 = vadd.f32 %v4510, %v3962
  %v4512 = vadd.f32 %v4511, %v3963
  %v4513 = vsel %vm2965, %v3964, 0.0
  %v4514 = vadd.f32 %v4512, %v4513
  %4515 = vadd.xlane.f32.xlu0 %v4514
  %v4516 = vpop.xlane.xlu0 %4515
  %v4517 = vadd.f32 %v3965, %v3966
  %v4518 = vadd.f32 %v4517, %v3967
  %v4519 = vadd.f32 %v4518, %v3968
  %v4520 = vadd.f32 %v4519, %v3969
  %v4521 = vadd.f32 %v4520, %v3970
  %v4522 = vsel %vm2965, %v3971, 0.0
  %v4523 = vadd.f32 %v4521, %v4522
  %4524 = vadd.xlane.f32.xlu0 %v4523
  %v4525 = vpop.xlane.xlu0 %4524
  %v4526 = vadd.f32 %v3972, %v3973
  %v4527 = vadd.f32 %v4526, %v3974
  %v4528 = vadd.f32 %v4527, %v3975
  %v4529 = vadd.f32 %v4528, %v3976
  %v4530 = vadd.f32 %v4529, %v3977
  %v4531 = vsel %vm2965, %v3978, 0.0
  %v4532 = vadd.f32 %v4530, %v4531
  %4533 = vadd.xlane.f32.xlu0 %v4532
  %v4534 = vpop.xlane.xlu0 %4533
  %v4535 = vadd.f32 %v3979, %v3980
  %v4536 = vadd.f32 %v4535, %v3981
  %v4537 = vadd.f32 %v4536, %v3982
  %v4538 = vadd.f32 %v4537, %v3983
  %v4539 = vadd.f32 %v4538, %v3984
  %v4540 = vsel %vm2965, %v3985, 0.0
  %v4541 = vadd.f32 %v4539, %v4540
  %4542 = vadd.xlane.f32.xlu0 %v4541
  %v4543 = vpop.xlane.xlu0 %4542
  %v4544 = vadd.f32 %v3986, %v3987
  %v4545 = vadd.f32 %v4544, %v3988
  %v4546 = vadd.f32 %v4545, %v3989
  %v4547 = vadd.f32 %v4546, %v3990
  %v4548 = vadd.f32 %v4547, %v3991
  %v4549 = vsel %vm2965, %v3992, 0.0
  %v4550 = vadd.f32 %v4548, %v4549
  %4551 = vadd.xlane.f32.xlu0 %v4550
  %v4552 = vpop.xlane.xlu0 %4551
  %v4553 = vadd.f32 %v3993, %v3994
  %v4554 = vadd.f32 %v4553, %v3995
  %v4555 = vadd.f32 %v4554, %v3996
  %v4556 = vadd.f32 %v4555, %v3997
  %v4557 = vadd.f32 %v4556, %v3998
  %v4558 = vsel %vm2965, %v3999, 0.0
  %v4559 = vadd.f32 %v4557, %v4558
  %4560 = vadd.xlane.f32.xlu0 %v4559
  %v4561 = vpop.xlane.xlu0 %4560
  %v4562 = vadd.f32 %v4000, %v4001
  %v4563 = vadd.f32 %v4562, %v4002
  %v4564 = vadd.f32 %v4563, %v4003
  %v4565 = vadd.f32 %v4564, %v4004
  %v4566 = vadd.f32 %v4565, %v4005
  %v4567 = vsel %vm2965, %v4006, 0.0
  %v4568 = vadd.f32 %v4566, %v4567
  %4569 = vadd.xlane.f32.xlu0 %v4568
  %v4570 = vpop.xlane.xlu0 %4569
  %v4571 = vadd.f32 %v4007, %v4008
  %v4572 = vadd.f32 %v4571, %v4009
  %v4573 = vadd.f32 %v4572, %v4010
  %v4574 = vadd.f32 %v4573, %v4011
  %v4575 = vadd.f32 %v4574, %v4012
  %v4576 = vsel %vm2965, %v4013, 0.0
  %v4577 = vadd.f32 %v4575, %v4576
  %4578 = vadd.xlane.f32.xlu0 %v4577
  %v4579 = vpop.xlane.xlu0 %4578
  %v4580 = vadd.f32 %v4014, %v4015
  %v4581 = vadd.f32 %v4580, %v4016
  %v4582 = vadd.f32 %v4581, %v4017
  %v4583 = vadd.f32 %v4582, %v4018
  %v4584 = vadd.f32 %v4583, %v4019
  %v4585 = vsel %vm2965, %v4020, 0.0
  %v4586 = vadd.f32 %v4584, %v4585
  %4587 = vadd.xlane.f32.xlu0 %v4586
  %v4588 = vpop.xlane.xlu0 %4587
  %v4589 = vadd.f32 %v4021, %v4022
  %v4590 = vadd.f32 %v4589, %v4023
  %v4591 = vadd.f32 %v4590, %v4024
  %v4592 = vadd.f32 %v4591, %v4025
  %v4593 = vadd.f32 %v4592, %v4026
  %v4594 = vsel %vm2965, %v4027, 0.0
  %v4595 = vadd.f32 %v4593, %v4594
  %4596 = vadd.xlane.f32.xlu0 %v4595
  %v4597 = vpop.xlane.xlu0 %4596
  %v4598 = vadd.f32 %v4028, %v4029
  %v4599 = vadd.f32 %v4598, %v4030
  %v4600 = vadd.f32 %v4599, %v4031
  %v4601 = vadd.f32 %v4600, %v4032
  %v4602 = vadd.f32 %v4601, %v4033
  %v4603 = vsel %vm2965, %v4034, 0.0
  %v4604 = vadd.f32 %v4602, %v4603
  %4605 = vadd.xlane.f32.xlu0 %v4604
  %v4606 = vpop.xlane.xlu0 %4605
  %v4607 = vadd.f32 %v4035, %v4036
  %v4608 = vadd.f32 %v4607, %v4037
  %v4609 = vadd.f32 %v4608, %v4038
  %v4610 = vadd.f32 %v4609, %v4039
  %v4611 = vadd.f32 %v4610, %v4040
  %v4612 = vsel %vm2965, %v4041, 0.0
  %v4613 = vadd.f32 %v4611, %v4612
  %4614 = vadd.xlane.f32.xlu0 %v4613
  %v4615 = vpop.xlane.xlu0 %4614
  %v4616 = vadd.f32 %v4042, %v4043
  %v4617 = vadd.f32 %v4616, %v4044
  %v4618 = vadd.f32 %v4617, %v4045
  %v4619 = vadd.f32 %v4618, %v4046
  %v4620 = vadd.f32 %v4619, %v4047
  %v4621 = vsel %vm2965, %v4048, 0.0
  %v4622 = vadd.f32 %v4620, %v4621
  %4623 = vadd.xlane.f32.xlu0 %v4622
  %v4624 = vpop.xlane.xlu0 %4623
  %v4625 = vmul.f32 %v4057, 0.0012755102
  %v4626 = vmul.f32 %v4066, 0.0012755102
  %v4627 = vmul.f32 %v4075, 0.0012755102
  %v4628 = vmul.f32 %v4084, 0.0012755102
  %v4629 = vmul.f32 %v4093, 0.0012755102
  %v4630 = vmul.f32 %v4102, 0.0012755102
  %v4631 = vmul.f32 %v4111, 0.0012755102
  %v4632 = vmul.f32 %v4120, 0.0012755102
  %v4633 = vmul.f32 %v4129, 0.0012755102
  %v4634 = vmul.f32 %v4138, 0.0012755102
  %v4635 = vmul.f32 %v4147, 0.0012755102
  %v4636 = vmul.f32 %v4156, 0.0012755102
  %v4637 = vmul.f32 %v4165, 0.0012755102
  %v4638 = vmul.f32 %v4174, 0.0012755102
  %v4639 = vmul.f32 %v4183, 0.0012755102
  %v4640 = vmul.f32 %v4192, 0.0012755102
  %v4641 = vmul.f32 %v4201, 0.0012755102
  %v4642 = vmul.f32 %v4210, 0.0012755102
  %v4643 = vmul.f32 %v4219, 0.0012755102
  %v4644 = vmul.f32 %v4228, 0.0012755102
  %v4645 = vmul.f32 %v4237, 0.0012755102
  %v4646 = vmul.f32 %v4246, 0.0012755102
  %v4647 = vmul.f32 %v4255, 0.0012755102
  %v4648 = vmul.f32 %v4264, 0.0012755102
  %v4649 = vmul.f32 %v4273, 0.0012755102
  %v4650 = vmul.f32 %v4282, 0.0012755102
  %v4651 = vmul.f32 %v4291, 0.0012755102
  %v4652 = vmul.f32 %v4300, 0.0012755102
  %v4653 = vmul.f32 %v4309, 0.0012755102
  %v4654 = vmul.f32 %v4318, 0.0012755102
  %v4655 = vmul.f32 %v4327, 0.0012755102
  %v4656 = vmul.f32 %v4336, 0.0012755102
  %v4657 = vmul.f32 %v4345, 0.0012755102
  %v4658 = vmul.f32 %v4354, 0.0012755102
  %v4659 = vmul.f32 %v4363, 0.0012755102
  %v4660 = vmul.f32 %v4372, 0.0012755102
  %v4661 = vmul.f32 %v4381, 0.0012755102
  %v4662 = vmul.f32 %v4390, 0.0012755102
  %v4663 = vmul.f32 %v4399, 0.0012755102
  %v4664 = vmul.f32 %v4408, 0.0012755102
  %v4665 = vmul.f32 %v4417, 0.0012755102
  %v4666 = vmul.f32 %v4426, 0.0012755102
  %v4667 = vmul.f32 %v4435, 0.0012755102
  %v4668 = vmul.f32 %v4444, 0.0012755102
  %v4669 = vmul.f32 %v4453, 0.0012755102
  %v4670 = vmul.f32 %v4462, 0.0012755102
  %v4671 = vmul.f32 %v4471, 0.0012755102
  %v4672 = vmul.f32 %v4480, 0.0012755102
  %v4673 = vmul.f32 %v4489, 0.0012755102
  %v4674 = vmul.f32 %v4498, 0.0012755102
  %v4675 = vmul.f32 %v4507, 0.0012755102
  %v4676 = vmul.f32 %v4516, 0.0012755102
  %v4677 = vmul.f32 %v4525, 0.0012755102
  %v4678 = vmul.f32 %v4534, 0.0012755102
  %v4679 = vmul.f32 %v4543, 0.0012755102
  %v4680 = vmul.f32 %v4552, 0.0012755102
  %v4681 = vmul.f32 %v4561, 0.0012755102
  %v4682 = vmul.f32 %v4570, 0.0012755102
  %v4683 = vmul.f32 %v4579, 0.0012755102
  %v4684 = vmul.f32 %v4588, 0.0012755102
  %v4685 = vmul.f32 %v4597, 0.0012755102
  %v4686 = vmul.f32 %v4606, 0.0012755102
  %v4687 = vmul.f32 %v4615, 0.0012755102
  %v4688 = vmul.f32 %v4624, 0.0012755102
  %v4689 = vmul.f32 %v3537, %v3537
  %v4690 = vmul.f32 %v3538, %v3538
  %v4691 = vmul.f32 %v3539, %v3539
  %v4692 = vmul.f32 %v3540, %v3540
  %v4693 = vmul.f32 %v3541, %v3541
  %v4694 = vmul.f32 %v3542, %v3542
  %v4695 = vmul.f32 %v3543, %v3543
  %v4696 = vmul.f32 %v3544, %v3544
  %v4697 = vmul.f32 %v3545, %v3545
  %v4698 = vmul.f32 %v3546, %v3546
  %v4699 = vmul.f32 %v3547, %v3547
  %v4700 = vmul.f32 %v3548, %v3548
  %v4701 = vmul.f32 %v3549, %v3549
  %v4702 = vmul.f32 %v3550, %v3550
  %v4703 = vmul.f32 %v3551, %v3551
  %v4704 = vmul.f32 %v3552, %v3552
  %v4705 = vmul.f32 %v3553, %v3553
  %v4706 = vmul.f32 %v3554, %v3554
  %v4707 = vmul.f32 %v3555, %v3555
  %v4708 = vmul.f32 %v3556, %v3556
  %v4709 = vmul.f32 %v3557, %v3557
  %v4710 = vmul.f32 %v3558, %v3558
  %v4711 = vmul.f32 %v3559, %v3559
  %v4712 = vmul.f32 %v3560, %v3560
  %v4713 = vmul.f32 %v3561, %v3561
  %v4714 = vmul.f32 %v3562, %v3562
  %v4715 = vmul.f32 %v3563, %v3563
  %v4716 = vmul.f32 %v3564, %v3564
  %v4717 = vmul.f32 %v3565, %v3565
  %v4718 = vmul.f32 %v3566, %v3566
  %v4719 = vmul.f32 %v3567, %v3567
  %v4720 = vmul.f32 %v3568, %v3568
  %v4721 = vmul.f32 %v3569, %v3569
  %v4722 = vmul.f32 %v3570, %v3570
  %v4723 = vmul.f32 %v3571, %v3571
  %v4724 = vmul.f32 %v3572, %v3572
  %v4725 = vmul.f32 %v3573, %v3573
  %v4726 = vmul.f32 %v3574, %v3574
  %v4727 = vmul.f32 %v3575, %v3575
  %v4728 = vmul.f32 %v3576, %v3576
  %v4729 = vmul.f32 %v3577, %v3577
  %v4730 = vmul.f32 %v3578, %v3578
  %v4731 = vmul.f32 %v3579, %v3579
  %v4732 = vmul.f32 %v3580, %v3580
  %v4733 = vmul.f32 %v3581, %v3581
  %v4734 = vmul.f32 %v3582, %v3582
  %v4735 = vmul.f32 %v3583, %v3583
  %v4736 = vmul.f32 %v3584, %v3584
  %v4737 = vmul.f32 %v3585, %v3585
  %v4738 = vmul.f32 %v3586, %v3586
  %v4739 = vmul.f32 %v3587, %v3587
  %v4740 = vmul.f32 %v3588, %v3588
  %v4741 = vmul.f32 %v3589, %v3589
  %v4742 = vmul.f32 %v3590, %v3590
  %v4743 = vmul.f32 %v3591, %v3591
  %v4744 = vmul.f32 %v3592, %v3592
  %v4745 = vmul.f32 %v3593, %v3593
  %v4746 = vmul.f32 %v3594, %v3594
  %v4747 = vmul.f32 %v3595, %v3595
  %v4748 = vmul.f32 %v3596, %v3596
  %v4749 = vmul.f32 %v3597, %v3597
  %v4750 = vmul.f32 %v3598, %v3598
  %v4751 = vmul.f32 %v3599, %v3599
  %v4752 = vmul.f32 %v3600, %v3600
  %v4753 = vsub.f32 %v4625, %v4689
  %v4754 = vsub.f32 %v4626, %v4690
  %v4755 = vsub.f32 %v4627, %v4691
  %v4756 = vsub.f32 %v4628, %v4692
  %v4757 = vsub.f32 %v4629, %v4693
  %v4758 = vsub.f32 %v4630, %v4694
  %v4759 = vsub.f32 %v4631, %v4695
  %v4760 = vsub.f32 %v4632, %v4696
  %v4761 = vsub.f32 %v4633, %v4697
  %v4762 = vsub.f32 %v4634, %v4698
  %v4763 = vsub.f32 %v4635, %v4699
  %v4764 = vsub.f32 %v4636, %v4700
  %v4765 = vsub.f32 %v4637, %v4701
  %v4766 = vsub.f32 %v4638, %v4702
  %v4767 = vsub.f32 %v4639, %v4703
  %v4768 = vsub.f32 %v4640, %v4704
  %v4769 = vsub.f32 %v4641, %v4705
  %v4770 = vsub.f32 %v4642, %v4706
  %v4771 = vsub.f32 %v4643, %v4707
  %v4772 = vsub.f32 %v4644, %v4708
  %v4773 = vsub.f32 %v4645, %v4709
  %v4774 = vsub.f32 %v4646, %v4710
  %v4775 = vsub.f32 %v4647, %v4711
  %v4776 = vsub.f32 %v4648, %v4712
  %v4777 = vsub.f32 %v4649, %v4713
  %v4778 = vsub.f32 %v4650, %v4714
  %v4779 = vsub.f32 %v4651, %v4715
  %v4780 = vsub.f32 %v4652, %v4716
  %v4781 = vsub.f32 %v4653, %v4717
  %v4782 = vsub.f32 %v4654, %v4718
  %v4783 = vsub.f32 %v4655, %v4719
  %v4784 = vsub.f32 %v4656, %v4720
  %v4785 = vsub.f32 %v4657, %v4721
  %v4786 = vsub.f32 %v4658, %v4722
  %v4787 = vsub.f32 %v4659, %v4723
  %v4788 = vsub.f32 %v4660, %v4724
  %v4789 = vsub.f32 %v4661, %v4725
  %v4790 = vsub.f32 %v4662, %v4726
  %v4791 = vsub.f32 %v4663, %v4727
  %v4792 = vsub.f32 %v4664, %v4728
  %v4793 = vsub.f32 %v4665, %v4729
  %v4794 = vsub.f32 %v4666, %v4730
  %v4795 = vsub.f32 %v4667, %v4731
  %v4796 = vsub.f32 %v4668, %v4732
  %v4797 = vsub.f32 %v4669, %v4733
  %v4798 = vsub.f32 %v4670, %v4734
  %v4799 = vsub.f32 %v4671, %v4735
  %v4800 = vsub.f32 %v4672, %v4736
  %v4801 = vsub.f32 %v4673, %v4737
  %v4802 = vsub.f32 %v4674, %v4738
  %v4803 = vsub.f32 %v4675, %v4739
  %v4804 = vsub.f32 %v4676, %v4740
  %v4805 = vsub.f32 %v4677, %v4741
  %v4806 = vsub.f32 %v4678, %v4742
  %v4807 = vsub.f32 %v4679, %v4743
  %v4808 = vsub.f32 %v4680, %v4744
  %v4809 = vsub.f32 %v4681, %v4745
  %v4810 = vsub.f32 %v4682, %v4746
  %v4811 = vsub.f32 %v4683, %v4747
  %v4812 = vsub.f32 %v4684, %v4748
  %v4813 = vsub.f32 %v4685, %v4749
  %v4814 = vsub.f32 %v4686, %v4750
  %v4815 = vsub.f32 %v4687, %v4751
  %v4816 = vsub.f32 %v4688, %v4752
  %v4817 = vadd.f32 %v4753, 1e-05
  %v4818 = vadd.f32 %v4754, 1e-05
  %v4819 = vadd.f32 %v4755, 1e-05
  %v4820 = vadd.f32 %v4756, 1e-05
  %v4821 = vadd.f32 %v4757, 1e-05
  %v4822 = vadd.f32 %v4758, 1e-05
  %v4823 = vadd.f32 %v4759, 1e-05
  %v4824 = vadd.f32 %v4760, 1e-05
  %v4825 = vadd.f32 %v4761, 1e-05
  %v4826 = vadd.f32 %v4762, 1e-05
  %v4827 = vadd.f32 %v4763, 1e-05
  %v4828 = vadd.f32 %v4764, 1e-05
  %v4829 = vadd.f32 %v4765, 1e-05
  %v4830 = vadd.f32 %v4766, 1e-05
  %v4831 = vadd.f32 %v4767, 1e-05
  %v4832 = vadd.f32 %v4768, 1e-05
  %v4833 = vadd.f32 %v4769, 1e-05
  %v4834 = vadd.f32 %v4770, 1e-05
  %v4835 = vadd.f32 %v4771, 1e-05
  %v4836 = vadd.f32 %v4772, 1e-05
  %v4837 = vadd.f32 %v4773, 1e-05
  %v4838 = vadd.f32 %v4774, 1e-05
  %v4839 = vadd.f32 %v4775, 1e-05
  %v4840 = vadd.f32 %v4776, 1e-05
  %v4841 = vadd.f32 %v4777, 1e-05
  %v4842 = vadd.f32 %v4778, 1e-05
  %v4843 = vadd.f32 %v4779, 1e-05
  %v4844 = vadd.f32 %v4780, 1e-05
  %v4845 = vadd.f32 %v4781, 1e-05
  %v4846 = vadd.f32 %v4782, 1e-05
  %v4847 = vadd.f32 %v4783, 1e-05
  %v4848 = vadd.f32 %v4784, 1e-05
  %v4849 = vadd.f32 %v4785, 1e-05
  %v4850 = vadd.f32 %v4786, 1e-05
  %v4851 = vadd.f32 %v4787, 1e-05
  %v4852 = vadd.f32 %v4788, 1e-05
  %v4853 = vadd.f32 %v4789, 1e-05
  %v4854 = vadd.f32 %v4790, 1e-05
  %v4855 = vadd.f32 %v4791, 1e-05
  %v4856 = vadd.f32 %v4792, 1e-05
  %v4857 = vadd.f32 %v4793, 1e-05
  %v4858 = vadd.f32 %v4794, 1e-05
  %v4859 = vadd.f32 %v4795, 1e-05
  %v4860 = vadd.f32 %v4796, 1e-05
  %v4861 = vadd.f32 %v4797, 1e-05
  %v4862 = vadd.f32 %v4798, 1e-05
  %v4863 = vadd.f32 %v4799, 1e-05
  %v4864 = vadd.f32 %v4800, 1e-05
  %v4865 = vadd.f32 %v4801, 1e-05
  %v4866 = vadd.f32 %v4802, 1e-05
  %v4867 = vadd.f32 %v4803, 1e-05
  %v4868 = vadd.f32 %v4804, 1e-05
  %v4869 = vadd.f32 %v4805, 1e-05
  %v4870 = vadd.f32 %v4806, 1e-05
  %v4871 = vadd.f32 %v4807, 1e-05
  %v4872 = vadd.f32 %v4808, 1e-05
  %v4873 = vadd.f32 %v4809, 1e-05
  %v4874 = vadd.f32 %v4810, 1e-05
  %v4875 = vadd.f32 %v4811, 1e-05
  %v4876 = vadd.f32 %v4812, 1e-05
  %v4877 = vadd.f32 %v4813, 1e-05
  %v4878 = vadd.f32 %v4814, 1e-05
  %v4879 = vadd.f32 %v4815, 1e-05
  %v4880 = vadd.f32 %v4816, 1e-05
  %v4881 = vrsqrt.pop %v4817
  %v4882 = vrsqrt.pop %v4818
  %v4883 = vrsqrt.pop %v4819
  %v4884 = vrsqrt.pop %v4820
  %v4885 = vrsqrt.pop %v4821
  %v4886 = vrsqrt.pop %v4822
  %v4887 = vrsqrt.pop %v4823
  %v4888 = vrsqrt.pop %v4824
  %v4889 = vrsqrt.pop %v4825
  %v4890 = vrsqrt.pop %v4826
  %v4891 = vrsqrt.pop %v4827
  %v4892 = vrsqrt.pop %v4828
  %v4893 = vrsqrt.pop %v4829
  %v4894 = vrsqrt.pop %v4830
  %v4895 = vrsqrt.pop %v4831
  %v4896 = vrsqrt.pop %v4832
  %v4897 = vrsqrt.pop %v4833
  %v4898 = vrsqrt.pop %v4834
  %v4899 = vrsqrt.pop %v4835
  %v4900 = vrsqrt.pop %v4836
  %v4901 = vrsqrt.pop %v4837
  %v4902 = vrsqrt.pop %v4838
  %v4903 = vrsqrt.pop %v4839
  %v4904 = vrsqrt.pop %v4840
  %v4905 = vrsqrt.pop %v4841
  %v4906 = vrsqrt.pop %v4842
  %v4907 = vrsqrt.pop %v4843
  %v4908 = vrsqrt.pop %v4844
  %v4909 = vrsqrt.pop %v4845
  %v4910 = vrsqrt.pop %v4846
  %v4911 = vrsqrt.pop %v4847
  %v4912 = vrsqrt.pop %v4848
  %v4913 = vrsqrt.pop %v4849
  %v4914 = vrsqrt.pop %v4850
  %v4915 = vrsqrt.pop %v4851
  %v4916 = vrsqrt.pop %v4852
  %v4917 = vrsqrt.pop %v4853
  %v4918 = vrsqrt.pop %v4854
  %v4919 = vrsqrt.pop %v4855
  %v4920 = vrsqrt.pop %v4856
  %v4921 = vrsqrt.pop %v4857
  %v4922 = vrsqrt.pop %v4858
  %v4923 = vrsqrt.pop %v4859
  %v4924 = vrsqrt.pop %v4860
  %v4925 = vrsqrt.pop %v4861
  %v4926 = vrsqrt.pop %v4862
  %v4927 = vrsqrt.pop %v4863
  %v4928 = vrsqrt.pop %v4864
  %v4929 = vrsqrt.pop %v4865
  %v4930 = vrsqrt.pop %v4866
  %v4931 = vrsqrt.pop %v4867
  %v4932 = vrsqrt.pop %v4868
  %v4933 = vrsqrt.pop %v4869
  %v4934 = vrsqrt.pop %v4870
  %v4935 = vrsqrt.pop %v4871
  %v4936 = vrsqrt.pop %v4872
  %v4937 = vrsqrt.pop %v4873
  %v4938 = vrsqrt.pop %v4874
  %v4939 = vrsqrt.pop %v4875
  %v4940 = vrsqrt.pop %v4876
  %v4941 = vrsqrt.pop %v4877
  %v4942 = vrsqrt.pop %v4878
  %v4943 = vrsqrt.pop %v4879
  %v4944 = vrsqrt.pop %v4880
  %v4945 = vmul.f32 %v2896, %v4881
  %v4946 = vmul.f32 %v2897, %v4882
  %v4947 = vmul.f32 %v2898, %v4883
  %v4948 = vmul.f32 %v2899, %v4884
  %v4949 = vmul.f32 %v2900, %v4885
  %v4950 = vmul.f32 %v2901, %v4886
  %v4951 = vmul.f32 %v2902, %v4887
  %v4952 = vmul.f32 %v2903, %v4888
  %v4953 = vmul.f32 %v2904, %v4889
  %v4954 = vmul.f32 %v2905, %v4890
  %v4955 = vmul.f32 %v2906, %v4891
  %v4956 = vmul.f32 %v2907, %v4892
  %v4957 = vmul.f32 %v2908, %v4893
  %v4958 = vmul.f32 %v2909, %v4894
  %v4959 = vmul.f32 %v2910, %v4895
  %v4960 = vmul.f32 %v2911, %v4896
  %v4961 = vmul.f32 %v2912, %v4897
  %v4962 = vmul.f32 %v2913, %v4898
  %v4963 = vmul.f32 %v2914, %v4899
  %v4964 = vmul.f32 %v2915, %v4900
  %v4965 = vmul.f32 %v2916, %v4901
  %v4966 = vmul.f32 %v2917, %v4902
  %v4967 = vmul.f32 %v2918, %v4903
  %v4968 = vmul.f32 %v2919, %v4904
  %v4969 = vmul.f32 %v2920, %v4905
  %v4970 = vmul.f32 %v2921, %v4906
  %v4971 = vmul.f32 %v2922, %v4907
  %v4972 = vmul.f32 %v2923, %v4908
  %v4973 = vmul.f32 %v2924, %v4909
  %v4974 = vmul.f32 %v2925, %v4910
  %v4975 = vmul.f32 %v2926, %v4911
  %v4976 = vmul.f32 %v2927, %v4912
  %v4977 = vmul.f32 %v2928, %v4913
  %v4978 = vmul.f32 %v2929, %v4914
  %v4979 = vmul.f32 %v2930, %v4915
  %v4980 = vmul.f32 %v2931, %v4916
  %v4981 = vmul.f32 %v2932, %v4917
  %v4982 = vmul.f32 %v2933, %v4918
  %v4983 = vmul.f32 %v2934, %v4919
  %v4984 = vmul.f32 %v2935, %v4920
  %v4985 = vmul.f32 %v2936, %v4921
  %v4986 = vmul.f32 %v2937, %v4922
  %v4987 = vmul.f32 %v2938, %v4923
  %v4988 = vmul.f32 %v2939, %v4924
  %v4989 = vmul.f32 %v2940, %v4925
  %v4990 = vmul.f32 %v2941, %v4926
  %v4991 = vmul.f32 %v2942, %v4927
  %v4992 = vmul.f32 %v2943, %v4928
  %v4993 = vmul.f32 %v2944, %v4929
  %v4994 = vmul.f32 %v2945, %v4930
  %v4995 = vmul.f32 %v2946, %v4931
  %v4996 = vmul.f32 %v2947, %v4932
  %v4997 = vmul.f32 %v2948, %v4933
  %v4998 = vmul.f32 %v2949, %v4934
  %v4999 = vmul.f32 %v2950, %v4935
  %v5000 = vmul.f32 %v2951, %v4936
  %v5001 = vmul.f32 %v2952, %v4937
  %v5002 = vmul.f32 %v2953, %v4938
  %v5003 = vmul.f32 %v2954, %v4939
  %v5004 = vmul.f32 %v2955, %v4940
  %v5005 = vmul.f32 %v2956, %v4941
  %v5006 = vmul.f32 %v2957, %v4942
  %v5007 = vmul.f32 %v2958, %v4943
  %v5008 = vmul.f32 %v2959, %v4944
  %v5009 = vmul.f32 %v3537, %v4945
  %v5010 = vmul.f32 %v3538, %v4946
  %v5011 = vmul.f32 %v3539, %v4947
  %v5012 = vmul.f32 %v3540, %v4948
  %v5013 = vmul.f32 %v3541, %v4949
  %v5014 = vmul.f32 %v3542, %v4950
  %v5015 = vmul.f32 %v3543, %v4951
  %v5016 = vmul.f32 %v3544, %v4952
  %v5017 = vmul.f32 %v3545, %v4953
  %v5018 = vmul.f32 %v3546, %v4954
  %v5019 = vmul.f32 %v3547, %v4955
  %v5020 = vmul.f32 %v3548, %v4956
  %v5021 = vmul.f32 %v3549, %v4957
  %v5022 = vmul.f32 %v3550, %v4958
  %v5023 = vmul.f32 %v3551, %v4959
  %v5024 = vmul.f32 %v3552, %v4960
  %v5025 = vmul.f32 %v3553, %v4961
  %v5026 = vmul.f32 %v3554, %v4962
  %v5027 = vmul.f32 %v3555, %v4963
  %v5028 = vmul.f32 %v3556, %v4964
  %v5029 = vmul.f32 %v3557, %v4965
  %v5030 = vmul.f32 %v3558, %v4966
  %v5031 = vmul.f32 %v3559, %v4967
  %v5032 = vmul.f32 %v3560, %v4968
  %v5033 = vmul.f32 %v3561, %v4969
  %v5034 = vmul.f32 %v3562, %v4970
  %v5035 = vmul.f32 %v3563, %v4971
  %v5036 = vmul.f32 %v3564, %v4972
  %v5037 = vmul.f32 %v3565, %v4973
  %v5038 = vmul.f32 %v3566, %v4974
  %v5039 = vmul.f32 %v3567, %v4975
  %v5040 = vmul.f32 %v3568, %v4976
  %v5041 = vmul.f32 %v3569, %v4977
  %v5042 = vmul.f32 %v3570, %v4978
  %v5043 = vmul.f32 %v3571, %v4979
  %v5044 = vmul.f32 %v3572, %v4980
  %v5045 = vmul.f32 %v3573, %v4981
  %v5046 = vmul.f32 %v3574, %v4982
  %v5047 = vmul.f32 %v3575, %v4983
  %v5048 = vmul.f32 %v3576, %v4984
  %v5049 = vmul.f32 %v3577, %v4985
  %v5050 = vmul.f32 %v3578, %v4986
  %v5051 = vmul.f32 %v3579, %v4987
  %v5052 = vmul.f32 %v3580, %v4988
  %v5053 = vmul.f32 %v3581, %v4989
  %v5054 = vmul.f32 %v3582, %v4990
  %v5055 = vmul.f32 %v3583, %v4991
  %v5056 = vmul.f32 %v3584, %v4992
  %v5057 = vmul.f32 %v3585, %v4993
  %v5058 = vmul.f32 %v3586, %v4994
  %v5059 = vmul.f32 %v3587, %v4995
  %v5060 = vmul.f32 %v3588, %v4996
  %v5061 = vmul.f32 %v3589, %v4997
  %v5062 = vmul.f32 %v3590, %v4998
  %v5063 = vmul.f32 %v3591, %v4999
  %v5064 = vmul.f32 %v3592, %v5000
  %v5065 = vmul.f32 %v3593, %v5001
  %v5066 = vmul.f32 %v3594, %v5002
  %v5067 = vmul.f32 %v3595, %v5003
  %v5068 = vmul.f32 %v3596, %v5004
  %v5069 = vmul.f32 %v3597, %v5005
  %v5070 = vmul.f32 %v3598, %v5006
  %v5071 = vmul.f32 %v3599, %v5007
  %v5072 = vmul.f32 %v3600, %v5008
  %5137 = vrot.lane.b32.xlu0 %v5009, 1
  %v5138 = vpop.permute.xlu0 %5137
  %5139 = vrot.lane.b32.xlu0 %v5010, 1
  %v5140 = vpop.permute.xlu0 %5139
  %5141 = vrot.lane.b32.xlu0 %v5011, 1
  %v5142 = vpop.permute.xlu0 %5141
  %5143 = vrot.lane.b32.xlu0 %v5012, 1
  %v5144 = vpop.permute.xlu0 %5143
  %5145 = vrot.lane.b32.xlu0 %v5013, 1
  %v5146 = vpop.permute.xlu0 %5145
  %5147 = vrot.lane.b32.xlu0 %v5014, 1
  %v5148 = vpop.permute.xlu0 %5147
  %5149 = vrot.lane.b32.xlu0 %v5015, 1
  %v5150 = vpop.permute.xlu0 %5149
  %5151 = vrot.lane.b32.xlu0 %v5016, 1
  %v5152 = vpop.permute.xlu0 %5151
  %5153 = vrot.lane.b32.xlu0 %v5017, 1
  %v5154 = vpop.permute.xlu0 %5153
  %5155 = vrot.lane.b32.xlu0 %v5018, 1
  %v5156 = vpop.permute.xlu0 %5155
  %5157 = vrot.lane.b32.xlu0 %v5019, 1
  %v5158 = vpop.permute.xlu0 %5157
  %5159 = vrot.lane.b32.xlu0 %v5020, 1
  %v5160 = vpop.permute.xlu0 %5159
  %5161 = vrot.lane.b32.xlu0 %v5021, 1
  %v5162 = vpop.permute.xlu0 %5161
  %5163 = vrot.lane.b32.xlu0 %v5022, 1
  %v5164 = vpop.permute.xlu0 %5163
  %5165 = vrot.lane.b32.xlu0 %v5023, 1
  %v5166 = vpop.permute.xlu0 %5165
  %5167 = vrot.lane.b32.xlu0 %v5024, 1
  %v5168 = vpop.permute.xlu0 %5167
  %5169 = vrot.lane.b32.xlu0 %v5025, 1
  %v5170 = vpop.permute.xlu0 %5169
  %5171 = vrot.lane.b32.xlu0 %v5026, 1
  %v5172 = vpop.permute.xlu0 %5171
  %5173 = vrot.lane.b32.xlu0 %v5027, 1
  %v5174 = vpop.permute.xlu0 %5173
  %5175 = vrot.lane.b32.xlu0 %v5028, 1
  %v5176 = vpop.permute.xlu0 %5175
  %5177 = vrot.lane.b32.xlu0 %v5029, 1
  %v5178 = vpop.permute.xlu0 %5177
  %5179 = vrot.lane.b32.xlu0 %v5030, 1
  %v5180 = vpop.permute.xlu0 %5179
  %5181 = vrot.lane.b32.xlu0 %v5031, 1
  %v5182 = vpop.permute.xlu0 %5181
  %5183 = vrot.lane.b32.xlu0 %v5032, 1
  %v5184 = vpop.permute.xlu0 %5183
  %5185 = vrot.lane.b32.xlu0 %v5033, 1
  %v5186 = vpop.permute.xlu0 %5185
  %5187 = vrot.lane.b32.xlu0 %v5034, 1
  %v5188 = vpop.permute.xlu0 %5187
  %5189 = vrot.lane.b32.xlu0 %v5035, 1
  %v5190 = vpop.permute.xlu0 %5189
  %5191 = vrot.lane.b32.xlu0 %v5036, 1
  %v5192 = vpop.permute.xlu0 %5191
  %5193 = vrot.lane.b32.xlu0 %v5037, 1
  %v5194 = vpop.permute.xlu0 %5193
  %5195 = vrot.lane.b32.xlu0 %v5038, 1
  %v5196 = vpop.permute.xlu0 %5195
  %5197 = vrot.lane.b32.xlu0 %v5039, 1
  %v5198 = vpop.permute.xlu0 %5197
  %5199 = vrot.lane.b32.xlu0 %v5040, 1
  %v5200 = vpop.permute.xlu0 %5199
  %5201 = vrot.lane.b32.xlu0 %v5041, 1
  %v5202 = vpop.permute.xlu0 %5201
  %5203 = vrot.lane.b32.xlu0 %v5042, 1
  %v5204 = vpop.permute.xlu0 %5203
  %5205 = vrot.lane.b32.xlu0 %v5043, 1
  %v5206 = vpop.permute.xlu0 %5205
  %5207 = vrot.lane.b32.xlu0 %v5044, 1
  %v5208 = vpop.permute.xlu0 %5207
  %5209 = vrot.lane.b32.xlu0 %v5045, 1
  %v5210 = vpop.permute.xlu0 %5209
  %5211 = vrot.lane.b32.xlu0 %v5046, 1
  %v5212 = vpop.permute.xlu0 %5211
  %5213 = vrot.lane.b32.xlu0 %v5047, 1
  %v5214 = vpop.permute.xlu0 %5213
  %5215 = vrot.lane.b32.xlu0 %v5048, 1
  %v5216 = vpop.permute.xlu0 %5215
  %5217 = vrot.lane.b32.xlu0 %v5049, 1
  %v5218 = vpop.permute.xlu0 %5217
  %5219 = vrot.lane.b32.xlu0 %v5050, 1
  %v5220 = vpop.permute.xlu0 %5219
  %5221 = vrot.lane.b32.xlu0 %v5051, 1
  %v5222 = vpop.permute.xlu0 %5221
  %5223 = vrot.lane.b32.xlu0 %v5052, 1
  %v5224 = vpop.permute.xlu0 %5223
  %5225 = vrot.lane.b32.xlu0 %v5053, 1
  %v5226 = vpop.permute.xlu0 %5225
  %5227 = vrot.lane.b32.xlu0 %v5054, 1
  %v5228 = vpop.permute.xlu0 %5227
  %5229 = vrot.lane.b32.xlu0 %v5055, 1
  %v5230 = vpop.permute.xlu0 %5229
  %5231 = vrot.lane.b32.xlu0 %v5056, 1
  %v5232 = vpop.permute.xlu0 %5231
  %5233 = vrot.lane.b32.xlu0 %v5057, 1
  %v5234 = vpop.permute.xlu0 %5233
  %5235 = vrot.lane.b32.xlu0 %v5058, 1
  %v5236 = vpop.permute.xlu0 %5235
  %5237 = vrot.lane.b32.xlu0 %v5059, 1
  %v5238 = vpop.permute.xlu0 %5237
  %5239 = vrot.lane.b32.xlu0 %v5060, 1
  %v5240 = vpop.permute.xlu0 %5239
  %5241 = vrot.lane.b32.xlu0 %v5061, 1
  %v5242 = vpop.permute.xlu0 %5241
  %5243 = vrot.lane.b32.xlu0 %v5062, 1
  %v5244 = vpop.permute.xlu0 %5243
  %5245 = vrot.lane.b32.xlu0 %v5063, 1
  %v5246 = vpop.permute.xlu0 %5245
  %5247 = vrot.lane.b32.xlu0 %v5064, 1
  %v5248 = vpop.permute.xlu0 %5247
  %5249 = vrot.lane.b32.xlu0 %v5065, 1
  %v5250 = vpop.permute.xlu0 %5249
  %5251 = vrot.lane.b32.xlu0 %v5066, 1
  %v5252 = vpop.permute.xlu0 %5251
  %5253 = vrot.lane.b32.xlu0 %v5067, 1
  %v5254 = vpop.permute.xlu0 %5253
  %5255 = vrot.lane.b32.xlu0 %v5068, 1
  %v5256 = vpop.permute.xlu0 %5255
  %5257 = vrot.lane.b32.xlu0 %v5069, 1
  %v5258 = vpop.permute.xlu0 %5257
  %5259 = vrot.lane.b32.xlu0 %v5070, 1
  %v5260 = vpop.permute.xlu0 %5259
  %5261 = vrot.lane.b32.xlu0 %v5071, 1
  %v5262 = vpop.permute.xlu0 %5261
  %5263 = vrot.lane.b32.xlu0 %v5072, 1
  %v5264 = vpop.permute.xlu0 %5263
  %v5329 = vsub.f32 %v2896, %v5138
  %v5330 = vsub.f32 %v2897, %v5140
  %v5331 = vsub.f32 %v2898, %v5142
  %v5332 = vsub.f32 %v2899, %v5144
  %v5333 = vsub.f32 %v2900, %v5146
  %v5334 = vsub.f32 %v2901, %v5148
  %v5335 = vsub.f32 %v2902, %v5150
  %v5336 = vsub.f32 %v2903, %v5152
  %v5337 = vsub.f32 %v2904, %v5154
  %v5338 = vsub.f32 %v2905, %v5156
  %v5339 = vsub.f32 %v2906, %v5158
  %v5340 = vsub.f32 %v2907, %v5160
  %v5341 = vsub.f32 %v2908, %v5162
  %v5342 = vsub.f32 %v2909, %v5164
  %v5343 = vsub.f32 %v2910, %v5166
  %v5344 = vsub.f32 %v2911, %v5168
  %v5345 = vsub.f32 %v2912, %v5170
  %v5346 = vsub.f32 %v2913, %v5172
  %v5347 = vsub.f32 %v2914, %v5174
  %v5348 = vsub.f32 %v2915, %v5176
  %v5349 = vsub.f32 %v2916, %v5178
  %v5350 = vsub.f32 %v2917, %v5180
  %v5351 = vsub.f32 %v2918, %v5182
  %v5352 = vsub.f32 %v2919, %v5184
  %v5353 = vsub.f32 %v2920, %v5186
  %v5354 = vsub.f32 %v2921, %v5188
  %v5355 = vsub.f32 %v2922, %v5190
  %v5356 = vsub.f32 %v2923, %v5192
  %v5357 = vsub.f32 %v2924, %v5194
  %v5358 = vsub.f32 %v2925, %v5196
  %v5359 = vsub.f32 %v2926, %v5198
  %v5360 = vsub.f32 %v2927, %v5200
  %v5361 = vsub.f32 %v2928, %v5202
  %v5362 = vsub.f32 %v2929, %v5204
  %v5363 = vsub.f32 %v2930, %v5206
  %v5364 = vsub.f32 %v2931, %v5208
  %v5365 = vsub.f32 %v2932, %v5210
  %v5366 = vsub.f32 %v2933, %v5212
  %v5367 = vsub.f32 %v2934, %v5214
  %v5368 = vsub.f32 %v2935, %v5216
  %v5369 = vsub.f32 %v2936, %v5218
  %v5370 = vsub.f32 %v2937, %v5220
  %v5371 = vsub.f32 %v2938, %v5222
  %v5372 = vsub.f32 %v2939, %v5224
  %v5373 = vsub.f32 %v2940, %v5226
  %v5374 = vsub.f32 %v2941, %v5228
  %v5375 = vsub.f32 %v2942, %v5230
  %v5376 = vsub.f32 %v2943, %v5232
  %v5377 = vsub.f32 %v2944, %v5234
  %v5378 = vsub.f32 %v2945, %v5236
  %v5379 = vsub.f32 %v2946, %v5238
  %v5380 = vsub.f32 %v2947, %v5240
  %v5381 = vsub.f32 %v2948, %v5242
  %v5382 = vsub.f32 %v2949, %v5244
  %v5383 = vsub.f32 %v2950, %v5246
  %v5384 = vsub.f32 %v2951, %v5248
  %v5385 = vsub.f32 %v2952, %v5250
  %v5386 = vsub.f32 %v2953, %v5252
  %v5387 = vsub.f32 %v2954, %v5254
  %v5388 = vsub.f32 %v2955, %v5256
  %v5389 = vsub.f32 %v2956, %v5258
  %v5390 = vsub.f32 %v2957, %v5260
  %v5391 = vsub.f32 %v2958, %v5262
  %v5392 = vsub.f32 %v2959, %v5264
  %s5393 = smul.u32 8, 64
  %s5394 = smul.u32 %s5393, 7
  %s5395 = sshll.u32 %s5394, 4
  %5396 = dma.done [#allocation4], %s5395
  %5398 = vset.pattern.permute.xlu0 0
  %5399 = vperm.xlu0 %5398, %v4945
  %v5400 = vpop.permute.xlu0 %5399
  %5403 = vset.pattern.permute.xlu0 0
  %5404 = vperm.xlu0 %5403, %v4946
  %v5405 = vpop.permute.xlu0 %5404
  %5408 = vset.pattern.permute.xlu0 0
  %5409 = vperm.xlu0 %5408, %v4947
  %v5410 = vpop.permute.xlu0 %5409
  %5413 = vset.pattern.permute.xlu0 0
  %5414 = vperm.xlu0 %5413, %v4948
  %v5415 = vpop.permute.xlu0 %5414
  %5418 = vset.pattern.permute.xlu0 0
  %5419 = vperm.xlu0 %5418, %v4949
  %v5420 = vpop.permute.xlu0 %5419
  %5423 = vset.pattern.permute.xlu0 0
  %5424 = vperm.xlu0 %5423, %v4950
  %v5425 = vpop.permute.xlu0 %5424
  %5428 = vset.pattern.permute.xlu0 0
  %5429 = vperm.xlu0 %5428, %v4951
  %v5430 = vpop.permute.xlu0 %5429
  %5433 = vset.pattern.permute.xlu0 0
  %5434 = vperm.xlu0 %5433, %v4952
  %v5435 = vpop.permute.xlu0 %5434
  %5438 = vset.pattern.permute.xlu0 0
  %5439 = vperm.xlu0 %5438, %v4953
  %v5440 = vpop.permute.xlu0 %5439
  %5443 = vset.pattern.permute.xlu0 0
  %5444 = vperm.xlu0 %5443, %v4954
  %v5445 = vpop.permute.xlu0 %5444
  %5448 = vset.pattern.permute.xlu0 0
  %5449 = vperm.xlu0 %5448, %v4955
  %v5450 = vpop.permute.xlu0 %5449
  %5453 = vset.pattern.permute.xlu0 0
  %5454 = vperm.xlu0 %5453, %v4956
  %v5455 = vpop.permute.xlu0 %5454
  %5458 = vset.pattern.permute.xlu0 0
  %5459 = vperm.xlu0 %5458, %v4957
  %v5460 = vpop.permute.xlu0 %5459
  %5463 = vset.pattern.permute.xlu0 0
  %5464 = vperm.xlu0 %5463, %v4958
  %v5465 = vpop.permute.xlu0 %5464
  %5468 = vset.pattern.permute.xlu0 0
  %5469 = vperm.xlu0 %5468, %v4959
  %v5470 = vpop.permute.xlu0 %5469
  %5473 = vset.pattern.permute.xlu0 0
  %5474 = vperm.xlu0 %5473, %v4960
  %v5475 = vpop.permute.xlu0 %5474
  %5478 = vset.pattern.permute.xlu0 0
  %5479 = vperm.xlu0 %5478, %v4961
  %v5480 = vpop.permute.xlu0 %5479
  %5483 = vset.pattern.permute.xlu0 0
  %5484 = vperm.xlu0 %5483, %v4962
  %v5485 = vpop.permute.xlu0 %5484
  %5488 = vset.pattern.permute.xlu0 0
  %5489 = vperm.xlu0 %5488, %v4963
  %v5490 = vpop.permute.xlu0 %5489
  %5493 = vset.pattern.permute.xlu0 0
  %5494 = vperm.xlu0 %5493, %v4964
  %v5495 = vpop.permute.xlu0 %5494
  %5498 = vset.pattern.permute.xlu0 0
  %5499 = vperm.xlu0 %5498, %v4965
  %v5500 = vpop.permute.xlu0 %5499
  %5503 = vset.pattern.permute.xlu0 0
  %5504 = vperm.xlu0 %5503, %v4966
  %v5505 = vpop.permute.xlu0 %5504
  %5508 = vset.pattern.permute.xlu0 0
  %5509 = vperm.xlu0 %5508, %v4967
  %v5510 = vpop.permute.xlu0 %5509
  %5513 = vset.pattern.permute.xlu0 0
  %5514 = vperm.xlu0 %5513, %v4968
  %v5515 = vpop.permute.xlu0 %5514
  %5518 = vset.pattern.permute.xlu0 0
  %5519 = vperm.xlu0 %5518, %v4969
  %v5520 = vpop.permute.xlu0 %5519
  %5523 = vset.pattern.permute.xlu0 0
  %5524 = vperm.xlu0 %5523, %v4970
  %v5525 = vpop.permute.xlu0 %5524
  %5528 = vset.pattern.permute.xlu0 0
  %5529 = vperm.xlu0 %5528, %v4971
  %v5530 = vpop.permute.xlu0 %5529
  %5533 = vset.pattern.permute.xlu0 0
  %5534 = vperm.xlu0 %5533, %v4972
  %v5535 = vpop.permute.xlu0 %5534
  %5538 = vset.pattern.permute.xlu0 0
  %5539 = vperm.xlu0 %5538, %v4973
  %v5540 = vpop.permute.xlu0 %5539
  %5543 = vset.pattern.permute.xlu0 0
  %5544 = vperm.xlu0 %5543, %v4974
  %v5545 = vpop.permute.xlu0 %5544
  %5548 = vset.pattern.permute.xlu0 0
  %5549 = vperm.xlu0 %5548, %v4975
  %v5550 = vpop.permute.xlu0 %5549
  %5553 = vset.pattern.permute.xlu0 0
  %5554 = vperm.xlu0 %5553, %v4976
  %v5555 = vpop.permute.xlu0 %5554
  %5558 = vset.pattern.permute.xlu0 0
  %5559 = vperm.xlu0 %5558, %v4977
  %v5560 = vpop.permute.xlu0 %5559
  %5563 = vset.pattern.permute.xlu0 0
  %5564 = vperm.xlu0 %5563, %v4978
  %v5565 = vpop.permute.xlu0 %5564
  %5568 = vset.pattern.permute.xlu0 0
  %5569 = vperm.xlu0 %5568, %v4979
  %v5570 = vpop.permute.xlu0 %5569
  %5573 = vset.pattern.permute.xlu0 0
  %5574 = vperm.xlu0 %5573, %v4980
  %v5575 = vpop.permute.xlu0 %5574
  %5578 = vset.pattern.permute.xlu0 0
  %5579 = vperm.xlu0 %5578, %v4981
  %v5580 = vpop.permute.xlu0 %5579
  %5583 = vset.pattern.permute.xlu0 0
  %5584 = vperm.xlu0 %5583, %v4982
  %v5585 = vpop.permute.xlu0 %5584
  %5588 = vset.pattern.permute.xlu0 0
  %5589 = vperm.xlu0 %5588, %v4983
  %v5590 = vpop.permute.xlu0 %5589
  %5593 = vset.pattern.permute.xlu0 0
  %5594 = vperm.xlu0 %5593, %v4984
  %v5595 = vpop.permute.xlu0 %5594
  %5598 = vset.pattern.permute.xlu0 0
  %5599 = vperm.xlu0 %5598, %v4985
  %v5600 = vpop.permute.xlu0 %5599
  %5603 = vset.pattern.permute.xlu0 0
  %5604 = vperm.xlu0 %5603, %v4986
  %v5605 = vpop.permute.xlu0 %5604
  %5608 = vset.pattern.permute.xlu0 0
  %5609 = vperm.xlu0 %5608, %v4987
  %v5610 = vpop.permute.xlu0 %5609
  %5613 = vset.pattern.permute.xlu0 0
  %5614 = vperm.xlu0 %5613, %v4988
  %v5615 = vpop.permute.xlu0 %5614
  %5618 = vset.pattern.permute.xlu0 0
  %5619 = vperm.xlu0 %5618, %v4989
  %v5620 = vpop.permute.xlu0 %5619
  %5623 = vset.pattern.permute.xlu0 0
  %5624 = vperm.xlu0 %5623, %v4990
  %v5625 = vpop.permute.xlu0 %5624
  %5628 = vset.pattern.permute.xlu0 0
  %5629 = vperm.xlu0 %5628, %v4991
  %v5630 = vpop.permute.xlu0 %5629
  %5633 = vset.pattern.permute.xlu0 0
  %5634 = vperm.xlu0 %5633, %v4992
  %v5635 = vpop.permute.xlu0 %5634
  %5638 = vset.pattern.permute.xlu0 0
  %5639 = vperm.xlu0 %5638, %v4993
  %v5640 = vpop.permute.xlu0 %5639
  %5643 = vset.pattern.permute.xlu0 0
  %5644 = vperm.xlu0 %5643, %v4994
  %v5645 = vpop.permute.xlu0 %5644
  %5648 = vset.pattern.permute.xlu0 0
  %5649 = vperm.xlu0 %5648, %v4995
  %v5650 = vpop.permute.xlu0 %5649
  %5653 = vset.pattern.permute.xlu0 0
  %5654 = vperm.xlu0 %5653, %v4996
  %v5655 = vpop.permute.xlu0 %5654
  %5658 = vset.pattern.permute.xlu0 0
  %5659 = vperm.xlu0 %5658, %v4997
  %v5660 = vpop.permute.xlu0 %5659
  %5663 = vset.pattern.permute.xlu0 0
  %5664 = vperm.xlu0 %5663, %v4998
  %v5665 = vpop.permute.xlu0 %5664
  %5668 = vset.pattern.permute.xlu0 0
  %5669 = vperm.xlu0 %5668, %v4999
  %v5670 = vpop.permute.xlu0 %5669
  %5673 = vset.pattern.permute.xlu0 0
  %5674 = vperm.xlu0 %5673, %v5000
  %v5675 = vpop.permute.xlu0 %5674
  %5678 = vset.pattern.permute.xlu0 0
  %5679 = vperm.xlu0 %5678, %v5001
  %v5680 = vpop.permute.xlu0 %5679
  %5683 = vset.pattern.permute.xlu0 0
  %5684 = vperm.xlu0 %5683, %v5002
  %v5685 = vpop.permute.xlu0 %5684
  %5688 = vset.pattern.permute.xlu0 0
  %5689 = vperm.xlu0 %5688, %v5003
  %v5690 = vpop.permute.xlu0 %5689
  %5693 = vset.pattern.permute.xlu0 0
  %5694 = vperm.xlu0 %5693, %v5004
  %v5695 = vpop.permute.xlu0 %5694
  %5698 = vset.pattern.permute.xlu0 0
  %5699 = vperm.xlu0 %5698, %v5005
  %v5700 = vpop.permute.xlu0 %5699
  %5703 = vset.pattern.permute.xlu0 0
  %5704 = vperm.xlu0 %5703, %v5006
  %v5705 = vpop.permute.xlu0 %5704
  %5708 = vset.pattern.permute.xlu0 0
  %5709 = vperm.xlu0 %5708, %v5007
  %v5710 = vpop.permute.xlu0 %5709
  %5713 = vset.pattern.permute.xlu0 0
  %5714 = vperm.xlu0 %5713, %v5008
  %v5715 = vpop.permute.xlu0 %5714
  %v5717 = vmul.f32 %v1583, %v5400
  %v5718 = vmul.f32 %v1585, %v5400
  %v5719 = vmul.f32 %v1936, %v5400
  %v5720 = vmul.f32 %v1938, %v5400
  %v5721 = vmul.f32 %v2289, %v5400
  %v5722 = vmul.f32 %v2291, %v5400
  %v5723 = vmul.f32 %v2642, %v5400
  %v5724 = vmul.f32 %v1587, %v5405
  %v5725 = vmul.f32 %v1589, %v5405
  %v5726 = vmul.f32 %v1940, %v5405
  %v5727 = vmul.f32 %v1942, %v5405
  %v5728 = vmul.f32 %v2293, %v5405
  %v5729 = vmul.f32 %v2295, %v5405
  %v5730 = vmul.f32 %v2645, %v5405
  %v5731 = vmul.f32 %v1593, %v5410
  %v5732 = vmul.f32 %v1595, %v5410
  %v5733 = vmul.f32 %v1946, %v5410
  %v5734 = vmul.f32 %v1948, %v5410
  %v5735 = vmul.f32 %v2299, %v5410
  %v5736 = vmul.f32 %v2301, %v5410
  %v5737 = vmul.f32 %v2650, %v5410
  %v5738 = vmul.f32 %v1597, %v5415
  %v5739 = vmul.f32 %v1599, %v5415
  %v5740 = vmul.f32 %v1950, %v5415
  %v5741 = vmul.f32 %v1952, %v5415
  %v5742 = vmul.f32 %v2303, %v5415
  %v5743 = vmul.f32 %v2305, %v5415
  %v5744 = vmul.f32 %v2653, %v5415
  %v5745 = vmul.f32 %v1603, %v5420
  %v5746 = vmul.f32 %v1605, %v5420
  %v5747 = vmul.f32 %v1956, %v5420
  %v5748 = vmul.f32 %v1958, %v5420
  %v5749 = vmul.f32 %v2309, %v5420
  %v5750 = vmul.f32 %v2311, %v5420
  %v5751 = vmul.f32 %v2658, %v5420
  %v5752 = vmul.f32 %v1607, %v5425
  %v5753 = vmul.f32 %v1609, %v5425
  %v5754 = vmul.f32 %v1960, %v5425
  %v5755 = vmul.f32 %v1962, %v5425
  %v5756 = vmul.f32 %v2313, %v5425
  %v5757 = vmul.f32 %v2315, %v5425
  %v5758 = vmul.f32 %v2661, %v5425
  %v5759 = vmul.f32 %v1613, %v5430
  %v5760 = vmul.f32 %v1615, %v5430
  %v5761 = vmul.f32 %v1966, %v5430
  %v5762 = vmul.f32 %v1968, %v5430
  %v5763 = vmul.f32 %v2319, %v5430
  %v5764 = vmul.f32 %v2321, %v5430
  %v5765 = vmul.f32 %v2666, %v5430
  %v5766 = vmul.f32 %v1617, %v5435
  %v5767 = vmul.f32 %v1619, %v5435
  %v5768 = vmul.f32 %v1970, %v5435
  %v5769 = vmul.f32 %v1972, %v5435
  %v5770 = vmul.f32 %v2323, %v5435
  %v5771 = vmul.f32 %v2325, %v5435
  %v5772 = vmul.f32 %v2669, %v5435
  %v5773 = vmul.f32 %v1623, %v5440
  %v5774 = vmul.f32 %v1625, %v5440
  %v5775 = vmul.f32 %v1976, %v5440
  %v5776 = vmul.f32 %v1978, %v5440
  %v5777 = vmul.f32 %v2329, %v5440
  %v5778 = vmul.f32 %v2331, %v5440
  %v5779 = vmul.f32 %v2674, %v5440
  %v5780 = vmul.f32 %v1627, %v5445
  %v5781 = vmul.f32 %v1629, %v5445
  %v5782 = vmul.f32 %v1980, %v5445
  %v5783 = vmul.f32 %v1982, %v5445
  %v5784 = vmul.f32 %v2333, %v5445
  %v5785 = vmul.f32 %v2335, %v5445
  %v5786 = vmul.f32 %v2677, %v5445
  %v5787 = vmul.f32 %v1633, %v5450
  %v5788 = vmul.f32 %v1635, %v5450
  %v5789 = vmul.f32 %v1986, %v5450
  %v5790 = vmul.f32 %v1988, %v5450
  %v5791 = vmul.f32 %v2339, %v5450
  %v5792 = vmul.f32 %v2341, %v5450
  %v5793 = vmul.f32 %v2682, %v5450
  %v5794 = vmul.f32 %v1637, %v5455
  %v5795 = vmul.f32 %v1639, %v5455
  %v5796 = vmul.f32 %v1990, %v5455
  %v5797 = vmul.f32 %v1992, %v5455
  %v5798 = vmul.f32 %v2343, %v5455
  %v5799 = vmul.f32 %v2345, %v5455
  %v5800 = vmul.f32 %v2685, %v5455
  %v5801 = vmul.f32 %v1643, %v5460
  %v5802 = vmul.f32 %v1645, %v5460
  %v5803 = vmul.f32 %v1996, %v5460
  %v5804 = vmul.f32 %v1998, %v5460
  %v5805 = vmul.f32 %v2349, %v5460
  %v5806 = vmul.f32 %v2351, %v5460
  %v5807 = vmul.f32 %v2690, %v5460
  %v5808 = vmul.f32 %v1647, %v5465
  %v5809 = vmul.f32 %v1649, %v5465
  %v5810 = vmul.f32 %v2000, %v5465
  %v5811 = vmul.f32 %v2002, %v5465
  %v5812 = vmul.f32 %v2353, %v5465
  %v5813 = vmul.f32 %v2355, %v5465
  %v5814 = vmul.f32 %v2693, %v5465
  %v5815 = vmul.f32 %v1653, %v5470
  %v5816 = vmul.f32 %v1655, %v5470
  %v5817 = vmul.f32 %v2006, %v5470
  %v5818 = vmul.f32 %v2008, %v5470
  %v5819 = vmul.f32 %v2359, %v5470
  %v5820 = vmul.f32 %v2361, %v5470
  %v5821 = vmul.f32 %v2698, %v5470
  %v5822 = vmul.f32 %v1657, %v5475
  %v5823 = vmul.f32 %v1659, %v5475
  %v5824 = vmul.f32 %v2010, %v5475
  %v5825 = vmul.f32 %v2012, %v5475
  %v5826 = vmul.f32 %v2363, %v5475
  %v5827 = vmul.f32 %v2365, %v5475
  %v5828 = vmul.f32 %v2701, %v5475
  %v5829 = vmul.f32 %v1663, %v5480
  %v5830 = vmul.f32 %v1665, %v5480
  %v5831 = vmul.f32 %v2016, %v5480
  %v5832 = vmul.f32 %v2018, %v5480
  %v5833 = vmul.f32 %v2369, %v5480
  %v5834 = vmul.f32 %v2371, %v5480
  %v5835 = vmul.f32 %v2706, %v5480
  %v5836 = vmul.f32 %v1667, %v5485
  %v5837 = vmul.f32 %v1669, %v5485
  %v5838 = vmul.f32 %v2020, %v5485
  %v5839 = vmul.f32 %v2022, %v5485
  %v5840 = vmul.f32 %v2373, %v5485
  %v5841 = vmul.f32 %v2375, %v5485
  %v5842 = vmul.f32 %v2709, %v5485
  %v5843 = vmul.f32 %v1673, %v5490
  %v5844 = vmul.f32 %v1675, %v5490
  %v5845 = vmul.f32 %v2026, %v5490
  %v5846 = vmul.f32 %v2028, %v5490
  %v5847 = vmul.f32 %v2379, %v5490
  %v5848 = vmul.f32 %v2381, %v5490
  %v5849 = vmul.f32 %v2714, %v5490
  %v5850 = vmul.f32 %v1677, %v5495
  %v5851 = vmul.f32 %v1679, %v5495
  %v5852 = vmul.f32 %v2030, %v5495
  %v5853 = vmul.f32 %v2032, %v5495
  %v5854 = vmul.f32 %v2383, %v5495
  %v5855 = vmul.f32 %v2385, %v5495
  %v5856 = vmul.f32 %v2717, %v5495
  %v5857 = vmul.f32 %v1683, %v5500
  %v5858 = vmul.f32 %v1685, %v5500
  %v5859 = vmul.f32 %v2036, %v5500
  %v5860 = vmul.f32 %v2038, %v5500
  %v5861 = vmul.f32 %v2389, %v5500
  %v5862 = vmul.f32 %v2391, %v5500
  %v5863 = vmul.f32 %v2722, %v5500
  %v5864 = vmul.f32 %v1687, %v5505
  %v5865 = vmul.f32 %v1689, %v5505
  %v5866 = vmul.f32 %v2040, %v5505
  %v5867 = vmul.f32 %v2042, %v5505
  %v5868 = vmul.f32 %v2393, %v5505
  %v5869 = vmul.f32 %v2395, %v5505
  %v5870 = vmul.f32 %v2725, %v5505
  %v5871 = vmul.f32 %v1693, %v5510
  %v5872 = vmul.f32 %v1695, %v5510
  %v5873 = vmul.f32 %v2046, %v5510
  %v5874 = vmul.f32 %v2048, %v5510
  %v5875 = vmul.f32 %v2399, %v5510
  %v5876 = vmul.f32 %v2401, %v5510
  %v5877 = vmul.f32 %v2730, %v5510
  %v5878 = vmul.f32 %v1697, %v5515
  %v5879 = vmul.f32 %v1699, %v5515
  %v5880 = vmul.f32 %v2050, %v5515
  %v5881 = vmul.f32 %v2052, %v5515
  %v5882 = vmul.f32 %v2403, %v5515
  %v5883 = vmul.f32 %v2405, %v5515
  %v5884 = vmul.f32 %v2733, %v5515
  %v5885 = vmul.f32 %v1703, %v5520
  %v5886 = vmul.f32 %v1705, %v5520
  %v5887 = vmul.f32 %v2056, %v5520
  %v5888 = vmul.f32 %v2058, %v5520
  %v5889 = vmul.f32 %v2409, %v5520
  %v5890 = vmul.f32 %v2411, %v5520
  %v5891 = vmul.f32 %v2738, %v5520
  %v5892 = vmul.f32 %v1707, %v5525
  %v5893 = vmul.f32 %v1709, %v5525
  %v5894 = vmul.f32 %v2060, %v5525
  %v5895 = vmul.f32 %v2062, %v5525
  %v5896 = vmul.f32 %v2413, %v5525
  %v5897 = vmul.f32 %v2415, %v5525
  %v5898 = vmul.f32 %v2741, %v5525
  %v5899 = vmul.f32 %v1713, %v5530
  %v5900 = vmul.f32 %v1715, %v5530
  %v5901 = vmul.f32 %v2066, %v5530
  %v5902 = vmul.f32 %v2068, %v5530
  %v5903 = vmul.f32 %v2419, %v5530
  %v5904 = vmul.f32 %v2421, %v5530
  %v5905 = vmul.f32 %v2746, %v5530
  %v5906 = vmul.f32 %v1717, %v5535
  %v5907 = vmul.f32 %v1719, %v5535
  %v5908 = vmul.f32 %v2070, %v5535
  %v5909 = vmul.f32 %v2072, %v5535
  %v5910 = vmul.f32 %v2423, %v5535
  %v5911 = vmul.f32 %v2425, %v5535
  %v5912 = vmul.f32 %v2749, %v5535
  %v5913 = vmul.f32 %v1723, %v5540
  %v5914 = vmul.f32 %v1725, %v5540
  %v5915 = vmul.f32 %v2076, %v5540
  %v5916 = vmul.f32 %v2078, %v5540
  %v5917 = vmul.f32 %v2429, %v5540
  %v5918 = vmul.f32 %v2431, %v5540
  %v5919 = vmul.f32 %v2754, %v5540
  %v5920 = vmul.f32 %v1727, %v5545
  %v5921 = vmul.f32 %v1729, %v5545
  %v5922 = vmul.f32 %v2080, %v5545
  %v5923 = vmul.f32 %v2082, %v5545
  %v5924 = vmul.f32 %v2433, %v5545
  %v5925 = vmul.f32 %v2435, %v5545
  %v5926 = vmul.f32 %v2757, %v5545
  %v5927 = vmul.f32 %v1733, %v5550
  %v5928 = vmul.f32 %v1735, %v5550
  %v5929 = vmul.f32 %v2086, %v5550
  %v5930 = vmul.f32 %v2088, %v5550
  %v5931 = vmul.f32 %v2439, %v5550
  %v5932 = vmul.f32 %v2441, %v5550
  %v5933 = vmul.f32 %v2762, %v5550
  %v5934 = vmul.f32 %v1737, %v5555
  %v5935 = vmul.f32 %v1739, %v5555
  %v5936 = vmul.f32 %v2090, %v5555
  %v5937 = vmul.f32 %v2092, %v5555
  %v5938 = vmul.f32 %v2443, %v5555
  %v5939 = vmul.f32 %v2445, %v5555
  %v5940 = vmul.f32 %v2765, %v5555
  %v5941 = vmul.f32 %v1743, %v5560
  %v5942 = vmul.f32 %v1745, %v5560
  %v5943 = vmul.f32 %v2096, %v5560
  %v5944 = vmul.f32 %v2098, %v5560
  %v5945 = vmul.f32 %v2449, %v5560
  %v5946 = vmul.f32 %v2451, %v5560
  %v5947 = vmul.f32 %v2770, %v5560
  %v5948 = vmul.f32 %v1747, %v5565
  %v5949 = vmul.f32 %v1749, %v5565
  %v5950 = vmul.f32 %v2100, %v5565
  %v5951 = vmul.f32 %v2102, %v5565
  %v5952 = vmul.f32 %v2453, %v5565
  %v5953 = vmul.f32 %v2455, %v5565
  %v5954 = vmul.f32 %v2773, %v5565
  %v5955 = vmul.f32 %v1753, %v5570
  %v5956 = vmul.f32 %v1755, %v5570
  %v5957 = vmul.f32 %v2106, %v5570
  %v5958 = vmul.f32 %v2108, %v5570
  %v5959 = vmul.f32 %v2459, %v5570
  %v5960 = vmul.f32 %v2461, %v5570
  %v5961 = vmul.f32 %v2778, %v5570
  %v5962 = vmul.f32 %v1757, %v5575
  %v5963 = vmul.f32 %v1759, %v5575
  %v5964 = vmul.f32 %v2110, %v5575
  %v5965 = vmul.f32 %v2112, %v5575
  %v5966 = vmul.f32 %v2463, %v5575
  %v5967 = vmul.f32 %v2465, %v5575
  %v5968 = vmul.f32 %v2781, %v5575
  %v5969 = vmul.f32 %v1763, %v5580
  %v5970 = vmul.f32 %v1765, %v5580
  %v5971 = vmul.f32 %v2116, %v5580
  %v5972 = vmul.f32 %v2118, %v5580
  %v5973 = vmul.f32 %v2469, %v5580
  %v5974 = vmul.f32 %v2471, %v5580
  %v5975 = vmul.f32 %v2786, %v5580
  %v5976 = vmul.f32 %v1767, %v5585
  %v5977 = vmul.f32 %v1769, %v5585
  %v5978 = vmul.f32 %v2120, %v5585
  %v5979 = vmul.f32 %v2122, %v5585
  %v5980 = vmul.f32 %v2473, %v5585
  %v5981 = vmul.f32 %v2475, %v5585
  %v5982 = vmul.f32 %v2789, %v5585
  %v5983 = vmul.f32 %v1773, %v5590
  %v5984 = vmul.f32 %v1775, %v5590
  %v5985 = vmul.f32 %v2126, %v5590
  %v5986 = vmul.f32 %v2128, %v5590
  %v5987 = vmul.f32 %v2479, %v5590
  %v5988 = vmul.f32 %v2481, %v5590
  %v5989 = vmul.f32 %v2794, %v5590
  %v5990 = vmul.f32 %v1777, %v5595
  %v5991 = vmul.f32 %v1779, %v5595
  %v5992 = vmul.f32 %v2130, %v5595
  %v5993 = vmul.f32 %v2132, %v5595
  %v5994 = vmul.f32 %v2483, %v5595
  %v5995 = vmul.f32 %v2485, %v5595
  %v5996 = vmul.f32 %v2797, %v5595
  %v5997 = vmul.f32 %v1783, %v5600
  %v5998 = vmul.f32 %v1785, %v5600
  %v5999 = vmul.f32 %v2136, %v5600
  %v6000 = vmul.f32 %v2138, %v5600
  %v6001 = vmul.f32 %v2489, %v5600
  %v6002 = vmul.f32 %v2491, %v5600
  %v6003 = vmul.f32 %v2802, %v5600
  %v6004 = vmul.f32 %v1787, %v5605
  %v6005 = vmul.f32 %v1789, %v5605
  %v6006 = vmul.f32 %v2140, %v5605
  %v6007 = vmul.f32 %v2142, %v5605
  %v6008 = vmul.f32 %v2493, %v5605
  %v6009 = vmul.f32 %v2495, %v5605
  %v6010 = vmul.f32 %v2805, %v5605
  %v6011 = vmul.f32 %v1793, %v5610
  %v6012 = vmul.f32 %v1795, %v5610
  %v6013 = vmul.f32 %v2146, %v5610
  %v6014 = vmul.f32 %v2148, %v5610
  %v6015 = vmul.f32 %v2499, %v5610
  %v6016 = vmul.f32 %v2501, %v5610
  %v6017 = vmul.f32 %v2810, %v5610
  %v6018 = vmul.f32 %v1797, %v5615
  %v6019 = vmul.f32 %v1799, %v5615
  %v6020 = vmul.f32 %v2150, %v5615
  %v6021 = vmul.f32 %v2152, %v5615
  %v6022 = vmul.f32 %v2503, %v5615
  %v6023 = vmul.f32 %v2505, %v5615
  %v6024 = vmul.f32 %v2813, %v5615
  %v6025 = vmul.f32 %v1803, %v5620
  %v6026 = vmul.f32 %v1805, %v5620
  %v6027 = vmul.f32 %v2156, %v5620
  %v6028 = vmul.f32 %v2158, %v5620
  %v6029 = vmul.f32 %v2509, %v5620
  %v6030 = vmul.f32 %v2511, %v5620
  %v6031 = vmul.f32 %v2818, %v5620
  %v6032 = vmul.f32 %v1807, %v5625
  %v6033 = vmul.f32 %v1809, %v5625
  %v6034 = vmul.f32 %v2160, %v5625
  %v6035 = vmul.f32 %v2162, %v5625
  %v6036 = vmul.f32 %v2513, %v5625
  %v6037 = vmul.f32 %v2515, %v5625
  %v6038 = vmul.f32 %v2821, %v5625
  %v6039 = vmul.f32 %v1813, %v5630
  %v6040 = vmul.f32 %v1815, %v5630
  %v6041 = vmul.f32 %v2166, %v5630
  %v6042 = vmul.f32 %v2168, %v5630
  %v6043 = vmul.f32 %v2519, %v5630
  %v6044 = vmul.f32 %v2521, %v5630
  %v6045 = vmul.f32 %v2826, %v5630
  %v6046 = vmul.f32 %v1817, %v5635
  %v6047 = vmul.f32 %v1819, %v5635
  %v6048 = vmul.f32 %v2170, %v5635
  %v6049 = vmul.f32 %v2172, %v5635
  %v6050 = vmul.f32 %v2523, %v5635
  %v6051 = vmul.f32 %v2525, %v5635
  %v6052 = vmul.f32 %v2829, %v5635
  %v6053 = vmul.f32 %v1823, %v5640
  %v6054 = vmul.f32 %v1825, %v5640
  %v6055 = vmul.f32 %v2176, %v5640
  %v6056 = vmul.f32 %v2178, %v5640
  %v6057 = vmul.f32 %v2529, %v5640
  %v6058 = vmul.f32 %v2531, %v5640
  %v6059 = vmul.f32 %v2834, %v5640
  %v6060 = vmul.f32 %v1827, %v5645
  %v6061 = vmul.f32 %v1829, %v5645
  %v6062 = vmul.f32 %v2180, %v5645
  %v6063 = vmul.f32 %v2182, %v5645
  %v6064 = vmul.f32 %v2533, %v5645
  %v6065 = vmul.f32 %v2535, %v5645
  %v6066 = vmul.f32 %v2837, %v5645
  %v6067 = vmul.f32 %v1833, %v5650
  %v6068 = vmul.f32 %v1835, %v5650
  %v6069 = vmul.f32 %v2186, %v5650
  %v6070 = vmul.f32 %v2188, %v5650
  %v6071 = vmul.f32 %v2539, %v5650
  %v6072 = vmul.f32 %v2541, %v5650
  %v6073 = vmul.f32 %v2842, %v5650
  %v6074 = vmul.f32 %v1837, %v5655
  %v6075 = vmul.f32 %v1839, %v5655
  %v6076 = vmul.f32 %v2190, %v5655
  %v6077 = vmul.f32 %v2192, %v5655
  %v6078 = vmul.f32 %v2543, %v5655
  %v6079 = vmul.f32 %v2545, %v5655
  %v6080 = vmul.f32 %v2845, %v5655
  %v6081 = vmul.f32 %v1843, %v5660
  %v6082 = vmul.f32 %v1845, %v5660
  %v6083 = vmul.f32 %v2196, %v5660
  %v6084 = vmul.f32 %v2198, %v5660
  %v6085 = vmul.f32 %v2549, %v5660
  %v6086 = vmul.f32 %v2551, %v5660
  %v6087 = vmul.f32 %v2850, %v5660
  %v6088 = vmul.f32 %v1847, %v5665
  %v6089 = vmul.f32 %v1849, %v5665
  %v6090 = vmul.f32 %v2200, %v5665
  %v6091 = vmul.f32 %v2202, %v5665
  %v6092 = vmul.f32 %v2553, %v5665
  %v6093 = vmul.f32 %v2555, %v5665
  %v6094 = vmul.f32 %v2853, %v5665
  %v6095 = vmul.f32 %v1853, %v5670
  %v6096 = vmul.f32 %v1855, %v5670
  %v6097 = vmul.f32 %v2206, %v5670
  %v6098 = vmul.f32 %v2208, %v5670
  %v6099 = vmul.f32 %v2559, %v5670
  %v6100 = vmul.f32 %v2561, %v5670
  %v6101 = vmul.f32 %v2858, %v5670
  %v6102 = vmul.f32 %v1857, %v5675
  %v6103 = vmul.f32 %v1859, %v5675
  %v6104 = vmul.f32 %v2210, %v5675
  %v6105 = vmul.f32 %v2212, %v5675
  %v6106 = vmul.f32 %v2563, %v5675
  %v6107 = vmul.f32 %v2565, %v5675
  %v6108 = vmul.f32 %v2861, %v5675
  %v6109 = vmul.f32 %v1863, %v5680
  %v6110 = vmul.f32 %v1865, %v5680
  %v6111 = vmul.f32 %v2216, %v5680
  %v6112 = vmul.f32 %v2218, %v5680
  %v6113 = vmul.f32 %v2569, %v5680
  %v6114 = vmul.f32 %v2571, %v5680
  %v6115 = vmul.f32 %v2866, %v5680
  %v6116 = vmul.f32 %v1867, %v5685
  %v6117 = vmul.f32 %v1869, %v5685
  %v6118 = vmul.f32 %v2220, %v5685
  %v6119 = vmul.f32 %v2222, %v5685
  %v6120 = vmul.f32 %v2573, %v5685
  %v6121 = vmul.f32 %v2575, %v5685
  %v6122 = vmul.f32 %v2869, %v5685
  %v6123 = vmul.f32 %v1873, %v5690
  %v6124 = vmul.f32 %v1875, %v5690
  %v6125 = vmul.f32 %v2226, %v5690
  %v6126 = vmul.f32 %v2228, %v5690
  %v6127 = vmul.f32 %v2579, %v5690
  %v6128 = vmul.f32 %v2581, %v5690
  %v6129 = vmul.f32 %v2874, %v5690
  %v6130 = vmul.f32 %v1877, %v5695
  %v6131 = vmul.f32 %v1879, %v5695
  %v6132 = vmul.f32 %v2230, %v5695
  %v6133 = vmul.f32 %v2232, %v5695
  %v6134 = vmul.f32 %v2583, %v5695
  %v6135 = vmul.f32 %v2585, %v5695
  %v6136 = vmul.f32 %v2877, %v5695
  %v6137 = vmul.f32 %v1883, %v5700
  %v6138 = vmul.f32 %v1885, %v5700
  %v6139 = vmul.f32 %v2236, %v5700
  %v6140 = vmul.f32 %v2238, %v5700
  %v6141 = vmul.f32 %v2589, %v5700
  %v6142 = vmul.f32 %v2591, %v5700
  %v6143 = vmul.f32 %v2882, %v5700
  %v6144 = vmul.f32 %v1887, %v5705
  %v6145 = vmul.f32 %v1889, %v5705
  %v6146 = vmul.f32 %v2240, %v5705
  %v6147 = vmul.f32 %v2242, %v5705
  %v6148 = vmul.f32 %v2593, %v5705
  %v6149 = vmul.f32 %v2595, %v5705
  %v6150 = vmul.f32 %v2885, %v5705
  %v6151 = vmul.f32 %v1893, %v5710
  %v6152 = vmul.f32 %v1895, %v5710
  %v6153 = vmul.f32 %v2246, %v5710
  %v6154 = vmul.f32 %v2248, %v5710
  %v6155 = vmul.f32 %v2599, %v5710
  %v6156 = vmul.f32 %v2601, %v5710
  %v6157 = vmul.f32 %v2890, %v5710
  %v6158 = vmul.f32 %v1897, %v5715
  %v6159 = vmul.f32 %v1899, %v5715
  %v6160 = vmul.f32 %v2250, %v5715
  %v6161 = vmul.f32 %v2252, %v5715
  %v6162 = vmul.f32 %v2603, %v5715
  %v6163 = vmul.f32 %v2605, %v5715
  %v6164 = vmul.f32 %v2893, %v5715
  %6166 = vset.pattern.permute.xlu0 1
  %6167 = vperm.xlu0 %6166, %v5329
  %v6168 = vpop.permute.xlu0 %6167
  %6171 = vset.pattern.permute.xlu0 1
  %6172 = vperm.xlu0 %6171, %v5330
  %v6173 = vpop.permute.xlu0 %6172
  %6176 = vset.pattern.permute.xlu0 1
  %6177 = vperm.xlu0 %6176, %v5331
  %v6178 = vpop.permute.xlu0 %6177
  %6181 = vset.pattern.permute.xlu0 1
  %6182 = vperm.xlu0 %6181, %v5332
  %v6183 = vpop.permute.xlu0 %6182
  %6186 = vset.pattern.permute.xlu0 1
  %6187 = vperm.xlu0 %6186, %v5333
  %v6188 = vpop.permute.xlu0 %6187
  %6191 = vset.pattern.permute.xlu0 1
  %6192 = vperm.xlu0 %6191, %v5334
  %v6193 = vpop.permute.xlu0 %6192
  %6196 = vset.pattern.permute.xlu0 1
  %6197 = vperm.xlu0 %6196, %v5335
  %v6198 = vpop.permute.xlu0 %6197
  %6201 = vset.pattern.permute.xlu0 1
  %6202 = vperm.xlu0 %6201, %v5336
  %v6203 = vpop.permute.xlu0 %6202
  %6206 = vset.pattern.permute.xlu0 1
  %6207 = vperm.xlu0 %6206, %v5337
  %v6208 = vpop.permute.xlu0 %6207
  %6211 = vset.pattern.permute.xlu0 1
  %6212 = vperm.xlu0 %6211, %v5338
  %v6213 = vpop.permute.xlu0 %6212
  %6216 = vset.pattern.permute.xlu0 1
  %6217 = vperm.xlu0 %6216, %v5339
  %v6218 = vpop.permute.xlu0 %6217
  %6221 = vset.pattern.permute.xlu0 1
  %6222 = vperm.xlu0 %6221, %v5340
  %v6223 = vpop.permute.xlu0 %6222
  %6226 = vset.pattern.permute.xlu0 1
  %6227 = vperm.xlu0 %6226, %v5341
  %v6228 = vpop.permute.xlu0 %6227
  %6231 = vset.pattern.permute.xlu0 1
  %6232 = vperm.xlu0 %6231, %v5342
  %v6233 = vpop.permute.xlu0 %6232
  %6236 = vset.pattern.permute.xlu0 1
  %6237 = vperm.xlu0 %6236, %v5343
  %v6238 = vpop.permute.xlu0 %6237
  %6241 = vset.pattern.permute.xlu0 1
  %6242 = vperm.xlu0 %6241, %v5344
  %v6243 = vpop.permute.xlu0 %6242
  %6246 = vset.pattern.permute.xlu0 1
  %6247 = vperm.xlu0 %6246, %v5345
  %v6248 = vpop.permute.xlu0 %6247
  %6251 = vset.pattern.permute.xlu0 1
  %6252 = vperm.xlu0 %6251, %v5346
  %v6253 = vpop.permute.xlu0 %6252
  %6256 = vset.pattern.permute.xlu0 1
  %6257 = vperm.xlu0 %6256, %v5347
  %v6258 = vpop.permute.xlu0 %6257
  %6261 = vset.pattern.permute.xlu0 1
  %6262 = vperm.xlu0 %6261, %v5348
  %v6263 = vpop.permute.xlu0 %6262
  %6266 = vset.pattern.permute.xlu0 1
  %6267 = vperm.xlu0 %6266, %v5349
  %v6268 = vpop.permute.xlu0 %6267
  %6271 = vset.pattern.permute.xlu0 1
  %6272 = vperm.xlu0 %6271, %v5350
  %v6273 = vpop.permute.xlu0 %6272
  %6276 = vset.pattern.permute.xlu0 1
  %6277 = vperm.xlu0 %6276, %v5351
  %v6278 = vpop.permute.xlu0 %6277
  %6281 = vset.pattern.permute.xlu0 1
  %6282 = vperm.xlu0 %6281, %v5352
  %v6283 = vpop.permute.xlu0 %6282
  %6286 = vset.pattern.permute.xlu0 1
  %6287 = vperm.xlu0 %6286, %v5353
  %v6288 = vpop.permute.xlu0 %6287
  %6291 = vset.pattern.permute.xlu0 1
  %6292 = vperm.xlu0 %6291, %v5354
  %v6293 = vpop.permute.xlu0 %6292
  %6296 = vset.pattern.permute.xlu0 1
  %6297 = vperm.xlu0 %6296, %v5355
  %v6298 = vpop.permute.xlu0 %6297
  %6301 = vset.pattern.permute.xlu0 1
  %6302 = vperm.xlu0 %6301, %v5356
  %v6303 = vpop.permute.xlu0 %6302
  %6306 = vset.pattern.permute.xlu0 1
  %6307 = vperm.xlu0 %6306, %v5357
  %v6308 = vpop.permute.xlu0 %6307
  %6311 = vset.pattern.permute.xlu0 1
  %6312 = vperm.xlu0 %6311, %v5358
  %v6313 = vpop.permute.xlu0 %6312
  %6316 = vset.pattern.permute.xlu0 1
  %6317 = vperm.xlu0 %6316, %v5359
  %v6318 = vpop.permute.xlu0 %6317
  %6321 = vset.pattern.permute.xlu0 1
  %6322 = vperm.xlu0 %6321, %v5360
  %v6323 = vpop.permute.xlu0 %6322
  %6326 = vset.pattern.permute.xlu0 1
  %6327 = vperm.xlu0 %6326, %v5361
  %v6328 = vpop.permute.xlu0 %6327
  %6331 = vset.pattern.permute.xlu0 1
  %6332 = vperm.xlu0 %6331, %v5362
  %v6333 = vpop.permute.xlu0 %6332
  %6336 = vset.pattern.permute.xlu0 1
  %6337 = vperm.xlu0 %6336, %v5363
  %v6338 = vpop.permute.xlu0 %6337
  %6341 = vset.pattern.permute.xlu0 1
  %6342 = vperm.xlu0 %6341, %v5364
  %v6343 = vpop.permute.xlu0 %6342
  %6346 = vset.pattern.permute.xlu0 1
  %6347 = vperm.xlu0 %6346, %v5365
  %v6348 = vpop.permute.xlu0 %6347
  %6351 = vset.pattern.permute.xlu0 1
  %6352 = vperm.xlu0 %6351, %v5366
  %v6353 = vpop.permute.xlu0 %6352
  %6356 = vset.pattern.permute.xlu0 1
  %6357 = vperm.xlu0 %6356, %v5367
  %v6358 = vpop.permute.xlu0 %6357
  %6361 = vset.pattern.permute.xlu0 1
  %6362 = vperm.xlu0 %6361, %v5368
  %v6363 = vpop.permute.xlu0 %6362
  %6366 = vset.pattern.permute.xlu0 1
  %6367 = vperm.xlu0 %6366, %v5369
  %v6368 = vpop.permute.xlu0 %6367
  %6371 = vset.pattern.permute.xlu0 1
  %6372 = vperm.xlu0 %6371, %v5370
  %v6373 = vpop.permute.xlu0 %6372
  %6376 = vset.pattern.permute.xlu0 1
  %6377 = vperm.xlu0 %6376, %v5371
  %v6378 = vpop.permute.xlu0 %6377
  %6381 = vset.pattern.permute.xlu0 1
  %6382 = vperm.xlu0 %6381, %v5372
  %v6383 = vpop.permute.xlu0 %6382
  %6386 = vset.pattern.permute.xlu0 1
  %6387 = vperm.xlu0 %6386, %v5373
  %v6388 = vpop.permute.xlu0 %6387
  %6391 = vset.pattern.permute.xlu0 1
  %6392 = vperm.xlu0 %6391, %v5374
  %v6393 = vpop.permute.xlu0 %6392
  %6396 = vset.pattern.permute.xlu0 1
  %6397 = vperm.xlu0 %6396, %v5375
  %v6398 = vpop.permute.xlu0 %6397
  %6401 = vset.pattern.permute.xlu0 1
  %6402 = vperm.xlu0 %6401, %v5376
  %v6403 = vpop.permute.xlu0 %6402
  %6406 = vset.pattern.permute.xlu0 1
  %6407 = vperm.xlu0 %6406, %v5377
  %v6408 = vpop.permute.xlu0 %6407
  %6411 = vset.pattern.permute.xlu0 1
  %6412 = vperm.xlu0 %6411, %v5378
  %v6413 = vpop.permute.xlu0 %6412
  %6416 = vset.pattern.permute.xlu0 1
  %6417 = vperm.xlu0 %6416, %v5379
  %v6418 = vpop.permute.xlu0 %6417
  %6421 = vset.pattern.permute.xlu0 1
  %6422 = vperm.xlu0 %6421, %v5380
  %v6423 = vpop.permute.xlu0 %6422
  %6426 = vset.pattern.permute.xlu0 1
  %6427 = vperm.xlu0 %6426, %v5381
  %v6428 = vpop.permute.xlu0 %6427
  %6431 = vset.pattern.permute.xlu0 1
  %6432 = vperm.xlu0 %6431, %v5382
  %v6433 = vpop.permute.xlu0 %6432
  %6436 = vset.pattern.permute.xlu0 1
  %6437 = vperm.xlu0 %6436, %v5383
  %v6438 = vpop.permute.xlu0 %6437
  %6441 = vset.pattern.permute.xlu0 1
  %6442 = vperm.xlu0 %6441, %v5384
  %v6443 = vpop.permute.xlu0 %6442
  %6446 = vset.pattern.permute.xlu0 1
  %6447 = vperm.xlu0 %6446, %v5385
  %v6448 = vpop.permute.xlu0 %6447
  %6451 = vset.pattern.permute.xlu0 1
  %6452 = vperm.xlu0 %6451, %v5386
  %v6453 = vpop.permute.xlu0 %6452
  %6456 = vset.pattern.permute.xlu0 1
  %6457 = vperm.xlu0 %6456, %v5387
  %v6458 = vpop.permute.xlu0 %6457
  %6461 = vset.pattern.permute.xlu0 1
  %6462 = vperm.xlu0 %6461, %v5388
  %v6463 = vpop.permute.xlu0 %6462
  %6466 = vset.pattern.permute.xlu0 1
  %6467 = vperm.xlu0 %6466, %v5389
  %v6468 = vpop.permute.xlu0 %6467
  %6471 = vset.pattern.permute.xlu0 1
  %6472 = vperm.xlu0 %6471, %v5390
  %v6473 = vpop.permute.xlu0 %6472
  %6476 = vset.pattern.permute.xlu0 1
  %6477 = vperm.xlu0 %6476, %v5391
  %v6478 = vpop.permute.xlu0 %6477
  %6481 = vset.pattern.permute.xlu0 1
  %6482 = vperm.xlu0 %6481, %v5392
  %v6483 = vpop.permute.xlu0 %6482
  %v6485 = vadd.f32 %v5717, %v6168
  %v6486 = vadd.f32 %v5718, %v6168
  %v6487 = vadd.f32 %v5719, %v6168
  %v6488 = vadd.f32 %v5720, %v6168
  %v6489 = vadd.f32 %v5721, %v6168
  %v6490 = vadd.f32 %v5722, %v6168
  %v6491 = vadd.f32 %v5723, %v6168
  %v6492 = vadd.f32 %v5724, %v6173
  %v6493 = vadd.f32 %v5725, %v6173
  %v6494 = vadd.f32 %v5726, %v6173
  %v6495 = vadd.f32 %v5727, %v6173
  %v6496 = vadd.f32 %v5728, %v6173
  %v6497 = vadd.f32 %v5729, %v6173
  %v6498 = vadd.f32 %v5730, %v6173
  %v6499 = vadd.f32 %v5731, %v6178
  %v6500 = vadd.f32 %v5732, %v6178
  %v6501 = vadd.f32 %v5733, %v6178
  %v6502 = vadd.f32 %v5734, %v6178
  %v6503 = vadd.f32 %v5735, %v6178
  %v6504 = vadd.f32 %v5736, %v6178
  %v6505 = vadd.f32 %v5737, %v6178
  %v6506 = vadd.f32 %v5738, %v6183
  %v6507 = vadd.f32 %v5739, %v6183
  %v6508 = vadd.f32 %v5740, %v6183
  %v6509 = vadd.f32 %v5741, %v6183
  %v6510 = vadd.f32 %v5742, %v6183
  %v6511 = vadd.f32 %v5743, %v6183
  %v6512 = vadd.f32 %v5744, %v6183
  %v6513 = vadd.f32 %v5745, %v6188
  %v6514 = vadd.f32 %v5746, %v6188
  %v6515 = vadd.f32 %v5747, %v6188
  %v6516 = vadd.f32 %v5748, %v6188
  %v6517 = vadd.f32 %v5749, %v6188
  %v6518 = vadd.f32 %v5750, %v6188
  %v6519 = vadd.f32 %v5751, %v6188
  %v6520 = vadd.f32 %v5752, %v6193
  %v6521 = vadd.f32 %v5753, %v6193
  %v6522 = vadd.f32 %v5754, %v6193
  %v6523 = vadd.f32 %v5755, %v6193
  %v6524 = vadd.f32 %v5756, %v6193
  %v6525 = vadd.f32 %v5757, %v6193
  %v6526 = vadd.f32 %v5758, %v6193
  %v6527 = vadd.f32 %v5759, %v6198
  %v6528 = vadd.f32 %v5760, %v6198
  %v6529 = vadd.f32 %v5761, %v6198
  %v6530 = vadd.f32 %v5762, %v6198
  %v6531 = vadd.f32 %v5763, %v6198
  %v6532 = vadd.f32 %v5764, %v6198
  %v6533 = vadd.f32 %v5765, %v6198
  %v6534 = vadd.f32 %v5766, %v6203
  %v6535 = vadd.f32 %v5767, %v6203
  %v6536 = vadd.f32 %v5768, %v6203
  %v6537 = vadd.f32 %v5769, %v6203
  %v6538 = vadd.f32 %v5770, %v6203
  %v6539 = vadd.f32 %v5771, %v6203
  %v6540 = vadd.f32 %v5772, %v6203
  %v6541 = vadd.f32 %v5773, %v6208
  %v6542 = vadd.f32 %v5774, %v6208
  %v6543 = vadd.f32 %v5775, %v6208
  %v6544 = vadd.f32 %v5776, %v6208
  %v6545 = vadd.f32 %v5777, %v6208
  %v6546 = vadd.f32 %v5778, %v6208
  %v6547 = vadd.f32 %v5779, %v6208
  %v6548 = vadd.f32 %v5780, %v6213
  %v6549 = vadd.f32 %v5781, %v6213
  %v6550 = vadd.f32 %v5782, %v6213
  %v6551 = vadd.f32 %v5783, %v6213
  %v6552 = vadd.f32 %v5784, %v6213
  %v6553 = vadd.f32 %v5785, %v6213
  %v6554 = vadd.f32 %v5786, %v6213
  %v6555 = vadd.f32 %v5787, %v6218
  %v6556 = vadd.f32 %v5788, %v6218
  %v6557 = vadd.f32 %v5789, %v6218
  %v6558 = vadd.f32 %v5790, %v6218
  %v6559 = vadd.f32 %v5791, %v6218
  %v6560 = vadd.f32 %v5792, %v6218
  %v6561 = vadd.f32 %v5793, %v6218
  %v6562 = vadd.f32 %v5794, %v6223
  %v6563 = vadd.f32 %v5795, %v6223
  %v6564 = vadd.f32 %v5796, %v6223
  %v6565 = vadd.f32 %v5797, %v6223
  %v6566 = vadd.f32 %v5798, %v6223
  %v6567 = vadd.f32 %v5799, %v6223
  %v6568 = vadd.f32 %v5800, %v6223
  %v6569 = vadd.f32 %v5801, %v6228
  %v6570 = vadd.f32 %v5802, %v6228
  %v6571 = vadd.f32 %v5803, %v6228
  %v6572 = vadd.f32 %v5804, %v6228
  %v6573 = vadd.f32 %v5805, %v6228
  %v6574 = vadd.f32 %v5806, %v6228
  %v6575 = vadd.f32 %v5807, %v6228
  %v6576 = vadd.f32 %v5808, %v6233
  %v6577 = vadd.f32 %v5809, %v6233
  %v6578 = vadd.f32 %v5810, %v6233
  %v6579 = vadd.f32 %v5811, %v6233
  %v6580 = vadd.f32 %v5812, %v6233
  %v6581 = vadd.f32 %v5813, %v6233
  %v6582 = vadd.f32 %v5814, %v6233
  %v6583 = vadd.f32 %v5815, %v6238
  %v6584 = vadd.f32 %v5816, %v6238
  %v6585 = vadd.f32 %v5817, %v6238
  %v6586 = vadd.f32 %v5818, %v6238
  %v6587 = vadd.f32 %v5819, %v6238
  %v6588 = vadd.f32 %v5820, %v6238
  %v6589 = vadd.f32 %v5821, %v6238
  %v6590 = vadd.f32 %v5822, %v6243
  %v6591 = vadd.f32 %v5823, %v6243
  %v6592 = vadd.f32 %v5824, %v6243
  %v6593 = vadd.f32 %v5825, %v6243
  %v6594 = vadd.f32 %v5826, %v6243
  %v6595 = vadd.f32 %v5827, %v6243
  %v6596 = vadd.f32 %v5828, %v6243
  %v6597 = vadd.f32 %v5829, %v6248
  %v6598 = vadd.f32 %v5830, %v6248
  %v6599 = vadd.f32 %v5831, %v6248
  %v6600 = vadd.f32 %v5832, %v6248
  %v6601 = vadd.f32 %v5833, %v6248
  %v6602 = vadd.f32 %v5834, %v6248
  %v6603 = vadd.f32 %v5835, %v6248
  %v6604 = vadd.f32 %v5836, %v6253
  %v6605 = vadd.f32 %v5837, %v6253
  %v6606 = vadd.f32 %v5838, %v6253
  %v6607 = vadd.f32 %v5839, %v6253
  %v6608 = vadd.f32 %v5840, %v6253
  %v6609 = vadd.f32 %v5841, %v6253
  %v6610 = vadd.f32 %v5842, %v6253
  %v6611 = vadd.f32 %v5843, %v6258
  %v6612 = vadd.f32 %v5844, %v6258
  %v6613 = vadd.f32 %v5845, %v6258
  %v6614 = vadd.f32 %v5846, %v6258
  %v6615 = vadd.f32 %v5847, %v6258
  %v6616 = vadd.f32 %v5848, %v6258
  %v6617 = vadd.f32 %v5849, %v6258
  %v6618 = vadd.f32 %v5850, %v6263
  %v6619 = vadd.f32 %v5851, %v6263
  %v6620 = vadd.f32 %v5852, %v6263
  %v6621 = vadd.f32 %v5853, %v6263
  %v6622 = vadd.f32 %v5854, %v6263
  %v6623 = vadd.f32 %v5855, %v6263
  %v6624 = vadd.f32 %v5856, %v6263
  %v6625 = vadd.f32 %v5857, %v6268
  %v6626 = vadd.f32 %v5858, %v6268
  %v6627 = vadd.f32 %v5859, %v6268
  %v6628 = vadd.f32 %v5860, %v6268
  %v6629 = vadd.f32 %v5861, %v6268
  %v6630 = vadd.f32 %v5862, %v6268
  %v6631 = vadd.f32 %v5863, %v6268
  %v6632 = vadd.f32 %v5864, %v6273
  %v6633 = vadd.f32 %v5865, %v6273
  %v6634 = vadd.f32 %v5866, %v6273
  %v6635 = vadd.f32 %v5867, %v6273
  %v6636 = vadd.f32 %v5868, %v6273
  %v6637 = vadd.f32 %v5869, %v6273
  %v6638 = vadd.f32 %v5870, %v6273
  %v6639 = vadd.f32 %v5871, %v6278
  %v6640 = vadd.f32 %v5872, %v6278
  %v6641 = vadd.f32 %v5873, %v6278
  %v6642 = vadd.f32 %v5874, %v6278
  %v6643 = vadd.f32 %v5875, %v6278
  %v6644 = vadd.f32 %v5876, %v6278
  %v6645 = vadd.f32 %v5877, %v6278
  %v6646 = vadd.f32 %v5878, %v6283
  %v6647 = vadd.f32 %v5879, %v6283
  %v6648 = vadd.f32 %v5880, %v6283
  %v6649 = vadd.f32 %v5881, %v6283
  %v6650 = vadd.f32 %v5882, %v6283
  %v6651 = vadd.f32 %v5883, %v6283
  %v6652 = vadd.f32 %v5884, %v6283
  %v6653 = vadd.f32 %v5885, %v6288
  %v6654 = vadd.f32 %v5886, %v6288
  %v6655 = vadd.f32 %v5887, %v6288
  %v6656 = vadd.f32 %v5888, %v6288
  %v6657 = vadd.f32 %v5889, %v6288
  %v6658 = vadd.f32 %v5890, %v6288
  %v6659 = vadd.f32 %v5891, %v6288
  %v6660 = vadd.f32 %v5892, %v6293
  %v6661 = vadd.f32 %v5893, %v6293
  %v6662 = vadd.f32 %v5894, %v6293
  %v6663 = vadd.f32 %v5895, %v6293
  %v6664 = vadd.f32 %v5896, %v6293
  %v6665 = vadd.f32 %v5897, %v6293
  %v6666 = vadd.f32 %v5898, %v6293
  %v6667 = vadd.f32 %v5899, %v6298
  %v6668 = vadd.f32 %v5900, %v6298
  %v6669 = vadd.f32 %v5901, %v6298
  %v6670 = vadd.f32 %v5902, %v6298
  %v6671 = vadd.f32 %v5903, %v6298
  %v6672 = vadd.f32 %v5904, %v6298
  %v6673 = vadd.f32 %v5905, %v6298
  %v6674 = vadd.f32 %v5906, %v6303
  %v6675 = vadd.f32 %v5907, %v6303
  %v6676 = vadd.f32 %v5908, %v6303
  %v6677 = vadd.f32 %v5909, %v6303
  %v6678 = vadd.f32 %v5910, %v6303
  %v6679 = vadd.f32 %v5911, %v6303
  %v6680 = vadd.f32 %v5912, %v6303
  %v6681 = vadd.f32 %v5913, %v6308
  %v6682 = vadd.f32 %v5914, %v6308
  %v6683 = vadd.f32 %v5915, %v6308
  %v6684 = vadd.f32 %v5916, %v6308
  %v6685 = vadd.f32 %v5917, %v6308
  %v6686 = vadd.f32 %v5918, %v6308
  %v6687 = vadd.f32 %v5919, %v6308
  %v6688 = vadd.f32 %v5920, %v6313
  %v6689 = vadd.f32 %v5921, %v6313
  %v6690 = vadd.f32 %v5922, %v6313
  %v6691 = vadd.f32 %v5923, %v6313
  %v6692 = vadd.f32 %v5924, %v6313
  %v6693 = vadd.f32 %v5925, %v6313
  %v6694 = vadd.f32 %v5926, %v6313
  %v6695 = vadd.f32 %v5927, %v6318
  %v6696 = vadd.f32 %v5928, %v6318
  %v6697 = vadd.f32 %v5929, %v6318
  %v6698 = vadd.f32 %v5930, %v6318
  %v6699 = vadd.f32 %v5931, %v6318
  %v6700 = vadd.f32 %v5932, %v6318
  %v6701 = vadd.f32 %v5933, %v6318
  %v6702 = vadd.f32 %v5934, %v6323
  %v6703 = vadd.f32 %v5935, %v6323
  %v6704 = vadd.f32 %v5936, %v6323
  %v6705 = vadd.f32 %v5937, %v6323
  %v6706 = vadd.f32 %v5938, %v6323
  %v6707 = vadd.f32 %v5939, %v6323
  %v6708 = vadd.f32 %v5940, %v6323
  %v6709 = vadd.f32 %v5941, %v6328
  %v6710 = vadd.f32 %v5942, %v6328
  %v6711 = vadd.f32 %v5943, %v6328
  %v6712 = vadd.f32 %v5944, %v6328
  %v6713 = vadd.f32 %v5945, %v6328
  %v6714 = vadd.f32 %v5946, %v6328
  %v6715 = vadd.f32 %v5947, %v6328
  %v6716 = vadd.f32 %v5948, %v6333
  %v6717 = vadd.f32 %v5949, %v6333
  %v6718 = vadd.f32 %v5950, %v6333
  %v6719 = vadd.f32 %v5951, %v6333
  %v6720 = vadd.f32 %v5952, %v6333
  %v6721 = vadd.f32 %v5953, %v6333
  %v6722 = vadd.f32 %v5954, %v6333
  %v6723 = vadd.f32 %v5955, %v6338
  %v6724 = vadd.f32 %v5956, %v6338
  %v6725 = vadd.f32 %v5957, %v6338
  %v6726 = vadd.f32 %v5958, %v6338
  %v6727 = vadd.f32 %v5959, %v6338
  %v6728 = vadd.f32 %v5960, %v6338
  %v6729 = vadd.f32 %v5961, %v6338
  %v6730 = vadd.f32 %v5962, %v6343
  %v6731 = vadd.f32 %v5963, %v6343
  %v6732 = vadd.f32 %v5964, %v6343
  %v6733 = vadd.f32 %v5965, %v6343
  %v6734 = vadd.f32 %v5966, %v6343
  %v6735 = vadd.f32 %v5967, %v6343
  %v6736 = vadd.f32 %v5968, %v6343
  %v6737 = vadd.f32 %v5969, %v6348
  %v6738 = vadd.f32 %v5970, %v6348
  %v6739 = vadd.f32 %v5971, %v6348
  %v6740 = vadd.f32 %v5972, %v6348
  %v6741 = vadd.f32 %v5973, %v6348
  %v6742 = vadd.f32 %v5974, %v6348
  %v6743 = vadd.f32 %v5975, %v6348
  %v6744 = vadd.f32 %v5976, %v6353
  %v6745 = vadd.f32 %v5977, %v6353
  %v6746 = vadd.f32 %v5978, %v6353
  %v6747 = vadd.f32 %v5979, %v6353
  %v6748 = vadd.f32 %v5980, %v6353
  %v6749 = vadd.f32 %v5981, %v6353
  %v6750 = vadd.f32 %v5982, %v6353
  %v6751 = vadd.f32 %v5983, %v6358
  %v6752 = vadd.f32 %v5984, %v6358
  %v6753 = vadd.f32 %v5985, %v6358
  %v6754 = vadd.f32 %v5986, %v6358
  %v6755 = vadd.f32 %v5987, %v6358
  %v6756 = vadd.f32 %v5988, %v6358
  %v6757 = vadd.f32 %v5989, %v6358
  %v6758 = vadd.f32 %v5990, %v6363
  %v6759 = vadd.f32 %v5991, %v6363
  %v6760 = vadd.f32 %v5992, %v6363
  %v6761 = vadd.f32 %v5993, %v6363
  %v6762 = vadd.f32 %v5994, %v6363
  %v6763 = vadd.f32 %v5995, %v6363
  %v6764 = vadd.f32 %v5996, %v6363
  %v6765 = vadd.f32 %v5997, %v6368
  %v6766 = vadd.f32 %v5998, %v6368
  %v6767 = vadd.f32 %v5999, %v6368
  %v6768 = vadd.f32 %v6000, %v6368
  %v6769 = vadd.f32 %v6001, %v6368
  %v6770 = vadd.f32 %v6002, %v6368
  %v6771 = vadd.f32 %v6003, %v6368
  %v6772 = vadd.f32 %v6004, %v6373
  %v6773 = vadd.f32 %v6005, %v6373
  %v6774 = vadd.f32 %v6006, %v6373
  %v6775 = vadd.f32 %v6007, %v6373
  %v6776 = vadd.f32 %v6008, %v6373
  %v6777 = vadd.f32 %v6009, %v6373
  %v6778 = vadd.f32 %v6010, %v6373
  %v6779 = vadd.f32 %v6011, %v6378
  %v6780 = vadd.f32 %v6012, %v6378
  %v6781 = vadd.f32 %v6013, %v6378
  %v6782 = vadd.f32 %v6014, %v6378
  %v6783 = vadd.f32 %v6015, %v6378
  %v6784 = vadd.f32 %v6016, %v6378
  %v6785 = vadd.f32 %v6017, %v6378
  %v6786 = vadd.f32 %v6018, %v6383
  %v6787 = vadd.f32 %v6019, %v6383
  %v6788 = vadd.f32 %v6020, %v6383
  %v6789 = vadd.f32 %v6021, %v6383
  %v6790 = vadd.f32 %v6022, %v6383
  %v6791 = vadd.f32 %v6023, %v6383
  %v6792 = vadd.f32 %v6024, %v6383
  %v6793 = vadd.f32 %v6025, %v6388
  %v6794 = vadd.f32 %v6026, %v6388
  %v6795 = vadd.f32 %v6027, %v6388
  %v6796 = vadd.f32 %v6028, %v6388
  %v6797 = vadd.f32 %v6029, %v6388
  %v6798 = vadd.f32 %v6030, %v6388
  %v6799 = vadd.f32 %v6031, %v6388
  %v6800 = vadd.f32 %v6032, %v6393
  %v6801 = vadd.f32 %v6033, %v6393
  %v6802 = vadd.f32 %v6034, %v6393
  %v6803 = vadd.f32 %v6035, %v6393
  %v6804 = vadd.f32 %v6036, %v6393
  %v6805 = vadd.f32 %v6037, %v6393
  %v6806 = vadd.f32 %v6038, %v6393
  %v6807 = vadd.f32 %v6039, %v6398
  %v6808 = vadd.f32 %v6040, %v6398
  %v6809 = vadd.f32 %v6041, %v6398
  %v6810 = vadd.f32 %v6042, %v6398
  %v6811 = vadd.f32 %v6043, %v6398
  %v6812 = vadd.f32 %v6044, %v6398
  %v6813 = vadd.f32 %v6045, %v6398
  %v6814 = vadd.f32 %v6046, %v6403
  %v6815 = vadd.f32 %v6047, %v6403
  %v6816 = vadd.f32 %v6048, %v6403
  %v6817 = vadd.f32 %v6049, %v6403
  %v6818 = vadd.f32 %v6050, %v6403
  %v6819 = vadd.f32 %v6051, %v6403
  %v6820 = vadd.f32 %v6052, %v6403
  %v6821 = vadd.f32 %v6053, %v6408
  %v6822 = vadd.f32 %v6054, %v6408
  %v6823 = vadd.f32 %v6055, %v6408
  %v6824 = vadd.f32 %v6056, %v6408
  %v6825 = vadd.f32 %v6057, %v6408
  %v6826 = vadd.f32 %v6058, %v6408
  %v6827 = vadd.f32 %v6059, %v6408
  %v6828 = vadd.f32 %v6060, %v6413
  %v6829 = vadd.f32 %v6061, %v6413
  %v6830 = vadd.f32 %v6062, %v6413
  %v6831 = vadd.f32 %v6063, %v6413
  %v6832 = vadd.f32 %v6064, %v6413
  %v6833 = vadd.f32 %v6065, %v6413
  %v6834 = vadd.f32 %v6066, %v6413
  %v6835 = vadd.f32 %v6067, %v6418
  %v6836 = vadd.f32 %v6068, %v6418
  %v6837 = vadd.f32 %v6069, %v6418
  %v6838 = vadd.f32 %v6070, %v6418
  %v6839 = vadd.f32 %v6071, %v6418
  %v6840 = vadd.f32 %v6072, %v6418
  %v6841 = vadd.f32 %v6073, %v6418
  %v6842 = vadd.f32 %v6074, %v6423
  %v6843 = vadd.f32 %v6075, %v6423
  %v6844 = vadd.f32 %v6076, %v6423
  %v6845 = vadd.f32 %v6077, %v6423
  %v6846 = vadd.f32 %v6078, %v6423
  %v6847 = vadd.f32 %v6079, %v6423
  %v6848 = vadd.f32 %v6080, %v6423
  %v6849 = vadd.f32 %v6081, %v6428
  %v6850 = vadd.f32 %v6082, %v6428
  %v6851 = vadd.f32 %v6083, %v6428
  %v6852 = vadd.f32 %v6084, %v6428
  %v6853 = vadd.f32 %v6085, %v6428
  %v6854 = vadd.f32 %v6086, %v6428
  %v6855 = vadd.f32 %v6087, %v6428
  %v6856 = vadd.f32 %v6088, %v6433
  %v6857 = vadd.f32 %v6089, %v6433
  %v6858 = vadd.f32 %v6090, %v6433
  %v6859 = vadd.f32 %v6091, %v6433
  %v6860 = vadd.f32 %v6092, %v6433
  %v6861 = vadd.f32 %v6093, %v6433
  %v6862 = vadd.f32 %v6094, %v6433
  %v6863 = vadd.f32 %v6095, %v6438
  %v6864 = vadd.f32 %v6096, %v6438
  %v6865 = vadd.f32 %v6097, %v6438
  %v6866 = vadd.f32 %v6098, %v6438
  %v6867 = vadd.f32 %v6099, %v6438
  %v6868 = vadd.f32 %v6100, %v6438
  %v6869 = vadd.f32 %v6101, %v6438
  %v6870 = vadd.f32 %v6102, %v6443
  %v6871 = vadd.f32 %v6103, %v6443
  %v6872 = vadd.f32 %v6104, %v6443
  %v6873 = vadd.f32 %v6105, %v6443
  %v6874 = vadd.f32 %v6106, %v6443
  %v6875 = vadd.f32 %v6107, %v6443
  %v6876 = vadd.f32 %v6108, %v6443
  %v6877 = vadd.f32 %v6109, %v6448
  %v6878 = vadd.f32 %v6110, %v6448
  %v6879 = vadd.f32 %v6111, %v6448
  %v6880 = vadd.f32 %v6112, %v6448
  %v6881 = vadd.f32 %v6113, %v6448
  %v6882 = vadd.f32 %v6114, %v6448
  %v6883 = vadd.f32 %v6115, %v6448
  %v6884 = vadd.f32 %v6116, %v6453
  %v6885 = vadd.f32 %v6117, %v6453
  %v6886 = vadd.f32 %v6118, %v6453
  %v6887 = vadd.f32 %v6119, %v6453
  %v6888 = vadd.f32 %v6120, %v6453
  %v6889 = vadd.f32 %v6121, %v6453
  %v6890 = vadd.f32 %v6122, %v6453
  %v6891 = vadd.f32 %v6123, %v6458
  %v6892 = vadd.f32 %v6124, %v6458
  %v6893 = vadd.f32 %v6125, %v6458
  %v6894 = vadd.f32 %v6126, %v6458
  %v6895 = vadd.f32 %v6127, %v6458
  %v6896 = vadd.f32 %v6128, %v6458
  %v6897 = vadd.f32 %v6129, %v6458
  %v6898 = vadd.f32 %v6130, %v6463
  %v6899 = vadd.f32 %v6131, %v6463
  %v6900 = vadd.f32 %v6132, %v6463
  %v6901 = vadd.f32 %v6133, %v6463
  %v6902 = vadd.f32 %v6134, %v6463
  %v6903 = vadd.f32 %v6135, %v6463
  %v6904 = vadd.f32 %v6136, %v6463
  %v6905 = vadd.f32 %v6137, %v6468
  %v6906 = vadd.f32 %v6138, %v6468
  %v6907 = vadd.f32 %v6139, %v6468
  %v6908 = vadd.f32 %v6140, %v6468
  %v6909 = vadd.f32 %v6141, %v6468
  %v6910 = vadd.f32 %v6142, %v6468
  %v6911 = vadd.f32 %v6143, %v6468
  %v6912 = vadd.f32 %v6144, %v6473
  %v6913 = vadd.f32 %v6145, %v6473
  %v6914 = vadd.f32 %v6146, %v6473
  %v6915 = vadd.f32 %v6147, %v6473
  %v6916 = vadd.f32 %v6148, %v6473
  %v6917 = vadd.f32 %v6149, %v6473
  %v6918 = vadd.f32 %v6150, %v6473
  %v6919 = vadd.f32 %v6151, %v6478
  %v6920 = vadd.f32 %v6152, %v6478
  %v6921 = vadd.f32 %v6153, %v6478
  %v6922 = vadd.f32 %v6154, %v6478
  %v6923 = vadd.f32 %v6155, %v6478
  %v6924 = vadd.f32 %v6156, %v6478
  %v6925 = vadd.f32 %v6157, %v6478
  %v6926 = vadd.f32 %v6158, %v6483
  %v6927 = vadd.f32 %v6159, %v6483
  %v6928 = vadd.f32 %v6160, %v6483
  %v6929 = vadd.f32 %v6161, %v6483
  %v6930 = vadd.f32 %v6162, %v6483
  %v6931 = vadd.f32 %v6163, %v6483
  %v6932 = vadd.f32 %v6164, %v6483
  %v6933 = vld [vmem:[#allocation2] sm:$0xff]
  %v6934 = vld [vmem:[#allocation2 + $0x8] sm:$0xff]
  %v6935 = vld [vmem:[#allocation2 + $0x10] sm:$0xff]
  %v6936 = vld [vmem:[#allocation2 + $0x18] sm:$0xff]
  %v6937 = vld [vmem:[#allocation2 + $0x20] sm:$0xff]
  %v6938 = vld [vmem:[#allocation2 + $0x28] sm:$0xff]
  %v6939 = vld [vmem:[#allocation2 + $0x30] sm:$0xff]
  %v6940 = vld [vmem:[#allocation2 + $0x38] sm:$0xff]
  %v6941 = vld [vmem:[#allocation2 + $0x40] sm:$0xff]
  %v6942 = vld [vmem:[#allocation2 + $0x48] sm:$0xff]
  %v6943 = vld [vmem:[#allocation2 + $0x50] sm:$0xff]
  %v6944 = vld [vmem:[#allocation2 + $0x58] sm:$0xff]
  %v6945 = vld [vmem:[#allocation2 + $0x60] sm:$0xff]
  %v6946 = vld [vmem:[#allocation2 + $0x68] sm:$0xff]
  %v6947 = vld [vmem:[#allocation2 + $0x70] sm:$0xff]
  %v6948 = vld [vmem:[#allocation2 + $0x78] sm:$0xff]
  %v6949 = vld [vmem:[#allocation2 + $0x80] sm:$0xff]
  %v6950 = vld [vmem:[#allocation2 + $0x88] sm:$0xff]
  %v6951 = vld [vmem:[#allocation2 + $0x90] sm:$0xff]
  %v6952 = vld [vmem:[#allocation2 + $0x98] sm:$0xff]
  %v6953 = vld [vmem:[#allocation2 + $0xa0] sm:$0xff]
  %v6954 = vld [vmem:[#allocation2 + $0xa8] sm:$0xff]
  %v6955 = vld [vmem:[#allocation2 + $0xb0] sm:$0xff]
  %v6956 = vld [vmem:[#allocation2 + $0xb8] sm:$0xff]
  %v6957 = vld [vmem:[#allocation2 + $0xc0] sm:$0xff]
  %v6958 = vld [vmem:[#allocation2 + $0xc8] sm:$0xff]
  %v6959 = vld [vmem:[#allocation2 + $0xd0] sm:$0xff]
  %v6960 = vld [vmem:[#allocation2 + $0xd8] sm:$0xff]
  %v6961 = vld [vmem:[#allocation2 + $0xe0] sm:$0xff]
  %v6962 = vld [vmem:[#allocation2 + $0xe8] sm:$0xff]
  %v6963 = vld [vmem:[#allocation2 + $0xf0] sm:$0xff]
  %v6964 = vld [vmem:[#allocation2 + $0xf8] sm:$0xff]
  %v6965 = vld [vmem:[#allocation2 + $0x100] sm:$0xff]
  %v6966 = vld [vmem:[#allocation2 + $0x108] sm:$0xff]
  %v6967 = vld [vmem:[#allocation2 + $0x110] sm:$0xff]
  %v6968 = vld [vmem:[#allocation2 + $0x118] sm:$0xff]
  %v6969 = vld [vmem:[#allocation2 + $0x120] sm:$0xff]
  %v6970 = vld [vmem:[#allocation2 + $0x128] sm:$0xff]
  %v6971 = vld [vmem:[#allocation2 + $0x130] sm:$0xff]
  %v6972 = vld [vmem:[#allocation2 + $0x138] sm:$0xff]
  %v6973 = vld [vmem:[#allocation2 + $0x140] sm:$0xff]
  %v6974 = vld [vmem:[#allocation2 + $0x148] sm:$0xff]
  %v6975 = vld [vmem:[#allocation2 + $0x150] sm:$0xff]
  %v6976 = vld [vmem:[#allocation2 + $0x158] sm:$0xff]
  %v6977 = vld [vmem:[#allocation2 + $0x160] sm:$0xff]
  %v6978 = vld [vmem:[#allocation2 + $0x168] sm:$0xff]
  %v6979 = vld [vmem:[#allocation2 + $0x170] sm:$0xff]
  %v6980 = vld [vmem:[#allocation2 + $0x178] sm:$0xff]
  %v6981 = vld [vmem:[#allocation2 + $0x180] sm:$0xff]
  %v6982 = vld [vmem:[#allocation2 + $0x188] sm:$0xff]
  %v6983 = vld [vmem:[#allocation2 + $0x190] sm:$0xff]
  %v6984 = vld [vmem:[#allocation2 + $0x198] sm:$0xff]
  %v6985 = vld [vmem:[#allocation2 + $0x1a0] sm:$0xff]
  %v6986 = vld [vmem:[#allocation2 + $0x1a8] sm:$0xff]
  %v6987 = vld [vmem:[#allocation2 + $0x1b0] sm:$0xff]
  %v6988 = vld [vmem:[#allocation2 + $0x1b8] sm:$0xff]
  %v6989 = vld [vmem:[#allocation2 + $0x1c0] sm:$0xff]
  %v6990 = vld [vmem:[#allocation2 + $0x1c8] sm:$0xff]
  %v6991 = vld [vmem:[#allocation2 + $0x1d0] sm:$0xff]
  %v6992 = vld [vmem:[#allocation2 + $0x1d8] sm:$0xff]
  %v6993 = vld [vmem:[#allocation2 + $0x1e0] sm:$0xff]
  %v6994 = vld [vmem:[#allocation2 + $0x1e8] sm:$0xff]
  %v6995 = vld [vmem:[#allocation2 + $0x1f0] sm:$0xff]
  %v6996 = vld [vmem:[#allocation2 + $0x1f8] sm:$0xff]
  %v6997 = vld [vmem:[#allocation2 + $0x200] sm:$0xff]
  %v6998 = vld [vmem:[#allocation2 + $0x208] sm:$0xff]
  %v6999 = vld [vmem:[#allocation2 + $0x210] sm:$0xff]
  %v7000 = vld [vmem:[#allocation2 + $0x218] sm:$0xff]
  %v7001 = vld [vmem:[#allocation2 + $0x220] sm:$0xff]
  %v7002 = vld [vmem:[#allocation2 + $0x228] sm:$0xff]
  %v7003 = vld [vmem:[#allocation2 + $0x230] sm:$0xff]
  %v7004 = vld [vmem:[#allocation2 + $0x238] sm:$0xff]
  %v7005 = vld [vmem:[#allocation2 + $0x240] sm:$0xff]
  %v7006 = vld [vmem:[#allocation2 + $0x248] sm:$0xff]
  %v7007 = vld [vmem:[#allocation2 + $0x250] sm:$0xff]
  %v7008 = vld [vmem:[#allocation2 + $0x258] sm:$0xff]
  %v7009 = vld [vmem:[#allocation2 + $0x260] sm:$0xff]
  %v7010 = vld [vmem:[#allocation2 + $0x268] sm:$0xff]
  %v7011 = vld [vmem:[#allocation2 + $0x270] sm:$0xff]
  %v7012 = vld [vmem:[#allocation2 + $0x278] sm:$0xff]
  %v7013 = vld [vmem:[#allocation2 + $0x280] sm:$0xff]
  %v7014 = vld [vmem:[#allocation2 + $0x288] sm:$0xff]
  %v7015 = vld [vmem:[#allocation2 + $0x290] sm:$0xff]
  %v7016 = vld [vmem:[#allocation2 + $0x298] sm:$0xff]
  %v7017 = vld [vmem:[#allocation2 + $0x2a0] sm:$0xff]
  %v7018 = vld [vmem:[#allocation2 + $0x2a8] sm:$0xff]
  %v7019 = vld [vmem:[#allocation2 + $0x2b0] sm:$0xff]
  %v7020 = vld [vmem:[#allocation2 + $0x2b8] sm:$0xff]
  %v7021 = vld [vmem:[#allocation2 + $0x2c0] sm:$0xff]
  %v7022 = vld [vmem:[#allocation2 + $0x2c8] sm:$0xff]
  %v7023 = vld [vmem:[#allocation2 + $0x2d0] sm:$0xff]
  %v7024 = vld [vmem:[#allocation2 + $0x2d8] sm:$0xff]
  %v7025 = vld [vmem:[#allocation2 + $0x2e0] sm:$0xff]
  %v7026 = vld [vmem:[#allocation2 + $0x2e8] sm:$0xff]
  %v7027 = vld [vmem:[#allocation2 + $0x2f0] sm:$0xff]
  %v7028 = vld [vmem:[#allocation2 + $0x2f8] sm:$0xff]
  %v7029 = vld [vmem:[#allocation2 + $0x300] sm:$0xff]
  %v7030 = vld [vmem:[#allocation2 + $0x308] sm:$0xff]
  %v7031 = vld [vmem:[#allocation2 + $0x310] sm:$0xff]
  %v7032 = vld [vmem:[#allocation2 + $0x318] sm:$0xff]
  %v7033 = vld [vmem:[#allocation2 + $0x320] sm:$0xff]
  %v7034 = vld [vmem:[#allocation2 + $0x328] sm:$0xff]
  %v7035 = vld [vmem:[#allocation2 + $0x330] sm:$0xff]
  %v7036 = vld [vmem:[#allocation2 + $0x338] sm:$0xff]
  %v7037 = vld [vmem:[#allocation2 + $0x340] sm:$0xff]
  %v7038 = vld [vmem:[#allocation2 + $0x348] sm:$0xff]
  %v7039 = vld [vmem:[#allocation2 + $0x350] sm:$0xff]
  %v7040 = vld [vmem:[#allocation2 + $0x358] sm:$0xff]
  %v7041 = vld [vmem:[#allocation2 + $0x360] sm:$0xff]
  %v7042 = vld [vmem:[#allocation2 + $0x368] sm:$0xff]
  %v7043 = vld [vmem:[#allocation2 + $0x370] sm:$0xff]
  %v7044 = vld [vmem:[#allocation2 + $0x378] sm:$0xff]
  %v7045 = vld [vmem:[#allocation2 + $0x380] sm:$0xff]
  %v7046 = vld [vmem:[#allocation2 + $0x388] sm:$0xff]
  %v7047 = vld [vmem:[#allocation2 + $0x390] sm:$0xff]
  %v7048 = vld [vmem:[#allocation2 + $0x398] sm:$0xff]
  %v7049 = vld [vmem:[#allocation2 + $0x3a0] sm:$0xff]
  %v7050 = vld [vmem:[#allocation2 + $0x3a8] sm:$0xff]
  %v7051 = vld [vmem:[#allocation2 + $0x3b0] sm:$0xff]
  %v7052 = vld [vmem:[#allocation2 + $0x3b8] sm:$0xff]
  %v7053 = vld [vmem:[#allocation2 + $0x3c0] sm:$0xff]
  %v7054 = vld [vmem:[#allocation2 + $0x3c8] sm:$0xff]
  %v7055 = vld [vmem:[#allocation2 + $0x3d0] sm:$0xff]
  %v7056 = vld [vmem:[#allocation2 + $0x3d8] sm:$0xff]
  %v7057 = vld [vmem:[#allocation2 + $0x3e0] sm:$0xff]
  %v7058 = vld [vmem:[#allocation2 + $0x3e8] sm:$0xff]
  %v7059 = vld [vmem:[#allocation2 + $0x3f0] sm:$0xff]
  %v7060 = vld [vmem:[#allocation2 + $0x3f8] sm:$0xff]
  %v7061 = vld [vmem:[#allocation2 + $0x400] sm:$0xff]
  %v7062 = vld [vmem:[#allocation2 + $0x408] sm:$0xff]
  %v7063 = vld [vmem:[#allocation2 + $0x410] sm:$0xff]
  %v7064 = vld [vmem:[#allocation2 + $0x418] sm:$0xff]
  %v7065 = vld [vmem:[#allocation2 + $0x420] sm:$0xff]
  %v7066 = vld [vmem:[#allocation2 + $0x428] sm:$0xff]
  %v7067 = vld [vmem:[#allocation2 + $0x430] sm:$0xff]
  %v7068 = vld [vmem:[#allocation2 + $0x438] sm:$0xff]
  %v7069 = vld [vmem:[#allocation2 + $0x440] sm:$0xff]
  %v7070 = vld [vmem:[#allocation2 + $0x448] sm:$0xff]
  %v7071 = vld [vmem:[#allocation2 + $0x450] sm:$0xff]
  %v7072 = vld [vmem:[#allocation2 + $0x458] sm:$0xff]
  %v7073 = vld [vmem:[#allocation2 + $0x460] sm:$0xff]
  %v7074 = vld [vmem:[#allocation2 + $0x468] sm:$0xff]
  %v7075 = vld [vmem:[#allocation2 + $0x470] sm:$0xff]
  %v7076 = vld [vmem:[#allocation2 + $0x478] sm:$0xff]
  %v7077 = vld [vmem:[#allocation2 + $0x480] sm:$0xff]
  %v7078 = vld [vmem:[#allocation2 + $0x488] sm:$0xff]
  %v7079 = vld [vmem:[#allocation2 + $0x490] sm:$0xff]
  %v7080 = vld [vmem:[#allocation2 + $0x498] sm:$0xff]
  %v7081 = vld [vmem:[#allocation2 + $0x4a0] sm:$0xff]
  %v7082 = vld [vmem:[#allocation2 + $0x4a8] sm:$0xff]
  %v7083 = vld [vmem:[#allocation2 + $0x4b0] sm:$0xff]
  %v7084 = vld [vmem:[#allocation2 + $0x4b8] sm:$0xff]
  %v7085 = vld [vmem:[#allocation2 + $0x4c0] sm:$0xff]
  %v7086 = vld [vmem:[#allocation2 + $0x4c8] sm:$0xff]
  %v7087 = vld [vmem:[#allocation2 + $0x4d0] sm:$0xff]
  %v7088 = vld [vmem:[#allocation2 + $0x4d8] sm:$0xff]
  %v7089 = vld [vmem:[#allocation2 + $0x4e0] sm:$0xff]
  %v7090 = vld [vmem:[#allocation2 + $0x4e8] sm:$0xff]
  %v7091 = vld [vmem:[#allocation2 + $0x4f0] sm:$0xff]
  %v7092 = vld [vmem:[#allocation2 + $0x4f8] sm:$0xff]
  %v7093 = vld [vmem:[#allocation2 + $0x500] sm:$0xff]
  %v7094 = vld [vmem:[#allocation2 + $0x508] sm:$0xff]
  %v7095 = vld [vmem:[#allocation2 + $0x510] sm:$0xff]
  %v7096 = vld [vmem:[#allocation2 + $0x518] sm:$0xff]
  %v7097 = vld [vmem:[#allocation2 + $0x520] sm:$0xff]
  %v7098 = vld [vmem:[#allocation2 + $0x528] sm:$0xff]
  %v7099 = vld [vmem:[#allocation2 + $0x530] sm:$0xff]
  %v7100 = vld [vmem:[#allocation2 + $0x538] sm:$0xff]
  %v7101 = vld [vmem:[#allocation2 + $0x540] sm:$0xff]
  %v7102 = vld [vmem:[#allocation2 + $0x548] sm:$0xff]
  %v7103 = vld [vmem:[#allocation2 + $0x550] sm:$0xff]
  %v7104 = vld [vmem:[#allocation2 + $0x558] sm:$0xff]
  %v7105 = vld [vmem:[#allocation2 + $0x560] sm:$0xff]
  %v7106 = vld [vmem:[#allocation2 + $0x568] sm:$0xff]
  %v7107 = vld [vmem:[#allocation2 + $0x570] sm:$0xff]
  %v7108 = vld [vmem:[#allocation2 + $0x578] sm:$0xff]
  %v7109 = vld [vmem:[#allocation2 + $0x580] sm:$0xff]
  %v7110 = vld [vmem:[#allocation2 + $0x588] sm:$0xff]
  %v7111 = vld [vmem:[#allocation2 + $0x590] sm:$0xff]
  %v7112 = vld [vmem:[#allocation2 + $0x598] sm:$0xff]
  %v7113 = vld [vmem:[#allocation2 + $0x5a0] sm:$0xff]
  %v7114 = vld [vmem:[#allocation2 + $0x5a8] sm:$0xff]
  %v7115 = vld [vmem:[#allocation2 + $0x5b0] sm:$0xff]
  %v7116 = vld [vmem:[#allocation2 + $0x5b8] sm:$0xff]
  %v7117 = vld [vmem:[#allocation2 + $0x5c0] sm:$0xff]
  %v7118 = vld [vmem:[#allocation2 + $0x5c8] sm:$0xff]
  %v7119 = vld [vmem:[#allocation2 + $0x5d0] sm:$0xff]
  %v7120 = vld [vmem:[#allocation2 + $0x5d8] sm:$0xff]
  %v7121 = vld [vmem:[#allocation2 + $0x5e0] sm:$0xff]
  %v7122 = vld [vmem:[#allocation2 + $0x5e8] sm:$0xff]
  %v7123 = vld [vmem:[#allocation2 + $0x5f0] sm:$0xff]
  %v7124 = vld [vmem:[#allocation2 + $0x5f8] sm:$0xff]
  %v7125 = vld [vmem:[#allocation2 + $0x600] sm:$0xff]
  %v7126 = vld [vmem:[#allocation2 + $0x608] sm:$0xff]
  %v7127 = vld [vmem:[#allocation2 + $0x610] sm:$0xff]
  %v7128 = vld [vmem:[#allocation2 + $0x618] sm:$0xff]
  %v7129 = vld [vmem:[#allocation2 + $0x620] sm:$0xff]
  %v7130 = vld [vmem:[#allocation2 + $0x628] sm:$0xff]
  %v7131 = vld [vmem:[#allocation2 + $0x630] sm:$0xff]
  %v7132 = vld [vmem:[#allocation2 + $0x638] sm:$0xff]
  %v7133 = vld [vmem:[#allocation2 + $0x640] sm:$0xff]
  %v7134 = vld [vmem:[#allocation2 + $0x648] sm:$0xff]
  %v7135 = vld [vmem:[#allocation2 + $0x650] sm:$0xff]
  %v7136 = vld [vmem:[#allocation2 + $0x658] sm:$0xff]
  %v7137 = vld [vmem:[#allocation2 + $0x660] sm:$0xff]
  %v7138 = vld [vmem:[#allocation2 + $0x668] sm:$0xff]
  %v7139 = vld [vmem:[#allocation2 + $0x670] sm:$0xff]
  %v7140 = vld [vmem:[#allocation2 + $0x678] sm:$0xff]
  %v7141 = vld [vmem:[#allocation2 + $0x680] sm:$0xff]
  %v7142 = vld [vmem:[#allocation2 + $0x688] sm:$0xff]
  %v7143 = vld [vmem:[#allocation2 + $0x690] sm:$0xff]
  %v7144 = vld [vmem:[#allocation2 + $0x698] sm:$0xff]
  %v7145 = vld [vmem:[#allocation2 + $0x6a0] sm:$0xff]
  %v7146 = vld [vmem:[#allocation2 + $0x6a8] sm:$0xff]
  %v7147 = vld [vmem:[#allocation2 + $0x6b0] sm:$0xff]
  %v7148 = vld [vmem:[#allocation2 + $0x6b8] sm:$0xff]
  %v7149 = vld [vmem:[#allocation2 + $0x6c0] sm:$0xff]
  %v7150 = vld [vmem:[#allocation2 + $0x6c8] sm:$0xff]
  %v7151 = vld [vmem:[#allocation2 + $0x6d0] sm:$0xff]
  %v7152 = vld [vmem:[#allocation2 + $0x6d8] sm:$0xff]
  %v7153 = vld [vmem:[#allocation2 + $0x6e0] sm:$0xff]
  %v7154 = vld [vmem:[#allocation2 + $0x6e8] sm:$0xff]
  %v7155 = vld [vmem:[#allocation2 + $0x6f0] sm:$0xff]
  %v7156 = vld [vmem:[#allocation2 + $0x6f8] sm:$0xff]
  %v7157 = vld [vmem:[#allocation2 + $0x700] sm:$0xff]
  %v7158 = vld [vmem:[#allocation2 + $0x708] sm:$0xff]
  %v7159 = vld [vmem:[#allocation2 + $0x710] sm:$0xff]
  %v7160 = vld [vmem:[#allocation2 + $0x718] sm:$0xff]
  %v7161 = vld [vmem:[#allocation2 + $0x720] sm:$0xff]
  %v7162 = vld [vmem:[#allocation2 + $0x728] sm:$0xff]
  %v7163 = vld [vmem:[#allocation2 + $0x730] sm:$0xff]
  %v7164 = vld [vmem:[#allocation2 + $0x738] sm:$0xff]
  %v7165 = vld [vmem:[#allocation2 + $0x740] sm:$0xff]
  %v7166 = vld [vmem:[#allocation2 + $0x748] sm:$0xff]
  %v7167 = vld [vmem:[#allocation2 + $0x750] sm:$0xff]
  %v7168 = vld [vmem:[#allocation2 + $0x758] sm:$0xff]
  %v7169 = vld [vmem:[#allocation2 + $0x760] sm:$0xff]
  %v7170 = vld [vmem:[#allocation2 + $0x768] sm:$0xff]
  %v7171 = vld [vmem:[#allocation2 + $0x770] sm:$0xff]
  %v7172 = vld [vmem:[#allocation2 + $0x778] sm:$0xff]
  %v7173 = vld [vmem:[#allocation2 + $0x780] sm:$0xff]
  %v7174 = vld [vmem:[#allocation2 + $0x788] sm:$0xff]
  %v7175 = vld [vmem:[#allocation2 + $0x790] sm:$0xff]
  %v7176 = vld [vmem:[#allocation2 + $0x798] sm:$0xff]
  %v7177 = vld [vmem:[#allocation2 + $0x7a0] sm:$0xff]
  %v7178 = vld [vmem:[#allocation2 + $0x7a8] sm:$0xff]
  %v7179 = vld [vmem:[#allocation2 + $0x7b0] sm:$0xff]
  %v7180 = vld [vmem:[#allocation2 + $0x7b8] sm:$0xff]
  %v7181 = vld [vmem:[#allocation2 + $0x7c0] sm:$0xff]
  %v7182 = vld [vmem:[#allocation2 + $0x7c8] sm:$0xff]
  %v7183 = vld [vmem:[#allocation2 + $0x7d0] sm:$0xff]
  %v7184 = vld [vmem:[#allocation2 + $0x7d8] sm:$0xff]
  %v7185 = vld [vmem:[#allocation2 + $0x7e0] sm:$0xff]
  %v7186 = vld [vmem:[#allocation2 + $0x7e8] sm:$0xff]
  %v7187 = vld [vmem:[#allocation2 + $0x7f0] sm:$0xff]
  %v7188 = vld [vmem:[#allocation2 + $0x7f8] sm:$0xff]
  %v7189 = vld [vmem:[#allocation2 + $0x800] sm:$0xff]
  %v7190 = vld [vmem:[#allocation2 + $0x808] sm:$0xff]
  %v7191 = vld [vmem:[#allocation2 + $0x810] sm:$0xff]
  %v7192 = vld [vmem:[#allocation2 + $0x818] sm:$0xff]
  %v7193 = vld [vmem:[#allocation2 + $0x820] sm:$0xff]
  %v7194 = vld [vmem:[#allocation2 + $0x828] sm:$0xff]
  %v7195 = vld [vmem:[#allocation2 + $0x830] sm:$0xff]
  %v7196 = vld [vmem:[#allocation2 + $0x838] sm:$0xff]
  %v7197 = vld [vmem:[#allocation2 + $0x840] sm:$0xff]
  %v7198 = vld [vmem:[#allocation2 + $0x848] sm:$0xff]
  %v7199 = vld [vmem:[#allocation2 + $0x850] sm:$0xff]
  %v7200 = vld [vmem:[#allocation2 + $0x858] sm:$0xff]
  %v7201 = vld [vmem:[#allocation2 + $0x860] sm:$0xff]
  %v7202 = vld [vmem:[#allocation2 + $0x868] sm:$0xff]
  %v7203 = vld [vmem:[#allocation2 + $0x870] sm:$0xff]
  %v7204 = vld [vmem:[#allocation2 + $0x878] sm:$0xff]
  %v7205 = vld [vmem:[#allocation2 + $0x880] sm:$0xff]
  %v7206 = vld [vmem:[#allocation2 + $0x888] sm:$0xff]
  %v7207 = vld [vmem:[#allocation2 + $0x890] sm:$0xff]
  %v7208 = vld [vmem:[#allocation2 + $0x898] sm:$0xff]
  %v7209 = vld [vmem:[#allocation2 + $0x8a0] sm:$0xff]
  %v7210 = vld [vmem:[#allocation2 + $0x8a8] sm:$0xff]
  %v7211 = vld [vmem:[#allocation2 + $0x8b0] sm:$0xff]
  %v7212 = vld [vmem:[#allocation2 + $0x8b8] sm:$0xff]
  %v7213 = vld [vmem:[#allocation2 + $0x8c0] sm:$0xff]
  %v7214 = vld [vmem:[#allocation2 + $0x8c8] sm:$0xff]
  %v7215 = vld [vmem:[#allocation2 + $0x8d0] sm:$0xff]
  %v7216 = vld [vmem:[#allocation2 + $0x8d8] sm:$0xff]
  %v7217 = vld [vmem:[#allocation2 + $0x8e0] sm:$0xff]
  %v7218 = vld [vmem:[#allocation2 + $0x8e8] sm:$0xff]
  %v7219 = vld [vmem:[#allocation2 + $0x8f0] sm:$0xff]
  %v7220 = vld [vmem:[#allocation2 + $0x8f8] sm:$0xff]
  %v7221 = vld [vmem:[#allocation2 + $0x900] sm:$0xff]
  %v7222 = vld [vmem:[#allocation2 + $0x908] sm:$0xff]
  %v7223 = vld [vmem:[#allocation2 + $0x910] sm:$0xff]
  %v7224 = vld [vmem:[#allocation2 + $0x918] sm:$0xff]
  %v7225 = vld [vmem:[#allocation2 + $0x920] sm:$0xff]
  %v7226 = vld [vmem:[#allocation2 + $0x928] sm:$0xff]
  %v7227 = vld [vmem:[#allocation2 + $0x930] sm:$0xff]
  %v7228 = vld [vmem:[#allocation2 + $0x938] sm:$0xff]
  %v7229 = vld [vmem:[#allocation2 + $0x940] sm:$0xff]
  %v7230 = vld [vmem:[#allocation2 + $0x948] sm:$0xff]
  %v7231 = vld [vmem:[#allocation2 + $0x950] sm:$0xff]
  %v7232 = vld [vmem:[#allocation2 + $0x958] sm:$0xff]
  %v7233 = vld [vmem:[#allocation2 + $0x960] sm:$0xff]
  %v7234 = vld [vmem:[#allocation2 + $0x968] sm:$0xff]
  %v7235 = vld [vmem:[#allocation2 + $0x970] sm:$0xff]
  %v7236 = vld [vmem:[#allocation2 + $0x978] sm:$0xff]
  %v7237 = vld [vmem:[#allocation2 + $0x980] sm:$0xff]
  %v7238 = vld [vmem:[#allocation2 + $0x988] sm:$0xff]
  %v7239 = vld [vmem:[#allocation2 + $0x990] sm:$0xff]
  %v7240 = vld [vmem:[#allocation2 + $0x998] sm:$0xff]
  %v7241 = vld [vmem:[#allocation2 + $0x9a0] sm:$0xff]
  %v7242 = vld [vmem:[#allocation2 + $0x9a8] sm:$0xff]
  %v7243 = vld [vmem:[#allocation2 + $0x9b0] sm:$0xff]
  %v7244 = vld [vmem:[#allocation2 + $0x9b8] sm:$0xff]
  %v7245 = vld [vmem:[#allocation2 + $0x9c0] sm:$0xff]
  %v7246 = vld [vmem:[#allocation2 + $0x9c8] sm:$0xff]
  %v7247 = vld [vmem:[#allocation2 + $0x9d0] sm:$0xff]
  %v7248 = vld [vmem:[#allocation2 + $0x9d8] sm:$0xff]
  %v7249 = vld [vmem:[#allocation2 + $0x9e0] sm:$0xff]
  %v7250 = vld [vmem:[#allocation2 + $0x9e8] sm:$0xff]
  %v7251 = vld [vmem:[#allocation2 + $0x9f0] sm:$0xff]
  %v7252 = vld [vmem:[#allocation2 + $0x9f8] sm:$0xff]
  %v7253 = vld [vmem:[#allocation2 + $0xa00] sm:$0xff]
  %v7254 = vld [vmem:[#allocation2 + $0xa08] sm:$0xff]
  %v7255 = vld [vmem:[#allocation2 + $0xa10] sm:$0xff]
  %v7256 = vld [vmem:[#allocation2 + $0xa18] sm:$0xff]
  %v7257 = vld [vmem:[#allocation2 + $0xa20] sm:$0xff]
  %v7258 = vld [vmem:[#allocation2 + $0xa28] sm:$0xff]
  %v7259 = vld [vmem:[#allocation2 + $0xa30] sm:$0xff]
  %v7260 = vld [vmem:[#allocation2 + $0xa38] sm:$0xff]
  %v7261 = vld [vmem:[#allocation2 + $0xa40] sm:$0xff]
  %v7262 = vld [vmem:[#allocation2 + $0xa48] sm:$0xff]
  %v7263 = vld [vmem:[#allocation2 + $0xa50] sm:$0xff]
  %v7264 = vld [vmem:[#allocation2 + $0xa58] sm:$0xff]
  %v7265 = vld [vmem:[#allocation2 + $0xa60] sm:$0xff]
  %v7266 = vld [vmem:[#allocation2 + $0xa68] sm:$0xff]
  %v7267 = vld [vmem:[#allocation2 + $0xa70] sm:$0xff]
  %v7268 = vld [vmem:[#allocation2 + $0xa78] sm:$0xff]
  %v7269 = vld [vmem:[#allocation2 + $0xa80] sm:$0xff]
  %v7270 = vld [vmem:[#allocation2 + $0xa88] sm:$0xff]
  %v7271 = vld [vmem:[#allocation2 + $0xa90] sm:$0xff]
  %v7272 = vld [vmem:[#allocation2 + $0xa98] sm:$0xff]
  %v7273 = vld [vmem:[#allocation2 + $0xaa0] sm:$0xff]
  %v7274 = vld [vmem:[#allocation2 + $0xaa8] sm:$0xff]
  %v7275 = vld [vmem:[#allocation2 + $0xab0] sm:$0xff]
  %v7276 = vld [vmem:[#allocation2 + $0xab8] sm:$0xff]
  %v7277 = vld [vmem:[#allocation2 + $0xac0] sm:$0xff]
  %v7278 = vld [vmem:[#allocation2 + $0xac8] sm:$0xff]
  %v7279 = vld [vmem:[#allocation2 + $0xad0] sm:$0xff]
  %v7280 = vld [vmem:[#allocation2 + $0xad8] sm:$0xff]
  %v7281 = vld [vmem:[#allocation2 + $0xae0] sm:$0xff]
  %v7282 = vld [vmem:[#allocation2 + $0xae8] sm:$0xff]
  %v7283 = vld [vmem:[#allocation2 + $0xaf0] sm:$0xff]
  %v7284 = vld [vmem:[#allocation2 + $0xaf8] sm:$0xff]
  %v7285 = vld [vmem:[#allocation2 + $0xb00] sm:$0xff]
  %v7286 = vld [vmem:[#allocation2 + $0xb08] sm:$0xff]
  %v7287 = vld [vmem:[#allocation2 + $0xb10] sm:$0xff]
  %v7288 = vld [vmem:[#allocation2 + $0xb18] sm:$0xff]
  %v7289 = vld [vmem:[#allocation2 + $0xb20] sm:$0xff]
  %v7290 = vld [vmem:[#allocation2 + $0xb28] sm:$0xff]
  %v7291 = vld [vmem:[#allocation2 + $0xb30] sm:$0xff]
  %v7292 = vld [vmem:[#allocation2 + $0xb38] sm:$0xff]
  %v7293 = vld [vmem:[#allocation2 + $0xb40] sm:$0xff]
  %v7294 = vld [vmem:[#allocation2 + $0xb48] sm:$0xff]
  %v7295 = vld [vmem:[#allocation2 + $0xb50] sm:$0xff]
  %v7296 = vld [vmem:[#allocation2 + $0xb58] sm:$0xff]
  %v7297 = vld [vmem:[#allocation2 + $0xb60] sm:$0xff]
  %v7298 = vld [vmem:[#allocation2 + $0xb68] sm:$0xff]
  %v7299 = vld [vmem:[#allocation2 + $0xb70] sm:$0xff]
  %v7300 = vld [vmem:[#allocation2 + $0xb78] sm:$0xff]
  %v7301 = vld [vmem:[#allocation2 + $0xb80] sm:$0xff]
  %v7302 = vld [vmem:[#allocation2 + $0xb88] sm:$0xff]
  %v7303 = vld [vmem:[#allocation2 + $0xb90] sm:$0xff]
  %v7304 = vld [vmem:[#allocation2 + $0xb98] sm:$0xff]
  %v7305 = vld [vmem:[#allocation2 + $0xba0] sm:$0xff]
  %v7306 = vld [vmem:[#allocation2 + $0xba8] sm:$0xff]
  %v7307 = vld [vmem:[#allocation2 + $0xbb0] sm:$0xff]
  %v7308 = vld [vmem:[#allocation2 + $0xbb8] sm:$0xff]
  %v7309 = vld [vmem:[#allocation2 + $0xbc0] sm:$0xff]
  %v7310 = vld [vmem:[#allocation2 + $0xbc8] sm:$0xff]
  %v7311 = vld [vmem:[#allocation2 + $0xbd0] sm:$0xff]
  %v7312 = vld [vmem:[#allocation2 + $0xbd8] sm:$0xff]
  %v7313 = vld [vmem:[#allocation2 + $0xbe0] sm:$0xff]
  %v7314 = vld [vmem:[#allocation2 + $0xbe8] sm:$0xff]
  %v7315 = vld [vmem:[#allocation2 + $0xbf0] sm:$0xff]
  %v7316 = vld [vmem:[#allocation2 + $0xbf8] sm:$0xff]
  %v7317 = vld [vmem:[#allocation2 + $0xc00] sm:$0xff]
  %v7318 = vld [vmem:[#allocation2 + $0xc08] sm:$0xff]
  %v7319 = vld [vmem:[#allocation2 + $0xc10] sm:$0xff]
  %v7320 = vld [vmem:[#allocation2 + $0xc18] sm:$0xff]
  %v7321 = vld [vmem:[#allocation2 + $0xc20] sm:$0xff]
  %v7322 = vld [vmem:[#allocation2 + $0xc28] sm:$0xff]
  %v7323 = vld [vmem:[#allocation2 + $0xc30] sm:$0xff]
  %v7324 = vld [vmem:[#allocation2 + $0xc38] sm:$0xff]
  %v7325 = vld [vmem:[#allocation2 + $0xc40] sm:$0xff]
  %v7326 = vld [vmem:[#allocation2 + $0xc48] sm:$0xff]
  %v7327 = vld [vmem:[#allocation2 + $0xc50] sm:$0xff]
  %v7328 = vld [vmem:[#allocation2 + $0xc58] sm:$0xff]
  %v7329 = vld [vmem:[#allocation2 + $0xc60] sm:$0xff]
  %v7330 = vld [vmem:[#allocation2 + $0xc68] sm:$0xff]
  %v7331 = vld [vmem:[#allocation2 + $0xc70] sm:$0xff]
  %v7332 = vld [vmem:[#allocation2 + $0xc78] sm:$0xff]
  %v7333 = vld [vmem:[#allocation2 + $0xc80] sm:$0xff]
  %v7334 = vld [vmem:[#allocation2 + $0xc88] sm:$0xff]
  %v7335 = vld [vmem:[#allocation2 + $0xc90] sm:$0xff]
  %v7336 = vld [vmem:[#allocation2 + $0xc98] sm:$0xff]
  %v7337 = vld [vmem:[#allocation2 + $0xca0] sm:$0xff]
  %v7338 = vld [vmem:[#allocation2 + $0xca8] sm:$0xff]
  %v7339 = vld [vmem:[#allocation2 + $0xcb0] sm:$0xff]
  %v7340 = vld [vmem:[#allocation2 + $0xcb8] sm:$0xff]
  %v7341 = vld [vmem:[#allocation2 + $0xcc0] sm:$0xff]
  %v7342 = vld [vmem:[#allocation2 + $0xcc8] sm:$0xff]
  %v7343 = vld [vmem:[#allocation2 + $0xcd0] sm:$0xff]
  %v7344 = vld [vmem:[#allocation2 + $0xcd8] sm:$0xff]
  %v7345 = vld [vmem:[#allocation2 + $0xce0] sm:$0xff]
  %v7346 = vld [vmem:[#allocation2 + $0xce8] sm:$0xff]
  %v7347 = vld [vmem:[#allocation2 + $0xcf0] sm:$0xff]
  %v7348 = vld [vmem:[#allocation2 + $0xcf8] sm:$0xff]
  %v7349 = vld [vmem:[#allocation2 + $0xd00] sm:$0xff]
  %v7350 = vld [vmem:[#allocation2 + $0xd08] sm:$0xff]
  %v7351 = vld [vmem:[#allocation2 + $0xd10] sm:$0xff]
  %v7352 = vld [vmem:[#allocation2 + $0xd18] sm:$0xff]
  %v7353 = vld [vmem:[#allocation2 + $0xd20] sm:$0xff]
  %v7354 = vld [vmem:[#allocation2 + $0xd28] sm:$0xff]
  %v7355 = vld [vmem:[#allocation2 + $0xd30] sm:$0xff]
  %v7356 = vld [vmem:[#allocation2 + $0xd38] sm:$0xff]
  %v7357 = vld [vmem:[#allocation2 + $0xd40] sm:$0xff]
  %v7358 = vld [vmem:[#allocation2 + $0xd48] sm:$0xff]
  %v7359 = vld [vmem:[#allocation2 + $0xd50] sm:$0xff]
  %v7360 = vld [vmem:[#allocation2 + $0xd58] sm:$0xff]
  %v7361 = vld [vmem:[#allocation2 + $0xd60] sm:$0xff]
  %v7362 = vld [vmem:[#allocation2 + $0xd68] sm:$0xff]
  %v7363 = vld [vmem:[#allocation2 + $0xd70] sm:$0xff]
  %v7364 = vld [vmem:[#allocation2 + $0xd78] sm:$0xff]
  %v7365 = vld [vmem:[#allocation2 + $0xd80] sm:$0xff]
  %v7366 = vld [vmem:[#allocation2 + $0xd88] sm:$0xff]
  %v7367 = vld [vmem:[#allocation2 + $0xd90] sm:$0xff]
  %v7368 = vld [vmem:[#allocation2 + $0xd98] sm:$0xff]
  %v7369 = vld [vmem:[#allocation2 + $0xda0] sm:$0xff]
  %v7370 = vld [vmem:[#allocation2 + $0xda8] sm:$0xff]
  %v7371 = vld [vmem:[#allocation2 + $0xdb0] sm:$0xff]
  %v7372 = vld [vmem:[#allocation2 + $0xdb8] sm:$0xff]
  %v7373 = vld [vmem:[#allocation2 + $0xdc0] sm:$0xff]
  %v7374 = vld [vmem:[#allocation2 + $0xdc8] sm:$0xff]
  %v7375 = vld [vmem:[#allocation2 + $0xdd0] sm:$0xff]
  %v7376 = vld [vmem:[#allocation2 + $0xdd8] sm:$0xff]
  %v7377 = vld [vmem:[#allocation2 + $0xde0] sm:$0xff]
  %v7378 = vld [vmem:[#allocation2 + $0xde8] sm:$0xff]
  %v7379 = vld [vmem:[#allocation2 + $0xdf0] sm:$0xff]
  %v7380 = vld [vmem:[#allocation2 + $0xdf8] sm:$0xff]
  %v7381 = vadd.f32 %v6485, %v6933
  %v7382 = vadd.f32 %v6486, %v6934
  %v7383 = vadd.f32 %v6487, %v6935
  %v7384 = vadd.f32 %v6488, %v6936
  %v7385 = vadd.f32 %v6489, %v6937
  %v7386 = vadd.f32 %v6490, %v6938
  %v7387 = vadd.f32 %v6491, %v6939
  %v7388 = vadd.f32 %v6492, %v6940
  %v7389 = vadd.f32 %v6493, %v6941
  %v7390 = vadd.f32 %v6494, %v6942
  %v7391 = vadd.f32 %v6495, %v6943
  %v7392 = vadd.f32 %v6496, %v6944
  %v7393 = vadd.f32 %v6497, %v6945
  %v7394 = vadd.f32 %v6498, %v6946
  %v7395 = vadd.f32 %v6499, %v6947
  %v7396 = vadd.f32 %v6500, %v6948
  %v7397 = vadd.f32 %v6501, %v6949
  %v7398 = vadd.f32 %v6502, %v6950
  %v7399 = vadd.f32 %v6503, %v6951
  %v7400 = vadd.f32 %v6504, %v6952
  %v7401 = vadd.f32 %v6505, %v6953
  %v7402 = vadd.f32 %v6506, %v6954
  %v7403 = vadd.f32 %v6507, %v6955
  %v7404 = vadd.f32 %v6508, %v6956
  %v7405 = vadd.f32 %v6509, %v6957
  %v7406 = vadd.f32 %v6510, %v6958
  %v7407 = vadd.f32 %v6511, %v6959
  %v7408 = vadd.f32 %v6512, %v6960
  %v7409 = vadd.f32 %v6513, %v6961
  %v7410 = vadd.f32 %v6514, %v6962
  %v7411 = vadd.f32 %v6515, %v6963
  %v7412 = vadd.f32 %v6516, %v6964
  %v7413 = vadd.f32 %v6517, %v6965
  %v7414 = vadd.f32 %v6518, %v6966
  %v7415 = vadd.f32 %v6519, %v6967
  %v7416 = vadd.f32 %v6520, %v6968
  %v7417 = vadd.f32 %v6521, %v6969
  %v7418 = vadd.f32 %v6522, %v6970
  %v7419 = vadd.f32 %v6523, %v6971
  %v7420 = vadd.f32 %v6524, %v6972
  %v7421 = vadd.f32 %v6525, %v6973
  %v7422 = vadd.f32 %v6526, %v6974
  %v7423 = vadd.f32 %v6527, %v6975
  %v7424 = vadd.f32 %v6528, %v6976
  %v7425 = vadd.f32 %v6529, %v6977
  %v7426 = vadd.f32 %v6530, %v6978
  %v7427 = vadd.f32 %v6531, %v6979
  %v7428 = vadd.f32 %v6532, %v6980
  %v7429 = vadd.f32 %v6533, %v6981
  %v7430 = vadd.f32 %v6534, %v6982
  %v7431 = vadd.f32 %v6535, %v6983
  %v7432 = vadd.f32 %v6536, %v6984
  %v7433 = vadd.f32 %v6537, %v6985
  %v7434 = vadd.f32 %v6538, %v6986
  %v7435 = vadd.f32 %v6539, %v6987
  %v7436 = vadd.f32 %v6540, %v6988
  %v7437 = vadd.f32 %v6541, %v6989
  %v7438 = vadd.f32 %v6542, %v6990
  %v7439 = vadd.f32 %v6543, %v6991
  %v7440 = vadd.f32 %v6544, %v6992
  %v7441 = vadd.f32 %v6545, %v6993
  %v7442 = vadd.f32 %v6546, %v6994
  %v7443 = vadd.f32 %v6547, %v6995
  %v7444 = vadd.f32 %v6548, %v6996
  %v7445 = vadd.f32 %v6549, %v6997
  %v7446 = vadd.f32 %v6550, %v6998
  %v7447 = vadd.f32 %v6551, %v6999
  %v7448 = vadd.f32 %v6552, %v7000
  %v7449 = vadd.f32 %v6553, %v7001
  %v7450 = vadd.f32 %v6554, %v7002
  %v7451 = vadd.f32 %v6555, %v7003
  %v7452 = vadd.f32 %v6556, %v7004
  %v7453 = vadd.f32 %v6557, %v7005
  %v7454 = vadd.f32 %v6558, %v7006
  %v7455 = vadd.f32 %v6559, %v7007
  %v7456 = vadd.f32 %v6560, %v7008
  %v7457 = vadd.f32 %v6561, %v7009
  %v7458 = vadd.f32 %v6562, %v7010
  %v7459 = vadd.f32 %v6563, %v7011
  %v7460 = vadd.f32 %v6564, %v7012
  %v7461 = vadd.f32 %v6565, %v7013
  %v7462 = vadd.f32 %v6566, %v7014
  %v7463 = vadd.f32 %v6567, %v7015
  %v7464 = vadd.f32 %v6568, %v7016
  %v7465 = vadd.f32 %v6569, %v7017
  %v7466 = vadd.f32 %v6570, %v7018
  %v7467 = vadd.f32 %v6571, %v7019
  %v7468 = vadd.f32 %v6572, %v7020
  %v7469 = vadd.f32 %v6573, %v7021
  %v7470 = vadd.f32 %v6574, %v7022
  %v7471 = vadd.f32 %v6575, %v7023
  %v7472 = vadd.f32 %v6576, %v7024
  %v7473 = vadd.f32 %v6577, %v7025
  %v7474 = vadd.f32 %v6578, %v7026
  %v7475 = vadd.f32 %v6579, %v7027
  %v7476 = vadd.f32 %v6580, %v7028
  %v7477 = vadd.f32 %v6581, %v7029
  %v7478 = vadd.f32 %v6582, %v7030
  %v7479 = vadd.f32 %v6583, %v7031
  %v7480 = vadd.f32 %v6584, %v7032
  %v7481 = vadd.f32 %v6585, %v7033
  %v7482 = vadd.f32 %v6586, %v7034
  %v7483 = vadd.f32 %v6587, %v7035
  %v7484 = vadd.f32 %v6588, %v7036
  %v7485 = vadd.f32 %v6589, %v7037
  %v7486 = vadd.f32 %v6590, %v7038
  %v7487 = vadd.f32 %v6591, %v7039
  %v7488 = vadd.f32 %v6592, %v7040
  %v7489 = vadd.f32 %v6593, %v7041
  %v7490 = vadd.f32 %v6594, %v7042
  %v7491 = vadd.f32 %v6595, %v7043
  %v7492 = vadd.f32 %v6596, %v7044
  %v7493 = vadd.f32 %v6597, %v7045
  %v7494 = vadd.f32 %v6598, %v7046
  %v7495 = vadd.f32 %v6599, %v7047
  %v7496 = vadd.f32 %v6600, %v7048
  %v7497 = vadd.f32 %v6601, %v7049
  %v7498 = vadd.f32 %v6602, %v7050
  %v7499 = vadd.f32 %v6603, %v7051
  %v7500 = vadd.f32 %v6604, %v7052
  %v7501 = vadd.f32 %v6605, %v7053
  %v7502 = vadd.f32 %v6606, %v7054
  %v7503 = vadd.f32 %v6607, %v7055
  %v7504 = vadd.f32 %v6608, %v7056
  %v7505 = vadd.f32 %v6609, %v7057
  %v7506 = vadd.f32 %v6610, %v7058
  %v7507 = vadd.f32 %v6611, %v7059
  %v7508 = vadd.f32 %v6612, %v7060
  %v7509 = vadd.f32 %v6613, %v7061
  %v7510 = vadd.f32 %v6614, %v7062
  %v7511 = vadd.f32 %v6615, %v7063
  %v7512 = vadd.f32 %v6616, %v7064
  %v7513 = vadd.f32 %v6617, %v7065
  %v7514 = vadd.f32 %v6618, %v7066
  %v7515 = vadd.f32 %v6619, %v7067
  %v7516 = vadd.f32 %v6620, %v7068
  %v7517 = vadd.f32 %v6621, %v7069
  %v7518 = vadd.f32 %v6622, %v7070
  %v7519 = vadd.f32 %v6623, %v7071
  %v7520 = vadd.f32 %v6624, %v7072
  %v7521 = vadd.f32 %v6625, %v7073
  %v7522 = vadd.f32 %v6626, %v7074
  %v7523 = vadd.f32 %v6627, %v7075
  %v7524 = vadd.f32 %v6628, %v7076
  %v7525 = vadd.f32 %v6629, %v7077
  %v7526 = vadd.f32 %v6630, %v7078
  %v7527 = vadd.f32 %v6631, %v7079
  %v7528 = vadd.f32 %v6632, %v7080
  %v7529 = vadd.f32 %v6633, %v7081
  %v7530 = vadd.f32 %v6634, %v7082
  %v7531 = vadd.f32 %v6635, %v7083
  %v7532 = vadd.f32 %v6636, %v7084
  %v7533 = vadd.f32 %v6637, %v7085
  %v7534 = vadd.f32 %v6638, %v7086
  %v7535 = vadd.f32 %v6639, %v7087
  %v7536 = vadd.f32 %v6640, %v7088
  %v7537 = vadd.f32 %v6641, %v7089
  %v7538 = vadd.f32 %v6642, %v7090
  %v7539 = vadd.f32 %v6643, %v7091
  %v7540 = vadd.f32 %v6644, %v7092
  %v7541 = vadd.f32 %v6645, %v7093
  %v7542 = vadd.f32 %v6646, %v7094
  %v7543 = vadd.f32 %v6647, %v7095
  %v7544 = vadd.f32 %v6648, %v7096
  %v7545 = vadd.f32 %v6649, %v7097
  %v7546 = vadd.f32 %v6650, %v7098
  %v7547 = vadd.f32 %v6651, %v7099
  %v7548 = vadd.f32 %v6652, %v7100
  %v7549 = vadd.f32 %v6653, %v7101
  %v7550 = vadd.f32 %v6654, %v7102
  %v7551 = vadd.f32 %v6655, %v7103
  %v7552 = vadd.f32 %v6656, %v7104
  %v7553 = vadd.f32 %v6657, %v7105
  %v7554 = vadd.f32 %v6658, %v7106
  %v7555 = vadd.f32 %v6659, %v7107
  %v7556 = vadd.f32 %v6660, %v7108
  %v7557 = vadd.f32 %v6661, %v7109
  %v7558 = vadd.f32 %v6662, %v7110
  %v7559 = vadd.f32 %v6663, %v7111
  %v7560 = vadd.f32 %v6664, %v7112
  %v7561 = vadd.f32 %v6665, %v7113
  %v7562 = vadd.f32 %v6666, %v7114
  %v7563 = vadd.f32 %v6667, %v7115
  %v7564 = vadd.f32 %v6668, %v7116
  %v7565 = vadd.f32 %v6669, %v7117
  %v7566 = vadd.f32 %v6670, %v7118
  %v7567 = vadd.f32 %v6671, %v7119
  %v7568 = vadd.f32 %v6672, %v7120
  %v7569 = vadd.f32 %v6673, %v7121
  %v7570 = vadd.f32 %v6674, %v7122
  %v7571 = vadd.f32 %v6675, %v7123
  %v7572 = vadd.f32 %v6676, %v7124
  %v7573 = vadd.f32 %v6677, %v7125
  %v7574 = vadd.f32 %v6678, %v7126
  %v7575 = vadd.f32 %v6679, %v7127
  %v7576 = vadd.f32 %v6680, %v7128
  %v7577 = vadd.f32 %v6681, %v7129
  %v7578 = vadd.f32 %v6682, %v7130
  %v7579 = vadd.f32 %v6683, %v7131
  %v7580 = vadd.f32 %v6684, %v7132
  %v7581 = vadd.f32 %v6685, %v7133
  %v7582 = vadd.f32 %v6686, %v7134
  %v7583 = vadd.f32 %v6687, %v7135
  %v7584 = vadd.f32 %v6688, %v7136
  %v7585 = vadd.f32 %v6689, %v7137
  %v7586 = vadd.f32 %v6690, %v7138
  %v7587 = vadd.f32 %v6691, %v7139
  %v7588 = vadd.f32 %v6692, %v7140
  %v7589 = vadd.f32 %v6693, %v7141
  %v7590 = vadd.f32 %v6694, %v7142
  %v7591 = vadd.f32 %v6695, %v7143
  %v7592 = vadd.f32 %v6696, %v7144
  %v7593 = vadd.f32 %v6697, %v7145
  %v7594 = vadd.f32 %v6698, %v7146
  %v7595 = vadd.f32 %v6699, %v7147
  %v7596 = vadd.f32 %v6700, %v7148
  %v7597 = vadd.f32 %v6701, %v7149
  %v7598 = vadd.f32 %v6702, %v7150
  %v7599 = vadd.f32 %v6703, %v7151
  %v7600 = vadd.f32 %v6704, %v7152
  %v7601 = vadd.f32 %v6705, %v7153
  %v7602 = vadd.f32 %v6706, %v7154
  %v7603 = vadd.f32 %v6707, %v7155
  %v7604 = vadd.f32 %v6708, %v7156
  %v7605 = vadd.f32 %v6709, %v7157
  %v7606 = vadd.f32 %v6710, %v7158
  %v7607 = vadd.f32 %v6711, %v7159
  %v7608 = vadd.f32 %v6712, %v7160
  %v7609 = vadd.f32 %v6713, %v7161
  %v7610 = vadd.f32 %v6714, %v7162
  %v7611 = vadd.f32 %v6715, %v7163
  %v7612 = vadd.f32 %v6716, %v7164
  %v7613 = vadd.f32 %v6717, %v7165
  %v7614 = vadd.f32 %v6718, %v7166
  %v7615 = vadd.f32 %v6719, %v7167
  %v7616 = vadd.f32 %v6720, %v7168
  %v7617 = vadd.f32 %v6721, %v7169
  %v7618 = vadd.f32 %v6722, %v7170
  %v7619 = vadd.f32 %v6723, %v7171
  %v7620 = vadd.f32 %v6724, %v7172
  %v7621 = vadd.f32 %v6725, %v7173
  %v7622 = vadd.f32 %v6726, %v7174
  %v7623 = vadd.f32 %v6727, %v7175
  %v7624 = vadd.f32 %v6728, %v7176
  %v7625 = vadd.f32 %v6729, %v7177
  %v7626 = vadd.f32 %v6730, %v7178
  %v7627 = vadd.f32 %v6731, %v7179
  %v7628 = vadd.f32 %v6732, %v7180
  %v7629 = vadd.f32 %v6733, %v7181
  %v7630 = vadd.f32 %v6734, %v7182
  %v7631 = vadd.f32 %v6735, %v7183
  %v7632 = vadd.f32 %v6736, %v7184
  %v7633 = vadd.f32 %v6737, %v7185
  %v7634 = vadd.f32 %v6738, %v7186
  %v7635 = vadd.f32 %v6739, %v7187
  %v7636 = vadd.f32 %v6740, %v7188
  %v7637 = vadd.f32 %v6741, %v7189
  %v7638 = vadd.f32 %v6742, %v7190
  %v7639 = vadd.f32 %v6743, %v7191
  %v7640 = vadd.f32 %v6744, %v7192
  %v7641 = vadd.f32 %v6745, %v7193
  %v7642 = vadd.f32 %v6746, %v7194
  %v7643 = vadd.f32 %v6747, %v7195
  %v7644 = vadd.f32 %v6748, %v7196
  %v7645 = vadd.f32 %v6749, %v7197
  %v7646 = vadd.f32 %v6750, %v7198
  %v7647 = vadd.f32 %v6751, %v7199
  %v7648 = vadd.f32 %v6752, %v7200
  %v7649 = vadd.f32 %v6753, %v7201
  %v7650 = vadd.f32 %v6754, %v7202
  %v7651 = vadd.f32 %v6755, %v7203
  %v7652 = vadd.f32 %v6756, %v7204
  %v7653 = vadd.f32 %v6757, %v7205
  %v7654 = vadd.f32 %v6758, %v7206
  %v7655 = vadd.f32 %v6759, %v7207
  %v7656 = vadd.f32 %v6760, %v7208
  %v7657 = vadd.f32 %v6761, %v7209
  %v7658 = vadd.f32 %v6762, %v7210
  %v7659 = vadd.f32 %v6763, %v7211
  %v7660 = vadd.f32 %v6764, %v7212
  %v7661 = vadd.f32 %v6765, %v7213
  %v7662 = vadd.f32 %v6766, %v7214
  %v7663 = vadd.f32 %v6767, %v7215
  %v7664 = vadd.f32 %v6768, %v7216
  %v7665 = vadd.f32 %v6769, %v7217
  %v7666 = vadd.f32 %v6770, %v7218
  %v7667 = vadd.f32 %v6771, %v7219
  %v7668 = vadd.f32 %v6772, %v7220
  %v7669 = vadd.f32 %v6773, %v7221
  %v7670 = vadd.f32 %v6774, %v7222
  %v7671 = vadd.f32 %v6775, %v7223
  %v7672 = vadd.f32 %v6776, %v7224
  %v7673 = vadd.f32 %v6777, %v7225
  %v7674 = vadd.f32 %v6778, %v7226
  %v7675 = vadd.f32 %v6779, %v7227
  %v7676 = vadd.f32 %v6780, %v7228
  %v7677 = vadd.f32 %v6781, %v7229
  %v7678 = vadd.f32 %v6782, %v7230
  %v7679 = vadd.f32 %v6783, %v7231
  %v7680 = vadd.f32 %v6784, %v7232
  %v7681 = vadd.f32 %v6785, %v7233
  %v7682 = vadd.f32 %v6786, %v7234
  %v7683 = vadd.f32 %v6787, %v7235
  %v7684 = vadd.f32 %v6788, %v7236
  %v7685 = vadd.f32 %v6789, %v7237
  %v7686 = vadd.f32 %v6790, %v7238
  %v7687 = vadd.f32 %v6791, %v7239
  %v7688 = vadd.f32 %v6792, %v7240
  %v7689 = vadd.f32 %v6793, %v7241
  %v7690 = vadd.f32 %v6794, %v7242
  %v7691 = vadd.f32 %v6795, %v7243
  %v7692 = vadd.f32 %v6796, %v7244
  %v7693 = vadd.f32 %v6797, %v7245
  %v7694 = vadd.f32 %v6798, %v7246
  %v7695 = vadd.f32 %v6799, %v7247
  %v7696 = vadd.f32 %v6800, %v7248
  %v7697 = vadd.f32 %v6801, %v7249
  %v7698 = vadd.f32 %v6802, %v7250
  %v7699 = vadd.f32 %v6803, %v7251
  %v7700 = vadd.f32 %v6804, %v7252
  %v7701 = vadd.f32 %v6805, %v7253
  %v7702 = vadd.f32 %v6806, %v7254
  %v7703 = vadd.f32 %v6807, %v7255
  %v7704 = vadd.f32 %v6808, %v7256
  %v7705 = vadd.f32 %v6809, %v7257
  %v7706 = vadd.f32 %v6810, %v7258
  %v7707 = vadd.f32 %v6811, %v7259
  %v7708 = vadd.f32 %v6812, %v7260
  %v7709 = vadd.f32 %v6813, %v7261
  %v7710 = vadd.f32 %v6814, %v7262
  %v7711 = vadd.f32 %v6815, %v7263
  %v7712 = vadd.f32 %v6816, %v7264
  %v7713 = vadd.f32 %v6817, %v7265
  %v7714 = vadd.f32 %v6818, %v7266
  %v7715 = vadd.f32 %v6819, %v7267
  %v7716 = vadd.f32 %v6820, %v7268
  %v7717 = vadd.f32 %v6821, %v7269
  %v7718 = vadd.f32 %v6822, %v7270
  %v7719 = vadd.f32 %v6823, %v7271
  %v7720 = vadd.f32 %v6824, %v7272
  %v7721 = vadd.f32 %v6825, %v7273
  %v7722 = vadd.f32 %v6826, %v7274
  %v7723 = vadd.f32 %v6827, %v7275
  %v7724 = vadd.f32 %v6828, %v7276
  %v7725 = vadd.f32 %v6829, %v7277
  %v7726 = vadd.f32 %v6830, %v7278
  %v7727 = vadd.f32 %v6831, %v7279
  %v7728 = vadd.f32 %v6832, %v7280
  %v7729 = vadd.f32 %v6833, %v7281
  %v7730 = vadd.f32 %v6834, %v7282
  %v7731 = vadd.f32 %v6835, %v7283
  %v7732 = vadd.f32 %v6836, %v7284
  %v7733 = vadd.f32 %v6837, %v7285
  %v7734 = vadd.f32 %v6838, %v7286
  %v7735 = vadd.f32 %v6839, %v7287
  %v7736 = vadd.f32 %v6840, %v7288
  %v7737 = vadd.f32 %v6841, %v7289
  %v7738 = vadd.f32 %v6842, %v7290
  %v7739 = vadd.f32 %v6843, %v7291
  %v7740 = vadd.f32 %v6844, %v7292
  %v7741 = vadd.f32 %v6845, %v7293
  %v7742 = vadd.f32 %v6846, %v7294
  %v7743 = vadd.f32 %v6847, %v7295
  %v7744 = vadd.f32 %v6848, %v7296
  %v7745 = vadd.f32 %v6849, %v7297
  %v7746 = vadd.f32 %v6850, %v7298
  %v7747 = vadd.f32 %v6851, %v7299
  %v7748 = vadd.f32 %v6852, %v7300
  %v7749 = vadd.f32 %v6853, %v7301
  %v7750 = vadd.f32 %v6854, %v7302
  %v7751 = vadd.f32 %v6855, %v7303
  %v7752 = vadd.f32 %v6856, %v7304
  %v7753 = vadd.f32 %v6857, %v7305
  %v7754 = vadd.f32 %v6858, %v7306
  %v7755 = vadd.f32 %v6859, %v7307
  %v7756 = vadd.f32 %v6860, %v7308
  %v7757 = vadd.f32 %v6861, %v7309
  %v7758 = vadd.f32 %v6862, %v7310
  %v7759 = vadd.f32 %v6863, %v7311
  %v7760 = vadd.f32 %v6864, %v7312
  %v7761 = vadd.f32 %v6865, %v7313
  %v7762 = vadd.f32 %v6866, %v7314
  %v7763 = vadd.f32 %v6867, %v7315
  %v7764 = vadd.f32 %v6868, %v7316
  %v7765 = vadd.f32 %v6869, %v7317
  %v7766 = vadd.f32 %v6870, %v7318
  %v7767 = vadd.f32 %v6871, %v7319
  %v7768 = vadd.f32 %v6872, %v7320
  %v7769 = vadd.f32 %v6873, %v7321
  %v7770 = vadd.f32 %v6874, %v7322
  %v7771 = vadd.f32 %v6875, %v7323
  %v7772 = vadd.f32 %v6876, %v7324
  %v7773 = vadd.f32 %v6877, %v7325
  %v7774 = vadd.f32 %v6878, %v7326
  %v7775 = vadd.f32 %v6879, %v7327
  %v7776 = vadd.f32 %v6880, %v7328
  %v7777 = vadd.f32 %v6881, %v7329
  %v7778 = vadd.f32 %v6882, %v7330
  %v7779 = vadd.f32 %v6883, %v7331
  %v7780 = vadd.f32 %v6884, %v7332
  %v7781 = vadd.f32 %v6885, %v7333
  %v7782 = vadd.f32 %v6886, %v7334
  %v7783 = vadd.f32 %v6887, %v7335
  %v7784 = vadd.f32 %v6888, %v7336
  %v7785 = vadd.f32 %v6889, %v7337
  %v7786 = vadd.f32 %v6890, %v7338
  %v7787 = vadd.f32 %v6891, %v7339
  %v7788 = vadd.f32 %v6892, %v7340
  %v7789 = vadd.f32 %v6893, %v7341
  %v7790 = vadd.f32 %v6894, %v7342
  %v7791 = vadd.f32 %v6895, %v7343
  %v7792 = vadd.f32 %v6896, %v7344
  %v7793 = vadd.f32 %v6897, %v7345
  %v7794 = vadd.f32 %v6898, %v7346
  %v7795 = vadd.f32 %v6899, %v7347
  %v7796 = vadd.f32 %v6900, %v7348
  %v7797 = vadd.f32 %v6901, %v7349
  %v7798 = vadd.f32 %v6902, %v7350
  %v7799 = vadd.f32 %v6903, %v7351
  %v7800 = vadd.f32 %v6904, %v7352
  %v7801 = vadd.f32 %v6905, %v7353
  %v7802 = vadd.f32 %v6906, %v7354
  %v7803 = vadd.f32 %v6907, %v7355
  %v7804 = vadd.f32 %v6908, %v7356
  %v7805 = vadd.f32 %v6909, %v7357
  %v7806 = vadd.f32 %v6910, %v7358
  %v7807 = vadd.f32 %v6911, %v7359
  %v7808 = vadd.f32 %v6912, %v7360
  %v7809 = vadd.f32 %v6913, %v7361
  %v7810 = vadd.f32 %v6914, %v7362
  %v7811 = vadd.f32 %v6915, %v7363
  %v7812 = vadd.f32 %v6916, %v7364
  %v7813 = vadd.f32 %v6917, %v7365
  %v7814 = vadd.f32 %v6918, %v7366
  %v7815 = vadd.f32 %v6919, %v7367
  %v7816 = vadd.f32 %v6920, %v7368
  %v7817 = vadd.f32 %v6921, %v7369
  %v7818 = vadd.f32 %v6922, %v7370
  %v7819 = vadd.f32 %v6923, %v7371
  %v7820 = vadd.f32 %v6924, %v7372
  %v7821 = vadd.f32 %v6925, %v7373
  %v7822 = vadd.f32 %v6926, %v7374
  %v7823 = vadd.f32 %v6927, %v7375
  %v7824 = vadd.f32 %v6928, %v7376
  %v7825 = vadd.f32 %v6929, %v7377
  %v7826 = vadd.f32 %v6930, %v7378
  %v7827 = vadd.f32 %v6931, %v7379
  %v7828 = vadd.f32 %v6932, %v7380
  %v7829 = vmax.f32 %v7381, 0.0
  %v7830 = vmax.f32 %v7382, 0.0
  %v7831 = vmax.f32 %v7383, 0.0
  %v7832 = vmax.f32 %v7384, 0.0
  %v7833 = vmax.f32 %v7385, 0.0
  %v7834 = vmax.f32 %v7386, 0.0
  %v7835 = vmax.f32 %v7387, 0.0
  %v7836 = vmax.f32 %v7388, 0.0
  %v7837 = vmax.f32 %v7389, 0.0
  %v7838 = vmax.f32 %v7390, 0.0
  %v7839 = vmax.f32 %v7391, 0.0
  %v7840 = vmax.f32 %v7392, 0.0
  %v7841 = vmax.f32 %v7393, 0.0
  %v7842 = vmax.f32 %v7394, 0.0
  %v7843 = vmax.f32 %v7395, 0.0
  %v7844 = vmax.f32 %v7396, 0.0
  %v7845 = vmax.f32 %v7397, 0.0
  %v7846 = vmax.f32 %v7398, 0.0
  %v7847 = vmax.f32 %v7399, 0.0
  %v7848 = vmax.f32 %v7400, 0.0
  %v7849 = vmax.f32 %v7401, 0.0
  %v7850 = vmax.f32 %v7402, 0.0
  %v7851 = vmax.f32 %v7403, 0.0
  %v7852 = vmax.f32 %v7404, 0.0
  %v7853 = vmax.f32 %v7405, 0.0
  %v7854 = vmax.f32 %v7406, 0.0
  %v7855 = vmax.f32 %v7407, 0.0
  %v7856 = vmax.f32 %v7408, 0.0
  %v7857 = vmax.f32 %v7409, 0.0
  %v7858 = vmax.f32 %v7410, 0.0
  %v7859 = vmax.f32 %v7411, 0.0
  %v7860 = vmax.f32 %v7412, 0.0
  %v7861 = vmax.f32 %v7413, 0.0
  %v7862 = vmax.f32 %v7414, 0.0
  %v7863 = vmax.f32 %v7415, 0.0
  %v7864 = vmax.f32 %v7416, 0.0
  %v7865 = vmax.f32 %v7417, 0.0
  %v7866 = vmax.f32 %v7418, 0.0
  %v7867 = vmax.f32 %v7419, 0.0
  %v7868 = vmax.f32 %v7420, 0.0
  %v7869 = vmax.f32 %v7421, 0.0
  %v7870 = vmax.f32 %v7422, 0.0
  %v7871 = vmax.f32 %v7423, 0.0
  %v7872 = vmax.f32 %v7424, 0.0
  %v7873 = vmax.f32 %v7425, 0.0
  %v7874 = vmax.f32 %v7426, 0.0
  %v7875 = vmax.f32 %v7427, 0.0
  %v7876 = vmax.f32 %v7428, 0.0
  %v7877 = vmax.f32 %v7429, 0.0
  %v7878 = vmax.f32 %v7430, 0.0
  %v7879 = vmax.f32 %v7431, 0.0
  %v7880 = vmax.f32 %v7432, 0.0
  %v7881 = vmax.f32 %v7433, 0.0
  %v7882 = vmax.f32 %v7434, 0.0
  %v7883 = vmax.f32 %v7435, 0.0
  %v7884 = vmax.f32 %v7436, 0.0
  %v7885 = vmax.f32 %v7437, 0.0
  %v7886 = vmax.f32 %v7438, 0.0
  %v7887 = vmax.f32 %v7439, 0.0
  %v7888 = vmax.f32 %v7440, 0.0
  %v7889 = vmax.f32 %v7441, 0.0
  %v7890 = vmax.f32 %v7442, 0.0
  %v7891 = vmax.f32 %v7443, 0.0
  %v7892 = vmax.f32 %v7444, 0.0
  %v7893 = vmax.f32 %v7445, 0.0
  %v7894 = vmax.f32 %v7446, 0.0
  %v7895 = vmax.f32 %v7447, 0.0
  %v7896 = vmax.f32 %v7448, 0.0
  %v7897 = vmax.f32 %v7449, 0.0
  %v7898 = vmax.f32 %v7450, 0.0
  %v7899 = vmax.f32 %v7451, 0.0
  %v7900 = vmax.f32 %v7452, 0.0
  %v7901 = vmax.f32 %v7453, 0.0
  %v7902 = vmax.f32 %v7454, 0.0
  %v7903 = vmax.f32 %v7455, 0.0
  %v7904 = vmax.f32 %v7456, 0.0
  %v7905 = vmax.f32 %v7457, 0.0
  %v7906 = vmax.f32 %v7458, 0.0
  %v7907 = vmax.f32 %v7459, 0.0
  %v7908 = vmax.f32 %v7460, 0.0
  %v7909 = vmax.f32 %v7461, 0.0
  %v7910 = vmax.f32 %v7462, 0.0
  %v7911 = vmax.f32 %v7463, 0.0
  %v7912 = vmax.f32 %v7464, 0.0
  %v7913 = vmax.f32 %v7465, 0.0
  %v7914 = vmax.f32 %v7466, 0.0
  %v7915 = vmax.f32 %v7467, 0.0
  %v7916 = vmax.f32 %v7468, 0.0
  %v7917 = vmax.f32 %v7469, 0.0
  %v7918 = vmax.f32 %v7470, 0.0
  %v7919 = vmax.f32 %v7471, 0.0
  %v7920 = vmax.f32 %v7472, 0.0
  %v7921 = vmax.f32 %v7473, 0.0
  %v7922 = vmax.f32 %v7474, 0.0
  %v7923 = vmax.f32 %v7475, 0.0
  %v7924 = vmax.f32 %v7476, 0.0
  %v7925 = vmax.f32 %v7477, 0.0
  %v7926 = vmax.f32 %v7478, 0.0
  %v7927 = vmax.f32 %v7479, 0.0
  %v7928 = vmax.f32 %v7480, 0.0
  %v7929 = vmax.f32 %v7481, 0.0
  %v7930 = vmax.f32 %v7482, 0.0
  %v7931 = vmax.f32 %v7483, 0.0
  %v7932 = vmax.f32 %v7484, 0.0
  %v7933 = vmax.f32 %v7485, 0.0
  %v7934 = vmax.f32 %v7486, 0.0
  %v7935 = vmax.f32 %v7487, 0.0
  %v7936 = vmax.f32 %v7488, 0.0
  %v7937 = vmax.f32 %v7489, 0.0
  %v7938 = vmax.f32 %v7490, 0.0
  %v7939 = vmax.f32 %v7491, 0.0
  %v7940 = vmax.f32 %v7492, 0.0
  %v7941 = vmax.f32 %v7493, 0.0
  %v7942 = vmax.f32 %v7494, 0.0
  %v7943 = vmax.f32 %v7495, 0.0
  %v7944 = vmax.f32 %v7496, 0.0
  %v7945 = vmax.f32 %v7497, 0.0
  %v7946 = vmax.f32 %v7498, 0.0
  %v7947 = vmax.f32 %v7499, 0.0
  %v7948 = vmax.f32 %v7500, 0.0
  %v7949 = vmax.f32 %v7501, 0.0
  %v7950 = vmax.f32 %v7502, 0.0
  %v7951 = vmax.f32 %v7503, 0.0
  %v7952 = vmax.f32 %v7504, 0.0
  %v7953 = vmax.f32 %v7505, 0.0
  %v7954 = vmax.f32 %v7506, 0.0
  %v7955 = vmax.f32 %v7507, 0.0
  %v7956 = vmax.f32 %v7508, 0.0
  %v7957 = vmax.f32 %v7509, 0.0
  %v7958 = vmax.f32 %v7510, 0.0
  %v7959 = vmax.f32 %v7511, 0.0
  %v7960 = vmax.f32 %v7512, 0.0
  %v7961 = vmax.f32 %v7513, 0.0
  %v7962 = vmax.f32 %v7514, 0.0
  %v7963 = vmax.f32 %v7515, 0.0
  %v7964 = vmax.f32 %v7516, 0.0
  %v7965 = vmax.f32 %v7517, 0.0
  %v7966 = vmax.f32 %v7518, 0.0
  %v7967 = vmax.f32 %v7519, 0.0
  %v7968 = vmax.f32 %v7520, 0.0
  %v7969 = vmax.f32 %v7521, 0.0
  %v7970 = vmax.f32 %v7522, 0.0
  %v7971 = vmax.f32 %v7523, 0.0
  %v7972 = vmax.f32 %v7524, 0.0
  %v7973 = vmax.f32 %v7525, 0.0
  %v7974 = vmax.f32 %v7526, 0.0
  %v7975 = vmax.f32 %v7527, 0.0
  %v7976 = vmax.f32 %v7528, 0.0
  %v7977 = vmax.f32 %v7529, 0.0
  %v7978 = vmax.f32 %v7530, 0.0
  %v7979 = vmax.f32 %v7531, 0.0
  %v7980 = vmax.f32 %v7532, 0.0
  %v7981 = vmax.f32 %v7533, 0.0
  %v7982 = vmax.f32 %v7534, 0.0
  %v7983 = vmax.f32 %v7535, 0.0
  %v7984 = vmax.f32 %v7536, 0.0
  %v7985 = vmax.f32 %v7537, 0.0
  %v7986 = vmax.f32 %v7538, 0.0
  %v7987 = vmax.f32 %v7539, 0.0
  %v7988 = vmax.f32 %v7540, 0.0
  %v7989 = vmax.f32 %v7541, 0.0
  %v7990 = vmax.f32 %v7542, 0.0
  %v7991 = vmax.f32 %v7543, 0.0
  %v7992 = vmax.f32 %v7544, 0.0
  %v7993 = vmax.f32 %v7545, 0.0
  %v7994 = vmax.f32 %v7546, 0.0
  %v7995 = vmax.f32 %v7547, 0.0
  %v7996 = vmax.f32 %v7548, 0.0
  %v7997 = vmax.f32 %v7549, 0.0
  %v7998 = vmax.f32 %v7550, 0.0
  %v7999 = vmax.f32 %v7551, 0.0
  %v8000 = vmax.f32 %v7552, 0.0
  %v8001 = vmax.f32 %v7553, 0.0
  %v8002 = vmax.f32 %v7554, 0.0
  %v8003 = vmax.f32 %v7555, 0.0
  %v8004 = vmax.f32 %v7556, 0.0
  %v8005 = vmax.f32 %v7557, 0.0
  %v8006 = vmax.f32 %v7558, 0.0
  %v8007 = vmax.f32 %v7559, 0.0
  %v8008 = vmax.f32 %v7560, 0.0
  %v8009 = vmax.f32 %v7561, 0.0
  %v8010 = vmax.f32 %v7562, 0.0
  %v8011 = vmax.f32 %v7563, 0.0
  %v8012 = vmax.f32 %v7564, 0.0
  %v8013 = vmax.f32 %v7565, 0.0
  %v8014 = vmax.f32 %v7566, 0.0
  %v8015 = vmax.f32 %v7567, 0.0
  %v8016 = vmax.f32 %v7568, 0.0
  %v8017 = vmax.f32 %v7569, 0.0
  %v8018 = vmax.f32 %v7570, 0.0
  %v8019 = vmax.f32 %v7571, 0.0
  %v8020 = vmax.f32 %v7572, 0.0
  %v8021 = vmax.f32 %v7573, 0.0
  %v8022 = vmax.f32 %v7574, 0.0
  %v8023 = vmax.f32 %v7575, 0.0
  %v8024 = vmax.f32 %v7576, 0.0
  %v8025 = vmax.f32 %v7577, 0.0
  %v8026 = vmax.f32 %v7578, 0.0
  %v8027 = vmax.f32 %v7579, 0.0
  %v8028 = vmax.f32 %v7580, 0.0
  %v8029 = vmax.f32 %v7581, 0.0
  %v8030 = vmax.f32 %v7582, 0.0
  %v8031 = vmax.f32 %v7583, 0.0
  %v8032 = vmax.f32 %v7584, 0.0
  %v8033 = vmax.f32 %v7585, 0.0
  %v8034 = vmax.f32 %v7586, 0.0
  %v8035 = vmax.f32 %v7587, 0.0
  %v8036 = vmax.f32 %v7588, 0.0
  %v8037 = vmax.f32 %v7589, 0.0
  %v8038 = vmax.f32 %v7590, 0.0
  %v8039 = vmax.f32 %v7591, 0.0
  %v8040 = vmax.f32 %v7592, 0.0
  %v8041 = vmax.f32 %v7593, 0.0
  %v8042 = vmax.f32 %v7594, 0.0
  %v8043 = vmax.f32 %v7595, 0.0
  %v8044 = vmax.f32 %v7596, 0.0
  %v8045 = vmax.f32 %v7597, 0.0
  %v8046 = vmax.f32 %v7598, 0.0
  %v8047 = vmax.f32 %v7599, 0.0
  %v8048 = vmax.f32 %v7600, 0.0
  %v8049 = vmax.f32 %v7601, 0.0
  %v8050 = vmax.f32 %v7602, 0.0
  %v8051 = vmax.f32 %v7603, 0.0
  %v8052 = vmax.f32 %v7604, 0.0
  %v8053 = vmax.f32 %v7605, 0.0
  %v8054 = vmax.f32 %v7606, 0.0
  %v8055 = vmax.f32 %v7607, 0.0
  %v8056 = vmax.f32 %v7608, 0.0
  %v8057 = vmax.f32 %v7609, 0.0
  %v8058 = vmax.f32 %v7610, 0.0
  %v8059 = vmax.f32 %v7611, 0.0
  %v8060 = vmax.f32 %v7612, 0.0
  %v8061 = vmax.f32 %v7613, 0.0
  %v8062 = vmax.f32 %v7614, 0.0
  %v8063 = vmax.f32 %v7615, 0.0
  %v8064 = vmax.f32 %v7616, 0.0
  %v8065 = vmax.f32 %v7617, 0.0
  %v8066 = vmax.f32 %v7618, 0.0
  %v8067 = vmax.f32 %v7619, 0.0
  %v8068 = vmax.f32 %v7620, 0.0
  %v8069 = vmax.f32 %v7621, 0.0
  %v8070 = vmax.f32 %v7622, 0.0
  %v8071 = vmax.f32 %v7623, 0.0
  %v8072 = vmax.f32 %v7624, 0.0
  %v8073 = vmax.f32 %v7625, 0.0
  %v8074 = vmax.f32 %v7626, 0.0
  %v8075 = vmax.f32 %v7627, 0.0
  %v8076 = vmax.f32 %v7628, 0.0
  %v8077 = vmax.f32 %v7629, 0.0
  %v8078 = vmax.f32 %v7630, 0.0
  %v8079 = vmax.f32 %v7631, 0.0
  %v8080 = vmax.f32 %v7632, 0.0
  %v8081 = vmax.f32 %v7633, 0.0
  %v8082 = vmax.f32 %v7634, 0.0
  %v8083 = vmax.f32 %v7635, 0.0
  %v8084 = vmax.f32 %v7636, 0.0
  %v8085 = vmax.f32 %v7637, 0.0
  %v8086 = vmax.f32 %v7638, 0.0
  %v8087 = vmax.f32 %v7639, 0.0
  %v8088 = vmax.f32 %v7640, 0.0
  %v8089 = vmax.f32 %v7641, 0.0
  %v8090 = vmax.f32 %v7642, 0.0
  %v8091 = vmax.f32 %v7643, 0.0
  %v8092 = vmax.f32 %v7644, 0.0
  %v8093 = vmax.f32 %v7645, 0.0
  %v8094 = vmax.f32 %v7646, 0.0
  %v8095 = vmax.f32 %v7647, 0.0
  %v8096 = vmax.f32 %v7648, 0.0
  %v8097 = vmax.f32 %v7649, 0.0
  %v8098 = vmax.f32 %v7650, 0.0
  %v8099 = vmax.f32 %v7651, 0.0
  %v8100 = vmax.f32 %v7652, 0.0
  %v8101 = vmax.f32 %v7653, 0.0
  %v8102 = vmax.f32 %v7654, 0.0
  %v8103 = vmax.f32 %v7655, 0.0
  %v8104 = vmax.f32 %v7656, 0.0
  %v8105 = vmax.f32 %v7657, 0.0
  %v8106 = vmax.f32 %v7658, 0.0
  %v8107 = vmax.f32 %v7659, 0.0
  %v8108 = vmax.f32 %v7660, 0.0
  %v8109 = vmax.f32 %v7661, 0.0
  %v8110 = vmax.f32 %v7662, 0.0
  %v8111 = vmax.f32 %v7663, 0.0
  %v8112 = vmax.f32 %v7664, 0.0
  %v8113 = vmax.f32 %v7665, 0.0
  %v8114 = vmax.f32 %v7666, 0.0
  %v8115 = vmax.f32 %v7667, 0.0
  %v8116 = vmax.f32 %v7668, 0.0
  %v8117 = vmax.f32 %v7669, 0.0
  %v8118 = vmax.f32 %v7670, 0.0
  %v8119 = vmax.f32 %v7671, 0.0
  %v8120 = vmax.f32 %v7672, 0.0
  %v8121 = vmax.f32 %v7673, 0.0
  %v8122 = vmax.f32 %v7674, 0.0
  %v8123 = vmax.f32 %v7675, 0.0
  %v8124 = vmax.f32 %v7676, 0.0
  %v8125 = vmax.f32 %v7677, 0.0
  %v8126 = vmax.f32 %v7678, 0.0
  %v8127 = vmax.f32 %v7679, 0.0
  %v8128 = vmax.f32 %v7680, 0.0
  %v8129 = vmax.f32 %v7681, 0.0
  %v8130 = vmax.f32 %v7682, 0.0
  %v8131 = vmax.f32 %v7683, 0.0
  %v8132 = vmax.f32 %v7684, 0.0
  %v8133 = vmax.f32 %v7685, 0.0
  %v8134 = vmax.f32 %v7686, 0.0
  %v8135 = vmax.f32 %v7687, 0.0
  %v8136 = vmax.f32 %v7688, 0.0
  %v8137 = vmax.f32 %v7689, 0.0
  %v8138 = vmax.f32 %v7690, 0.0
  %v8139 = vmax.f32 %v7691, 0.0
  %v8140 = vmax.f32 %v7692, 0.0
  %v8141 = vmax.f32 %v7693, 0.0
  %v8142 = vmax.f32 %v7694, 0.0
  %v8143 = vmax.f32 %v7695, 0.0
  %v8144 = vmax.f32 %v7696, 0.0
  %v8145 = vmax.f32 %v7697, 0.0
  %v8146 = vmax.f32 %v7698, 0.0
  %v8147 = vmax.f32 %v7699, 0.0
  %v8148 = vmax.f32 %v7700, 0.0
  %v8149 = vmax.f32 %v7701, 0.0
  %v8150 = vmax.f32 %v7702, 0.0
  %v8151 = vmax.f32 %v7703, 0.0
  %v8152 = vmax.f32 %v7704, 0.0
  %v8153 = vmax.f32 %v7705, 0.0
  %v8154 = vmax.f32 %v7706, 0.0
  %v8155 = vmax.f32 %v7707, 0.0
  %v8156 = vmax.f32 %v7708, 0.0
  %v8157 = vmax.f32 %v7709, 0.0
  %v8158 = vmax.f32 %v7710, 0.0
  %v8159 = vmax.f32 %v7711, 0.0
  %v8160 = vmax.f32 %v7712, 0.0
  %v8161 = vmax.f32 %v7713, 0.0
  %v8162 = vmax.f32 %v7714, 0.0
  %v8163 = vmax.f32 %v7715, 0.0
  %v8164 = vmax.f32 %v7716, 0.0
  %v8165 = vmax.f32 %v7717, 0.0
  %v8166 = vmax.f32 %v7718, 0.0
  %v8167 = vmax.f32 %v7719, 0.0
  %v8168 = vmax.f32 %v7720, 0.0
  %v8169 = vmax.f32 %v7721, 0.0
  %v8170 = vmax.f32 %v7722, 0.0
  %v8171 = vmax.f32 %v7723, 0.0
  %v8172 = vmax.f32 %v7724, 0.0
  %v8173 = vmax.f32 %v7725, 0.0
  %v8174 = vmax.f32 %v7726, 0.0
  %v8175 = vmax.f32 %v7727, 0.0
  %v8176 = vmax.f32 %v7728, 0.0
  %v8177 = vmax.f32 %v7729, 0.0
  %v8178 = vmax.f32 %v7730, 0.0
  %v8179 = vmax.f32 %v7731, 0.0
  %v8180 = vmax.f32 %v7732, 0.0
  %v8181 = vmax.f32 %v7733, 0.0
  %v8182 = vmax.f32 %v7734, 0.0
  %v8183 = vmax.f32 %v7735, 0.0
  %v8184 = vmax.f32 %v7736, 0.0
  %v8185 = vmax.f32 %v7737, 0.0
  %v8186 = vmax.f32 %v7738, 0.0
  %v8187 = vmax.f32 %v7739, 0.0
  %v8188 = vmax.f32 %v7740, 0.0
  %v8189 = vmax.f32 %v7741, 0.0
  %v8190 = vmax.f32 %v7742, 0.0
  %v8191 = vmax.f32 %v7743, 0.0
  %v8192 = vmax.f32 %v7744, 0.0
  %v8193 = vmax.f32 %v7745, 0.0
  %v8194 = vmax.f32 %v7746, 0.0
  %v8195 = vmax.f32 %v7747, 0.0
  %v8196 = vmax.f32 %v7748, 0.0
  %v8197 = vmax.f32 %v7749, 0.0
  %v8198 = vmax.f32 %v7750, 0.0
  %v8199 = vmax.f32 %v7751, 0.0
  %v8200 = vmax.f32 %v7752, 0.0
  %v8201 = vmax.f32 %v7753, 0.0
  %v8202 = vmax.f32 %v7754, 0.0
  %v8203 = vmax.f32 %v7755, 0.0
  %v8204 = vmax.f32 %v7756, 0.0
  %v8205 = vmax.f32 %v7757, 0.0
  %v8206 = vmax.f32 %v7758, 0.0
  %v8207 = vmax.f32 %v7759, 0.0
  %v8208 = vmax.f32 %v7760, 0.0
  %v8209 = vmax.f32 %v7761, 0.0
  %v8210 = vmax.f32 %v7762, 0.0
  %v8211 = vmax.f32 %v7763, 0.0
  %v8212 = vmax.f32 %v7764, 0.0
  %v8213 = vmax.f32 %v7765, 0.0
  %v8214 = vmax.f32 %v7766, 0.0
  %v8215 = vmax.f32 %v7767, 0.0
  %v8216 = vmax.f32 %v7768, 0.0
  %v8217 = vmax.f32 %v7769, 0.0
  %v8218 = vmax.f32 %v7770, 0.0
  %v8219 = vmax.f32 %v7771, 0.0
  %v8220 = vmax.f32 %v7772, 0.0
  %v8221 = vmax.f32 %v7773, 0.0
  %v8222 = vmax.f32 %v7774, 0.0
  %v8223 = vmax.f32 %v7775, 0.0
  %v8224 = vmax.f32 %v7776, 0.0
  %v8225 = vmax.f32 %v7777, 0.0
  %v8226 = vmax.f32 %v7778, 0.0
  %v8227 = vmax.f32 %v7779, 0.0
  %v8228 = vmax.f32 %v7780, 0.0
  %v8229 = vmax.f32 %v7781, 0.0
  %v8230 = vmax.f32 %v7782, 0.0
  %v8231 = vmax.f32 %v7783, 0.0
  %v8232 = vmax.f32 %v7784, 0.0
  %v8233 = vmax.f32 %v7785, 0.0
  %v8234 = vmax.f32 %v7786, 0.0
  %v8235 = vmax.f32 %v7787, 0.0
  %v8236 = vmax.f32 %v7788, 0.0
  %v8237 = vmax.f32 %v7789, 0.0
  %v8238 = vmax.f32 %v7790, 0.0
  %v8239 = vmax.f32 %v7791, 0.0
  %v8240 = vmax.f32 %v7792, 0.0
  %v8241 = vmax.f32 %v7793, 0.0
  %v8242 = vmax.f32 %v7794, 0.0
  %v8243 = vmax.f32 %v7795, 0.0
  %v8244 = vmax.f32 %v7796, 0.0
  %v8245 = vmax.f32 %v7797, 0.0
  %v8246 = vmax.f32 %v7798, 0.0
  %v8247 = vmax.f32 %v7799, 0.0
  %v8248 = vmax.f32 %v7800, 0.0
  %v8249 = vmax.f32 %v7801, 0.0
  %v8250 = vmax.f32 %v7802, 0.0
  %v8251 = vmax.f32 %v7803, 0.0
  %v8252 = vmax.f32 %v7804, 0.0
  %v8253 = vmax.f32 %v7805, 0.0
  %v8254 = vmax.f32 %v7806, 0.0
  %v8255 = vmax.f32 %v7807, 0.0
  %v8256 = vmax.f32 %v7808, 0.0
  %v8257 = vmax.f32 %v7809, 0.0
  %v8258 = vmax.f32 %v7810, 0.0
  %v8259 = vmax.f32 %v7811, 0.0
  %v8260 = vmax.f32 %v7812, 0.0
  %v8261 = vmax.f32 %v7813, 0.0
  %v8262 = vmax.f32 %v7814, 0.0
  %v8263 = vmax.f32 %v7815, 0.0
  %v8264 = vmax.f32 %v7816, 0.0
  %v8265 = vmax.f32 %v7817, 0.0
  %v8266 = vmax.f32 %v7818, 0.0
  %v8267 = vmax.f32 %v7819, 0.0
  %v8268 = vmax.f32 %v7820, 0.0
  %v8269 = vmax.f32 %v7821, 0.0
  %v8270 = vmax.f32 %v7822, 0.0
  %v8271 = vmax.f32 %v7823, 0.0
  %v8272 = vmax.f32 %v7824, 0.0
  %v8273 = vmax.f32 %v7825, 0.0
  %v8274 = vmax.f32 %v7826, 0.0
  %v8275 = vmax.f32 %v7827, 0.0
  %v8276 = vmax.f32 %v7828, 0.0
  %v8277 = vpack.c.bf16 %v7836, %v7829
  %v8278 = vpack.c.bf16 %v7837, %v7830
  %v8279 = vpack.c.bf16 %v7838, %v7831
  %v8280 = vpack.c.bf16 %v7839, %v7832
  %v8281 = vpack.c.bf16 %v7840, %v7833
  %v8282 = vpack.c.bf16 %v7841, %v7834
  %v8283 = vpack.c.bf16 %v7842, %v7835
  %v8284 = vpack.c.bf16 %v7850, %v7843
  %v8285 = vpack.c.bf16 %v7851, %v7844
  %v8286 = vpack.c.bf16 %v7852, %v7845
  %v8287 = vpack.c.bf16 %v7853, %v7846
  %v8288 = vpack.c.bf16 %v7854, %v7847
  %v8289 = vpack.c.bf16 %v7855, %v7848
  %v8290 = vpack.c.bf16 %v7856, %v7849
  %v8291 = vpack.c.bf16 %v7864, %v7857
  %v8292 = vpack.c.bf16 %v7865, %v7858
  %v8293 = vpack.c.bf16 %v7866, %v7859
  %v8294 = vpack.c.bf16 %v7867, %v7860
  %v8295 = vpack.c.bf16 %v7868, %v7861
  %v8296 = vpack.c.bf16 %v7869, %v7862
  %v8297 = vpack.c.bf16 %v7870, %v7863
  %v8298 = vpack.c.bf16 %v7878, %v7871
  %v8299 = vpack.c.bf16 %v7879, %v7872
  %v8300 = vpack.c.bf16 %v7880, %v7873
  %v8301 = vpack.c.bf16 %v7881, %v7874
  %v8302 = vpack.c.bf16 %v7882, %v7875
  %v8303 = vpack.c.bf16 %v7883, %v7876
  %v8304 = vpack.c.bf16 %v7884, %v7877
  %v8305 = vpack.c.bf16 %v7892, %v7885
  %v8306 = vpack.c.bf16 %v7893, %v7886
  %v8307 = vpack.c.bf16 %v7894, %v7887
  %v8308 = vpack.c.bf16 %v7895, %v7888
  %v8309 = vpack.c.bf16 %v7896, %v7889
  %v8310 = vpack.c.bf16 %v7897, %v7890
  %v8311 = vpack.c.bf16 %v7898, %v7891
  %v8312 = vpack.c.bf16 %v7906, %v7899
  %v8313 = vpack.c.bf16 %v7907, %v7900
  %v8314 = vpack.c.bf16 %v7908, %v7901
  %v8315 = vpack.c.bf16 %v7909, %v7902
  %v8316 = vpack.c.bf16 %v7910, %v7903
  %v8317 = vpack.c.bf16 %v7911, %v7904
  %v8318 = vpack.c.bf16 %v7912, %v7905
  %v8319 = vpack.c.bf16 %v7920, %v7913
  %v8320 = vpack.c.bf16 %v7921, %v7914
  %v8321 = vpack.c.bf16 %v7922, %v7915
  %v8322 = vpack.c.bf16 %v7923, %v7916
  %v8323 = vpack.c.bf16 %v7924, %v7917
  %v8324 = vpack.c.bf16 %v7925, %v7918
  %v8325 = vpack.c.bf16 %v7926, %v7919
  %v8326 = vpack.c.bf16 %v7934, %v7927
  %v8327 = vpack.c.bf16 %v7935, %v7928
  %v8328 = vpack.c.bf16 %v7936, %v7929
  %v8329 = vpack.c.bf16 %v7937, %v7930
  %v8330 = vpack.c.bf16 %v7938, %v7931
  %v8331 = vpack.c.bf16 %v7939, %v7932
  %v8332 = vpack.c.bf16 %v7940, %v7933
  %v8333 = vpack.c.bf16 %v7948, %v7941
  %v8334 = vpack.c.bf16 %v7949, %v7942
  %v8335 = vpack.c.bf16 %v7950, %v7943
  %v8336 = vpack.c.bf16 %v7951, %v7944
  %v8337 = vpack.c.bf16 %v7952, %v7945
  %v8338 = vpack.c.bf16 %v7953, %v7946
  %v8339 = vpack.c.bf16 %v7954, %v7947
  %v8340 = vpack.c.bf16 %v7962, %v7955
  %v8341 = vpack.c.bf16 %v7963, %v7956
  %v8342 = vpack.c.bf16 %v7964, %v7957
  %v8343 = vpack.c.bf16 %v7965, %v7958
  %v8344 = vpack.c.bf16 %v7966, %v7959
  %v8345 = vpack.c.bf16 %v7967, %v7960
  %v8346 = vpack.c.bf16 %v7968, %v7961
  %v8347 = vpack.c.bf16 %v7976, %v7969
  %v8348 = vpack.c.bf16 %v7977, %v7970
  %v8349 = vpack.c.bf16 %v7978, %v7971
  %v8350 = vpack.c.bf16 %v7979, %v7972
  %v8351 = vpack.c.bf16 %v7980, %v7973
  %v8352 = vpack.c.bf16 %v7981, %v7974
  %v8353 = vpack.c.bf16 %v7982, %v7975
  %v8354 = vpack.c.bf16 %v7990, %v7983
  %v8355 = vpack.c.bf16 %v7991, %v7984
  %v8356 = vpack.c.bf16 %v7992, %v7985
  %v8357 = vpack.c.bf16 %v7993, %v7986
  %v8358 = vpack.c.bf16 %v7994, %v7987
  %v8359 = vpack.c.bf16 %v7995, %v7988
  %v8360 = vpack.c.bf16 %v7996, %v7989
  %v8361 = vpack.c.bf16 %v8004, %v7997
  %v8362 = vpack.c.bf16 %v8005, %v7998
  %v8363 = vpack.c.bf16 %v8006, %v7999
  %v8364 = vpack.c.bf16 %v8007, %v8000
  %v8365 = vpack.c.bf16 %v8008, %v8001
  %v8366 = vpack.c.bf16 %v8009, %v8002
  %v8367 = vpack.c.bf16 %v8010, %v8003
  %v8368 = vpack.c.bf16 %v8018, %v8011
  %v8369 = vpack.c.bf16 %v8019, %v8012
  %v8370 = vpack.c.bf16 %v8020, %v8013
  %v8371 = vpack.c.bf16 %v8021, %v8014
  %v8372 = vpack.c.bf16 %v8022, %v8015
  %v8373 = vpack.c.bf16 %v8023, %v8016
  %v8374 = vpack.c.bf16 %v8024, %v8017
  %v8375 = vpack.c.bf16 %v8032, %v8025
  %v8376 = vpack.c.bf16 %v8033, %v8026
  %v8377 = vpack.c.bf16 %v8034, %v8027
  %v8378 = vpack.c.bf16 %v8035, %v8028
  %v8379 = vpack.c.bf16 %v8036, %v8029
  %v8380 = vpack.c.bf16 %v8037, %v8030
  %v8381 = vpack.c.bf16 %v8038, %v8031
  %v8382 = vpack.c.bf16 %v8046, %v8039
  %v8383 = vpack.c.bf16 %v8047, %v8040
  %v8384 = vpack.c.bf16 %v8048, %v8041
  %v8385 = vpack.c.bf16 %v8049, %v8042
  %v8386 = vpack.c.bf16 %v8050, %v8043
  %v8387 = vpack.c.bf16 %v8051, %v8044
  %v8388 = vpack.c.bf16 %v8052, %v8045
  %v8389 = vpack.c.bf16 %v8060, %v8053
  %v8390 = vpack.c.bf16 %v8061, %v8054
  %v8391 = vpack.c.bf16 %v8062, %v8055
  %v8392 = vpack.c.bf16 %v8063, %v8056
  %v8393 = vpack.c.bf16 %v8064, %v8057
  %v8394 = vpack.c.bf16 %v8065, %v8058
  %v8395 = vpack.c.bf16 %v8066, %v8059
  %v8396 = vpack.c.bf16 %v8074, %v8067
  %v8397 = vpack.c.bf16 %v8075, %v8068
  %v8398 = vpack.c.bf16 %v8076, %v8069
  %v8399 = vpack.c.bf16 %v8077, %v8070
  %v8400 = vpack.c.bf16 %v8078, %v8071
  %v8401 = vpack.c.bf16 %v8079, %v8072
  %v8402 = vpack.c.bf16 %v8080, %v8073
  %v8403 = vpack.c.bf16 %v8088, %v8081
  %v8404 = vpack.c.bf16 %v8089, %v8082
  %v8405 = vpack.c.bf16 %v8090, %v8083
  %v8406 = vpack.c.bf16 %v8091, %v8084
  %v8407 = vpack.c.bf16 %v8092, %v8085
  %v8408 = vpack.c.bf16 %v8093, %v8086
  %v8409 = vpack.c.bf16 %v8094, %v8087
  %v8410 = vpack.c.bf16 %v8102, %v8095
  %v8411 = vpack.c.bf16 %v8103, %v8096
  %v8412 = vpack.c.bf16 %v8104, %v8097
  %v8413 = vpack.c.bf16 %v8105, %v8098
  %v8414 = vpack.c.bf16 %v8106, %v8099
  %v8415 = vpack.c.bf16 %v8107, %v8100
  %v8416 = vpack.c.bf16 %v8108, %v8101
  %v8417 = vpack.c.bf16 %v8116, %v8109
  %v8418 = vpack.c.bf16 %v8117, %v8110
  %v8419 = vpack.c.bf16 %v8118, %v8111
  %v8420 = vpack.c.bf16 %v8119, %v8112
  %v8421 = vpack.c.bf16 %v8120, %v8113
  %v8422 = vpack.c.bf16 %v8121, %v8114
  %v8423 = vpack.c.bf16 %v8122, %v8115
  %v8424 = vpack.c.bf16 %v8130, %v8123
  %v8425 = vpack.c.bf16 %v8131, %v8124
  %v8426 = vpack.c.bf16 %v8132, %v8125
  %v8427 = vpack.c.bf16 %v8133, %v8126
  %v8428 = vpack.c.bf16 %v8134, %v8127
  %v8429 = vpack.c.bf16 %v8135, %v8128
  %v8430 = vpack.c.bf16 %v8136, %v8129
  %v8431 = vpack.c.bf16 %v8144, %v8137
  %v8432 = vpack.c.bf16 %v8145, %v8138
  %v8433 = vpack.c.bf16 %v8146, %v8139
  %v8434 = vpack.c.bf16 %v8147, %v8140
  %v8435 = vpack.c.bf16 %v8148, %v8141
  %v8436 = vpack.c.bf16 %v8149, %v8142
  %v8437 = vpack.c.bf16 %v8150, %v8143
  %v8438 = vpack.c.bf16 %v8158, %v8151
  %v8439 = vpack.c.bf16 %v8159, %v8152
  %v8440 = vpack.c.bf16 %v8160, %v8153
  %v8441 = vpack.c.bf16 %v8161, %v8154
  %v8442 = vpack.c.bf16 %v8162, %v8155
  %v8443 = vpack.c.bf16 %v8163, %v8156
  %v8444 = vpack.c.bf16 %v8164, %v8157
  %v8445 = vpack.c.bf16 %v8172, %v8165
  %v8446 = vpack.c.bf16 %v8173, %v8166
  %v8447 = vpack.c.bf16 %v8174, %v8167
  %v8448 = vpack.c.bf16 %v8175, %v8168
  %v8449 = vpack.c.bf16 %v8176, %v8169
  %v8450 = vpack.c.bf16 %v8177, %v8170
  %v8451 = vpack.c.bf16 %v8178, %v8171
  %v8452 = vpack.c.bf16 %v8186, %v8179
  %v8453 = vpack.c.bf16 %v8187, %v8180
  %v8454 = vpack.c.bf16 %v8188, %v8181
  %v8455 = vpack.c.bf16 %v8189, %v8182
  %v8456 = vpack.c.bf16 %v8190, %v8183
  %v8457 = vpack.c.bf16 %v8191, %v8184
  %v8458 = vpack.c.bf16 %v8192, %v8185
  %v8459 = vpack.c.bf16 %v8200, %v8193
  %v8460 = vpack.c.bf16 %v8201, %v8194
  %v8461 = vpack.c.bf16 %v8202, %v8195
  %v8462 = vpack.c.bf16 %v8203, %v8196
  %v8463 = vpack.c.bf16 %v8204, %v8197
  %v8464 = vpack.c.bf16 %v8205, %v8198
  %v8465 = vpack.c.bf16 %v8206, %v8199
  %v8466 = vpack.c.bf16 %v8214, %v8207
  %v8467 = vpack.c.bf16 %v8215, %v8208
  %v8468 = vpack.c.bf16 %v8216, %v8209
  %v8469 = vpack.c.bf16 %v8217, %v8210
  %v8470 = vpack.c.bf16 %v8218, %v8211
  %v8471 = vpack.c.bf16 %v8219, %v8212
  %v8472 = vpack.c.bf16 %v8220, %v8213
  %v8473 = vpack.c.bf16 %v8228, %v8221
  %v8474 = vpack.c.bf16 %v8229, %v8222
  %v8475 = vpack.c.bf16 %v8230, %v8223
  %v8476 = vpack.c.bf16 %v8231, %v8224
  %v8477 = vpack.c.bf16 %v8232, %v8225
  %v8478 = vpack.c.bf16 %v8233, %v8226
  %v8479 = vpack.c.bf16 %v8234, %v8227
  %v8480 = vpack.c.bf16 %v8242, %v8235
  %v8481 = vpack.c.bf16 %v8243, %v8236
  %v8482 = vpack.c.bf16 %v8244, %v8237
  %v8483 = vpack.c.bf16 %v8245, %v8238
  %v8484 = vpack.c.bf16 %v8246, %v8239
  %v8485 = vpack.c.bf16 %v8247, %v8240
  %v8486 = vpack.c.bf16 %v8248, %v8241
  %v8487 = vpack.c.bf16 %v8256, %v8249
  %v8488 = vpack.c.bf16 %v8257, %v8250
  %v8489 = vpack.c.bf16 %v8258, %v8251
  %v8490 = vpack.c.bf16 %v8259, %v8252
  %v8491 = vpack.c.bf16 %v8260, %v8253
  %v8492 = vpack.c.bf16 %v8261, %v8254
  %v8493 = vpack.c.bf16 %v8262, %v8255
  %v8494 = vpack.c.bf16 %v8270, %v8263
  %v8495 = vpack.c.bf16 %v8271, %v8264
  %v8496 = vpack.c.bf16 %v8272, %v8265
  %v8497 = vpack.c.bf16 %v8273, %v8266
  %v8498 = vpack.c.bf16 %v8274, %v8267
  %v8499 = vpack.c.bf16 %v8275, %v8268
  %v8500 = vpack.c.bf16 %v8276, %v8269
  %s8501 = smul.u32 4, 32
  %s8502 = smul.u32 %s8501, 4
  %s8503 = sshll.u32 %s8502, 4
  %8504 = dma.done %s954, %s8503
  %v8505 = vld [vmem:[#allocation3] sm:$0xff]
  %v8506 = vld [vmem:[#allocation3 + $0x8] sm:$0xff]
  %v8507 = vld [vmem:[#allocation3 + $0x10] sm:$0xff]
  %v8508 = vld [vmem:[#allocation3 + $0x18] sm:$0xff]
  %v8509 = vld [vmem:[#allocation3 + $0x20] sm:$0xff]
  %v8510 = vld [vmem:[#allocation3 + $0x28] sm:$0xff]
  %v8511 = vld [vmem:[#allocation3 + $0x30] sm:$0xff]
  %v8512 = vld [vmem:[#allocation3 + $0x38] sm:$0xff]
  %v8513 = vld [vmem:[#allocation3 + $0x40] sm:$0xff]
  %v8514 = vld [vmem:[#allocation3 + $0x48] sm:$0xff]
  %v8515 = vld [vmem:[#allocation3 + $0x50] sm:$0xff]
  %v8516 = vld [vmem:[#allocation3 + $0x58] sm:$0xff]
  %v8517 = vld [vmem:[#allocation3 + $0x60] sm:$0xff]
  %v8518 = vld [vmem:[#allocation3 + $0x68] sm:$0xff]
  %v8519 = vld [vmem:[#allocation3 + $0x70] sm:$0xff]
  %v8520 = vld [vmem:[#allocation3 + $0x78] sm:$0xff]
  %v8521 = vld [vmem:[#allocation3 + $0x80] sm:$0xff]
  %v8522 = vld [vmem:[#allocation3 + $0x88] sm:$0xff]
  %v8523 = vld [vmem:[#allocation3 + $0x90] sm:$0xff]
  %v8524 = vld [vmem:[#allocation3 + $0x98] sm:$0xff]
  %v8525 = vld [vmem:[#allocation3 + $0xa0] sm:$0xff]
  %v8526 = vld [vmem:[#allocation3 + $0xa8] sm:$0xff]
  %v8527 = vld [vmem:[#allocation3 + $0xb0] sm:$0xff]
  %v8528 = vld [vmem:[#allocation3 + $0xb8] sm:$0xff]
  %v8529 = vld [vmem:[#allocation3 + $0xc0] sm:$0xff]
  %v8530 = vld [vmem:[#allocation3 + $0xc8] sm:$0xff]
  %v8531 = vld [vmem:[#allocation3 + $0xd0] sm:$0xff]
  %v8532 = vld [vmem:[#allocation3 + $0xd8] sm:$0xff]
  %v8533 = vld [vmem:[#allocation3 + $0xe0] sm:$0xff]
  %v8534 = vld [vmem:[#allocation3 + $0xe8] sm:$0xff]
  %v8535 = vld [vmem:[#allocation3 + $0xf0] sm:$0xff]
  %v8536 = vld [vmem:[#allocation3 + $0xf8] sm:$0xff]
  %v8537 = vld [vmem:[#allocation3 + $0x100] sm:$0xff]
  %v8538 = vld [vmem:[#allocation3 + $0x108] sm:$0xff]
  %v8539 = vld [vmem:[#allocation3 + $0x110] sm:$0xff]
  %v8540 = vld [vmem:[#allocation3 + $0x118] sm:$0xff]
  %v8541 = vld [vmem:[#allocation3 + $0x120] sm:$0xff]
  %v8542 = vld [vmem:[#allocation3 + $0x128] sm:$0xff]
  %v8543 = vld [vmem:[#allocation3 + $0x130] sm:$0xff]
  %v8544 = vld [vmem:[#allocation3 + $0x138] sm:$0xff]
  %v8545 = vld [vmem:[#allocation3 + $0x140] sm:$0xff]
  %v8546 = vld [vmem:[#allocation3 + $0x148] sm:$0xff]
  %v8547 = vld [vmem:[#allocation3 + $0x150] sm:$0xff]
  %v8548 = vld [vmem:[#allocation3 + $0x158] sm:$0xff]
  %v8549 = vld [vmem:[#allocation3 + $0x160] sm:$0xff]
  %v8550 = vld [vmem:[#allocation3 + $0x168] sm:$0xff]
  %v8551 = vld [vmem:[#allocation3 + $0x170] sm:$0xff]
  %v8552 = vld [vmem:[#allocation3 + $0x178] sm:$0xff]
  %v8553 = vld [vmem:[#allocation3 + $0x180] sm:$0xff]
  %v8554 = vld [vmem:[#allocation3 + $0x188] sm:$0xff]
  %v8555 = vld [vmem:[#allocation3 + $0x190] sm:$0xff]
  %v8556 = vld [vmem:[#allocation3 + $0x198] sm:$0xff]
  %v8557 = vld [vmem:[#allocation3 + $0x1a0] sm:$0xff]
  %v8558 = vld [vmem:[#allocation3 + $0x1a8] sm:$0xff]
  %v8559 = vld [vmem:[#allocation3 + $0x1b0] sm:$0xff]
  %v8560 = vld [vmem:[#allocation3 + $0x1b8] sm:$0xff]
  %v8561 = vld [vmem:[#allocation3 + $0x1c0] sm:$0xff]
  %v8562 = vld [vmem:[#allocation3 + $0x1c8] sm:$0xff]
  %v8563 = vld [vmem:[#allocation3 + $0x1d0] sm:$0xff]
  %v8564 = vld [vmem:[#allocation3 + $0x1d8] sm:$0xff]
  %v8565 = vld [vmem:[#allocation3 + $0x1e0] sm:$0xff]
  %v8566 = vld [vmem:[#allocation3 + $0x1e8] sm:$0xff]
  %v8567 = vld [vmem:[#allocation3 + $0x1f0] sm:$0xff]
  %v8568 = vld [vmem:[#allocation3 + $0x1f8] sm:$0xff]
  %v8633 = vunpack.c.l.b16 %v8505
  %v8634 = vunpack.c.h.b16 %v8505
  %v8635 = vunpack.c.l.b16 %v8506
  %v8636 = vunpack.c.h.b16 %v8506
  %v8637 = vunpack.c.l.b16 %v8507
  %v8638 = vunpack.c.h.b16 %v8507
  %v8639 = vunpack.c.l.b16 %v8508
  %v8640 = vunpack.c.h.b16 %v8508
  %v8641 = vunpack.c.l.b16 %v8509
  %v8642 = vunpack.c.h.b16 %v8509
  %v8643 = vunpack.c.l.b16 %v8510
  %v8644 = vunpack.c.h.b16 %v8510
  %v8645 = vunpack.c.l.b16 %v8511
  %v8646 = vunpack.c.h.b16 %v8511
  %v8647 = vunpack.c.l.b16 %v8512
  %v8648 = vunpack.c.h.b16 %v8512
  %v8649 = vunpack.c.l.b16 %v8513
  %v8650 = vunpack.c.h.b16 %v8513
  %v8651 = vunpack.c.l.b16 %v8514
  %v8652 = vunpack.c.h.b16 %v8514
  %v8653 = vunpack.c.l.b16 %v8515
  %v8654 = vunpack.c.h.b16 %v8515
  %v8655 = vunpack.c.l.b16 %v8516
  %v8656 = vunpack.c.h.b16 %v8516
  %v8657 = vunpack.c.l.b16 %v8517
  %v8658 = vunpack.c.h.b16 %v8517
  %v8659 = vunpack.c.l.b16 %v8518
  %v8660 = vunpack.c.h.b16 %v8518
  %v8661 = vunpack.c.l.b16 %v8519
  %v8662 = vunpack.c.h.b16 %v8519
  %v8663 = vunpack.c.l.b16 %v8520
  %v8664 = vunpack.c.h.b16 %v8520
  %v8665 = vunpack.c.l.b16 %v8521
  %v8666 = vunpack.c.h.b16 %v8521
  %v8667 = vunpack.c.l.b16 %v8522
  %v8668 = vunpack.c.h.b16 %v8522
  %v8669 = vunpack.c.l.b16 %v8523
  %v8670 = vunpack.c.h.b16 %v8523
  %v8671 = vunpack.c.l.b16 %v8524
  %v8672 = vunpack.c.h.b16 %v8524
  %v8673 = vunpack.c.l.b16 %v8525
  %v8674 = vunpack.c.h.b16 %v8525
  %v8675 = vunpack.c.l.b16 %v8526
  %v8676 = vunpack.c.h.b16 %v8526
  %v8677 = vunpack.c.l.b16 %v8527
  %v8678 = vunpack.c.h.b16 %v8527
  %v8679 = vunpack.c.l.b16 %v8528
  %v8680 = vunpack.c.h.b16 %v8528
  %v8681 = vunpack.c.l.b16 %v8529
  %v8682 = vunpack.c.h.b16 %v8529
  %v8683 = vunpack.c.l.b16 %v8530
  %v8684 = vunpack.c.h.b16 %v8530
  %v8685 = vunpack.c.l.b16 %v8531
  %v8686 = vunpack.c.h.b16 %v8531
  %v8687 = vunpack.c.l.b16 %v8532
  %v8688 = vunpack.c.h.b16 %v8532
  %v8689 = vunpack.c.l.b16 %v8533
  %v8690 = vunpack.c.h.b16 %v8533
  %v8691 = vunpack.c.l.b16 %v8534
  %v8692 = vunpack.c.h.b16 %v8534
  %v8693 = vunpack.c.l.b16 %v8535
  %v8694 = vunpack.c.h.b16 %v8535
  %v8695 = vunpack.c.l.b16 %v8536
  %v8696 = vunpack.c.h.b16 %v8536
  %v8697 = vunpack.c.l.b16 %v8537
  %v8698 = vunpack.c.h.b16 %v8537
  %v8699 = vunpack.c.l.b16 %v8538
  %v8700 = vunpack.c.h.b16 %v8538
  %v8701 = vunpack.c.l.b16 %v8539
  %v8702 = vunpack.c.h.b16 %v8539
  %v8703 = vunpack.c.l.b16 %v8540
  %v8704 = vunpack.c.h.b16 %v8540
  %v8705 = vunpack.c.l.b16 %v8541
  %v8706 = vunpack.c.h.b16 %v8541
  %v8707 = vunpack.c.l.b16 %v8542
  %v8708 = vunpack.c.h.b16 %v8542
  %v8709 = vunpack.c.l.b16 %v8543
  %v8710 = vunpack.c.h.b16 %v8543
  %v8711 = vunpack.c.l.b16 %v8544
  %v8712 = vunpack.c.h.b16 %v8544
  %v8713 = vunpack.c.l.b16 %v8545
  %v8714 = vunpack.c.h.b16 %v8545
  %v8715 = vunpack.c.l.b16 %v8546
  %v8716 = vunpack.c.h.b16 %v8546
  %v8717 = vunpack.c.l.b16 %v8547
  %v8718 = vunpack.c.h.b16 %v8547
  %v8719 = vunpack.c.l.b16 %v8548
  %v8720 = vunpack.c.h.b16 %v8548
  %v8721 = vunpack.c.l.b16 %v8549
  %v8722 = vunpack.c.h.b16 %v8549
  %v8723 = vunpack.c.l.b16 %v8550
  %v8724 = vunpack.c.h.b16 %v8550
  %v8725 = vunpack.c.l.b16 %v8551
  %v8726 = vunpack.c.h.b16 %v8551
  %v8727 = vunpack.c.l.b16 %v8552
  %v8728 = vunpack.c.h.b16 %v8552
  %v8729 = vunpack.c.l.b16 %v8553
  %v8730 = vunpack.c.h.b16 %v8553
  %v8731 = vunpack.c.l.b16 %v8554
  %v8732 = vunpack.c.h.b16 %v8554
  %v8733 = vunpack.c.l.b16 %v8555
  %v8734 = vunpack.c.h.b16 %v8555
  %v8735 = vunpack.c.l.b16 %v8556
  %v8736 = vunpack.c.h.b16 %v8556
  %v8737 = vunpack.c.l.b16 %v8557
  %v8738 = vunpack.c.h.b16 %v8557
  %v8739 = vunpack.c.l.b16 %v8558
  %v8740 = vunpack.c.h.b16 %v8558
  %v8741 = vunpack.c.l.b16 %v8559
  %v8742 = vunpack.c.h.b16 %v8559
  %v8743 = vunpack.c.l.b16 %v8560
  %v8744 = vunpack.c.h.b16 %v8560
  %v8745 = vunpack.c.l.b16 %v8561
  %v8746 = vunpack.c.h.b16 %v8561
  %v8747 = vunpack.c.l.b16 %v8562
  %v8748 = vunpack.c.h.b16 %v8562
  %v8749 = vunpack.c.l.b16 %v8563
  %v8750 = vunpack.c.h.b16 %v8563
  %v8751 = vunpack.c.l.b16 %v8564
  %v8752 = vunpack.c.h.b16 %v8564
  %v8753 = vunpack.c.l.b16 %v8565
  %v8754 = vunpack.c.h.b16 %v8565
  %v8755 = vunpack.c.l.b16 %v8566
  %v8756 = vunpack.c.h.b16 %v8566
  %v8757 = vunpack.c.l.b16 %v8567
  %v8758 = vunpack.c.h.b16 %v8567
  %v8759 = vunpack.c.l.b16 %v8568
  %v8760 = vunpack.c.h.b16 %v8568
  %v8761 = vpack.c.b16 %v8637, %v8633
  %v8762 = vpack.c.b16 %v8638, %v8634
  %v8763 = vpack.c.b16 %v8639, %v8635
  %v8764 = vpack.c.b16 %v8640, %v8636
  %v8765 = vpack.c.b16 %v8645, %v8641
  %v8766 = vpack.c.b16 %v8646, %v8642
  %v8767 = vpack.c.b16 %v8647, %v8643
  %v8768 = vpack.c.b16 %v8648, %v8644
  %v8769 = vpack.c.b16 %v8653, %v8649
  %v8770 = vpack.c.b16 %v8654, %v8650
  %v8771 = vpack.c.b16 %v8655, %v8651
  %v8772 = vpack.c.b16 %v8656, %v8652
  %v8773 = vpack.c.b16 %v8661, %v8657
  %v8774 = vpack.c.b16 %v8662, %v8658
  %v8775 = vpack.c.b16 %v8663, %v8659
  %v8776 = vpack.c.b16 %v8664, %v8660
  %v8777 = vpack.c.b16 %v8669, %v8665
  %v8778 = vpack.c.b16 %v8670, %v8666
  %v8779 = vpack.c.b16 %v8671, %v8667
  %v8780 = vpack.c.b16 %v8672, %v8668
  %v8781 = vpack.c.b16 %v8677, %v8673
  %v8782 = vpack.c.b16 %v8678, %v8674
  %v8783 = vpack.c.b16 %v8679, %v8675
  %v8784 = vpack.c.b16 %v8680, %v8676
  %v8785 = vpack.c.b16 %v8685, %v8681
  %v8786 = vpack.c.b16 %v8686, %v8682
  %v8787 = vpack.c.b16 %v8687, %v8683
  %v8788 = vpack.c.b16 %v8688, %v8684
  %v8789 = vpack.c.b16 %v8693, %v8689
  %v8790 = vpack.c.b16 %v8694, %v8690
  %v8791 = vpack.c.b16 %v8695, %v8691
  %v8792 = vpack.c.b16 %v8696, %v8692
  %v8793 = vpack.c.b16 %v8701, %v8697
  %v8794 = vpack.c.b16 %v8702, %v8698
  %v8795 = vpack.c.b16 %v8703, %v8699
  %v8796 = vpack.c.b16 %v8704, %v8700
  %v8797 = vpack.c.b16 %v8709, %v8705
  %v8798 = vpack.c.b16 %v8710, %v8706
  %v8799 = vpack.c.b16 %v8711, %v8707
  %v8800 = vpack.c.b16 %v8712, %v8708
  %v8801 = vpack.c.b16 %v8717, %v8713
  %v8802 = vpack.c.b16 %v8718, %v8714
  %v8803 = vpack.c.b16 %v8719, %v8715
  %v8804 = vpack.c.b16 %v8720, %v8716
  %v8805 = vpack.c.b16 %v8725, %v8721
  %v8806 = vpack.c.b16 %v8726, %v8722
  %v8807 = vpack.c.b16 %v8727, %v8723
  %v8808 = vpack.c.b16 %v8728, %v8724
  %v8809 = vpack.c.b16 %v8733, %v8729
  %v8810 = vpack.c.b16 %v8734, %v8730
  %v8811 = vpack.c.b16 %v8735, %v8731
  %v8812 = vpack.c.b16 %v8736, %v8732
  %v8813 = vpack.c.b16 %v8741, %v8737
  %v8814 = vpack.c.b16 %v8742, %v8738
  %v8815 = vpack.c.b16 %v8743, %v8739
  %v8816 = vpack.c.b16 %v8744, %v8740
  %v8817 = vpack.c.b16 %v8749, %v8745
  %v8818 = vpack.c.b16 %v8750, %v8746
  %v8819 = vpack.c.b16 %v8751, %v8747
  %v8820 = vpack.c.b16 %v8752, %v8748
  %v8821 = vpack.c.b16 %v8757, %v8753
  %v8822 = vpack.c.b16 %v8758, %v8754
  %v8823 = vpack.c.b16 %v8759, %v8755
  %v8824 = vpack.c.b16 %v8760, %v8756
  %8889 = vmatprep.subr.bf16.mxu0 %v8327
  %8890 = vmatpush1.bf16.msra.mxu0 %v8326
  %8891 = vmatprep.subr.bf16.mxu0 %v8320
  %8892 = vmatpush1.bf16.msra.mxu0 %v8319
  %8893 = vmatprep.subr.bf16.mxu0 %v8313
  %8894 = vmatpush1.bf16.msra.mxu0 %v8312
  %8895 = vmatprep.subr.bf16.mxu0 %v8306
  %8896 = vmatpush1.bf16.msra.mxu0 %v8305
  %8897 = vmatprep.subr.bf16.mxu0 %v8299
  %8898 = vmatpush1.bf16.msra.mxu0 %v8298
  %8899 = vmatprep.subr.bf16.mxu0 %v8292
  %8900 = vmatpush1.bf16.msra.mxu0 %v8291
  %8901 = vmatprep.subr.bf16.mxu0 %v8285
  %8902 = vmatpush1.bf16.msra.mxu0 %v8284
  %8903 = vmatprep.subr.bf16.mxu0 %v8278
  %8904 = vmatpush1.bf16.msra.mxu0 %v8277
  %8905 = vmatprep.subr.bf16.mxu0 %v8383
  %8906 = vmatpush2.bf16.msra.mxu0 %v8382
  %8907 = vmatprep.subr.bf16.mxu0 %v8376
  %8908 = vmatpush2.bf16.msra.mxu0 %v8375
  %8909 = vmatprep.subr.bf16.mxu0 %v8369
  %8910 = vmatpush2.bf16.msra.mxu0 %v8368
  %8911 = vmatprep.subr.bf16.mxu0 %v8362
  %8912 = vmatpush2.bf16.msra.mxu0 %v8361
  %8913 = vmatprep.subr.bf16.mxu0 %v8355
  %8914 = vmatpush2.bf16.msra.mxu0 %v8354
  %8915 = vmatprep.subr.bf16.mxu0 %v8348
  %8916 = vmatpush2.bf16.msra.mxu0 %v8347
  %8917 = vmatprep.subr.bf16.mxu0 %v8341
  %8918 = vmatpush2.bf16.msra.mxu0 %v8340
  %8919 = vmatprep.subr.bf16.mxu0 %v8334
  %8920 = vmatpush2.bf16.msra.mxu0 %v8333
  %8921 = vmatprep.mubr.bf16.mxu0 %v8762
  %8922 = vmatmul.mubr.bf16.gmra.mxu0 %v8761
  %v8923 = vpop.f32.mrf.mxu0
  %v8924 = vadd.f32 0.0, %v8923
  %v8925 = vpop.f32.mrf.mxu0
  %v8926 = vadd.f32 0.0, %v8925
  %v8927 = vpop.f32.mrf.mxu0
  %v8928 = vadd.f32 0.0, %v8927
  %v8929 = vpop.f32.mrf.mxu0
  %v8930 = vadd.f32 0.0, %v8929
  %8931 = vmatprep.mubr.bf16.mxu0 %v8766
  %8932 = vmatmul.mubr.bf16.gmra.mxu0 %v8765
  %v8933 = vpop.f32.mrf.mxu0
  %v8934 = vadd.f32 0.0, %v8933
  %v8935 = vpop.f32.mrf.mxu0
  %v8936 = vadd.f32 0.0, %v8935
  %v8937 = vpop.f32.mrf.mxu0
  %v8938 = vadd.f32 0.0, %v8937
  %v8939 = vpop.f32.mrf.mxu0
  %v8940 = vadd.f32 0.0, %v8939
  %8941 = vmatprep.mubr.bf16.mxu0 %v8770
  %8942 = vmatmul.mubr.bf16.gmra.mxu0 %v8769
  %v8943 = vpop.f32.mrf.mxu0
  %v8944 = vadd.f32 0.0, %v8943
  %v8945 = vpop.f32.mrf.mxu0
  %v8946 = vadd.f32 0.0, %v8945
  %v8947 = vpop.f32.mrf.mxu0
  %v8948 = vadd.f32 0.0, %v8947
  %v8949 = vpop.f32.mrf.mxu0
  %v8950 = vadd.f32 0.0, %v8949
  %8951 = vmatprep.mubr.bf16.mxu0 %v8774
  %8952 = vmatmul.mubr.bf16.gmra.mxu0 %v8773
  %v8953 = vpop.f32.mrf.mxu0
  %v8954 = vadd.f32 0.0, %v8953
  %v8955 = vpop.f32.mrf.mxu0
  %v8956 = vadd.f32 0.0, %v8955
  %v8957 = vpop.f32.mrf.mxu0
  %v8958 = vadd.f32 0.0, %v8957
  %v8959 = vpop.f32.mrf.mxu0
  %v8960 = vadd.f32 0.0, %v8959
  %8961 = vmatprep.mubr.bf16.mxu0 %v8778
  %8962 = vmatmul.mubr.bf16.gmra.mxu0 %v8777
  %v8963 = vpop.f32.mrf.mxu0
  %v8964 = vadd.f32 0.0, %v8963
  %v8965 = vpop.f32.mrf.mxu0
  %v8966 = vadd.f32 0.0, %v8965
  %v8967 = vpop.f32.mrf.mxu0
  %v8968 = vadd.f32 0.0, %v8967
  %v8969 = vpop.f32.mrf.mxu0
  %v8970 = vadd.f32 0.0, %v8969
  %8971 = vmatprep.mubr.bf16.mxu0 %v8782
  %8972 = vmatmul.mubr.bf16.gmra.mxu0 %v8781
  %v8973 = vpop.f32.mrf.mxu0
  %v8974 = vadd.f32 0.0, %v8973
  %v8975 = vpop.f32.mrf.mxu0
  %v8976 = vadd.f32 0.0, %v8975
  %v8977 = vpop.f32.mrf.mxu0
  %v8978 = vadd.f32 0.0, %v8977
  %v8979 = vpop.f32.mrf.mxu0
  %v8980 = vadd.f32 0.0, %v8979
  %8981 = vmatprep.mubr.bf16.mxu0 %v8786
  %8982 = vmatmul.mubr.bf16.gmra.mxu0 %v8785
  %v8983 = vpop.f32.mrf.mxu0
  %v8984 = vadd.f32 0.0, %v8983
  %v8985 = vpop.f32.mrf.mxu0
  %v8986 = vadd.f32 0.0, %v8985
  %v8987 = vpop.f32.mrf.mxu0
  %v8988 = vadd.f32 0.0, %v8987
  %v8989 = vpop.f32.mrf.mxu0
  %v8990 = vadd.f32 0.0, %v8989
  %8991 = vmatprep.mubr.bf16.mxu0 %v8790
  %8992 = vmatmul.mubr.bf16.gmra.mxu0 %v8789
  %v8993 = vpop.f32.mrf.mxu0
  %v8994 = vadd.f32 0.0, %v8993
  %v8995 = vpop.f32.mrf.mxu0
  %v8996 = vadd.f32 0.0, %v8995
  %v8997 = vpop.f32.mrf.mxu0
  %v8998 = vadd.f32 0.0, %v8997
  %v8999 = vpop.f32.mrf.mxu0
  %v9000 = vadd.f32 0.0, %v8999
  %9001 = vmatprep.mubr.bf16.mxu0 %v8794
  %9002 = vmatmul.mubr.bf16.gmra.mxu0 %v8793
  %v9003 = vpop.f32.mrf.mxu0
  %v9004 = vadd.f32 0.0, %v9003
  %v9005 = vpop.f32.mrf.mxu0
  %v9006 = vadd.f32 0.0, %v9005
  %v9007 = vpop.f32.mrf.mxu0
  %v9008 = vadd.f32 0.0, %v9007
  %v9009 = vpop.f32.mrf.mxu0
  %v9010 = vadd.f32 0.0, %v9009
  %9011 = vmatprep.mubr.bf16.mxu0 %v8798
  %9012 = vmatmul.mubr.bf16.gmra.mxu0 %v8797
  %v9013 = vpop.f32.mrf.mxu0
  %v9014 = vadd.f32 0.0, %v9013
  %v9015 = vpop.f32.mrf.mxu0
  %v9016 = vadd.f32 0.0, %v9015
  %v9017 = vpop.f32.mrf.mxu0
  %v9018 = vadd.f32 0.0, %v9017
  %v9019 = vpop.f32.mrf.mxu0
  %v9020 = vadd.f32 0.0, %v9019
  %9021 = vmatprep.mubr.bf16.mxu0 %v8802
  %9022 = vmatmul.mubr.bf16.gmra.mxu0 %v8801
  %v9023 = vpop.f32.mrf.mxu0
  %v9024 = vadd.f32 0.0, %v9023
  %v9025 = vpop.f32.mrf.mxu0
  %v9026 = vadd.f32 0.0, %v9025
  %v9027 = vpop.f32.mrf.mxu0
  %v9028 = vadd.f32 0.0, %v9027
  %v9029 = vpop.f32.mrf.mxu0
  %v9030 = vadd.f32 0.0, %v9029
  %9031 = vmatprep.mubr.bf16.mxu0 %v8806
  %9032 = vmatmul.mubr.bf16.gmra.mxu0 %v8805
  %v9033 = vpop.f32.mrf.mxu0
  %v9034 = vadd.f32 0.0, %v9033
  %v9035 = vpop.f32.mrf.mxu0
  %v9036 = vadd.f32 0.0, %v9035
  %v9037 = vpop.f32.mrf.mxu0
  %v9038 = vadd.f32 0.0, %v9037
  %v9039 = vpop.f32.mrf.mxu0
  %v9040 = vadd.f32 0.0, %v9039
  %9041 = vmatprep.mubr.bf16.mxu0 %v8810
  %9042 = vmatmul.mubr.bf16.gmra.mxu0 %v8809
  %v9043 = vpop.f32.mrf.mxu0
  %v9044 = vadd.f32 0.0, %v9043
  %v9045 = vpop.f32.mrf.mxu0
  %v9046 = vadd.f32 0.0, %v9045
  %v9047 = vpop.f32.mrf.mxu0
  %v9048 = vadd.f32 0.0, %v9047
  %v9049 = vpop.f32.mrf.mxu0
  %v9050 = vadd.f32 0.0, %v9049
  %9051 = vmatprep.mubr.bf16.mxu0 %v8814
  %9052 = vmatmul.mubr.bf16.gmra.mxu0 %v8813
  %v9053 = vpop.f32.mrf.mxu0
  %v9054 = vadd.f32 0.0, %v9053
  %v9055 = vpop.f32.mrf.mxu0
  %v9056 = vadd.f32 0.0, %v9055
  %v9057 = vpop.f32.mrf.mxu0
  %v9058 = vadd.f32 0.0, %v9057
  %v9059 = vpop.f32.mrf.mxu0
  %v9060 = vadd.f32 0.0, %v9059
  %9061 = vmatprep.mubr.bf16.mxu0 %v8818
  %9062 = vmatmul.mubr.bf16.gmra.mxu0 %v8817
  %v9063 = vpop.f32.mrf.mxu0
  %v9064 = vadd.f32 0.0, %v9063
  %v9065 = vpop.f32.mrf.mxu0
  %v9066 = vadd.f32 0.0, %v9065
  %v9067 = vpop.f32.mrf.mxu0
  %v9068 = vadd.f32 0.0, %v9067
  %v9069 = vpop.f32.mrf.mxu0
  %v9070 = vadd.f32 0.0, %v9069
  %9071 = vmatprep.mubr.bf16.mxu0 %v8822
  %9072 = vmatmul.mubr.bf16.gmra.mxu0 %v8821
  %v9073 = vpop.f32.mrf.mxu0
  %v9074 = vadd.f32 0.0, %v9073
  %v9075 = vpop.f32.mrf.mxu0
  %v9076 = vadd.f32 0.0, %v9075
  %v9077 = vpop.f32.mrf.mxu0
  %v9078 = vadd.f32 0.0, %v9077
  %v9079 = vpop.f32.mrf.mxu0
  %v9080 = vadd.f32 0.0, %v9079
  %9081 = vdwg.mxu0
  %9082 = vmatprep.subr.bf16.mxu0 %v8439
  %9083 = vmatpush1.bf16.msra.mxu0 %v8438
  %9084 = vmatprep.subr.bf16.mxu0 %v8432
  %9085 = vmatpush1.bf16.msra.mxu0 %v8431
  %9086 = vmatprep.subr.bf16.mxu0 %v8425
  %9087 = vmatpush1.bf16.msra.mxu0 %v8424
  %9088 = vmatprep.subr.bf16.mxu0 %v8418
  %9089 = vmatpush1.bf16.msra.mxu0 %v8417
  %9090 = vmatprep.subr.bf16.mxu0 %v8411
  %9091 = vmatpush1.bf16.msra.mxu0 %v8410
  %9092 = vmatprep.subr.bf16.mxu0 %v8404
  %9093 = vmatpush1.bf16.msra.mxu0 %v8403
  %9094 = vmatprep.subr.bf16.mxu0 %v8397
  %9095 = vmatpush1.bf16.msra.mxu0 %v8396
  %9096 = vmatprep.subr.bf16.mxu0 %v8390
  %9097 = vmatpush1.bf16.msra.mxu0 %v8389
  %9098 = vmatprep.subr.bf16.mxu0 %v8495
  %9099 = vmatpush2.bf16.msra.mxu0 %v8494
  %9100 = vmatprep.subr.bf16.mxu0 %v8488
  %9101 = vmatpush2.bf16.msra.mxu0 %v8487
  %9102 = vmatprep.subr.bf16.mxu0 %v8481
  %9103 = vmatpush2.bf16.msra.mxu0 %v8480
  %9104 = vmatprep.subr.bf16.mxu0 %v8474
  %9105 = vmatpush2.bf16.msra.mxu0 %v8473
  %9106 = vmatprep.subr.bf16.mxu0 %v8467
  %9107 = vmatpush2.bf16.msra.mxu0 %v8466
  %9108 = vmatprep.subr.bf16.mxu0 %v8460
  %9109 = vmatpush2.bf16.msra.mxu0 %v8459
  %9110 = vmatprep.subr.bf16.mxu0 %v8453
  %9111 = vmatpush2.bf16.msra.mxu0 %v8452
  %9112 = vmatprep.subr.bf16.mxu0 %v8446
  %9113 = vmatpush2.bf16.msra.mxu0 %v8445
  %9114 = vmatprep.mubr.bf16.mxu0 %v8764
  %9115 = vmatmul.mubr.bf16.gmra.mxu0 %v8763
  %v9116 = vpop.f32.mrf.mxu0
  %v9117 = vadd.f32 %v8924, %v9116
  %v9118 = vpop.f32.mrf.mxu0
  %v9119 = vadd.f32 %v8926, %v9118
  %v9120 = vpop.f32.mrf.mxu0
  %v9121 = vadd.f32 %v8928, %v9120
  %v9122 = vpop.f32.mrf.mxu0
  %v9123 = vadd.f32 %v8930, %v9122
  %9124 = vmatprep.mubr.bf16.mxu0 %v8768
  %9125 = vmatmul.mubr.bf16.gmra.mxu0 %v8767
  %v9126 = vpop.f32.mrf.mxu0
  %v9127 = vadd.f32 %v8934, %v9126
  %v9128 = vpop.f32.mrf.mxu0
  %v9129 = vadd.f32 %v8936, %v9128
  %v9130 = vpop.f32.mrf.mxu0
  %v9131 = vadd.f32 %v8938, %v9130
  %v9132 = vpop.f32.mrf.mxu0
  %v9133 = vadd.f32 %v8940, %v9132
  %9134 = vmatprep.mubr.bf16.mxu0 %v8772
  %9135 = vmatmul.mubr.bf16.gmra.mxu0 %v8771
  %v9136 = vpop.f32.mrf.mxu0
  %v9137 = vadd.f32 %v8944, %v9136
  %v9138 = vpop.f32.mrf.mxu0
  %v9139 = vadd.f32 %v8946, %v9138
  %v9140 = vpop.f32.mrf.mxu0
  %v9141 = vadd.f32 %v8948, %v9140
  %v9142 = vpop.f32.mrf.mxu0
  %v9143 = vadd.f32 %v8950, %v9142
  %9144 = vmatprep.mubr.bf16.mxu0 %v8776
  %9145 = vmatmul.mubr.bf16.gmra.mxu0 %v8775
  %v9146 = vpop.f32.mrf.mxu0
  %v9147 = vadd.f32 %v8954, %v9146
  %v9148 = vpop.f32.mrf.mxu0
  %v9149 = vadd.f32 %v8956, %v9148
  %v9150 = vpop.f32.mrf.mxu0
  %v9151 = vadd.f32 %v8958, %v9150
  %v9152 = vpop.f32.mrf.mxu0
  %v9153 = vadd.f32 %v8960, %v9152
  %9154 = vmatprep.mubr.bf16.mxu0 %v8780
  %9155 = vmatmul.mubr.bf16.gmra.mxu0 %v8779
  %v9156 = vpop.f32.mrf.mxu0
  %v9157 = vadd.f32 %v8964, %v9156
  %v9158 = vpop.f32.mrf.mxu0
  %v9159 = vadd.f32 %v8966, %v9158
  %v9160 = vpop.f32.mrf.mxu0
  %v9161 = vadd.f32 %v8968, %v9160
  %v9162 = vpop.f32.mrf.mxu0
  %v9163 = vadd.f32 %v8970, %v9162
  %9164 = vmatprep.mubr.bf16.mxu0 %v8784
  %9165 = vmatmul.mubr.bf16.gmra.mxu0 %v8783
  %v9166 = vpop.f32.mrf.mxu0
  %v9167 = vadd.f32 %v8974, %v9166
  %v9168 = vpop.f32.mrf.mxu0
  %v9169 = vadd.f32 %v8976, %v9168
  %v9170 = vpop.f32.mrf.mxu0
  %v9171 = vadd.f32 %v8978, %v9170
  %v9172 = vpop.f32.mrf.mxu0
  %v9173 = vadd.f32 %v8980, %v9172
  %9174 = vmatprep.mubr.bf16.mxu0 %v8788
  %9175 = vmatmul.mubr.bf16.gmra.mxu0 %v8787
  %v9176 = vpop.f32.mrf.mxu0
  %v9177 = vadd.f32 %v8984, %v9176
  %v9178 = vpop.f32.mrf.mxu0
  %v9179 = vadd.f32 %v8986, %v9178
  %v9180 = vpop.f32.mrf.mxu0
  %v9181 = vadd.f32 %v8988, %v9180
  %v9182 = vpop.f32.mrf.mxu0
  %v9183 = vadd.f32 %v8990, %v9182
  %9184 = vmatprep.mubr.bf16.mxu0 %v8792
  %9185 = vmatmul.mubr.bf16.gmra.mxu0 %v8791
  %v9186 = vpop.f32.mrf.mxu0
  %v9187 = vadd.f32 %v8994, %v9186
  %v9188 = vpop.f32.mrf.mxu0
  %v9189 = vadd.f32 %v8996, %v9188
  %v9190 = vpop.f32.mrf.mxu0
  %v9191 = vadd.f32 %v8998, %v9190
  %v9192 = vpop.f32.mrf.mxu0
  %v9193 = vadd.f32 %v9000, %v9192
  %9194 = vmatprep.mubr.bf16.mxu0 %v8796
  %9195 = vmatmul.mubr.bf16.gmra.mxu0 %v8795
  %v9196 = vpop.f32.mrf.mxu0
  %v9197 = vadd.f32 %v9004, %v9196
  %v9198 = vpop.f32.mrf.mxu0
  %v9199 = vadd.f32 %v9006, %v9198
  %v9200 = vpop.f32.mrf.mxu0
  %v9201 = vadd.f32 %v9008, %v9200
  %v9202 = vpop.f32.mrf.mxu0
  %v9203 = vadd.f32 %v9010, %v9202
  %9204 = vmatprep.mubr.bf16.mxu0 %v8800
  %9205 = vmatmul.mubr.bf16.gmra.mxu0 %v8799
  %v9206 = vpop.f32.mrf.mxu0
  %v9207 = vadd.f32 %v9014, %v9206
  %v9208 = vpop.f32.mrf.mxu0
  %v9209 = vadd.f32 %v9016, %v9208
  %v9210 = vpop.f32.mrf.mxu0
  %v9211 = vadd.f32 %v9018, %v9210
  %v9212 = vpop.f32.mrf.mxu0
  %v9213 = vadd.f32 %v9020, %v9212
  %9214 = vmatprep.mubr.bf16.mxu0 %v8804
  %9215 = vmatmul.mubr.bf16.gmra.mxu0 %v8803
  %v9216 = vpop.f32.mrf.mxu0
  %v9217 = vadd.f32 %v9024, %v9216
  %v9218 = vpop.f32.mrf.mxu0
  %v9219 = vadd.f32 %v9026, %v9218
  %v9220 = vpop.f32.mrf.mxu0
  %v9221 = vadd.f32 %v9028, %v9220
  %v9222 = vpop.f32.mrf.mxu0
  %v9223 = vadd.f32 %v9030, %v9222
  %9224 = vmatprep.mubr.bf16.mxu0 %v8808
  %9225 = vmatmul.mubr.bf16.gmra.mxu0 %v8807
  %v9226 = vpop.f32.mrf.mxu0
  %v9227 = vadd.f32 %v9034, %v9226
  %v9228 = vpop.f32.mrf.mxu0
  %v9229 = vadd.f32 %v9036, %v9228
  %v9230 = vpop.f32.mrf.mxu0
  %v9231 = vadd.f32 %v9038, %v9230
  %v9232 = vpop.f32.mrf.mxu0
  %v9233 = vadd.f32 %v9040, %v9232
  %9234 = vmatprep.mubr.bf16.mxu0 %v8812
  %9235 = vmatmul.mubr.bf16.gmra.mxu0 %v8811
  %v9236 = vpop.f32.mrf.mxu0
  %v9237 = vadd.f32 %v9044, %v9236
  %v9238 = vpop.f32.mrf.mxu0
  %v9239 = vadd.f32 %v9046, %v9238
  %v9240 = vpop.f32.mrf.mxu0
  %v9241 = vadd.f32 %v9048, %v9240
  %v9242 = vpop.f32.mrf.mxu0
  %v9243 = vadd.f32 %v9050, %v9242
  %9244 = vmatprep.mubr.bf16.mxu0 %v8816
  %9245 = vmatmul.mubr.bf16.gmra.mxu0 %v8815
  %v9246 = vpop.f32.mrf.mxu0
  %v9247 = vadd.f32 %v9054, %v9246
  %v9248 = vpop.f32.mrf.mxu0
  %v9249 = vadd.f32 %v9056, %v9248
  %v9250 = vpop.f32.mrf.mxu0
  %v9251 = vadd.f32 %v9058, %v9250
  %v9252 = vpop.f32.mrf.mxu0
  %v9253 = vadd.f32 %v9060, %v9252
  %9254 = vmatprep.mubr.bf16.mxu0 %v8820
  %9255 = vmatmul.mubr.bf16.gmra.mxu0 %v8819
  %v9256 = vpop.f32.mrf.mxu0
  %v9257 = vadd.f32 %v9064, %v9256
  %v9258 = vpop.f32.mrf.mxu0
  %v9259 = vadd.f32 %v9066, %v9258
  %v9260 = vpop.f32.mrf.mxu0
  %v9261 = vadd.f32 %v9068, %v9260
  %v9262 = vpop.f32.mrf.mxu0
  %v9263 = vadd.f32 %v9070, %v9262
  %9264 = vmatprep.mubr.bf16.mxu0 %v8824
  %9265 = vmatmul.mubr.bf16.gmra.mxu0 %v8823
  %v9266 = vpop.f32.mrf.mxu0
  %v9267 = vadd.f32 %v9074, %v9266
  %v9268 = vpop.f32.mrf.mxu0
  %v9269 = vadd.f32 %v9076, %v9268
  %v9270 = vpop.f32.mrf.mxu0
  %v9271 = vadd.f32 %v9078, %v9270
  %v9272 = vpop.f32.mrf.mxu0
  %v9273 = vadd.f32 %v9080, %v9272
  %9274 = vdwg.mxu0
  %9275 = vmatprep.subr.bf16.mxu0 %v8329
  %9276 = vmatpush1.bf16.msra.mxu0 %v8328
  %9277 = vmatprep.subr.bf16.mxu0 %v8322
  %9278 = vmatpush1.bf16.msra.mxu0 %v8321
  %9279 = vmatprep.subr.bf16.mxu0 %v8315
  %9280 = vmatpush1.bf16.msra.mxu0 %v8314
  %9281 = vmatprep.subr.bf16.mxu0 %v8308
  %9282 = vmatpush1.bf16.msra.mxu0 %v8307
  %9283 = vmatprep.subr.bf16.mxu0 %v8301
  %9284 = vmatpush1.bf16.msra.mxu0 %v8300
  %9285 = vmatprep.subr.bf16.mxu0 %v8294
  %9286 = vmatpush1.bf16.msra.mxu0 %v8293
  %9287 = vmatprep.subr.bf16.mxu0 %v8287
  %9288 = vmatpush1.bf16.msra.mxu0 %v8286
  %9289 = vmatprep.subr.bf16.mxu0 %v8280
  %9290 = vmatpush1.bf16.msra.mxu0 %v8279
  %9291 = vmatprep.subr.bf16.mxu0 %v8385
  %9292 = vmatpush2.bf16.msra.mxu0 %v8384
  %9293 = vmatprep.subr.bf16.mxu0 %v8378
  %9294 = vmatpush2.bf16.msra.mxu0 %v8377
  %9295 = vmatprep.subr.bf16.mxu0 %v8371
  %9296 = vmatpush2.bf16.msra.mxu0 %v8370
  %9297 = vmatprep.subr.bf16.mxu0 %v8364
  %9298 = vmatpush2.bf16.msra.mxu0 %v8363
  %9299 = vmatprep.subr.bf16.mxu0 %v8357
  %9300 = vmatpush2.bf16.msra.mxu0 %v8356
  %9301 = vmatprep.subr.bf16.mxu0 %v8350
  %9302 = vmatpush2.bf16.msra.mxu0 %v8349
  %9303 = vmatprep.subr.bf16.mxu0 %v8343
  %9304 = vmatpush2.bf16.msra.mxu0 %v8342
  %9305 = vmatprep.subr.bf16.mxu0 %v8336
  %9306 = vmatpush2.bf16.msra.mxu0 %v8335
  %9307 = vmatprep.mubr.bf16.mxu0 %v8762
  %9308 = vmatmul.mubr.bf16.gmra.mxu0 %v8761
  %v9309 = vpop.f32.mrf.mxu0
  %v9310 = vadd.f32 0.0, %v9309
  %v9311 = vpop.f32.mrf.mxu0
  %v9312 = vadd.f32 0.0, %v9311
  %v9313 = vpop.f32.mrf.mxu0
  %v9314 = vadd.f32 0.0, %v9313
  %v9315 = vpop.f32.mrf.mxu0
  %v9316 = vadd.f32 0.0, %v9315
  %9317 = vmatprep.mubr.bf16.mxu0 %v8766
  %9318 = vmatmul.mubr.bf16.gmra.mxu0 %v8765
  %v9319 = vpop.f32.mrf.mxu0
  %v9320 = vadd.f32 0.0, %v9319
  %v9321 = vpop.f32.mrf.mxu0
  %v9322 = vadd.f32 0.0, %v9321
  %v9323 = vpop.f32.mrf.mxu0
  %v9324 = vadd.f32 0.0, %v9323
  %v9325 = vpop.f32.mrf.mxu0
  %v9326 = vadd.f32 0.0, %v9325
  %9327 = vmatprep.mubr.bf16.mxu0 %v8770
  %9328 = vmatmul.mubr.bf16.gmra.mxu0 %v8769
  %v9329 = vpop.f32.mrf.mxu0
  %v9330 = vadd.f32 0.0, %v9329
  %v9331 = vpop.f32.mrf.mxu0
  %v9332 = vadd.f32 0.0, %v9331
  %v9333 = vpop.f32.mrf.mxu0
  %v9334 = vadd.f32 0.0, %v9333
  %v9335 = vpop.f32.mrf.mxu0
  %v9336 = vadd.f32 0.0, %v9335
  %9337 = vmatprep.mubr.bf16.mxu0 %v8774
  %9338 = vmatmul.mubr.bf16.gmra.mxu0 %v8773
  %v9339 = vpop.f32.mrf.mxu0
  %v9340 = vadd.f32 0.0, %v9339
  %v9341 = vpop.f32.mrf.mxu0
  %v9342 = vadd.f32 0.0, %v9341
  %v9343 = vpop.f32.mrf.mxu0
  %v9344 = vadd.f32 0.0, %v9343
  %v9345 = vpop.f32.mrf.mxu0
  %v9346 = vadd.f32 0.0, %v9345
  %9347 = vmatprep.mubr.bf16.mxu0 %v8778
  %9348 = vmatmul.mubr.bf16.gmra.mxu0 %v8777
  %v9349 = vpop.f32.mrf.mxu0
  %v9350 = vadd.f32 0.0, %v9349
  %v9351 = vpop.f32.mrf.mxu0
  %v9352 = vadd.f32 0.0, %v9351
  %v9353 = vpop.f32.mrf.mxu0
  %v9354 = vadd.f32 0.0, %v9353
  %v9355 = vpop.f32.mrf.mxu0
  %v9356 = vadd.f32 0.0, %v9355
  %9357 = vmatprep.mubr.bf16.mxu0 %v8782
  %9358 = vmatmul.mubr.bf16.gmra.mxu0 %v8781
  %v9359 = vpop.f32.mrf.mxu0
  %v9360 = vadd.f32 0.0, %v9359
  %v9361 = vpop.f32.mrf.mxu0
  %v9362 = vadd.f32 0.0, %v9361
  %v9363 = vpop.f32.mrf.mxu0
  %v9364 = vadd.f32 0.0, %v9363
  %v9365 = vpop.f32.mrf.mxu0
  %v9366 = vadd.f32 0.0, %v9365
  %9367 = vmatprep.mubr.bf16.mxu0 %v8786
  %9368 = vmatmul.mubr.bf16.gmra.mxu0 %v8785
  %v9369 = vpop.f32.mrf.mxu0
  %v9370 = vadd.f32 0.0, %v9369
  %v9371 = vpop.f32.mrf.mxu0
  %v9372 = vadd.f32 0.0, %v9371
  %v9373 = vpop.f32.mrf.mxu0
  %v9374 = vadd.f32 0.0, %v9373
  %v9375 = vpop.f32.mrf.mxu0
  %v9376 = vadd.f32 0.0, %v9375
  %9377 = vmatprep.mubr.bf16.mxu0 %v8790
  %9378 = vmatmul.mubr.bf16.gmra.mxu0 %v8789
  %v9379 = vpop.f32.mrf.mxu0
  %v9380 = vadd.f32 0.0, %v9379
  %v9381 = vpop.f32.mrf.mxu0
  %v9382 = vadd.f32 0.0, %v9381
  %v9383 = vpop.f32.mrf.mxu0
  %v9384 = vadd.f32 0.0, %v9383
  %v9385 = vpop.f32.mrf.mxu0
  %v9386 = vadd.f32 0.0, %v9385
  %9387 = vmatprep.mubr.bf16.mxu0 %v8794
  %9388 = vmatmul.mubr.bf16.gmra.mxu0 %v8793
  %v9389 = vpop.f32.mrf.mxu0
  %v9390 = vadd.f32 0.0, %v9389
  %v9391 = vpop.f32.mrf.mxu0
  %v9392 = vadd.f32 0.0, %v9391
  %v9393 = vpop.f32.mrf.mxu0
  %v9394 = vadd.f32 0.0, %v9393
  %v9395 = vpop.f32.mrf.mxu0
  %v9396 = vadd.f32 0.0, %v9395
  %9397 = vmatprep.mubr.bf16.mxu0 %v8798
  %9398 = vmatmul.mubr.bf16.gmra.mxu0 %v8797
  %v9399 = vpop.f32.mrf.mxu0
  %v9400 = vadd.f32 0.0, %v9399
  %v9401 = vpop.f32.mrf.mxu0
  %v9402 = vadd.f32 0.0, %v9401
  %v9403 = vpop.f32.mrf.mxu0
  %v9404 = vadd.f32 0.0, %v9403
  %v9405 = vpop.f32.mrf.mxu0
  %v9406 = vadd.f32 0.0, %v9405
  %9407 = vmatprep.mubr.bf16.mxu0 %v8802
  %9408 = vmatmul.mubr.bf16.gmra.mxu0 %v8801
  %v9409 = vpop.f32.mrf.mxu0
  %v9410 = vadd.f32 0.0, %v9409
  %v9411 = vpop.f32.mrf.mxu0
  %v9412 = vadd.f32 0.0, %v9411
  %v9413 = vpop.f32.mrf.mxu0
  %v9414 = vadd.f32 0.0, %v9413
  %v9415 = vpop.f32.mrf.mxu0
  %v9416 = vadd.f32 0.0, %v9415
  %9417 = vmatprep.mubr.bf16.mxu0 %v8806
  %9418 = vmatmul.mubr.bf16.gmra.mxu0 %v8805
  %v9419 = vpop.f32.mrf.mxu0
  %v9420 = vadd.f32 0.0, %v9419
  %v9421 = vpop.f32.mrf.mxu0
  %v9422 = vadd.f32 0.0, %v9421
  %v9423 = vpop.f32.mrf.mxu0
  %v9424 = vadd.f32 0.0, %v9423
  %v9425 = vpop.f32.mrf.mxu0
  %v9426 = vadd.f32 0.0, %v9425
  %9427 = vmatprep.mubr.bf16.mxu0 %v8810
  %9428 = vmatmul.mubr.bf16.gmra.mxu0 %v8809
  %v9429 = vpop.f32.mrf.mxu0
  %v9430 = vadd.f32 0.0, %v9429
  %v9431 = vpop.f32.mrf.mxu0
  %v9432 = vadd.f32 0.0, %v9431
  %v9433 = vpop.f32.mrf.mxu0
  %v9434 = vadd.f32 0.0, %v9433
  %v9435 = vpop.f32.mrf.mxu0
  %v9436 = vadd.f32 0.0, %v9435
  %9437 = vmatprep.mubr.bf16.mxu0 %v8814
  %9438 = vmatmul.mubr.bf16.gmra.mxu0 %v8813
  %v9439 = vpop.f32.mrf.mxu0
  %v9440 = vadd.f32 0.0, %v9439
  %v9441 = vpop.f32.mrf.mxu0
  %v9442 = vadd.f32 0.0, %v9441
  %v9443 = vpop.f32.mrf.mxu0
  %v9444 = vadd.f32 0.0, %v9443
  %v9445 = vpop.f32.mrf.mxu0
  %v9446 = vadd.f32 0.0, %v9445
  %9447 = vmatprep.mubr.bf16.mxu0 %v8818
  %9448 = vmatmul.mubr.bf16.gmra.mxu0 %v8817
  %v9449 = vpop.f32.mrf.mxu0
  %v9450 = vadd.f32 0.0, %v9449
  %v9451 = vpop.f32.mrf.mxu0
  %v9452 = vadd.f32 0.0, %v9451
  %v9453 = vpop.f32.mrf.mxu0
  %v9454 = vadd.f32 0.0, %v9453
  %v9455 = vpop.f32.mrf.mxu0
  %v9456 = vadd.f32 0.0, %v9455
  %9457 = vmatprep.mubr.bf16.mxu0 %v8822
  %9458 = vmatmul.mubr.bf16.gmra.mxu0 %v8821
  %v9459 = vpop.f32.mrf.mxu0
  %v9460 = vadd.f32 0.0, %v9459
  %v9461 = vpop.f32.mrf.mxu0
  %v9462 = vadd.f32 0.0, %v9461
  %v9463 = vpop.f32.mrf.mxu0
  %v9464 = vadd.f32 0.0, %v9463
  %v9465 = vpop.f32.mrf.mxu0
  %v9466 = vadd.f32 0.0, %v9465
  %9467 = vdwg.mxu0
  %9468 = vmatprep.subr.bf16.mxu0 %v8441
  %9469 = vmatpush1.bf16.msra.mxu0 %v8440
  %9470 = vmatprep.subr.bf16.mxu0 %v8434
  %9471 = vmatpush1.bf16.msra.mxu0 %v8433
  %9472 = vmatprep.subr.bf16.mxu0 %v8427
  %9473 = vmatpush1.bf16.msra.mxu0 %v8426
  %9474 = vmatprep.subr.bf16.mxu0 %v8420
  %9475 = vmatpush1.bf16.msra.mxu0 %v8419
  %9476 = vmatprep.subr.bf16.mxu0 %v8413
  %9477 = vmatpush1.bf16.msra.mxu0 %v8412
  %9478 = vmatprep.subr.bf16.mxu0 %v8406
  %9479 = vmatpush1.bf16.msra.mxu0 %v8405
  %9480 = vmatprep.subr.bf16.mxu0 %v8399
  %9481 = vmatpush1.bf16.msra.mxu0 %v8398
  %9482 = vmatprep.subr.bf16.mxu0 %v8392
  %9483 = vmatpush1.bf16.msra.mxu0 %v8391
  %9484 = vmatprep.subr.bf16.mxu0 %v8497
  %9485 = vmatpush2.bf16.msra.mxu0 %v8496
  %9486 = vmatprep.subr.bf16.mxu0 %v8490
  %9487 = vmatpush2.bf16.msra.mxu0 %v8489
  %9488 = vmatprep.subr.bf16.mxu0 %v8483
  %9489 = vmatpush2.bf16.msra.mxu0 %v8482
  %9490 = vmatprep.subr.bf16.mxu0 %v8476
  %9491 = vmatpush2.bf16.msra.mxu0 %v8475
  %9492 = vmatprep.subr.bf16.mxu0 %v8469
  %9493 = vmatpush2.bf16.msra.mxu0 %v8468
  %9494 = vmatprep.subr.bf16.mxu0 %v8462
  %9495 = vmatpush2.bf16.msra.mxu0 %v8461
  %9496 = vmatprep.subr.bf16.mxu0 %v8455
  %9497 = vmatpush2.bf16.msra.mxu0 %v8454
  %9498 = vmatprep.subr.bf16.mxu0 %v8448
  %9499 = vmatpush2.bf16.msra.mxu0 %v8447
  %9500 = vmatprep.mubr.bf16.mxu0 %v8764
  %9501 = vmatmul.mubr.bf16.gmra.mxu0 %v8763
  %v9502 = vpop.f32.mrf.mxu0
  %v9503 = vadd.f32 %v9310, %v9502
  %v9504 = vpop.f32.mrf.mxu0
  %v9505 = vadd.f32 %v9312, %v9504
  %v9506 = vpop.f32.mrf.mxu0
  %v9507 = vadd.f32 %v9314, %v9506
  %v9508 = vpop.f32.mrf.mxu0
  %v9509 = vadd.f32 %v9316, %v9508
  %9510 = vmatprep.mubr.bf16.mxu0 %v8768
  %9511 = vmatmul.mubr.bf16.gmra.mxu0 %v8767
  %v9512 = vpop.f32.mrf.mxu0
  %v9513 = vadd.f32 %v9320, %v9512
  %v9514 = vpop.f32.mrf.mxu0
  %v9515 = vadd.f32 %v9322, %v9514
  %v9516 = vpop.f32.mrf.mxu0
  %v9517 = vadd.f32 %v9324, %v9516
  %v9518 = vpop.f32.mrf.mxu0
  %v9519 = vadd.f32 %v9326, %v9518
  %9520 = vmatprep.mubr.bf16.mxu0 %v8772
  %9521 = vmatmul.mubr.bf16.gmra.mxu0 %v8771
  %v9522 = vpop.f32.mrf.mxu0
  %v9523 = vadd.f32 %v9330, %v9522
  %v9524 = vpop.f32.mrf.mxu0
  %v9525 = vadd.f32 %v9332, %v9524
  %v9526 = vpop.f32.mrf.mxu0
  %v9527 = vadd.f32 %v9334, %v9526
  %v9528 = vpop.f32.mrf.mxu0
  %v9529 = vadd.f32 %v9336, %v9528
  %9530 = vmatprep.mubr.bf16.mxu0 %v8776
  %9531 = vmatmul.mubr.bf16.gmra.mxu0 %v8775
  %v9532 = vpop.f32.mrf.mxu0
  %v9533 = vadd.f32 %v9340, %v9532
  %v9534 = vpop.f32.mrf.mxu0
  %v9535 = vadd.f32 %v9342, %v9534
  %v9536 = vpop.f32.mrf.mxu0
  %v9537 = vadd.f32 %v9344, %v9536
  %v9538 = vpop.f32.mrf.mxu0
  %v9539 = vadd.f32 %v9346, %v9538
  %9540 = vmatprep.mubr.bf16.mxu0 %v8780
  %9541 = vmatmul.mubr.bf16.gmra.mxu0 %v8779
  %v9542 = vpop.f32.mrf.mxu0
  %v9543 = vadd.f32 %v9350, %v9542
  %v9544 = vpop.f32.mrf.mxu0
  %v9545 = vadd.f32 %v9352, %v9544
  %v9546 = vpop.f32.mrf.mxu0
  %v9547 = vadd.f32 %v9354, %v9546
  %v9548 = vpop.f32.mrf.mxu0
  %v9549 = vadd.f32 %v9356, %v9548
  %9550 = vmatprep.mubr.bf16.mxu0 %v8784
  %9551 = vmatmul.mubr.bf16.gmra.mxu0 %v8783
  %v9552 = vpop.f32.mrf.mxu0
  %v9553 = vadd.f32 %v9360, %v9552
  %v9554 = vpop.f32.mrf.mxu0
  %v9555 = vadd.f32 %v9362, %v9554
  %v9556 = vpop.f32.mrf.mxu0
  %v9557 = vadd.f32 %v9364, %v9556
  %v9558 = vpop.f32.mrf.mxu0
  %v9559 = vadd.f32 %v9366, %v9558
  %9560 = vmatprep.mubr.bf16.mxu0 %v8788
  %9561 = vmatmul.mubr.bf16.gmra.mxu0 %v8787
  %v9562 = vpop.f32.mrf.mxu0
  %v9563 = vadd.f32 %v9370, %v9562
  %v9564 = vpop.f32.mrf.mxu0
  %v9565 = vadd.f32 %v9372, %v9564
  %v9566 = vpop.f32.mrf.mxu0
  %v9567 = vadd.f32 %v9374, %v9566
  %v9568 = vpop.f32.mrf.mxu0
  %v9569 = vadd.f32 %v9376, %v9568
  %9570 = vmatprep.mubr.bf16.mxu0 %v8792
  %9571 = vmatmul.mubr.bf16.gmra.mxu0 %v8791
  %v9572 = vpop.f32.mrf.mxu0
  %v9573 = vadd.f32 %v9380, %v9572
  %v9574 = vpop.f32.mrf.mxu0
  %v9575 = vadd.f32 %v9382, %v9574
  %v9576 = vpop.f32.mrf.mxu0
  %v9577 = vadd.f32 %v9384, %v9576
  %v9578 = vpop.f32.mrf.mxu0
  %v9579 = vadd.f32 %v9386, %v9578
  %9580 = vmatprep.mubr.bf16.mxu0 %v8796
  %9581 = vmatmul.mubr.bf16.gmra.mxu0 %v8795
  %v9582 = vpop.f32.mrf.mxu0
  %v9583 = vadd.f32 %v9390, %v9582
  %v9584 = vpop.f32.mrf.mxu0
  %v9585 = vadd.f32 %v9392, %v9584
  %v9586 = vpop.f32.mrf.mxu0
  %v9587 = vadd.f32 %v9394, %v9586
  %v9588 = vpop.f32.mrf.mxu0
  %v9589 = vadd.f32 %v9396, %v9588
  %9590 = vmatprep.mubr.bf16.mxu0 %v8800
  %9591 = vmatmul.mubr.bf16.gmra.mxu0 %v8799
  %v9592 = vpop.f32.mrf.mxu0
  %v9593 = vadd.f32 %v9400, %v9592
  %v9594 = vpop.f32.mrf.mxu0
  %v9595 = vadd.f32 %v9402, %v9594
  %v9596 = vpop.f32.mrf.mxu0
  %v9597 = vadd.f32 %v9404, %v9596
  %v9598 = vpop.f32.mrf.mxu0
  %v9599 = vadd.f32 %v9406, %v9598
  %9600 = vmatprep.mubr.bf16.mxu0 %v8804
  %9601 = vmatmul.mubr.bf16.gmra.mxu0 %v8803
  %v9602 = vpop.f32.mrf.mxu0
  %v9603 = vadd.f32 %v9410, %v9602
  %v9604 = vpop.f32.mrf.mxu0
  %v9605 = vadd.f32 %v9412, %v9604
  %v9606 = vpop.f32.mrf.mxu0
  %v9607 = vadd.f32 %v9414, %v9606
  %v9608 = vpop.f32.mrf.mxu0
  %v9609 = vadd.f32 %v9416, %v9608
  %9610 = vmatprep.mubr.bf16.mxu0 %v8808
  %9611 = vmatmul.mubr.bf16.gmra.mxu0 %v8807
  %v9612 = vpop.f32.mrf.mxu0
  %v9613 = vadd.f32 %v9420, %v9612
  %v9614 = vpop.f32.mrf.mxu0
  %v9615 = vadd.f32 %v9422, %v9614
  %v9616 = vpop.f32.mrf.mxu0
  %v9617 = vadd.f32 %v9424, %v9616
  %v9618 = vpop.f32.mrf.mxu0
  %v9619 = vadd.f32 %v9426, %v9618
  %9620 = vmatprep.mubr.bf16.mxu0 %v8812
  %9621 = vmatmul.mubr.bf16.gmra.mxu0 %v8811
  %v9622 = vpop.f32.mrf.mxu0
  %v9623 = vadd.f32 %v9430, %v9622
  %v9624 = vpop.f32.mrf.mxu0
  %v9625 = vadd.f32 %v9432, %v9624
  %v9626 = vpop.f32.mrf.mxu0
  %v9627 = vadd.f32 %v9434, %v9626
  %v9628 = vpop.f32.mrf.mxu0
  %v9629 = vadd.f32 %v9436, %v9628
  %9630 = vmatprep.mubr.bf16.mxu0 %v8816
  %9631 = vmatmul.mubr.bf16.gmra.mxu0 %v8815
  %v9632 = vpop.f32.mrf.mxu0
  %v9633 = vadd.f32 %v9440, %v9632
  %v9634 = vpop.f32.mrf.mxu0
  %v9635 = vadd.f32 %v9442, %v9634
  %v9636 = vpop.f32.mrf.mxu0
  %v9637 = vadd.f32 %v9444, %v9636
  %v9638 = vpop.f32.mrf.mxu0
  %v9639 = vadd.f32 %v9446, %v9638
  %9640 = vmatprep.mubr.bf16.mxu0 %v8820
  %9641 = vmatmul.mubr.bf16.gmra.mxu0 %v8819
  %v9642 = vpop.f32.mrf.mxu0
  %v9643 = vadd.f32 %v9450, %v9642
  %v9644 = vpop.f32.mrf.mxu0
  %v9645 = vadd.f32 %v9452, %v9644
  %v9646 = vpop.f32.mrf.mxu0
  %v9647 = vadd.f32 %v9454, %v9646
  %v9648 = vpop.f32.mrf.mxu0
  %v9649 = vadd.f32 %v9456, %v9648
  %9650 = vmatprep.mubr.bf16.mxu0 %v8824
  %9651 = vmatmul.mubr.bf16.gmra.mxu0 %v8823
  %v9652 = vpop.f32.mrf.mxu0
  %v9653 = vadd.f32 %v9460, %v9652
  %v9654 = vpop.f32.mrf.mxu0
  %v9655 = vadd.f32 %v9462, %v9654
  %v9656 = vpop.f32.mrf.mxu0
  %v9657 = vadd.f32 %v9464, %v9656
  %v9658 = vpop.f32.mrf.mxu0
  %v9659 = vadd.f32 %v9466, %v9658
  %9660 = vdwg.mxu0
  %9661 = vmatprep.subr.bf16.mxu0 %v8331
  %9662 = vmatpush1.bf16.msra.mxu0 %v8330
  %9663 = vmatprep.subr.bf16.mxu0 %v8324
  %9664 = vmatpush1.bf16.msra.mxu0 %v8323
  %9665 = vmatprep.subr.bf16.mxu0 %v8317
  %9666 = vmatpush1.bf16.msra.mxu0 %v8316
  %9667 = vmatprep.subr.bf16.mxu0 %v8310
  %9668 = vmatpush1.bf16.msra.mxu0 %v8309
  %9669 = vmatprep.subr.bf16.mxu0 %v8303
  %9670 = vmatpush1.bf16.msra.mxu0 %v8302
  %9671 = vmatprep.subr.bf16.mxu0 %v8296
  %9672 = vmatpush1.bf16.msra.mxu0 %v8295
  %9673 = vmatprep.subr.bf16.mxu0 %v8289
  %9674 = vmatpush1.bf16.msra.mxu0 %v8288
  %9675 = vmatprep.subr.bf16.mxu0 %v8282
  %9676 = vmatpush1.bf16.msra.mxu0 %v8281
  %9677 = vmatprep.subr.bf16.mxu0 %v8387
  %9678 = vmatpush2.bf16.msra.mxu0 %v8386
  %9679 = vmatprep.subr.bf16.mxu0 %v8380
  %9680 = vmatpush2.bf16.msra.mxu0 %v8379
  %9681 = vmatprep.subr.bf16.mxu0 %v8373
  %9682 = vmatpush2.bf16.msra.mxu0 %v8372
  %9683 = vmatprep.subr.bf16.mxu0 %v8366
  %9684 = vmatpush2.bf16.msra.mxu0 %v8365
  %9685 = vmatprep.subr.bf16.mxu0 %v8359
  %9686 = vmatpush2.bf16.msra.mxu0 %v8358
  %9687 = vmatprep.subr.bf16.mxu0 %v8352
  %9688 = vmatpush2.bf16.msra.mxu0 %v8351
  %9689 = vmatprep.subr.bf16.mxu0 %v8345
  %9690 = vmatpush2.bf16.msra.mxu0 %v8344
  %9691 = vmatprep.subr.bf16.mxu0 %v8338
  %9692 = vmatpush2.bf16.msra.mxu0 %v8337
  %9693 = vmatprep.mubr.bf16.mxu0 %v8762
  %9694 = vmatmul.mubr.bf16.gmra.mxu0 %v8761
  %v9695 = vpop.f32.mrf.mxu0
  %v9696 = vadd.f32 0.0, %v9695
  %v9697 = vpop.f32.mrf.mxu0
  %v9698 = vadd.f32 0.0, %v9697
  %v9699 = vpop.f32.mrf.mxu0
  %v9700 = vadd.f32 0.0, %v9699
  %v9701 = vpop.f32.mrf.mxu0
  %v9702 = vadd.f32 0.0, %v9701
  %9703 = vmatprep.mubr.bf16.mxu0 %v8766
  %9704 = vmatmul.mubr.bf16.gmra.mxu0 %v8765
  %v9705 = vpop.f32.mrf.mxu0
  %v9706 = vadd.f32 0.0, %v9705
  %v9707 = vpop.f32.mrf.mxu0
  %v9708 = vadd.f32 0.0, %v9707
  %v9709 = vpop.f32.mrf.mxu0
  %v9710 = vadd.f32 0.0, %v9709
  %v9711 = vpop.f32.mrf.mxu0
  %v9712 = vadd.f32 0.0, %v9711
  %9713 = vmatprep.mubr.bf16.mxu0 %v8770
  %9714 = vmatmul.mubr.bf16.gmra.mxu0 %v8769
  %v9715 = vpop.f32.mrf.mxu0
  %v9716 = vadd.f32 0.0, %v9715
  %v9717 = vpop.f32.mrf.mxu0
  %v9718 = vadd.f32 0.0, %v9717
  %v9719 = vpop.f32.mrf.mxu0
  %v9720 = vadd.f32 0.0, %v9719
  %v9721 = vpop.f32.mrf.mxu0
  %v9722 = vadd.f32 0.0, %v9721
  %9723 = vmatprep.mubr.bf16.mxu0 %v8774
  %9724 = vmatmul.mubr.bf16.gmra.mxu0 %v8773
  %v9725 = vpop.f32.mrf.mxu0
  %v9726 = vadd.f32 0.0, %v9725
  %v9727 = vpop.f32.mrf.mxu0
  %v9728 = vadd.f32 0.0, %v9727
  %v9729 = vpop.f32.mrf.mxu0
  %v9730 = vadd.f32 0.0, %v9729
  %v9731 = vpop.f32.mrf.mxu0
  %v9732 = vadd.f32 0.0, %v9731
  %9733 = vmatprep.mubr.bf16.mxu0 %v8778
  %9734 = vmatmul.mubr.bf16.gmra.mxu0 %v8777
  %v9735 = vpop.f32.mrf.mxu0
  %v9736 = vadd.f32 0.0, %v9735
  %v9737 = vpop.f32.mrf.mxu0
  %v9738 = vadd.f32 0.0, %v9737
  %v9739 = vpop.f32.mrf.mxu0
  %v9740 = vadd.f32 0.0, %v9739
  %v9741 = vpop.f32.mrf.mxu0
  %v9742 = vadd.f32 0.0, %v9741
  %9743 = vmatprep.mubr.bf16.mxu0 %v8782
  %9744 = vmatmul.mubr.bf16.gmra.mxu0 %v8781
  %v9745 = vpop.f32.mrf.mxu0
  %v9746 = vadd.f32 0.0, %v9745
  %v9747 = vpop.f32.mrf.mxu0
  %v9748 = vadd.f32 0.0, %v9747
  %v9749 = vpop.f32.mrf.mxu0
  %v9750 = vadd.f32 0.0, %v9749
  %v9751 = vpop.f32.mrf.mxu0
  %v9752 = vadd.f32 0.0, %v9751
  %9753 = vmatprep.mubr.bf16.mxu0 %v8786
  %9754 = vmatmul.mubr.bf16.gmra.mxu0 %v8785
  %v9755 = vpop.f32.mrf.mxu0
  %v9756 = vadd.f32 0.0, %v9755
  %v9757 = vpop.f32.mrf.mxu0
  %v9758 = vadd.f32 0.0, %v9757
  %v9759 = vpop.f32.mrf.mxu0
  %v9760 = vadd.f32 0.0, %v9759
  %v9761 = vpop.f32.mrf.mxu0
  %v9762 = vadd.f32 0.0, %v9761
  %9763 = vmatprep.mubr.bf16.mxu0 %v8790
  %9764 = vmatmul.mubr.bf16.gmra.mxu0 %v8789
  %v9765 = vpop.f32.mrf.mxu0
  %v9766 = vadd.f32 0.0, %v9765
  %v9767 = vpop.f32.mrf.mxu0
  %v9768 = vadd.f32 0.0, %v9767
  %v9769 = vpop.f32.mrf.mxu0
  %v9770 = vadd.f32 0.0, %v9769
  %v9771 = vpop.f32.mrf.mxu0
  %v9772 = vadd.f32 0.0, %v9771
  %9773 = vmatprep.mubr.bf16.mxu0 %v8794
  %9774 = vmatmul.mubr.bf16.gmra.mxu0 %v8793
  %v9775 = vpop.f32.mrf.mxu0
  %v9776 = vadd.f32 0.0, %v9775
  %v9777 = vpop.f32.mrf.mxu0
  %v9778 = vadd.f32 0.0, %v9777
  %v9779 = vpop.f32.mrf.mxu0
  %v9780 = vadd.f32 0.0, %v9779
  %v9781 = vpop.f32.mrf.mxu0
  %v9782 = vadd.f32 0.0, %v9781
  %9783 = vmatprep.mubr.bf16.mxu0 %v8798
  %9784 = vmatmul.mubr.bf16.gmra.mxu0 %v8797
  %v9785 = vpop.f32.mrf.mxu0
  %v9786 = vadd.f32 0.0, %v9785
  %v9787 = vpop.f32.mrf.mxu0
  %v9788 = vadd.f32 0.0, %v9787
  %v9789 = vpop.f32.mrf.mxu0
  %v9790 = vadd.f32 0.0, %v9789
  %v9791 = vpop.f32.mrf.mxu0
  %v9792 = vadd.f32 0.0, %v9791
  %9793 = vmatprep.mubr.bf16.mxu0 %v8802
  %9794 = vmatmul.mubr.bf16.gmra.mxu0 %v8801
  %v9795 = vpop.f32.mrf.mxu0
  %v9796 = vadd.f32 0.0, %v9795
  %v9797 = vpop.f32.mrf.mxu0
  %v9798 = vadd.f32 0.0, %v9797
  %v9799 = vpop.f32.mrf.mxu0
  %v9800 = vadd.f32 0.0, %v9799
  %v9801 = vpop.f32.mrf.mxu0
  %v9802 = vadd.f32 0.0, %v9801
  %9803 = vmatprep.mubr.bf16.mxu0 %v8806
  %9804 = vmatmul.mubr.bf16.gmra.mxu0 %v8805
  %v9805 = vpop.f32.mrf.mxu0
  %v9806 = vadd.f32 0.0, %v9805
  %v9807 = vpop.f32.mrf.mxu0
  %v9808 = vadd.f32 0.0, %v9807
  %v9809 = vpop.f32.mrf.mxu0
  %v9810 = vadd.f32 0.0, %v9809
  %v9811 = vpop.f32.mrf.mxu0
  %v9812 = vadd.f32 0.0, %v9811
  %9813 = vmatprep.mubr.bf16.mxu0 %v8810
  %9814 = vmatmul.mubr.bf16.gmra.mxu0 %v8809
  %v9815 = vpop.f32.mrf.mxu0
  %v9816 = vadd.f32 0.0, %v9815
  %v9817 = vpop.f32.mrf.mxu0
  %v9818 = vadd.f32 0.0, %v9817
  %v9819 = vpop.f32.mrf.mxu0
  %v9820 = vadd.f32 0.0, %v9819
  %v9821 = vpop.f32.mrf.mxu0
  %v9822 = vadd.f32 0.0, %v9821
  %9823 = vmatprep.mubr.bf16.mxu0 %v8814
  %9824 = vmatmul.mubr.bf16.gmra.mxu0 %v8813
  %v9825 = vpop.f32.mrf.mxu0
  %v9826 = vadd.f32 0.0, %v9825
  %v9827 = vpop.f32.mrf.mxu0
  %v9828 = vadd.f32 0.0, %v9827
  %v9829 = vpop.f32.mrf.mxu0
  %v9830 = vadd.f32 0.0, %v9829
  %v9831 = vpop.f32.mrf.mxu0
  %v9832 = vadd.f32 0.0, %v9831
  %9833 = vmatprep.mubr.bf16.mxu0 %v8818
  %9834 = vmatmul.mubr.bf16.gmra.mxu0 %v8817
  %v9835 = vpop.f32.mrf.mxu0
  %v9836 = vadd.f32 0.0, %v9835
  %v9837 = vpop.f32.mrf.mxu0
  %v9838 = vadd.f32 0.0, %v9837
  %v9839 = vpop.f32.mrf.mxu0
  %v9840 = vadd.f32 0.0, %v9839
  %v9841 = vpop.f32.mrf.mxu0
  %v9842 = vadd.f32 0.0, %v9841
  %9843 = vmatprep.mubr.bf16.mxu0 %v8822
  %9844 = vmatmul.mubr.bf16.gmra.mxu0 %v8821
  %v9845 = vpop.f32.mrf.mxu0
  %v9846 = vadd.f32 0.0, %v9845
  %v9847 = vpop.f32.mrf.mxu0
  %v9848 = vadd.f32 0.0, %v9847
  %v9849 = vpop.f32.mrf.mxu0
  %v9850 = vadd.f32 0.0, %v9849
  %v9851 = vpop.f32.mrf.mxu0
  %v9852 = vadd.f32 0.0, %v9851
  %9853 = vdwg.mxu0
  %9854 = vmatprep.subr.bf16.mxu0 %v8443
  %9855 = vmatpush1.bf16.msra.mxu0 %v8442
  %9856 = vmatprep.subr.bf16.mxu0 %v8436
  %9857 = vmatpush1.bf16.msra.mxu0 %v8435
  %9858 = vmatprep.subr.bf16.mxu0 %v8429
  %9859 = vmatpush1.bf16.msra.mxu0 %v8428
  %9860 = vmatprep.subr.bf16.mxu0 %v8422
  %9861 = vmatpush1.bf16.msra.mxu0 %v8421
  %9862 = vmatprep.subr.bf16.mxu0 %v8415
  %9863 = vmatpush1.bf16.msra.mxu0 %v8414
  %9864 = vmatprep.subr.bf16.mxu0 %v8408
  %9865 = vmatpush1.bf16.msra.mxu0 %v8407
  %9866 = vmatprep.subr.bf16.mxu0 %v8401
  %9867 = vmatpush1.bf16.msra.mxu0 %v8400
  %9868 = vmatprep.subr.bf16.mxu0 %v8394
  %9869 = vmatpush1.bf16.msra.mxu0 %v8393
  %9870 = vmatprep.subr.bf16.mxu0 %v8499
  %9871 = vmatpush2.bf16.msra.mxu0 %v8498
  %9872 = vmatprep.subr.bf16.mxu0 %v8492
  %9873 = vmatpush2.bf16.msra.mxu0 %v8491
  %9874 = vmatprep.subr.bf16.mxu0 %v8485
  %9875 = vmatpush2.bf16.msra.mxu0 %v8484
  %9876 = vmatprep.subr.bf16.mxu0 %v8478
  %9877 = vmatpush2.bf16.msra.mxu0 %v8477
  %9878 = vmatprep.subr.bf16.mxu0 %v8471
  %9879 = vmatpush2.bf16.msra.mxu0 %v8470
  %9880 = vmatprep.subr.bf16.mxu0 %v8464
  %9881 = vmatpush2.bf16.msra.mxu0 %v8463
  %9882 = vmatprep.subr.bf16.mxu0 %v8457
  %9883 = vmatpush2.bf16.msra.mxu0 %v8456
  %9884 = vmatprep.subr.bf16.mxu0 %v8450
  %9885 = vmatpush2.bf16.msra.mxu0 %v8449
  %9886 = vmatprep.mubr.bf16.mxu0 %v8764
  %9887 = vmatmul.mubr.bf16.gmra.mxu0 %v8763
  %v9888 = vpop.f32.mrf.mxu0
  %v9889 = vadd.f32 %v9696, %v9888
  %v9890 = vpop.f32.mrf.mxu0
  %v9891 = vadd.f32 %v9698, %v9890
  %v9892 = vpop.f32.mrf.mxu0
  %v9893 = vadd.f32 %v9700, %v9892
  %v9894 = vpop.f32.mrf.mxu0
  %v9895 = vadd.f32 %v9702, %v9894
  %9896 = vmatprep.mubr.bf16.mxu0 %v8768
  %9897 = vmatmul.mubr.bf16.gmra.mxu0 %v8767
  %v9898 = vpop.f32.mrf.mxu0
  %v9899 = vadd.f32 %v9706, %v9898
  %v9900 = vpop.f32.mrf.mxu0
  %v9901 = vadd.f32 %v9708, %v9900
  %v9902 = vpop.f32.mrf.mxu0
  %v9903 = vadd.f32 %v9710, %v9902
  %v9904 = vpop.f32.mrf.mxu0
  %v9905 = vadd.f32 %v9712, %v9904
  %9906 = vmatprep.mubr.bf16.mxu0 %v8772
  %9907 = vmatmul.mubr.bf16.gmra.mxu0 %v8771
  %v9908 = vpop.f32.mrf.mxu0
  %v9909 = vadd.f32 %v9716, %v9908
  %v9910 = vpop.f32.mrf.mxu0
  %v9911 = vadd.f32 %v9718, %v9910
  %v9912 = vpop.f32.mrf.mxu0
  %v9913 = vadd.f32 %v9720, %v9912
  %v9914 = vpop.f32.mrf.mxu0
  %v9915 = vadd.f32 %v9722, %v9914
  %9916 = vmatprep.mubr.bf16.mxu0 %v8776
  %9917 = vmatmul.mubr.bf16.gmra.mxu0 %v8775
  %v9918 = vpop.f32.mrf.mxu0
  %v9919 = vadd.f32 %v9726, %v9918
  %v9920 = vpop.f32.mrf.mxu0
  %v9921 = vadd.f32 %v9728, %v9920
  %v9922 = vpop.f32.mrf.mxu0
  %v9923 = vadd.f32 %v9730, %v9922
  %v9924 = vpop.f32.mrf.mxu0
  %v9925 = vadd.f32 %v9732, %v9924
  %9926 = vmatprep.mubr.bf16.mxu0 %v8780
  %9927 = vmatmul.mubr.bf16.gmra.mxu0 %v8779
  %v9928 = vpop.f32.mrf.mxu0
  %v9929 = vadd.f32 %v9736, %v9928
  %v9930 = vpop.f32.mrf.mxu0
  %v9931 = vadd.f32 %v9738, %v9930
  %v9932 = vpop.f32.mrf.mxu0
  %v9933 = vadd.f32 %v9740, %v9932
  %v9934 = vpop.f32.mrf.mxu0
  %v9935 = vadd.f32 %v9742, %v9934
  %9936 = vmatprep.mubr.bf16.mxu0 %v8784
  %9937 = vmatmul.mubr.bf16.gmra.mxu0 %v8783
  %v9938 = vpop.f32.mrf.mxu0
  %v9939 = vadd.f32 %v9746, %v9938
  %v9940 = vpop.f32.mrf.mxu0
  %v9941 = vadd.f32 %v9748, %v9940
  %v9942 = vpop.f32.mrf.mxu0
  %v9943 = vadd.f32 %v9750, %v9942
  %v9944 = vpop.f32.mrf.mxu0
  %v9945 = vadd.f32 %v9752, %v9944
  %9946 = vmatprep.mubr.bf16.mxu0 %v8788
  %9947 = vmatmul.mubr.bf16.gmra.mxu0 %v8787
  %v9948 = vpop.f32.mrf.mxu0
  %v9949 = vadd.f32 %v9756, %v9948
  %v9950 = vpop.f32.mrf.mxu0
  %v9951 = vadd.f32 %v9758, %v9950
  %v9952 = vpop.f32.mrf.mxu0
  %v9953 = vadd.f32 %v9760, %v9952
  %v9954 = vpop.f32.mrf.mxu0
  %v9955 = vadd.f32 %v9762, %v9954
  %9956 = vmatprep.mubr.bf16.mxu0 %v8792
  %9957 = vmatmul.mubr.bf16.gmra.mxu0 %v8791
  %v9958 = vpop.f32.mrf.mxu0
  %v9959 = vadd.f32 %v9766, %v9958
  %v9960 = vpop.f32.mrf.mxu0
  %v9961 = vadd.f32 %v9768, %v9960
  %v9962 = vpop.f32.mrf.mxu0
  %v9963 = vadd.f32 %v9770, %v9962
  %v9964 = vpop.f32.mrf.mxu0
  %v9965 = vadd.f32 %v9772, %v9964
  %9966 = vmatprep.mubr.bf16.mxu0 %v8796
  %9967 = vmatmul.mubr.bf16.gmra.mxu0 %v8795
  %v9968 = vpop.f32.mrf.mxu0
  %v9969 = vadd.f32 %v9776, %v9968
  %v9970 = vpop.f32.mrf.mxu0
  %v9971 = vadd.f32 %v9778, %v9970
  %v9972 = vpop.f32.mrf.mxu0
  %v9973 = vadd.f32 %v9780, %v9972
  %v9974 = vpop.f32.mrf.mxu0
  %v9975 = vadd.f32 %v9782, %v9974
  %9976 = vmatprep.mubr.bf16.mxu0 %v8800
  %9977 = vmatmul.mubr.bf16.gmra.mxu0 %v8799
  %v9978 = vpop.f32.mrf.mxu0
  %v9979 = vadd.f32 %v9786, %v9978
  %v9980 = vpop.f32.mrf.mxu0
  %v9981 = vadd.f32 %v9788, %v9980
  %v9982 = vpop.f32.mrf.mxu0
  %v9983 = vadd.f32 %v9790, %v9982
  %v9984 = vpop.f32.mrf.mxu0
  %v9985 = vadd.f32 %v9792, %v9984
  %9986 = vmatprep.mubr.bf16.mxu0 %v8804
  %9987 = vmatmul.mubr.bf16.gmra.mxu0 %v8803
  %v9988 = vpop.f32.mrf.mxu0
  %v9989 = vadd.f32 %v9796, %v9988
  %v9990 = vpop.f32.mrf.mxu0
  %v9991 = vadd.f32 %v9798, %v9990
  %v9992 = vpop.f32.mrf.mxu0
  %v9993 = vadd.f32 %v9800, %v9992
  %v9994 = vpop.f32.mrf.mxu0
  %v9995 = vadd.f32 %v9802, %v9994
  %9996 = vmatprep.mubr.bf16.mxu0 %v8808
  %9997 = vmatmul.mubr.bf16.gmra.mxu0 %v8807
  %v9998 = vpop.f32.mrf.mxu0
  %v9999 = vadd.f32 %v9806, %v9998
  %v10000 = vpop.f32.mrf.mxu0
  %v10001 = vadd.f32 %v9808, %v10000
  %v10002 = vpop.f32.mrf.mxu0
  %v10003 = vadd.f32 %v9810, %v10002
  %v10004 = vpop.f32.mrf.mxu0
  %v10005 = vadd.f32 %v9812, %v10004
  %10006 = vmatprep.mubr.bf16.mxu0 %v8812
  %10007 = vmatmul.mubr.bf16.gmra.mxu0 %v8811
  %v10008 = vpop.f32.mrf.mxu0
  %v10009 = vadd.f32 %v9816, %v10008
  %v10010 = vpop.f32.mrf.mxu0
  %v10011 = vadd.f32 %v9818, %v10010
  %v10012 = vpop.f32.mrf.mxu0
  %v10013 = vadd.f32 %v9820, %v10012
  %v10014 = vpop.f32.mrf.mxu0
  %v10015 = vadd.f32 %v9822, %v10014
  %10016 = vmatprep.mubr.bf16.mxu0 %v8816
  %10017 = vmatmul.mubr.bf16.gmra.mxu0 %v8815
  %v10018 = vpop.f32.mrf.mxu0
  %v10019 = vadd.f32 %v9826, %v10018
  %v10020 = vpop.f32.mrf.mxu0
  %v10021 = vadd.f32 %v9828, %v10020
  %v10022 = vpop.f32.mrf.mxu0
  %v10023 = vadd.f32 %v9830, %v10022
  %v10024 = vpop.f32.mrf.mxu0
  %v10025 = vadd.f32 %v9832, %v10024
  %10026 = vmatprep.mubr.bf16.mxu0 %v8820
  %10027 = vmatmul.mubr.bf16.gmra.mxu0 %v8819
  %v10028 = vpop.f32.mrf.mxu0
  %v10029 = vadd.f32 %v9836, %v10028
  %v10030 = vpop.f32.mrf.mxu0
  %v10031 = vadd.f32 %v9838, %v10030
  %v10032 = vpop.f32.mrf.mxu0
  %v10033 = vadd.f32 %v9840, %v10032
  %v10034 = vpop.f32.mrf.mxu0
  %v10035 = vadd.f32 %v9842, %v10034
  %10036 = vmatprep.mubr.bf16.mxu0 %v8824
  %10037 = vmatmul.mubr.bf16.gmra.mxu0 %v8823
  %v10038 = vpop.f32.mrf.mxu0
  %v10039 = vadd.f32 %v9846, %v10038
  %v10040 = vpop.f32.mrf.mxu0
  %v10041 = vadd.f32 %v9848, %v10040
  %v10042 = vpop.f32.mrf.mxu0
  %v10043 = vadd.f32 %v9850, %v10042
  %v10044 = vpop.f32.mrf.mxu0
  %v10045 = vadd.f32 %v9852, %v10044
  %10046 = vdwg.mxu0
  %10047 = vmatprep.subr.bf16.mxu0 0
  %10048 = vmatpush1.bf16.msra.mxu0 %v8332
  %10049 = vmatprep.subr.bf16.mxu0 0
  %10050 = vmatpush1.bf16.msra.mxu0 %v8325
  %10051 = vmatprep.subr.bf16.mxu0 0
  %10052 = vmatpush1.bf16.msra.mxu0 %v8318
  %10053 = vmatprep.subr.bf16.mxu0 0
  %10054 = vmatpush1.bf16.msra.mxu0 %v8311
  %10055 = vmatprep.subr.bf16.mxu0 0
  %10056 = vmatpush1.bf16.msra.mxu0 %v8304
  %10057 = vmatprep.subr.bf16.mxu0 0
  %10058 = vmatpush1.bf16.msra.mxu0 %v8297
  %10059 = vmatprep.subr.bf16.mxu0 0
  %10060 = vmatpush1.bf16.msra.mxu0 %v8290
  %10061 = vmatprep.subr.bf16.mxu0 0
  %10062 = vmatpush1.bf16.msra.mxu0 %v8283
  %10063 = vmatprep.subr.bf16.mxu0 0
  %10064 = vmatpush2.bf16.msra.mxu0 %v8388
  %10065 = vmatprep.subr.bf16.mxu0 0
  %10066 = vmatpush2.bf16.msra.mxu0 %v8381
  %10067 = vmatprep.subr.bf16.mxu0 0
  %10068 = vmatpush2.bf16.msra.mxu0 %v8374
  %10069 = vmatprep.subr.bf16.mxu0 0
  %10070 = vmatpush2.bf16.msra.mxu0 %v8367
  %10071 = vmatprep.subr.bf16.mxu0 0
  %10072 = vmatpush2.bf16.msra.mxu0 %v8360
  %10073 = vmatprep.subr.bf16.mxu0 0
  %10074 = vmatpush2.bf16.msra.mxu0 %v8353
  %10075 = vmatprep.subr.bf16.mxu0 0
  %10076 = vmatpush2.bf16.msra.mxu0 %v8346
  %10077 = vmatprep.subr.bf16.mxu0 0
  %10078 = vmatpush2.bf16.msra.mxu0 %v8339
  %10079 = vmatprep.mubr.bf16.mxu0 %v8762
  %10080 = vmatmul.mubr.bf16.gmra.mxu0 %v8761
  %v10081 = vpop.f32.mrf.mxu0
  %v10082 = vadd.f32 0.0, %v10081
  %v10083 = vpop.f32.mrf.mxu0
  %v10084 = vpop.f32.mrf.mxu0
  %v10085 = vadd.f32 0.0, %v10084
  %v10086 = vpop.f32.mrf.mxu0
  %10087 = vmatprep.mubr.bf16.mxu0 %v8766
  %10088 = vmatmul.mubr.bf16.gmra.mxu0 %v8765
  %v10089 = vpop.f32.mrf.mxu0
  %v10090 = vadd.f32 0.0, %v10089
  %v10091 = vpop.f32.mrf.mxu0
  %v10092 = vpop.f32.mrf.mxu0
  %v10093 = vadd.f32 0.0, %v10092
  %v10094 = vpop.f32.mrf.mxu0
  %10095 = vmatprep.mubr.bf16.mxu0 %v8770
  %10096 = vmatmul.mubr.bf16.gmra.mxu0 %v8769
  %v10097 = vpop.f32.mrf.mxu0
  %v10098 = vadd.f32 0.0, %v10097
  %v10099 = vpop.f32.mrf.mxu0
  %v10100 = vpop.f32.mrf.mxu0
  %v10101 = vadd.f32 0.0, %v10100
  %v10102 = vpop.f32.mrf.mxu0
  %10103 = vmatprep.mubr.bf16.mxu0 %v8774
  %10104 = vmatmul.mubr.bf16.gmra.mxu0 %v8773
  %v10105 = vpop.f32.mrf.mxu0
  %v10106 = vadd.f32 0.0, %v10105
  %v10107 = vpop.f32.mrf.mxu0
  %v10108 = vpop.f32.mrf.mxu0
  %v10109 = vadd.f32 0.0, %v10108
  %v10110 = vpop.f32.mrf.mxu0
  %10111 = vmatprep.mubr.bf16.mxu0 %v8778
  %10112 = vmatmul.mubr.bf16.gmra.mxu0 %v8777
  %v10113 = vpop.f32.mrf.mxu0
  %v10114 = vadd.f32 0.0, %v10113
  %v10115 = vpop.f32.mrf.mxu0
  %v10116 = vpop.f32.mrf.mxu0
  %v10117 = vadd.f32 0.0, %v10116
  %v10118 = vpop.f32.mrf.mxu0
  %10119 = vmatprep.mubr.bf16.mxu0 %v8782
  %10120 = vmatmul.mubr.bf16.gmra.mxu0 %v8781
  %v10121 = vpop.f32.mrf.mxu0
  %v10122 = vadd.f32 0.0, %v10121
  %v10123 = vpop.f32.mrf.mxu0
  %v10124 = vpop.f32.mrf.mxu0
  %v10125 = vadd.f32 0.0, %v10124
  %v10126 = vpop.f32.mrf.mxu0
  %10127 = vmatprep.mubr.bf16.mxu0 %v8786
  %10128 = vmatmul.mubr.bf16.gmra.mxu0 %v8785
  %v10129 = vpop.f32.mrf.mxu0
  %v10130 = vadd.f32 0.0, %v10129
  %v10131 = vpop.f32.mrf.mxu0
  %v10132 = vpop.f32.mrf.mxu0
  %v10133 = vadd.f32 0.0, %v10132
  %v10134 = vpop.f32.mrf.mxu0
  %10135 = vmatprep.mubr.bf16.mxu0 %v8790
  %10136 = vmatmul.mubr.bf16.gmra.mxu0 %v8789
  %v10137 = vpop.f32.mrf.mxu0
  %v10138 = vadd.f32 0.0, %v10137
  %v10139 = vpop.f32.mrf.mxu0
  %v10140 = vpop.f32.mrf.mxu0
  %v10141 = vadd.f32 0.0, %v10140
  %v10142 = vpop.f32.mrf.mxu0
  %10143 = vmatprep.mubr.bf16.mxu0 %v8794
  %10144 = vmatmul.mubr.bf16.gmra.mxu0 %v8793
  %v10145 = vpop.f32.mrf.mxu0
  %v10146 = vadd.f32 0.0, %v10145
  %v10147 = vpop.f32.mrf.mxu0
  %v10148 = vpop.f32.mrf.mxu0
  %v10149 = vadd.f32 0.0, %v10148
  %v10150 = vpop.f32.mrf.mxu0
  %10151 = vmatprep.mubr.bf16.mxu0 %v8798
  %10152 = vmatmul.mubr.bf16.gmra.mxu0 %v8797
  %v10153 = vpop.f32.mrf.mxu0
  %v10154 = vadd.f32 0.0, %v10153
  %v10155 = vpop.f32.mrf.mxu0
  %v10156 = vpop.f32.mrf.mxu0
  %v10157 = vadd.f32 0.0, %v10156
  %v10158 = vpop.f32.mrf.mxu0
  %10159 = vmatprep.mubr.bf16.mxu0 %v8802
  %10160 = vmatmul.mubr.bf16.gmra.mxu0 %v8801
  %v10161 = vpop.f32.mrf.mxu0
  %v10162 = vadd.f32 0.0, %v10161
  %v10163 = vpop.f32.mrf.mxu0
  %v10164 = vpop.f32.mrf.mxu0
  %v10165 = vadd.f32 0.0, %v10164
  %v10166 = vpop.f32.mrf.mxu0
  %10167 = vmatprep.mubr.bf16.mxu0 %v8806
  %10168 = vmatmul.mubr.bf16.gmra.mxu0 %v8805
  %v10169 = vpop.f32.mrf.mxu0
  %v10170 = vadd.f32 0.0, %v10169
  %v10171 = vpop.f32.mrf.mxu0
  %v10172 = vpop.f32.mrf.mxu0
  %v10173 = vadd.f32 0.0, %v10172
  %v10174 = vpop.f32.mrf.mxu0
  %10175 = vmatprep.mubr.bf16.mxu0 %v8810
  %10176 = vmatmul.mubr.bf16.gmra.mxu0 %v8809
  %v10177 = vpop.f32.mrf.mxu0
  %v10178 = vadd.f32 0.0, %v10177
  %v10179 = vpop.f32.mrf.mxu0
  %v10180 = vpop.f32.mrf.mxu0
  %v10181 = vadd.f32 0.0, %v10180
  %v10182 = vpop.f32.mrf.mxu0
  %10183 = vmatprep.mubr.bf16.mxu0 %v8814
  %10184 = vmatmul.mubr.bf16.gmra.mxu0 %v8813
  %v10185 = vpop.f32.mrf.mxu0
  %v10186 = vadd.f32 0.0, %v10185
  %v10187 = vpop.f32.mrf.mxu0
  %v10188 = vpop.f32.mrf.mxu0
  %v10189 = vadd.f32 0.0, %v10188
  %v10190 = vpop.f32.mrf.mxu0
  %10191 = vmatprep.mubr.bf16.mxu0 %v8818
  %10192 = vmatmul.mubr.bf16.gmra.mxu0 %v8817
  %v10193 = vpop.f32.mrf.mxu0
  %v10194 = vadd.f32 0.0, %v10193
  %v10195 = vpop.f32.mrf.mxu0
  %v10196 = vpop.f32.mrf.mxu0
  %v10197 = vadd.f32 0.0, %v10196
  %v10198 = vpop.f32.mrf.mxu0
  %10199 = vmatprep.mubr.bf16.mxu0 %v8822
  %10200 = vmatmul.mubr.bf16.gmra.mxu0 %v8821
  %v10201 = vpop.f32.mrf.mxu0
  %v10202 = vadd.f32 0.0, %v10201
  %v10203 = vpop.f32.mrf.mxu0
  %v10204 = vpop.f32.mrf.mxu0
  %v10205 = vadd.f32 0.0, %v10204
  %v10206 = vpop.f32.mrf.mxu0
  %10207 = vdwg.mxu0
  %10208 = vmatprep.subr.bf16.mxu0 0
  %10209 = vmatpush1.bf16.msra.mxu0 %v8444
  %10210 = vmatprep.subr.bf16.mxu0 0
  %10211 = vmatpush1.bf16.msra.mxu0 %v8437
  %10212 = vmatprep.subr.bf16.mxu0 0
  %10213 = vmatpush1.bf16.msra.mxu0 %v8430
  %10214 = vmatprep.subr.bf16.mxu0 0
  %10215 = vmatpush1.bf16.msra.mxu0 %v8423
  %10216 = vmatprep.subr.bf16.mxu0 0
  %10217 = vmatpush1.bf16.msra.mxu0 %v8416
  %10218 = vmatprep.subr.bf16.mxu0 0
  %10219 = vmatpush1.bf16.msra.mxu0 %v8409
  %10220 = vmatprep.subr.bf16.mxu0 0
  %10221 = vmatpush1.bf16.msra.mxu0 %v8402
  %10222 = vmatprep.subr.bf16.mxu0 0
  %10223 = vmatpush1.bf16.msra.mxu0 %v8395
  %10224 = vmatprep.subr.bf16.mxu0 0
  %10225 = vmatpush2.bf16.msra.mxu0 %v8500
  %10226 = vmatprep.subr.bf16.mxu0 0
  %10227 = vmatpush2.bf16.msra.mxu0 %v8493
  %10228 = vmatprep.subr.bf16.mxu0 0
  %10229 = vmatpush2.bf16.msra.mxu0 %v8486
  %10230 = vmatprep.subr.bf16.mxu0 0
  %10231 = vmatpush2.bf16.msra.mxu0 %v8479
  %10232 = vmatprep.subr.bf16.mxu0 0
  %10233 = vmatpush2.bf16.msra.mxu0 %v8472
  %10234 = vmatprep.subr.bf16.mxu0 0
  %10235 = vmatpush2.bf16.msra.mxu0 %v8465
  %10236 = vmatprep.subr.bf16.mxu0 0
  %10237 = vmatpush2.bf16.msra.mxu0 %v8458
  %10238 = vmatprep.subr.bf16.mxu0 0
  %10239 = vmatpush2.bf16.msra.mxu0 %v8451
  %10240 = vmatprep.mubr.bf16.mxu0 %v8764
  %10241 = vmatmul.mubr.bf16.gmra.mxu0 %v8763
  %v10242 = vpop.f32.mrf.mxu0
  %v10243 = vadd.f32 %v10082, %v10242
  %v10244 = vpop.f32.mrf.mxu0
  %v10245 = vpop.f32.mrf.mxu0
  %v10246 = vadd.f32 %v10085, %v10245
  %v10247 = vpop.f32.mrf.mxu0
  %10248 = vmatprep.mubr.bf16.mxu0 %v8768
  %10249 = vmatmul.mubr.bf16.gmra.mxu0 %v8767
  %v10250 = vpop.f32.mrf.mxu0
  %v10251 = vadd.f32 %v10090, %v10250
  %v10252 = vpop.f32.mrf.mxu0
  %v10253 = vpop.f32.mrf.mxu0
  %v10254 = vadd.f32 %v10093, %v10253
  %v10255 = vpop.f32.mrf.mxu0
  %10256 = vmatprep.mubr.bf16.mxu0 %v8772
  %10257 = vmatmul.mubr.bf16.gmra.mxu0 %v8771
  %v10258 = vpop.f32.mrf.mxu0
  %v10259 = vadd.f32 %v10098, %v10258
  %v10260 = vpop.f32.mrf.mxu0
  %v10261 = vpop.f32.mrf.mxu0
  %v10262 = vadd.f32 %v10101, %v10261
  %v10263 = vpop.f32.mrf.mxu0
  %10264 = vmatprep.mubr.bf16.mxu0 %v8776
  %10265 = vmatmul.mubr.bf16.gmra.mxu0 %v8775
  %v10266 = vpop.f32.mrf.mxu0
  %v10267 = vadd.f32 %v10106, %v10266
  %v10268 = vpop.f32.mrf.mxu0
  %v10269 = vpop.f32.mrf.mxu0
  %v10270 = vadd.f32 %v10109, %v10269
  %v10271 = vpop.f32.mrf.mxu0
  %10272 = vmatprep.mubr.bf16.mxu0 %v8780
  %10273 = vmatmul.mubr.bf16.gmra.mxu0 %v8779
  %v10274 = vpop.f32.mrf.mxu0
  %v10275 = vadd.f32 %v10114, %v10274
  %v10276 = vpop.f32.mrf.mxu0
  %v10277 = vpop.f32.mrf.mxu0
  %v10278 = vadd.f32 %v10117, %v10277
  %v10279 = vpop.f32.mrf.mxu0
  %10280 = vmatprep.mubr.bf16.mxu0 %v8784
  %10281 = vmatmul.mubr.bf16.gmra.mxu0 %v8783
  %v10282 = vpop.f32.mrf.mxu0
  %v10283 = vadd.f32 %v10122, %v10282
  %v10284 = vpop.f32.mrf.mxu0
  %v10285 = vpop.f32.mrf.mxu0
  %v10286 = vadd.f32 %v10125, %v10285
  %v10287 = vpop.f32.mrf.mxu0
  %10288 = vmatprep.mubr.bf16.mxu0 %v8788
  %10289 = vmatmul.mubr.bf16.gmra.mxu0 %v8787
  %v10290 = vpop.f32.mrf.mxu0
  %v10291 = vadd.f32 %v10130, %v10290
  %v10292 = vpop.f32.mrf.mxu0
  %v10293 = vpop.f32.mrf.mxu0
  %v10294 = vadd.f32 %v10133, %v10293
  %v10295 = vpop.f32.mrf.mxu0
  %10296 = vmatprep.mubr.bf16.mxu0 %v8792
  %10297 = vmatmul.mubr.bf16.gmra.mxu0 %v8791
  %v10298 = vpop.f32.mrf.mxu0
  %v10299 = vadd.f32 %v10138, %v10298
  %v10300 = vpop.f32.mrf.mxu0
  %v10301 = vpop.f32.mrf.mxu0
  %v10302 = vadd.f32 %v10141, %v10301
  %v10303 = vpop.f32.mrf.mxu0
  %10304 = vmatprep.mubr.bf16.mxu0 %v8796
  %10305 = vmatmul.mubr.bf16.gmra.mxu0 %v8795
  %v10306 = vpop.f32.mrf.mxu0
  %v10307 = vadd.f32 %v10146, %v10306
  %v10308 = vpop.f32.mrf.mxu0
  %v10309 = vpop.f32.mrf.mxu0
  %v10310 = vadd.f32 %v10149, %v10309
  %v10311 = vpop.f32.mrf.mxu0
  %10312 = vmatprep.mubr.bf16.mxu0 %v8800
  %10313 = vmatmul.mubr.bf16.gmra.mxu0 %v8799
  %v10314 = vpop.f32.mrf.mxu0
  %v10315 = vadd.f32 %v10154, %v10314
  %v10316 = vpop.f32.mrf.mxu0
  %v10317 = vpop.f32.mrf.mxu0
  %v10318 = vadd.f32 %v10157, %v10317
  %v10319 = vpop.f32.mrf.mxu0
  %10320 = vmatprep.mubr.bf16.mxu0 %v8804
  %10321 = vmatmul.mubr.bf16.gmra.mxu0 %v8803
  %v10322 = vpop.f32.mrf.mxu0
  %v10323 = vadd.f32 %v10162, %v10322
  %v10324 = vpop.f32.mrf.mxu0
  %v10325 = vpop.f32.mrf.mxu0
  %v10326 = vadd.f32 %v10165, %v10325
  %v10327 = vpop.f32.mrf.mxu0
  %10328 = vmatprep.mubr.bf16.mxu0 %v8808
  %10329 = vmatmul.mubr.bf16.gmra.mxu0 %v8807
  %v10330 = vpop.f32.mrf.mxu0
  %v10331 = vadd.f32 %v10170, %v10330
  %v10332 = vpop.f32.mrf.mxu0
  %v10333 = vpop.f32.mrf.mxu0
  %v10334 = vadd.f32 %v10173, %v10333
  %v10335 = vpop.f32.mrf.mxu0
  %10336 = vmatprep.mubr.bf16.mxu0 %v8812
  %10337 = vmatmul.mubr.bf16.gmra.mxu0 %v8811
  %v10338 = vpop.f32.mrf.mxu0
  %v10339 = vadd.f32 %v10178, %v10338
  %v10340 = vpop.f32.mrf.mxu0
  %v10341 = vpop.f32.mrf.mxu0
  %v10342 = vadd.f32 %v10181, %v10341
  %v10343 = vpop.f32.mrf.mxu0
  %10344 = vmatprep.mubr.bf16.mxu0 %v8816
  %10345 = vmatmul.mubr.bf16.gmra.mxu0 %v8815
  %v10346 = vpop.f32.mrf.mxu0
  %v10347 = vadd.f32 %v10186, %v10346
  %v10348 = vpop.f32.mrf.mxu0
  %v10349 = vpop.f32.mrf.mxu0
  %v10350 = vadd.f32 %v10189, %v10349
  %v10351 = vpop.f32.mrf.mxu0
  %10352 = vmatprep.mubr.bf16.mxu0 %v8820
  %10353 = vmatmul.mubr.bf16.gmra.mxu0 %v8819
  %v10354 = vpop.f32.mrf.mxu0
  %v10355 = vadd.f32 %v10194, %v10354
  %v10356 = vpop.f32.mrf.mxu0
  %v10357 = vpop.f32.mrf.mxu0
  %v10358 = vadd.f32 %v10197, %v10357
  %v10359 = vpop.f32.mrf.mxu0
  %10360 = vmatprep.mubr.bf16.mxu0 %v8824
  %10361 = vmatmul.mubr.bf16.gmra.mxu0 %v8823
  %v10362 = vpop.f32.mrf.mxu0
  %v10363 = vadd.f32 %v10202, %v10362
  %v10364 = vpop.f32.mrf.mxu0
  %v10365 = vpop.f32.mrf.mxu0
  %v10366 = vadd.f32 %v10205, %v10365
  %v10367 = vpop.f32.mrf.mxu0
  %10368 = vdwg.mxu0
  %v10369 = vadd.f32 %v9117, %v9119
  %v10370 = vadd.f32 %v10369, %v9503
  %v10371 = vadd.f32 %v10370, %v9505
  %v10372 = vadd.f32 %v10371, %v9889
  %v10373 = vadd.f32 %v10372, %v9891
  %v10374 = vsel %vm2965, %v10243, 0.0
  %v10375 = vadd.f32 %v10373, %v10374
  %10376 = vadd.xlane.f32.xlu0 %v10375
  %v10377 = vpop.xlane.xlu0 %10376
  %v10378 = vadd.f32 %v9121, %v9123
  %v10379 = vadd.f32 %v10378, %v9507
  %v10380 = vadd.f32 %v10379, %v9509
  %v10381 = vadd.f32 %v10380, %v9893
  %v10382 = vadd.f32 %v10381, %v9895
  %v10383 = vsel %vm2965, %v10246, 0.0
  %v10384 = vadd.f32 %v10382, %v10383
  %10385 = vadd.xlane.f32.xlu0 %v10384
  %v10386 = vpop.xlane.xlu0 %10385
  %v10387 = vadd.f32 %v9127, %v9129
  %v10388 = vadd.f32 %v10387, %v9513
  %v10389 = vadd.f32 %v10388, %v9515
  %v10390 = vadd.f32 %v10389, %v9899
  %v10391 = vadd.f32 %v10390, %v9901
  %v10392 = vsel %vm2965, %v10251, 0.0
  %v10393 = vadd.f32 %v10391, %v10392
  %10394 = vadd.xlane.f32.xlu0 %v10393
  %v10395 = vpop.xlane.xlu0 %10394
  %v10396 = vadd.f32 %v9131, %v9133
  %v10397 = vadd.f32 %v10396, %v9517
  %v10398 = vadd.f32 %v10397, %v9519
  %v10399 = vadd.f32 %v10398, %v9903
  %v10400 = vadd.f32 %v10399, %v9905
  %v10401 = vsel %vm2965, %v10254, 0.0
  %v10402 = vadd.f32 %v10400, %v10401
  %10403 = vadd.xlane.f32.xlu0 %v10402
  %v10404 = vpop.xlane.xlu0 %10403
  %v10405 = vadd.f32 %v9137, %v9139
  %v10406 = vadd.f32 %v10405, %v9523
  %v10407 = vadd.f32 %v10406, %v9525
  %v10408 = vadd.f32 %v10407, %v9909
  %v10409 = vadd.f32 %v10408, %v9911
  %v10410 = vsel %vm2965, %v10259, 0.0
  %v10411 = vadd.f32 %v10409, %v10410
  %10412 = vadd.xlane.f32.xlu0 %v10411
  %v10413 = vpop.xlane.xlu0 %10412
  %v10414 = vadd.f32 %v9141, %v9143
  %v10415 = vadd.f32 %v10414, %v9527
  %v10416 = vadd.f32 %v10415, %v9529
  %v10417 = vadd.f32 %v10416, %v9913
  %v10418 = vadd.f32 %v10417, %v9915
  %v10419 = vsel %vm2965, %v10262, 0.0
  %v10420 = vadd.f32 %v10418, %v10419
  %10421 = vadd.xlane.f32.xlu0 %v10420
  %v10422 = vpop.xlane.xlu0 %10421
  %v10423 = vadd.f32 %v9147, %v9149
  %v10424 = vadd.f32 %v10423, %v9533
  %v10425 = vadd.f32 %v10424, %v9535
  %v10426 = vadd.f32 %v10425, %v9919
  %v10427 = vadd.f32 %v10426, %v9921
  %v10428 = vsel %vm2965, %v10267, 0.0
  %v10429 = vadd.f32 %v10427, %v10428
  %10430 = vadd.xlane.f32.xlu0 %v10429
  %v10431 = vpop.xlane.xlu0 %10430
  %v10432 = vadd.f32 %v9151, %v9153
  %v10433 = vadd.f32 %v10432, %v9537
  %v10434 = vadd.f32 %v10433, %v9539
  %v10435 = vadd.f32 %v10434, %v9923
  %v10436 = vadd.f32 %v10435, %v9925
  %v10437 = vsel %vm2965, %v10270, 0.0
  %v10438 = vadd.f32 %v10436, %v10437
  %10439 = vadd.xlane.f32.xlu0 %v10438
  %v10440 = vpop.xlane.xlu0 %10439
  %v10441 = vadd.f32 %v9157, %v9159
  %v10442 = vadd.f32 %v10441, %v9543
  %v10443 = vadd.f32 %v10442, %v9545
  %v10444 = vadd.f32 %v10443, %v9929
  %v10445 = vadd.f32 %v10444, %v9931
  %v10446 = vsel %vm2965, %v10275, 0.0
  %v10447 = vadd.f32 %v10445, %v10446
  %10448 = vadd.xlane.f32.xlu0 %v10447
  %v10449 = vpop.xlane.xlu0 %10448
  %v10450 = vadd.f32 %v9161, %v9163
  %v10451 = vadd.f32 %v10450, %v9547
  %v10452 = vadd.f32 %v10451, %v9549
  %v10453 = vadd.f32 %v10452, %v9933
  %v10454 = vadd.f32 %v10453, %v9935
  %v10455 = vsel %vm2965, %v10278, 0.0
  %v10456 = vadd.f32 %v10454, %v10455
  %10457 = vadd.xlane.f32.xlu0 %v10456
  %v10458 = vpop.xlane.xlu0 %10457
  %v10459 = vadd.f32 %v9167, %v9169
  %v10460 = vadd.f32 %v10459, %v9553
  %v10461 = vadd.f32 %v10460, %v9555
  %v10462 = vadd.f32 %v10461, %v9939
  %v10463 = vadd.f32 %v10462, %v9941
  %v10464 = vsel %vm2965, %v10283, 0.0
  %v10465 = vadd.f32 %v10463, %v10464
  %10466 = vadd.xlane.f32.xlu0 %v10465
  %v10467 = vpop.xlane.xlu0 %10466
  %v10468 = vadd.f32 %v9171, %v9173
  %v10469 = vadd.f32 %v10468, %v9557
  %v10470 = vadd.f32 %v10469, %v9559
  %v10471 = vadd.f32 %v10470, %v9943
  %v10472 = vadd.f32 %v10471, %v9945
  %v10473 = vsel %vm2965, %v10286, 0.0
  %v10474 = vadd.f32 %v10472, %v10473
  %10475 = vadd.xlane.f32.xlu0 %v10474
  %v10476 = vpop.xlane.xlu0 %10475
  %v10477 = vadd.f32 %v9177, %v9179
  %v10478 = vadd.f32 %v10477, %v9563
  %v10479 = vadd.f32 %v10478, %v9565
  %v10480 = vadd.f32 %v10479, %v9949
  %v10481 = vadd.f32 %v10480, %v9951
  %v10482 = vsel %vm2965, %v10291, 0.0
  %v10483 = vadd.f32 %v10481, %v10482
  %10484 = vadd.xlane.f32.xlu0 %v10483
  %v10485 = vpop.xlane.xlu0 %10484
  %v10486 = vadd.f32 %v9181, %v9183
  %v10487 = vadd.f32 %v10486, %v9567
  %v10488 = vadd.f32 %v10487, %v9569
  %v10489 = vadd.f32 %v10488, %v9953
  %v10490 = vadd.f32 %v10489, %v9955
  %v10491 = vsel %vm2965, %v10294, 0.0
  %v10492 = vadd.f32 %v10490, %v10491
  %10493 = vadd.xlane.f32.xlu0 %v10492
  %v10494 = vpop.xlane.xlu0 %10493
  %v10495 = vadd.f32 %v9187, %v9189
  %v10496 = vadd.f32 %v10495, %v9573
  %v10497 = vadd.f32 %v10496, %v9575
  %v10498 = vadd.f32 %v10497, %v9959
  %v10499 = vadd.f32 %v10498, %v9961
  %v10500 = vsel %vm2965, %v10299, 0.0
  %v10501 = vadd.f32 %v10499, %v10500
  %10502 = vadd.xlane.f32.xlu0 %v10501
  %v10503 = vpop.xlane.xlu0 %10502
  %v10504 = vadd.f32 %v9191, %v9193
  %v10505 = vadd.f32 %v10504, %v9577
  %v10506 = vadd.f32 %v10505, %v9579
  %v10507 = vadd.f32 %v10506, %v9963
  %v10508 = vadd.f32 %v10507, %v9965
  %v10509 = vsel %vm2965, %v10302, 0.0
  %v10510 = vadd.f32 %v10508, %v10509
  %10511 = vadd.xlane.f32.xlu0 %v10510
  %v10512 = vpop.xlane.xlu0 %10511
  %v10513 = vadd.f32 %v9197, %v9199
  %v10514 = vadd.f32 %v10513, %v9583
  %v10515 = vadd.f32 %v10514, %v9585
  %v10516 = vadd.f32 %v10515, %v9969
  %v10517 = vadd.f32 %v10516, %v9971
  %v10518 = vsel %vm2965, %v10307, 0.0
  %v10519 = vadd.f32 %v10517, %v10518
  %10520 = vadd.xlane.f32.xlu0 %v10519
  %v10521 = vpop.xlane.xlu0 %10520
  %v10522 = vadd.f32 %v9201, %v9203
  %v10523 = vadd.f32 %v10522, %v9587
  %v10524 = vadd.f32 %v10523, %v9589
  %v10525 = vadd.f32 %v10524, %v9973
  %v10526 = vadd.f32 %v10525, %v9975
  %v10527 = vsel %vm2965, %v10310, 0.0
  %v10528 = vadd.f32 %v10526, %v10527
  %10529 = vadd.xlane.f32.xlu0 %v10528
  %v10530 = vpop.xlane.xlu0 %10529
  %v10531 = vadd.f32 %v9207, %v9209
  %v10532 = vadd.f32 %v10531, %v9593
  %v10533 = vadd.f32 %v10532, %v9595
  %v10534 = vadd.f32 %v10533, %v9979
  %v10535 = vadd.f32 %v10534, %v9981
  %v10536 = vsel %vm2965, %v10315, 0.0
  %v10537 = vadd.f32 %v10535, %v10536
  %10538 = vadd.xlane.f32.xlu0 %v10537
  %v10539 = vpop.xlane.xlu0 %10538
  %v10540 = vadd.f32 %v9211, %v9213
  %v10541 = vadd.f32 %v10540, %v9597
  %v10542 = vadd.f32 %v10541, %v9599
  %v10543 = vadd.f32 %v10542, %v9983
  %v10544 = vadd.f32 %v10543, %v9985
  %v10545 = vsel %vm2965, %v10318, 0.0
  %v10546 = vadd.f32 %v10544, %v10545
  %10547 = vadd.xlane.f32.xlu0 %v10546
  %v10548 = vpop.xlane.xlu0 %10547
  %v10549 = vadd.f32 %v9217, %v9219
  %v10550 = vadd.f32 %v10549, %v9603
  %v10551 = vadd.f32 %v10550, %v9605
  %v10552 = vadd.f32 %v10551, %v9989
  %v10553 = vadd.f32 %v10552, %v9991
  %v10554 = vsel %vm2965, %v10323, 0.0
  %v10555 = vadd.f32 %v10553, %v10554
  %10556 = vadd.xlane.f32.xlu0 %v10555
  %v10557 = vpop.xlane.xlu0 %10556
  %v10558 = vadd.f32 %v9221, %v9223
  %v10559 = vadd.f32 %v10558, %v9607
  %v10560 = vadd.f32 %v10559, %v9609
  %v10561 = vadd.f32 %v10560, %v9993
  %v10562 = vadd.f32 %v10561, %v9995
  %v10563 = vsel %vm2965, %v10326, 0.0
  %v10564 = vadd.f32 %v10562, %v10563
  %10565 = vadd.xlane.f32.xlu0 %v10564
  %v10566 = vpop.xlane.xlu0 %10565
  %v10567 = vadd.f32 %v9227, %v9229
  %v10568 = vadd.f32 %v10567, %v9613
  %v10569 = vadd.f32 %v10568, %v9615
  %v10570 = vadd.f32 %v10569, %v9999
  %v10571 = vadd.f32 %v10570, %v10001
  %v10572 = vsel %vm2965, %v10331, 0.0
  %v10573 = vadd.f32 %v10571, %v10572
  %10574 = vadd.xlane.f32.xlu0 %v10573
  %v10575 = vpop.xlane.xlu0 %10574
  %v10576 = vadd.f32 %v9231, %v9233
  %v10577 = vadd.f32 %v10576, %v9617
  %v10578 = vadd.f32 %v10577, %v9619
  %v10579 = vadd.f32 %v10578, %v10003
  %v10580 = vadd.f32 %v10579, %v10005
  %v10581 = vsel %vm2965, %v10334, 0.0
  %v10582 = vadd.f32 %v10580, %v10581
  %10583 = vadd.xlane.f32.xlu0 %v10582
  %v10584 = vpop.xlane.xlu0 %10583
  %v10585 = vadd.f32 %v9237, %v9239
  %v10586 = vadd.f32 %v10585, %v9623
  %v10587 = vadd.f32 %v10586, %v9625
  %v10588 = vadd.f32 %v10587, %v10009
  %v10589 = vadd.f32 %v10588, %v10011
  %v10590 = vsel %vm2965, %v10339, 0.0
  %v10591 = vadd.f32 %v10589, %v10590
  %10592 = vadd.xlane.f32.xlu0 %v10591
  %v10593 = vpop.xlane.xlu0 %10592
  %v10594 = vadd.f32 %v9241, %v9243
  %v10595 = vadd.f32 %v10594, %v9627
  %v10596 = vadd.f32 %v10595, %v9629
  %v10597 = vadd.f32 %v10596, %v10013
  %v10598 = vadd.f32 %v10597, %v10015
  %v10599 = vsel %vm2965, %v10342, 0.0
  %v10600 = vadd.f32 %v10598, %v10599
  %10601 = vadd.xlane.f32.xlu0 %v10600
  %v10602 = vpop.xlane.xlu0 %10601
  %v10603 = vadd.f32 %v9247, %v9249
  %v10604 = vadd.f32 %v10603, %v9633
  %v10605 = vadd.f32 %v10604, %v9635
  %v10606 = vadd.f32 %v10605, %v10019
  %v10607 = vadd.f32 %v10606, %v10021
  %v10608 = vsel %vm2965, %v10347, 0.0
  %v10609 = vadd.f32 %v10607, %v10608
  %10610 = vadd.xlane.f32.xlu0 %v10609
  %v10611 = vpop.xlane.xlu0 %10610
  %v10612 = vadd.f32 %v9251, %v9253
  %v10613 = vadd.f32 %v10612, %v9637
  %v10614 = vadd.f32 %v10613, %v9639
  %v10615 = vadd.f32 %v10614, %v10023
  %v10616 = vadd.f32 %v10615, %v10025
  %v10617 = vsel %vm2965, %v10350, 0.0
  %v10618 = vadd.f32 %v10616, %v10617
  %10619 = vadd.xlane.f32.xlu0 %v10618
  %v10620 = vpop.xlane.xlu0 %10619
  %v10621 = vadd.f32 %v9257, %v9259
  %v10622 = vadd.f32 %v10621, %v9643
  %v10623 = vadd.f32 %v10622, %v9645
  %v10624 = vadd.f32 %v10623, %v10029
  %v10625 = vadd.f32 %v10624, %v10031
  %v10626 = vsel %vm2965, %v10355, 0.0
  %v10627 = vadd.f32 %v10625, %v10626
  %10628 = vadd.xlane.f32.xlu0 %v10627
  %v10629 = vpop.xlane.xlu0 %10628
  %v10630 = vadd.f32 %v9261, %v9263
  %v10631 = vadd.f32 %v10630, %v9647
  %v10632 = vadd.f32 %v10631, %v9649
  %v10633 = vadd.f32 %v10632, %v10033
  %v10634 = vadd.f32 %v10633, %v10035
  %v10635 = vsel %vm2965, %v10358, 0.0
  %v10636 = vadd.f32 %v10634, %v10635
  %10637 = vadd.xlane.f32.xlu0 %v10636
  %v10638 = vpop.xlane.xlu0 %10637
  %v10639 = vadd.f32 %v9267, %v9269
  %v10640 = vadd.f32 %v10639, %v9653
  %v10641 = vadd.f32 %v10640, %v9655
  %v10642 = vadd.f32 %v10641, %v10039
  %v10643 = vadd.f32 %v10642, %v10041
  %v10644 = vsel %vm2965, %v10363, 0.0
  %v10645 = vadd.f32 %v10643, %v10644
  %10646 = vadd.xlane.f32.xlu0 %v10645
  %v10647 = vpop.xlane.xlu0 %10646
  %v10648 = vadd.f32 %v9271, %v9273
  %v10649 = vadd.f32 %v10648, %v9657
  %v10650 = vadd.f32 %v10649, %v9659
  %v10651 = vadd.f32 %v10650, %v10043
  %v10652 = vadd.f32 %v10651, %v10045
  %v10653 = vsel %vm2965, %v10366, 0.0
  %v10654 = vadd.f32 %v10652, %v10653
  %10655 = vadd.xlane.f32.xlu0 %v10654
  %v10656 = vpop.xlane.xlu0 %10655
  %v10657 = vmul.f32 %v10377, 0.0012755102
  %v10658 = vmul.f32 %v10386, 0.0012755102
  %v10659 = vmul.f32 %v10395, 0.0012755102
  %v10660 = vmul.f32 %v10404, 0.0012755102
  %v10661 = vmul.f32 %v10413, 0.0012755102
  %v10662 = vmul.f32 %v10422, 0.0012755102
  %v10663 = vmul.f32 %v10431, 0.0012755102
  %v10664 = vmul.f32 %v10440, 0.0012755102
  %v10665 = vmul.f32 %v10449, 0.0012755102
  %v10666 = vmul.f32 %v10458, 0.0012755102
  %v10667 = vmul.f32 %v10467, 0.0012755102
  %v10668 = vmul.f32 %v10476, 0.0012755102
  %v10669 = vmul.f32 %v10485, 0.0012755102
  %v10670 = vmul.f32 %v10494, 0.0012755102
  %v10671 = vmul.f32 %v10503, 0.0012755102
  %v10672 = vmul.f32 %v10512, 0.0012755102
  %v10673 = vmul.f32 %v10521, 0.0012755102
  %v10674 = vmul.f32 %v10530, 0.0012755102
  %v10675 = vmul.f32 %v10539, 0.0012755102
  %v10676 = vmul.f32 %v10548, 0.0012755102
  %v10677 = vmul.f32 %v10557, 0.0012755102
  %v10678 = vmul.f32 %v10566, 0.0012755102
  %v10679 = vmul.f32 %v10575, 0.0012755102
  %v10680 = vmul.f32 %v10584, 0.0012755102
  %v10681 = vmul.f32 %v10593, 0.0012755102
  %v10682 = vmul.f32 %v10602, 0.0012755102
  %v10683 = vmul.f32 %v10611, 0.0012755102
  %v10684 = vmul.f32 %v10620, 0.0012755102
  %v10685 = vmul.f32 %v10629, 0.0012755102
  %v10686 = vmul.f32 %v10638, 0.0012755102
  %v10687 = vmul.f32 %v10647, 0.0012755102
  %v10688 = vmul.f32 %v10656, 0.0012755102
  %v10689 = vmul.f32 %v9117, %v9117
  %v10690 = vmul.f32 %v9119, %v9119
  %v10691 = vmul.f32 %v9503, %v9503
  %v10692 = vmul.f32 %v9505, %v9505
  %v10693 = vmul.f32 %v9889, %v9889
  %v10694 = vmul.f32 %v9891, %v9891
  %v10695 = vmul.f32 %v10243, %v10243
  %v10696 = vmul.f32 %v9121, %v9121
  %v10697 = vmul.f32 %v9123, %v9123
  %v10698 = vmul.f32 %v9507, %v9507
  %v10699 = vmul.f32 %v9509, %v9509
  %v10700 = vmul.f32 %v9893, %v9893
  %v10701 = vmul.f32 %v9895, %v9895
  %v10702 = vmul.f32 %v10246, %v10246
  %v10703 = vmul.f32 %v9127, %v9127
  %v10704 = vmul.f32 %v9129, %v9129
  %v10705 = vmul.f32 %v9513, %v9513
  %v10706 = vmul.f32 %v9515, %v9515
  %v10707 = vmul.f32 %v9899, %v9899
  %v10708 = vmul.f32 %v9901, %v9901
  %v10709 = vmul.f32 %v10251, %v10251
  %v10710 = vmul.f32 %v9131, %v9131
  %v10711 = vmul.f32 %v9133, %v9133
  %v10712 = vmul.f32 %v9517, %v9517
  %v10713 = vmul.f32 %v9519, %v9519
  %v10714 = vmul.f32 %v9903, %v9903
  %v10715 = vmul.f32 %v9905, %v9905
  %v10716 = vmul.f32 %v10254, %v10254
  %v10717 = vmul.f32 %v9137, %v9137
  %v10718 = vmul.f32 %v9139, %v9139
  %v10719 = vmul.f32 %v9523, %v9523
  %v10720 = vmul.f32 %v9525, %v9525
  %v10721 = vmul.f32 %v9909, %v9909
  %v10722 = vmul.f32 %v9911, %v9911
  %v10723 = vmul.f32 %v10259, %v10259
  %v10724 = vmul.f32 %v9141, %v9141
  %v10725 = vmul.f32 %v9143, %v9143
  %v10726 = vmul.f32 %v9527, %v9527
  %v10727 = vmul.f32 %v9529, %v9529
  %v10728 = vmul.f32 %v9913, %v9913
  %v10729 = vmul.f32 %v9915, %v9915
  %v10730 = vmul.f32 %v10262, %v10262
  %v10731 = vmul.f32 %v9147, %v9147
  %v10732 = vmul.f32 %v9149, %v9149
  %v10733 = vmul.f32 %v9533, %v9533
  %v10734 = vmul.f32 %v9535, %v9535
  %v10735 = vmul.f32 %v9919, %v9919
  %v10736 = vmul.f32 %v9921, %v9921
  %v10737 = vmul.f32 %v10267, %v10267
  %v10738 = vmul.f32 %v9151, %v9151
  %v10739 = vmul.f32 %v9153, %v9153
  %v10740 = vmul.f32 %v9537, %v9537
  %v10741 = vmul.f32 %v9539, %v9539
  %v10742 = vmul.f32 %v9923, %v9923
  %v10743 = vmul.f32 %v9925, %v9925
  %v10744 = vmul.f32 %v10270, %v10270
  %v10745 = vmul.f32 %v9157, %v9157
  %v10746 = vmul.f32 %v9159, %v9159
  %v10747 = vmul.f32 %v9543, %v9543
  %v10748 = vmul.f32 %v9545, %v9545
  %v10749 = vmul.f32 %v9929, %v9929
  %v10750 = vmul.f32 %v9931, %v9931
  %v10751 = vmul.f32 %v10275, %v10275
  %v10752 = vmul.f32 %v9161, %v9161
  %v10753 = vmul.f32 %v9163, %v9163
  %v10754 = vmul.f32 %v9547, %v9547
  %v10755 = vmul.f32 %v9549, %v9549
  %v10756 = vmul.f32 %v9933, %v9933
  %v10757 = vmul.f32 %v9935, %v9935
  %v10758 = vmul.f32 %v10278, %v10278
  %v10759 = vmul.f32 %v9167, %v9167
  %v10760 = vmul.f32 %v9169, %v9169
  %v10761 = vmul.f32 %v9553, %v9553
  %v10762 = vmul.f32 %v9555, %v9555
  %v10763 = vmul.f32 %v9939, %v9939
  %v10764 = vmul.f32 %v9941, %v9941
  %v10765 = vmul.f32 %v10283, %v10283
  %v10766 = vmul.f32 %v9171, %v9171
  %v10767 = vmul.f32 %v9173, %v9173
  %v10768 = vmul.f32 %v9557, %v9557
  %v10769 = vmul.f32 %v9559, %v9559
  %v10770 = vmul.f32 %v9943, %v9943
  %v10771 = vmul.f32 %v9945, %v9945
  %v10772 = vmul.f32 %v10286, %v10286
  %v10773 = vmul.f32 %v9177, %v9177
  %v10774 = vmul.f32 %v9179, %v9179
  %v10775 = vmul.f32 %v9563, %v9563
  %v10776 = vmul.f32 %v9565, %v9565
  %v10777 = vmul.f32 %v9949, %v9949
  %v10778 = vmul.f32 %v9951, %v9951
  %v10779 = vmul.f32 %v10291, %v10291
  %v10780 = vmul.f32 %v9181, %v9181
  %v10781 = vmul.f32 %v9183, %v9183
  %v10782 = vmul.f32 %v9567, %v9567
  %v10783 = vmul.f32 %v9569, %v9569
  %v10784 = vmul.f32 %v9953, %v9953
  %v10785 = vmul.f32 %v9955, %v9955
  %v10786 = vmul.f32 %v10294, %v10294
  %v10787 = vmul.f32 %v9187, %v9187
  %v10788 = vmul.f32 %v9189, %v9189
  %v10789 = vmul.f32 %v9573, %v9573
  %v10790 = vmul.f32 %v9575, %v9575
  %v10791 = vmul.f32 %v9959, %v9959
  %v10792 = vmul.f32 %v9961, %v9961
  %v10793 = vmul.f32 %v10299, %v10299
  %v10794 = vmul.f32 %v9191, %v9191
  %v10795 = vmul.f32 %v9193, %v9193
  %v10796 = vmul.f32 %v9577, %v9577
  %v10797 = vmul.f32 %v9579, %v9579
  %v10798 = vmul.f32 %v9963, %v9963
  %v10799 = vmul.f32 %v9965, %v9965
  %v10800 = vmul.f32 %v10302, %v10302
  %v10801 = vmul.f32 %v9197, %v9197
  %v10802 = vmul.f32 %v9199, %v9199
  %v10803 = vmul.f32 %v9583, %v9583
  %v10804 = vmul.f32 %v9585, %v9585
  %v10805 = vmul.f32 %v9969, %v9969
  %v10806 = vmul.f32 %v9971, %v9971
  %v10807 = vmul.f32 %v10307, %v10307
  %v10808 = vmul.f32 %v9201, %v9201
  %v10809 = vmul.f32 %v9203, %v9203
  %v10810 = vmul.f32 %v9587, %v9587
  %v10811 = vmul.f32 %v9589, %v9589
  %v10812 = vmul.f32 %v9973, %v9973
  %v10813 = vmul.f32 %v9975, %v9975
  %v10814 = vmul.f32 %v10310, %v10310
  %v10815 = vmul.f32 %v9207, %v9207
  %v10816 = vmul.f32 %v9209, %v9209
  %v10817 = vmul.f32 %v9593, %v9593
  %v10818 = vmul.f32 %v9595, %v9595
  %v10819 = vmul.f32 %v9979, %v9979
  %v10820 = vmul.f32 %v9981, %v9981
  %v10821 = vmul.f32 %v10315, %v10315
  %v10822 = vmul.f32 %v9211, %v9211
  %v10823 = vmul.f32 %v9213, %v9213
  %v10824 = vmul.f32 %v9597, %v9597
  %v10825 = vmul.f32 %v9599, %v9599
  %v10826 = vmul.f32 %v9983, %v9983
  %v10827 = vmul.f32 %v9985, %v9985
  %v10828 = vmul.f32 %v10318, %v10318
  %v10829 = vmul.f32 %v9217, %v9217
  %v10830 = vmul.f32 %v9219, %v9219
  %v10831 = vmul.f32 %v9603, %v9603
  %v10832 = vmul.f32 %v9605, %v9605
  %v10833 = vmul.f32 %v9989, %v9989
  %v10834 = vmul.f32 %v9991, %v9991
  %v10835 = vmul.f32 %v10323, %v10323
  %v10836 = vmul.f32 %v9221, %v9221
  %v10837 = vmul.f32 %v9223, %v9223
  %v10838 = vmul.f32 %v9607, %v9607
  %v10839 = vmul.f32 %v9609, %v9609
  %v10840 = vmul.f32 %v9993, %v9993
  %v10841 = vmul.f32 %v9995, %v9995
  %v10842 = vmul.f32 %v10326, %v10326
  %v10843 = vmul.f32 %v9227, %v9227
  %v10844 = vmul.f32 %v9229, %v9229
  %v10845 = vmul.f32 %v9613, %v9613
  %v10846 = vmul.f32 %v9615, %v9615
  %v10847 = vmul.f32 %v9999, %v9999
  %v10848 = vmul.f32 %v10001, %v10001
  %v10849 = vmul.f32 %v10331, %v10331
  %v10850 = vmul.f32 %v9231, %v9231
  %v10851 = vmul.f32 %v9233, %v9233
  %v10852 = vmul.f32 %v9617, %v9617
  %v10853 = vmul.f32 %v9619, %v9619
  %v10854 = vmul.f32 %v10003, %v10003
  %v10855 = vmul.f32 %v10005, %v10005
  %v10856 = vmul.f32 %v10334, %v10334
  %v10857 = vmul.f32 %v9237, %v9237
  %v10858 = vmul.f32 %v9239, %v9239
  %v10859 = vmul.f32 %v9623, %v9623
  %v10860 = vmul.f32 %v9625, %v9625
  %v10861 = vmul.f32 %v10009, %v10009
  %v10862 = vmul.f32 %v10011, %v10011
  %v10863 = vmul.f32 %v10339, %v10339
  %v10864 = vmul.f32 %v9241, %v9241
  %v10865 = vmul.f32 %v9243, %v9243
  %v10866 = vmul.f32 %v9627, %v9627
  %v10867 = vmul.f32 %v9629, %v9629
  %v10868 = vmul.f32 %v10013, %v10013
  %v10869 = vmul.f32 %v10015, %v10015
  %v10870 = vmul.f32 %v10342, %v10342
  %v10871 = vmul.f32 %v9247, %v9247
  %v10872 = vmul.f32 %v9249, %v9249
  %v10873 = vmul.f32 %v9633, %v9633
  %v10874 = vmul.f32 %v9635, %v9635
  %v10875 = vmul.f32 %v10019, %v10019
  %v10876 = vmul.f32 %v10021, %v10021
  %v10877 = vmul.f32 %v10347, %v10347
  %v10878 = vmul.f32 %v9251, %v9251
  %v10879 = vmul.f32 %v9253, %v9253
  %v10880 = vmul.f32 %v9637, %v9637
  %v10881 = vmul.f32 %v9639, %v9639
  %v10882 = vmul.f32 %v10023, %v10023
  %v10883 = vmul.f32 %v10025, %v10025
  %v10884 = vmul.f32 %v10350, %v10350
  %v10885 = vmul.f32 %v9257, %v9257
  %v10886 = vmul.f32 %v9259, %v9259
  %v10887 = vmul.f32 %v9643, %v9643
  %v10888 = vmul.f32 %v9645, %v9645
  %v10889 = vmul.f32 %v10029, %v10029
  %v10890 = vmul.f32 %v10031, %v10031
  %v10891 = vmul.f32 %v10355, %v10355
  %v10892 = vmul.f32 %v9261, %v9261
  %v10893 = vmul.f32 %v9263, %v9263
  %v10894 = vmul.f32 %v9647, %v9647
  %v10895 = vmul.f32 %v9649, %v9649
  %v10896 = vmul.f32 %v10033, %v10033
  %v10897 = vmul.f32 %v10035, %v10035
  %v10898 = vmul.f32 %v10358, %v10358
  %v10899 = vmul.f32 %v9267, %v9267
  %v10900 = vmul.f32 %v9269, %v9269
  %v10901 = vmul.f32 %v9653, %v9653
  %v10902 = vmul.f32 %v9655, %v9655
  %v10903 = vmul.f32 %v10039, %v10039
  %v10904 = vmul.f32 %v10041, %v10041
  %v10905 = vmul.f32 %v10363, %v10363
  %v10906 = vmul.f32 %v9271, %v9271
  %v10907 = vmul.f32 %v9273, %v9273
  %v10908 = vmul.f32 %v9657, %v9657
  %v10909 = vmul.f32 %v9659, %v9659
  %v10910 = vmul.f32 %v10043, %v10043
  %v10911 = vmul.f32 %v10045, %v10045
  %v10912 = vmul.f32 %v10366, %v10366
  %v10913 = vadd.f32 %v10689, %v10690
  %v10914 = vadd.f32 %v10913, %v10691
  %v10915 = vadd.f32 %v10914, %v10692
  %v10916 = vadd.f32 %v10915, %v10693
  %v10917 = vadd.f32 %v10916, %v10694
  %v10918 = vsel %vm2965, %v10695, 0.0
  %v10919 = vadd.f32 %v10917, %v10918
  %10920 = vadd.xlane.f32.xlu0 %v10919
  %v10921 = vpop.xlane.xlu0 %10920
  %v10922 = vadd.f32 %v10696, %v10697
  %v10923 = vadd.f32 %v10922, %v10698
  %v10924 = vadd.f32 %v10923, %v10699
  %v10925 = vadd.f32 %v10924, %v10700
  %v10926 = vadd.f32 %v10925, %v10701
  %v10927 = vsel %vm2965, %v10702, 0.0
  %v10928 = vadd.f32 %v10926, %v10927
  %10929 = vadd.xlane.f32.xlu0 %v10928
  %v10930 = vpop.xlane.xlu0 %10929
  %v10931 = vadd.f32 %v10703, %v10704
  %v10932 = vadd.f32 %v10931, %v10705
  %v10933 = vadd.f32 %v10932, %v10706
  %v10934 = vadd.f32 %v10933, %v10707
  %v10935 = vadd.f32 %v10934, %v10708
  %v10936 = vsel %vm2965, %v10709, 0.0
  %v10937 = vadd.f32 %v10935, %v10936
  %10938 = vadd.xlane.f32.xlu0 %v10937
  %v10939 = vpop.xlane.xlu0 %10938
  %v10940 = vadd.f32 %v10710, %v10711
  %v10941 = vadd.f32 %v10940, %v10712
  %v10942 = vadd.f32 %v10941, %v10713
  %v10943 = vadd.f32 %v10942, %v10714
  %v10944 = vadd.f32 %v10943, %v10715
  %v10945 = vsel %vm2965, %v10716, 0.0
  %v10946 = vadd.f32 %v10944, %v10945
  %10947 = vadd.xlane.f32.xlu0 %v10946
  %v10948 = vpop.xlane.xlu0 %10947
  %v10949 = vadd.f32 %v10717, %v10718
  %v10950 = vadd.f32 %v10949, %v10719
  %v10951 = vadd.f32 %v10950, %v10720
  %v10952 = vadd.f32 %v10951, %v10721
  %v10953 = vadd.f32 %v10952, %v10722
  %v10954 = vsel %vm2965, %v10723, 0.0
  %v10955 = vadd.f32 %v10953, %v10954
  %10956 = vadd.xlane.f32.xlu0 %v10955
  %v10957 = vpop.xlane.xlu0 %10956
  %v10958 = vadd.f32 %v10724, %v10725
  %v10959 = vadd.f32 %v10958, %v10726
  %v10960 = vadd.f32 %v10959, %v10727
  %v10961 = vadd.f32 %v10960, %v10728
  %v10962 = vadd.f32 %v10961, %v10729
  %v10963 = vsel %vm2965, %v10730, 0.0
  %v10964 = vadd.f32 %v10962, %v10963
  %10965 = vadd.xlane.f32.xlu0 %v10964
  %v10966 = vpop.xlane.xlu0 %10965
  %v10967 = vadd.f32 %v10731, %v10732
  %v10968 = vadd.f32 %v10967, %v10733
  %v10969 = vadd.f32 %v10968, %v10734
  %v10970 = vadd.f32 %v10969, %v10735
  %v10971 = vadd.f32 %v10970, %v10736
  %v10972 = vsel %vm2965, %v10737, 0.0
  %v10973 = vadd.f32 %v10971, %v10972
  %10974 = vadd.xlane.f32.xlu0 %v10973
  %v10975 = vpop.xlane.xlu0 %10974
  %v10976 = vadd.f32 %v10738, %v10739
  %v10977 = vadd.f32 %v10976, %v10740
  %v10978 = vadd.f32 %v10977, %v10741
  %v10979 = vadd.f32 %v10978, %v10742
  %v10980 = vadd.f32 %v10979, %v10743
  %v10981 = vsel %vm2965, %v10744, 0.0
  %v10982 = vadd.f32 %v10980, %v10981
  %10983 = vadd.xlane.f32.xlu0 %v10982
  %v10984 = vpop.xlane.xlu0 %10983
  %v10985 = vadd.f32 %v10745, %v10746
  %v10986 = vadd.f32 %v10985, %v10747
  %v10987 = vadd.f32 %v10986, %v10748
  %v10988 = vadd.f32 %v10987, %v10749
  %v10989 = vadd.f32 %v10988, %v10750
  %v10990 = vsel %vm2965, %v10751, 0.0
  %v10991 = vadd.f32 %v10989, %v10990
  %10992 = vadd.xlane.f32.xlu0 %v10991
  %v10993 = vpop.xlane.xlu0 %10992
  %v10994 = vadd.f32 %v10752, %v10753
  %v10995 = vadd.f32 %v10994, %v10754
  %v10996 = vadd.f32 %v10995, %v10755
  %v10997 = vadd.f32 %v10996, %v10756
  %v10998 = vadd.f32 %v10997, %v10757
  %v10999 = vsel %vm2965, %v10758, 0.0
  %v11000 = vadd.f32 %v10998, %v10999
  %11001 = vadd.xlane.f32.xlu0 %v11000
  %v11002 = vpop.xlane.xlu0 %11001
  %v11003 = vadd.f32 %v10759, %v10760
  %v11004 = vadd.f32 %v11003, %v10761
  %v11005 = vadd.f32 %v11004, %v10762
  %v11006 = vadd.f32 %v11005, %v10763
  %v11007 = vadd.f32 %v11006, %v10764
  %v11008 = vsel %vm2965, %v10765, 0.0
  %v11009 = vadd.f32 %v11007, %v11008
  %11010 = vadd.xlane.f32.xlu0 %v11009
  %v11011 = vpop.xlane.xlu0 %11010
  %v11012 = vadd.f32 %v10766, %v10767
  %v11013 = vadd.f32 %v11012, %v10768
  %v11014 = vadd.f32 %v11013, %v10769
  %v11015 = vadd.f32 %v11014, %v10770
  %v11016 = vadd.f32 %v11015, %v10771
  %v11017 = vsel %vm2965, %v10772, 0.0
  %v11018 = vadd.f32 %v11016, %v11017
  %11019 = vadd.xlane.f32.xlu0 %v11018
  %v11020 = vpop.xlane.xlu0 %11019
  %v11021 = vadd.f32 %v10773, %v10774
  %v11022 = vadd.f32 %v11021, %v10775
  %v11023 = vadd.f32 %v11022, %v10776
  %v11024 = vadd.f32 %v11023, %v10777
  %v11025 = vadd.f32 %v11024, %v10778
  %v11026 = vsel %vm2965, %v10779, 0.0
  %v11027 = vadd.f32 %v11025, %v11026
  %11028 = vadd.xlane.f32.xlu0 %v11027
  %v11029 = vpop.xlane.xlu0 %11028
  %v11030 = vadd.f32 %v10780, %v10781
  %v11031 = vadd.f32 %v11030, %v10782
  %v11032 = vadd.f32 %v11031, %v10783
  %v11033 = vadd.f32 %v11032, %v10784
  %v11034 = vadd.f32 %v11033, %v10785
  %v11035 = vsel %vm2965, %v10786, 0.0
  %v11036 = vadd.f32 %v11034, %v11035
  %11037 = vadd.xlane.f32.xlu0 %v11036
  %v11038 = vpop.xlane.xlu0 %11037
  %v11039 = vadd.f32 %v10787, %v10788
  %v11040 = vadd.f32 %v11039, %v10789
  %v11041 = vadd.f32 %v11040, %v10790
  %v11042 = vadd.f32 %v11041, %v10791
  %v11043 = vadd.f32 %v11042, %v10792
  %v11044 = vsel %vm2965, %v10793, 0.0
  %v11045 = vadd.f32 %v11043, %v11044
  %11046 = vadd.xlane.f32.xlu0 %v11045
  %v11047 = vpop.xlane.xlu0 %11046
  %v11048 = vadd.f32 %v10794, %v10795
  %v11049 = vadd.f32 %v11048, %v10796
  %v11050 = vadd.f32 %v11049, %v10797
  %v11051 = vadd.f32 %v11050, %v10798
  %v11052 = vadd.f32 %v11051, %v10799
  %v11053 = vsel %vm2965, %v10800, 0.0
  %v11054 = vadd.f32 %v11052, %v11053
  %11055 = vadd.xlane.f32.xlu0 %v11054
  %v11056 = vpop.xlane.xlu0 %11055
  %v11057 = vadd.f32 %v10801, %v10802
  %v11058 = vadd.f32 %v11057, %v10803
  %v11059 = vadd.f32 %v11058, %v10804
  %v11060 = vadd.f32 %v11059, %v10805
  %v11061 = vadd.f32 %v11060, %v10806
  %v11062 = vsel %vm2965, %v10807, 0.0
  %v11063 = vadd.f32 %v11061, %v11062
  %11064 = vadd.xlane.f32.xlu0 %v11063
  %v11065 = vpop.xlane.xlu0 %11064
  %v11066 = vadd.f32 %v10808, %v10809
  %v11067 = vadd.f32 %v11066, %v10810
  %v11068 = vadd.f32 %v11067, %v10811
  %v11069 = vadd.f32 %v11068, %v10812
  %v11070 = vadd.f32 %v11069, %v10813
  %v11071 = vsel %vm2965, %v10814, 0.0
  %v11072 = vadd.f32 %v11070, %v11071
  %11073 = vadd.xlane.f32.xlu0 %v11072
  %v11074 = vpop.xlane.xlu0 %11073
  %v11075 = vadd.f32 %v10815, %v10816
  %v11076 = vadd.f32 %v11075, %v10817
  %v11077 = vadd.f32 %v11076, %v10818
  %v11078 = vadd.f32 %v11077, %v10819
  %v11079 = vadd.f32 %v11078, %v10820
  %v11080 = vsel %vm2965, %v10821, 0.0
  %v11081 = vadd.f32 %v11079, %v11080
  %11082 = vadd.xlane.f32.xlu0 %v11081
  %v11083 = vpop.xlane.xlu0 %11082
  %v11084 = vadd.f32 %v10822, %v10823
  %v11085 = vadd.f32 %v11084, %v10824
  %v11086 = vadd.f32 %v11085, %v10825
  %v11087 = vadd.f32 %v11086, %v10826
  %v11088 = vadd.f32 %v11087, %v10827
  %v11089 = vsel %vm2965, %v10828, 0.0
  %v11090 = vadd.f32 %v11088, %v11089
  %11091 = vadd.xlane.f32.xlu0 %v11090
  %v11092 = vpop.xlane.xlu0 %11091
  %v11093 = vadd.f32 %v10829, %v10830
  %v11094 = vadd.f32 %v11093, %v10831
  %v11095 = vadd.f32 %v11094, %v10832
  %v11096 = vadd.f32 %v11095, %v10833
  %v11097 = vadd.f32 %v11096, %v10834
  %v11098 = vsel %vm2965, %v10835, 0.0
  %v11099 = vadd.f32 %v11097, %v11098
  %11100 = vadd.xlane.f32.xlu0 %v11099
  %v11101 = vpop.xlane.xlu0 %11100
  %v11102 = vadd.f32 %v10836, %v10837
  %v11103 = vadd.f32 %v11102, %v10838
  %v11104 = vadd.f32 %v11103, %v10839
  %v11105 = vadd.f32 %v11104, %v10840
  %v11106 = vadd.f32 %v11105, %v10841
  %v11107 = vsel %vm2965, %v10842, 0.0
  %v11108 = vadd.f32 %v11106, %v11107
  %11109 = vadd.xlane.f32.xlu0 %v11108
  %v11110 = vpop.xlane.xlu0 %11109
  %v11111 = vadd.f32 %v10843, %v10844
  %v11112 = vadd.f32 %v11111, %v10845
  %v11113 = vadd.f32 %v11112, %v10846
  %v11114 = vadd.f32 %v11113, %v10847
  %v11115 = vadd.f32 %v11114, %v10848
  %v11116 = vsel %vm2965, %v10849, 0.0
  %v11117 = vadd.f32 %v11115, %v11116
  %11118 = vadd.xlane.f32.xlu0 %v11117
  %v11119 = vpop.xlane.xlu0 %11118
  %v11120 = vadd.f32 %v10850, %v10851
  %v11121 = vadd.f32 %v11120, %v10852
  %v11122 = vadd.f32 %v11121, %v10853
  %v11123 = vadd.f32 %v11122, %v10854
  %v11124 = vadd.f32 %v11123, %v10855
  %v11125 = vsel %vm2965, %v10856, 0.0
  %v11126 = vadd.f32 %v11124, %v11125
  %11127 = vadd.xlane.f32.xlu0 %v11126
  %v11128 = vpop.xlane.xlu0 %11127
  %v11129 = vadd.f32 %v10857, %v10858
  %v11130 = vadd.f32 %v11129, %v10859
  %v11131 = vadd.f32 %v11130, %v10860
  %v11132 = vadd.f32 %v11131, %v10861
  %v11133 = vadd.f32 %v11132, %v10862
  %v11134 = vsel %vm2965, %v10863, 0.0
  %v11135 = vadd.f32 %v11133, %v11134
  %11136 = vadd.xlane.f32.xlu0 %v11135
  %v11137 = vpop.xlane.xlu0 %11136
  %v11138 = vadd.f32 %v10864, %v10865
  %v11139 = vadd.f32 %v11138, %v10866
  %v11140 = vadd.f32 %v11139, %v10867
  %v11141 = vadd.f32 %v11140, %v10868
  %v11142 = vadd.f32 %v11141, %v10869
  %v11143 = vsel %vm2965, %v10870, 0.0
  %v11144 = vadd.f32 %v11142, %v11143
  %11145 = vadd.xlane.f32.xlu0 %v11144
  %v11146 = vpop.xlane.xlu0 %11145
  %v11147 = vadd.f32 %v10871, %v10872
  %v11148 = vadd.f32 %v11147, %v10873
  %v11149 = vadd.f32 %v11148, %v10874
  %v11150 = vadd.f32 %v11149, %v10875
  %v11151 = vadd.f32 %v11150, %v10876
  %v11152 = vsel %vm2965, %v10877, 0.0
  %v11153 = vadd.f32 %v11151, %v11152
  %11154 = vadd.xlane.f32.xlu0 %v11153
  %v11155 = vpop.xlane.xlu0 %11154
  %v11156 = vadd.f32 %v10878, %v10879
  %v11157 = vadd.f32 %v11156, %v10880
  %v11158 = vadd.f32 %v11157, %v10881
  %v11159 = vadd.f32 %v11158, %v10882
  %v11160 = vadd.f32 %v11159, %v10883
  %v11161 = vsel %vm2965, %v10884, 0.0
  %v11162 = vadd.f32 %v11160, %v11161
  %11163 = vadd.xlane.f32.xlu0 %v11162
  %v11164 = vpop.xlane.xlu0 %11163
  %v11165 = vadd.f32 %v10885, %v10886
  %v11166 = vadd.f32 %v11165, %v10887
  %v11167 = vadd.f32 %v11166, %v10888
  %v11168 = vadd.f32 %v11167, %v10889
  %v11169 = vadd.f32 %v11168, %v10890
  %v11170 = vsel %vm2965, %v10891, 0.0
  %v11171 = vadd.f32 %v11169, %v11170
  %11172 = vadd.xlane.f32.xlu0 %v11171
  %v11173 = vpop.xlane.xlu0 %11172
  %v11174 = vadd.f32 %v10892, %v10893
  %v11175 = vadd.f32 %v11174, %v10894
  %v11176 = vadd.f32 %v11175, %v10895
  %v11177 = vadd.f32 %v11176, %v10896
  %v11178 = vadd.f32 %v11177, %v10897
  %v11179 = vsel %vm2965, %v10898, 0.0
  %v11180 = vadd.f32 %v11178, %v11179
  %11181 = vadd.xlane.f32.xlu0 %v11180
  %v11182 = vpop.xlane.xlu0 %11181
  %v11183 = vadd.f32 %v10899, %v10900
  %v11184 = vadd.f32 %v11183, %v10901
  %v11185 = vadd.f32 %v11184, %v10902
  %v11186 = vadd.f32 %v11185, %v10903
  %v11187 = vadd.f32 %v11186, %v10904
  %v11188 = vsel %vm2965, %v10905, 0.0
  %v11189 = vadd.f32 %v11187, %v11188
  %11190 = vadd.xlane.f32.xlu0 %v11189
  %v11191 = vpop.xlane.xlu0 %11190
  %v11192 = vadd.f32 %v10906, %v10907
  %v11193 = vadd.f32 %v11192, %v10908
  %v11194 = vadd.f32 %v11193, %v10909
  %v11195 = vadd.f32 %v11194, %v10910
  %v11196 = vadd.f32 %v11195, %v10911
  %v11197 = vsel %vm2965, %v10912, 0.0
  %v11198 = vadd.f32 %v11196, %v11197
  %11199 = vadd.xlane.f32.xlu0 %v11198
  %v11200 = vpop.xlane.xlu0 %11199
  %v11201 = vmul.f32 %v10921, 0.0012755102
  %v11202 = vmul.f32 %v10930, 0.0012755102
  %v11203 = vmul.f32 %v10939, 0.0012755102
  %v11204 = vmul.f32 %v10948, 0.0012755102
  %v11205 = vmul.f32 %v10957, 0.0012755102
  %v11206 = vmul.f32 %v10966, 0.0012755102
  %v11207 = vmul.f32 %v10975, 0.0012755102
  %v11208 = vmul.f32 %v10984, 0.0012755102
  %v11209 = vmul.f32 %v10993, 0.0012755102
  %v11210 = vmul.f32 %v11002, 0.0012755102
  %v11211 = vmul.f32 %v11011, 0.0012755102
  %v11212 = vmul.f32 %v11020, 0.0012755102
  %v11213 = vmul.f32 %v11029, 0.0012755102
  %v11214 = vmul.f32 %v11038, 0.0012755102
  %v11215 = vmul.f32 %v11047, 0.0012755102
  %v11216 = vmul.f32 %v11056, 0.0012755102
  %v11217 = vmul.f32 %v11065, 0.0012755102
  %v11218 = vmul.f32 %v11074, 0.0012755102
  %v11219 = vmul.f32 %v11083, 0.0012755102
  %v11220 = vmul.f32 %v11092, 0.0012755102
  %v11221 = vmul.f32 %v11101, 0.0012755102
  %v11222 = vmul.f32 %v11110, 0.0012755102
  %v11223 = vmul.f32 %v11119, 0.0012755102
  %v11224 = vmul.f32 %v11128, 0.0012755102
  %v11225 = vmul.f32 %v11137, 0.0012755102
  %v11226 = vmul.f32 %v11146, 0.0012755102
  %v11227 = vmul.f32 %v11155, 0.0012755102
  %v11228 = vmul.f32 %v11164, 0.0012755102
  %v11229 = vmul.f32 %v11173, 0.0012755102
  %v11230 = vmul.f32 %v11182, 0.0012755102
  %v11231 = vmul.f32 %v11191, 0.0012755102
  %v11232 = vmul.f32 %v11200, 0.0012755102
  %v11233 = vmul.f32 %v10657, %v10657
  %v11234 = vmul.f32 %v10658, %v10658
  %v11235 = vmul.f32 %v10659, %v10659
  %v11236 = vmul.f32 %v10660, %v10660
  %v11237 = vmul.f32 %v10661, %v10661
  %v11238 = vmul.f32 %v10662, %v10662
  %v11239 = vmul.f32 %v10663, %v10663
  %v11240 = vmul.f32 %v10664, %v10664
  %v11241 = vmul.f32 %v10665, %v10665
  %v11242 = vmul.f32 %v10666, %v10666
  %v11243 = vmul.f32 %v10667, %v10667
  %v11244 = vmul.f32 %v10668, %v10668
  %v11245 = vmul.f32 %v10669, %v10669
  %v11246 = vmul.f32 %v10670, %v10670
  %v11247 = vmul.f32 %v10671, %v10671
  %v11248 = vmul.f32 %v10672, %v10672
  %v11249 = vmul.f32 %v10673, %v10673
  %v11250 = vmul.f32 %v10674, %v10674
  %v11251 = vmul.f32 %v10675, %v10675
  %v11252 = vmul.f32 %v10676, %v10676
  %v11253 = vmul.f32 %v10677, %v10677
  %v11254 = vmul.f32 %v10678, %v10678
  %v11255 = vmul.f32 %v10679, %v10679
  %v11256 = vmul.f32 %v10680, %v10680
  %v11257 = vmul.f32 %v10681, %v10681
  %v11258 = vmul.f32 %v10682, %v10682
  %v11259 = vmul.f32 %v10683, %v10683
  %v11260 = vmul.f32 %v10684, %v10684
  %v11261 = vmul.f32 %v10685, %v10685
  %v11262 = vmul.f32 %v10686, %v10686
  %v11263 = vmul.f32 %v10687, %v10687
  %v11264 = vmul.f32 %v10688, %v10688
  %v11265 = vsub.f32 %v11201, %v11233
  %v11266 = vsub.f32 %v11202, %v11234
  %v11267 = vsub.f32 %v11203, %v11235
  %v11268 = vsub.f32 %v11204, %v11236
  %v11269 = vsub.f32 %v11205, %v11237
  %v11270 = vsub.f32 %v11206, %v11238
  %v11271 = vsub.f32 %v11207, %v11239
  %v11272 = vsub.f32 %v11208, %v11240
  %v11273 = vsub.f32 %v11209, %v11241
  %v11274 = vsub.f32 %v11210, %v11242
  %v11275 = vsub.f32 %v11211, %v11243
  %v11276 = vsub.f32 %v11212, %v11244
  %v11277 = vsub.f32 %v11213, %v11245
  %v11278 = vsub.f32 %v11214, %v11246
  %v11279 = vsub.f32 %v11215, %v11247
  %v11280 = vsub.f32 %v11216, %v11248
  %v11281 = vsub.f32 %v11217, %v11249
  %v11282 = vsub.f32 %v11218, %v11250
  %v11283 = vsub.f32 %v11219, %v11251
  %v11284 = vsub.f32 %v11220, %v11252
  %v11285 = vsub.f32 %v11221, %v11253
  %v11286 = vsub.f32 %v11222, %v11254
  %v11287 = vsub.f32 %v11223, %v11255
  %v11288 = vsub.f32 %v11224, %v11256
  %v11289 = vsub.f32 %v11225, %v11257
  %v11290 = vsub.f32 %v11226, %v11258
  %v11291 = vsub.f32 %v11227, %v11259
  %v11292 = vsub.f32 %v11228, %v11260
  %v11293 = vsub.f32 %v11229, %v11261
  %v11294 = vsub.f32 %v11230, %v11262
  %v11295 = vsub.f32 %v11231, %v11263
  %v11296 = vsub.f32 %v11232, %v11264
  %v11297 = vadd.f32 %v11265, 1e-05
  %v11298 = vadd.f32 %v11266, 1e-05
  %v11299 = vadd.f32 %v11267, 1e-05
  %v11300 = vadd.f32 %v11268, 1e-05
  %v11301 = vadd.f32 %v11269, 1e-05
  %v11302 = vadd.f32 %v11270, 1e-05
  %v11303 = vadd.f32 %v11271, 1e-05
  %v11304 = vadd.f32 %v11272, 1e-05
  %v11305 = vadd.f32 %v11273, 1e-05
  %v11306 = vadd.f32 %v11274, 1e-05
  %v11307 = vadd.f32 %v11275, 1e-05
  %v11308 = vadd.f32 %v11276, 1e-05
  %v11309 = vadd.f32 %v11277, 1e-05
  %v11310 = vadd.f32 %v11278, 1e-05
  %v11311 = vadd.f32 %v11279, 1e-05
  %v11312 = vadd.f32 %v11280, 1e-05
  %v11313 = vadd.f32 %v11281, 1e-05
  %v11314 = vadd.f32 %v11282, 1e-05
  %v11315 = vadd.f32 %v11283, 1e-05
  %v11316 = vadd.f32 %v11284, 1e-05
  %v11317 = vadd.f32 %v11285, 1e-05
  %v11318 = vadd.f32 %v11286, 1e-05
  %v11319 = vadd.f32 %v11287, 1e-05
  %v11320 = vadd.f32 %v11288, 1e-05
  %v11321 = vadd.f32 %v11289, 1e-05
  %v11322 = vadd.f32 %v11290, 1e-05
  %v11323 = vadd.f32 %v11291, 1e-05
  %v11324 = vadd.f32 %v11292, 1e-05
  %v11325 = vadd.f32 %v11293, 1e-05
  %v11326 = vadd.f32 %v11294, 1e-05
  %v11327 = vadd.f32 %v11295, 1e-05
  %v11328 = vadd.f32 %v11296, 1e-05
  %v11329 = vrsqrt.pop %v11297
  %v11330 = vrsqrt.pop %v11298
  %v11331 = vrsqrt.pop %v11299
  %v11332 = vrsqrt.pop %v11300
  %v11333 = vrsqrt.pop %v11301
  %v11334 = vrsqrt.pop %v11302
  %v11335 = vrsqrt.pop %v11303
  %v11336 = vrsqrt.pop %v11304
  %v11337 = vrsqrt.pop %v11305
  %v11338 = vrsqrt.pop %v11306
  %v11339 = vrsqrt.pop %v11307
  %v11340 = vrsqrt.pop %v11308
  %v11341 = vrsqrt.pop %v11309
  %v11342 = vrsqrt.pop %v11310
  %v11343 = vrsqrt.pop %v11311
  %v11344 = vrsqrt.pop %v11312
  %v11345 = vrsqrt.pop %v11313
  %v11346 = vrsqrt.pop %v11314
  %v11347 = vrsqrt.pop %v11315
  %v11348 = vrsqrt.pop %v11316
  %v11349 = vrsqrt.pop %v11317
  %v11350 = vrsqrt.pop %v11318
  %v11351 = vrsqrt.pop %v11319
  %v11352 = vrsqrt.pop %v11320
  %v11353 = vrsqrt.pop %v11321
  %v11354 = vrsqrt.pop %v11322
  %v11355 = vrsqrt.pop %v11323
  %v11356 = vrsqrt.pop %v11324
  %v11357 = vrsqrt.pop %v11325
  %v11358 = vrsqrt.pop %v11326
  %v11359 = vrsqrt.pop %v11327
  %v11360 = vrsqrt.pop %v11328
  %v11361 = vmul.f32 %v2896, %v11329
  %v11362 = vmul.f32 %v2897, %v11330
  %v11363 = vmul.f32 %v2898, %v11331
  %v11364 = vmul.f32 %v2899, %v11332
  %v11365 = vmul.f32 %v2900, %v11333
  %v11366 = vmul.f32 %v2901, %v11334
  %v11367 = vmul.f32 %v2902, %v11335
  %v11368 = vmul.f32 %v2903, %v11336
  %v11369 = vmul.f32 %v2904, %v11337
  %v11370 = vmul.f32 %v2905, %v11338
  %v11371 = vmul.f32 %v2906, %v11339
  %v11372 = vmul.f32 %v2907, %v11340
  %v11373 = vmul.f32 %v2908, %v11341
  %v11374 = vmul.f32 %v2909, %v11342
  %v11375 = vmul.f32 %v2910, %v11343
  %v11376 = vmul.f32 %v2911, %v11344
  %v11377 = vmul.f32 %v2912, %v11345
  %v11378 = vmul.f32 %v2913, %v11346
  %v11379 = vmul.f32 %v2914, %v11347
  %v11380 = vmul.f32 %v2915, %v11348
  %v11381 = vmul.f32 %v2916, %v11349
  %v11382 = vmul.f32 %v2917, %v11350
  %v11383 = vmul.f32 %v2918, %v11351
  %v11384 = vmul.f32 %v2919, %v11352
  %v11385 = vmul.f32 %v2920, %v11353
  %v11386 = vmul.f32 %v2921, %v11354
  %v11387 = vmul.f32 %v2922, %v11355
  %v11388 = vmul.f32 %v2923, %v11356
  %v11389 = vmul.f32 %v2924, %v11357
  %v11390 = vmul.f32 %v2925, %v11358
  %v11391 = vmul.f32 %v2926, %v11359
  %v11392 = vmul.f32 %v2927, %v11360
  %v11393 = vmul.f32 %v10657, %v11361
  %v11394 = vmul.f32 %v10658, %v11362
  %v11395 = vmul.f32 %v10659, %v11363
  %v11396 = vmul.f32 %v10660, %v11364
  %v11397 = vmul.f32 %v10661, %v11365
  %v11398 = vmul.f32 %v10662, %v11366
  %v11399 = vmul.f32 %v10663, %v11367
  %v11400 = vmul.f32 %v10664, %v11368
  %v11401 = vmul.f32 %v10665, %v11369
  %v11402 = vmul.f32 %v10666, %v11370
  %v11403 = vmul.f32 %v10667, %v11371
  %v11404 = vmul.f32 %v10668, %v11372
  %v11405 = vmul.f32 %v10669, %v11373
  %v11406 = vmul.f32 %v10670, %v11374
  %v11407 = vmul.f32 %v10671, %v11375
  %v11408 = vmul.f32 %v10672, %v11376
  %v11409 = vmul.f32 %v10673, %v11377
  %v11410 = vmul.f32 %v10674, %v11378
  %v11411 = vmul.f32 %v10675, %v11379
  %v11412 = vmul.f32 %v10676, %v11380
  %v11413 = vmul.f32 %v10677, %v11381
  %v11414 = vmul.f32 %v10678, %v11382
  %v11415 = vmul.f32 %v10679, %v11383
  %v11416 = vmul.f32 %v10680, %v11384
  %v11417 = vmul.f32 %v10681, %v11385
  %v11418 = vmul.f32 %v10682, %v11386
  %v11419 = vmul.f32 %v10683, %v11387
  %v11420 = vmul.f32 %v10684, %v11388
  %v11421 = vmul.f32 %v10685, %v11389
  %v11422 = vmul.f32 %v10686, %v11390
  %v11423 = vmul.f32 %v10687, %v11391
  %v11424 = vmul.f32 %v10688, %v11392
  %11457 = vrot.lane.b32.xlu0 %v11393, 1
  %v11458 = vpop.permute.xlu0 %11457
  %11459 = vrot.lane.b32.xlu0 %v11394, 1
  %v11460 = vpop.permute.xlu0 %11459
  %11461 = vrot.lane.b32.xlu0 %v11395, 1
  %v11462 = vpop.permute.xlu0 %11461
  %11463 = vrot.lane.b32.xlu0 %v11396, 1
  %v11464 = vpop.permute.xlu0 %11463
  %11465 = vrot.lane.b32.xlu0 %v11397, 1
  %v11466 = vpop.permute.xlu0 %11465
  %11467 = vrot.lane.b32.xlu0 %v11398, 1
  %v11468 = vpop.permute.xlu0 %11467
  %11469 = vrot.lane.b32.xlu0 %v11399, 1
  %v11470 = vpop.permute.xlu0 %11469
  %11471 = vrot.lane.b32.xlu0 %v11400, 1
  %v11472 = vpop.permute.xlu0 %11471
  %11473 = vrot.lane.b32.xlu0 %v11401, 1
  %v11474 = vpop.permute.xlu0 %11473
  %11475 = vrot.lane.b32.xlu0 %v11402, 1
  %v11476 = vpop.permute.xlu0 %11475
  %11477 = vrot.lane.b32.xlu0 %v11403, 1
  %v11478 = vpop.permute.xlu0 %11477
  %11479 = vrot.lane.b32.xlu0 %v11404, 1
  %v11480 = vpop.permute.xlu0 %11479
  %11481 = vrot.lane.b32.xlu0 %v11405, 1
  %v11482 = vpop.permute.xlu0 %11481
  %11483 = vrot.lane.b32.xlu0 %v11406, 1
  %v11484 = vpop.permute.xlu0 %11483
  %11485 = vrot.lane.b32.xlu0 %v11407, 1
  %v11486 = vpop.permute.xlu0 %11485
  %11487 = vrot.lane.b32.xlu0 %v11408, 1
  %v11488 = vpop.permute.xlu0 %11487
  %11489 = vrot.lane.b32.xlu0 %v11409, 1
  %v11490 = vpop.permute.xlu0 %11489
  %11491 = vrot.lane.b32.xlu0 %v11410, 1
  %v11492 = vpop.permute.xlu0 %11491
  %11493 = vrot.lane.b32.xlu0 %v11411, 1
  %v11494 = vpop.permute.xlu0 %11493
  %11495 = vrot.lane.b32.xlu0 %v11412, 1
  %v11496 = vpop.permute.xlu0 %11495
  %11497 = vrot.lane.b32.xlu0 %v11413, 1
  %v11498 = vpop.permute.xlu0 %11497
  %11499 = vrot.lane.b32.xlu0 %v11414, 1
  %v11500 = vpop.permute.xlu0 %11499
  %11501 = vrot.lane.b32.xlu0 %v11415, 1
  %v11502 = vpop.permute.xlu0 %11501
  %11503 = vrot.lane.b32.xlu0 %v11416, 1
  %v11504 = vpop.permute.xlu0 %11503
  %11505 = vrot.lane.b32.xlu0 %v11417, 1
  %v11506 = vpop.permute.xlu0 %11505
  %11507 = vrot.lane.b32.xlu0 %v11418, 1
  %v11508 = vpop.permute.xlu0 %11507
  %11509 = vrot.lane.b32.xlu0 %v11419, 1
  %v11510 = vpop.permute.xlu0 %11509
  %11511 = vrot.lane.b32.xlu0 %v11420, 1
  %v11512 = vpop.permute.xlu0 %11511
  %11513 = vrot.lane.b32.xlu0 %v11421, 1
  %v11514 = vpop.permute.xlu0 %11513
  %11515 = vrot.lane.b32.xlu0 %v11422, 1
  %v11516 = vpop.permute.xlu0 %11515
  %11517 = vrot.lane.b32.xlu0 %v11423, 1
  %v11518 = vpop.permute.xlu0 %11517
  %11519 = vrot.lane.b32.xlu0 %v11424, 1
  %v11520 = vpop.permute.xlu0 %11519
  %v11553 = vsub.f32 %v2896, %v11458
  %v11554 = vsub.f32 %v2897, %v11460
  %v11555 = vsub.f32 %v2898, %v11462
  %v11556 = vsub.f32 %v2899, %v11464
  %v11557 = vsub.f32 %v2900, %v11466
  %v11558 = vsub.f32 %v2901, %v11468
  %v11559 = vsub.f32 %v2902, %v11470
  %v11560 = vsub.f32 %v2903, %v11472
  %v11561 = vsub.f32 %v2904, %v11474
  %v11562 = vsub.f32 %v2905, %v11476
  %v11563 = vsub.f32 %v2906, %v11478
  %v11564 = vsub.f32 %v2907, %v11480
  %v11565 = vsub.f32 %v2908, %v11482
  %v11566 = vsub.f32 %v2909, %v11484
  %v11567 = vsub.f32 %v2910, %v11486
  %v11568 = vsub.f32 %v2911, %v11488
  %v11569 = vsub.f32 %v2912, %v11490
  %v11570 = vsub.f32 %v2913, %v11492
  %v11571 = vsub.f32 %v2914, %v11494
  %v11572 = vsub.f32 %v2915, %v11496
  %v11573 = vsub.f32 %v2916, %v11498
  %v11574 = vsub.f32 %v2917, %v11500
  %v11575 = vsub.f32 %v2918, %v11502
  %v11576 = vsub.f32 %v2919, %v11504
  %v11577 = vsub.f32 %v2920, %v11506
  %v11578 = vsub.f32 %v2921, %v11508
  %v11579 = vsub.f32 %v2922, %v11510
  %v11580 = vsub.f32 %v2923, %v11512
  %v11581 = vsub.f32 %v2924, %v11514
  %v11582 = vsub.f32 %v2925, %v11516
  %v11583 = vsub.f32 %v2926, %v11518
  %v11584 = vsub.f32 %v2927, %v11520
  %11586 = vset.pattern.permute.xlu0 2
  %11587 = vperm.xlu0 %11586, %v11361
  %v11588 = vpop.permute.xlu0 %11587
  %11591 = vset.pattern.permute.xlu0 2
  %11592 = vperm.xlu0 %11591, %v11362
  %v11593 = vpop.permute.xlu0 %11592
  %11596 = vset.pattern.permute.xlu0 2
  %11597 = vperm.xlu0 %11596, %v11363
  %v11598 = vpop.permute.xlu0 %11597
  %11601 = vset.pattern.permute.xlu0 2
  %11602 = vperm.xlu0 %11601, %v11364
  %v11603 = vpop.permute.xlu0 %11602
  %11606 = vset.pattern.permute.xlu0 2
  %11607 = vperm.xlu0 %11606, %v11365
  %v11608 = vpop.permute.xlu0 %11607
  %11611 = vset.pattern.permute.xlu0 2
  %11612 = vperm.xlu0 %11611, %v11366
  %v11613 = vpop.permute.xlu0 %11612
  %11616 = vset.pattern.permute.xlu0 2
  %11617 = vperm.xlu0 %11616, %v11367
  %v11618 = vpop.permute.xlu0 %11617
  %11621 = vset.pattern.permute.xlu0 2
  %11622 = vperm.xlu0 %11621, %v11368
  %v11623 = vpop.permute.xlu0 %11622
  %11626 = vset.pattern.permute.xlu0 2
  %11627 = vperm.xlu0 %11626, %v11369
  %v11628 = vpop.permute.xlu0 %11627
  %11631 = vset.pattern.permute.xlu0 2
  %11632 = vperm.xlu0 %11631, %v11370
  %v11633 = vpop.permute.xlu0 %11632
  %11636 = vset.pattern.permute.xlu0 2
  %11637 = vperm.xlu0 %11636, %v11371
  %v11638 = vpop.permute.xlu0 %11637
  %11641 = vset.pattern.permute.xlu0 2
  %11642 = vperm.xlu0 %11641, %v11372
  %v11643 = vpop.permute.xlu0 %11642
  %11646 = vset.pattern.permute.xlu0 2
  %11647 = vperm.xlu0 %11646, %v11373
  %v11648 = vpop.permute.xlu0 %11647
  %11651 = vset.pattern.permute.xlu0 2
  %11652 = vperm.xlu0 %11651, %v11374
  %v11653 = vpop.permute.xlu0 %11652
  %11656 = vset.pattern.permute.xlu0 2
  %11657 = vperm.xlu0 %11656, %v11375
  %v11658 = vpop.permute.xlu0 %11657
  %11661 = vset.pattern.permute.xlu0 2
  %11662 = vperm.xlu0 %11661, %v11376
  %v11663 = vpop.permute.xlu0 %11662
  %11666 = vset.pattern.permute.xlu0 2
  %11667 = vperm.xlu0 %11666, %v11377
  %v11668 = vpop.permute.xlu0 %11667
  %11671 = vset.pattern.permute.xlu0 2
  %11672 = vperm.xlu0 %11671, %v11378
  %v11673 = vpop.permute.xlu0 %11672
  %11676 = vset.pattern.permute.xlu0 2
  %11677 = vperm.xlu0 %11676, %v11379
  %v11678 = vpop.permute.xlu0 %11677
  %11681 = vset.pattern.permute.xlu0 2
  %11682 = vperm.xlu0 %11681, %v11380
  %v11683 = vpop.permute.xlu0 %11682
  %11686 = vset.pattern.permute.xlu0 2
  %11687 = vperm.xlu0 %11686, %v11381
  %v11688 = vpop.permute.xlu0 %11687
  %11691 = vset.pattern.permute.xlu0 2
  %11692 = vperm.xlu0 %11691, %v11382
  %v11693 = vpop.permute.xlu0 %11692
  %11696 = vset.pattern.permute.xlu0 2
  %11697 = vperm.xlu0 %11696, %v11383
  %v11698 = vpop.permute.xlu0 %11697
  %11701 = vset.pattern.permute.xlu0 2
  %11702 = vperm.xlu0 %11701, %v11384
  %v11703 = vpop.permute.xlu0 %11702
  %11706 = vset.pattern.permute.xlu0 2
  %11707 = vperm.xlu0 %11706, %v11385
  %v11708 = vpop.permute.xlu0 %11707
  %11711 = vset.pattern.permute.xlu0 2
  %11712 = vperm.xlu0 %11711, %v11386
  %v11713 = vpop.permute.xlu0 %11712
  %11716 = vset.pattern.permute.xlu0 2
  %11717 = vperm.xlu0 %11716, %v11387
  %v11718 = vpop.permute.xlu0 %11717
  %11721 = vset.pattern.permute.xlu0 2
  %11722 = vperm.xlu0 %11721, %v11388
  %v11723 = vpop.permute.xlu0 %11722
  %11726 = vset.pattern.permute.xlu0 2
  %11727 = vperm.xlu0 %11726, %v11389
  %v11728 = vpop.permute.xlu0 %11727
  %11731 = vset.pattern.permute.xlu0 2
  %11732 = vperm.xlu0 %11731, %v11390
  %v11733 = vpop.permute.xlu0 %11732
  %11736 = vset.pattern.permute.xlu0 2
  %11737 = vperm.xlu0 %11736, %v11391
  %v11738 = vpop.permute.xlu0 %11737
  %11741 = vset.pattern.permute.xlu0 2
  %11742 = vperm.xlu0 %11741, %v11392
  %v11743 = vpop.permute.xlu0 %11742
  %v11745 = vmul.f32 %v9117, %v11588
  %v11746 = vmul.f32 %v9119, %v11588
  %v11747 = vmul.f32 %v9503, %v11588
  %v11748 = vmul.f32 %v9505, %v11588
  %v11749 = vmul.f32 %v9889, %v11588
  %v11750 = vmul.f32 %v9891, %v11588
  %v11751 = vmul.f32 %v10243, %v11588
  %v11752 = vmul.f32 %v9121, %v11593
  %v11753 = vmul.f32 %v9123, %v11593
  %v11754 = vmul.f32 %v9507, %v11593
  %v11755 = vmul.f32 %v9509, %v11593
  %v11756 = vmul.f32 %v9893, %v11593
  %v11757 = vmul.f32 %v9895, %v11593
  %v11758 = vmul.f32 %v10246, %v11593
  %v11759 = vmul.f32 %v9127, %v11598
  %v11760 = vmul.f32 %v9129, %v11598
  %v11761 = vmul.f32 %v9513, %v11598
  %v11762 = vmul.f32 %v9515, %v11598
  %v11763 = vmul.f32 %v9899, %v11598
  %v11764 = vmul.f32 %v9901, %v11598
  %v11765 = vmul.f32 %v10251, %v11598
  %v11766 = vmul.f32 %v9131, %v11603
  %v11767 = vmul.f32 %v9133, %v11603
  %v11768 = vmul.f32 %v9517, %v11603
  %v11769 = vmul.f32 %v9519, %v11603
  %v11770 = vmul.f32 %v9903, %v11603
  %v11771 = vmul.f32 %v9905, %v11603
  %v11772 = vmul.f32 %v10254, %v11603
  %v11773 = vmul.f32 %v9137, %v11608
  %v11774 = vmul.f32 %v9139, %v11608
  %v11775 = vmul.f32 %v9523, %v11608
  %v11776 = vmul.f32 %v9525, %v11608
  %v11777 = vmul.f32 %v9909, %v11608
  %v11778 = vmul.f32 %v9911, %v11608
  %v11779 = vmul.f32 %v10259, %v11608
  %v11780 = vmul.f32 %v9141, %v11613
  %v11781 = vmul.f32 %v9143, %v11613
  %v11782 = vmul.f32 %v9527, %v11613
  %v11783 = vmul.f32 %v9529, %v11613
  %v11784 = vmul.f32 %v9913, %v11613
  %v11785 = vmul.f32 %v9915, %v11613
  %v11786 = vmul.f32 %v10262, %v11613
  %v11787 = vmul.f32 %v9147, %v11618
  %v11788 = vmul.f32 %v9149, %v11618
  %v11789 = vmul.f32 %v9533, %v11618
  %v11790 = vmul.f32 %v9535, %v11618
  %v11791 = vmul.f32 %v9919, %v11618
  %v11792 = vmul.f32 %v9921, %v11618
  %v11793 = vmul.f32 %v10267, %v11618
  %v11794 = vmul.f32 %v9151, %v11623
  %v11795 = vmul.f32 %v9153, %v11623
  %v11796 = vmul.f32 %v9537, %v11623
  %v11797 = vmul.f32 %v9539, %v11623
  %v11798 = vmul.f32 %v9923, %v11623
  %v11799 = vmul.f32 %v9925, %v11623
  %v11800 = vmul.f32 %v10270, %v11623
  %v11801 = vmul.f32 %v9157, %v11628
  %v11802 = vmul.f32 %v9159, %v11628
  %v11803 = vmul.f32 %v9543, %v11628
  %v11804 = vmul.f32 %v9545, %v11628
  %v11805 = vmul.f32 %v9929, %v11628
  %v11806 = vmul.f32 %v9931, %v11628
  %v11807 = vmul.f32 %v10275, %v11628
  %v11808 = vmul.f32 %v9161, %v11633
  %v11809 = vmul.f32 %v9163, %v11633
  %v11810 = vmul.f32 %v9547, %v11633
  %v11811 = vmul.f32 %v9549, %v11633
  %v11812 = vmul.f32 %v9933, %v11633
  %v11813 = vmul.f32 %v9935, %v11633
  %v11814 = vmul.f32 %v10278, %v11633
  %v11815 = vmul.f32 %v9167, %v11638
  %v11816 = vmul.f32 %v9169, %v11638
  %v11817 = vmul.f32 %v9553, %v11638
  %v11818 = vmul.f32 %v9555, %v11638
  %v11819 = vmul.f32 %v9939, %v11638
  %v11820 = vmul.f32 %v9941, %v11638
  %v11821 = vmul.f32 %v10283, %v11638
  %v11822 = vmul.f32 %v9171, %v11643
  %v11823 = vmul.f32 %v9173, %v11643
  %v11824 = vmul.f32 %v9557, %v11643
  %v11825 = vmul.f32 %v9559, %v11643
  %v11826 = vmul.f32 %v9943, %v11643
  %v11827 = vmul.f32 %v9945, %v11643
  %v11828 = vmul.f32 %v10286, %v11643
  %v11829 = vmul.f32 %v9177, %v11648
  %v11830 = vmul.f32 %v9179, %v11648
  %v11831 = vmul.f32 %v9563, %v11648
  %v11832 = vmul.f32 %v9565, %v11648
  %v11833 = vmul.f32 %v9949, %v11648
  %v11834 = vmul.f32 %v9951, %v11648
  %v11835 = vmul.f32 %v10291, %v11648
  %v11836 = vmul.f32 %v9181, %v11653
  %v11837 = vmul.f32 %v9183, %v11653
  %v11838 = vmul.f32 %v9567, %v11653
  %v11839 = vmul.f32 %v9569, %v11653
  %v11840 = vmul.f32 %v9953, %v11653
  %v11841 = vmul.f32 %v9955, %v11653
  %v11842 = vmul.f32 %v10294, %v11653
  %v11843 = vmul.f32 %v9187, %v11658
  %v11844 = vmul.f32 %v9189, %v11658
  %v11845 = vmul.f32 %v9573, %v11658
  %v11846 = vmul.f32 %v9575, %v11658
  %v11847 = vmul.f32 %v9959, %v11658
  %v11848 = vmul.f32 %v9961, %v11658
  %v11849 = vmul.f32 %v10299, %v11658
  %v11850 = vmul.f32 %v9191, %v11663
  %v11851 = vmul.f32 %v9193, %v11663
  %v11852 = vmul.f32 %v9577, %v11663
  %v11853 = vmul.f32 %v9579, %v11663
  %v11854 = vmul.f32 %v9963, %v11663
  %v11855 = vmul.f32 %v9965, %v11663
  %v11856 = vmul.f32 %v10302, %v11663
  %v11857 = vmul.f32 %v9197, %v11668
  %v11858 = vmul.f32 %v9199, %v11668
  %v11859 = vmul.f32 %v9583, %v11668
  %v11860 = vmul.f32 %v9585, %v11668
  %v11861 = vmul.f32 %v9969, %v11668
  %v11862 = vmul.f32 %v9971, %v11668
  %v11863 = vmul.f32 %v10307, %v11668
  %v11864 = vmul.f32 %v9201, %v11673
  %v11865 = vmul.f32 %v9203, %v11673
  %v11866 = vmul.f32 %v9587, %v11673
  %v11867 = vmul.f32 %v9589, %v11673
  %v11868 = vmul.f32 %v9973, %v11673
  %v11869 = vmul.f32 %v9975, %v11673
  %v11870 = vmul.f32 %v10310, %v11673
  %v11871 = vmul.f32 %v9207, %v11678
  %v11872 = vmul.f32 %v9209, %v11678
  %v11873 = vmul.f32 %v9593, %v11678
  %v11874 = vmul.f32 %v9595, %v11678
  %v11875 = vmul.f32 %v9979, %v11678
  %v11876 = vmul.f32 %v9981, %v11678
  %v11877 = vmul.f32 %v10315, %v11678
  %v11878 = vmul.f32 %v9211, %v11683
  %v11879 = vmul.f32 %v9213, %v11683
  %v11880 = vmul.f32 %v9597, %v11683
  %v11881 = vmul.f32 %v9599, %v11683
  %v11882 = vmul.f32 %v9983, %v11683
  %v11883 = vmul.f32 %v9985, %v11683
  %v11884 = vmul.f32 %v10318, %v11683
  %v11885 = vmul.f32 %v9217, %v11688
  %v11886 = vmul.f32 %v9219, %v11688
  %v11887 = vmul.f32 %v9603, %v11688
  %v11888 = vmul.f32 %v9605, %v11688
  %v11889 = vmul.f32 %v9989, %v11688
  %v11890 = vmul.f32 %v9991, %v11688
  %v11891 = vmul.f32 %v10323, %v11688
  %v11892 = vmul.f32 %v9221, %v11693
  %v11893 = vmul.f32 %v9223, %v11693
  %v11894 = vmul.f32 %v9607, %v11693
  %v11895 = vmul.f32 %v9609, %v11693
  %v11896 = vmul.f32 %v9993, %v11693
  %v11897 = vmul.f32 %v9995, %v11693
  %v11898 = vmul.f32 %v10326, %v11693
  %v11899 = vmul.f32 %v9227, %v11698
  %v11900 = vmul.f32 %v9229, %v11698
  %v11901 = vmul.f32 %v9613, %v11698
  %v11902 = vmul.f32 %v9615, %v11698
  %v11903 = vmul.f32 %v9999, %v11698
  %v11904 = vmul.f32 %v10001, %v11698
  %v11905 = vmul.f32 %v10331, %v11698
  %v11906 = vmul.f32 %v9231, %v11703
  %v11907 = vmul.f32 %v9233, %v11703
  %v11908 = vmul.f32 %v9617, %v11703
  %v11909 = vmul.f32 %v9619, %v11703
  %v11910 = vmul.f32 %v10003, %v11703
  %v11911 = vmul.f32 %v10005, %v11703
  %v11912 = vmul.f32 %v10334, %v11703
  %v11913 = vmul.f32 %v9237, %v11708
  %v11914 = vmul.f32 %v9239, %v11708
  %v11915 = vmul.f32 %v9623, %v11708
  %v11916 = vmul.f32 %v9625, %v11708
  %v11917 = vmul.f32 %v10009, %v11708
  %v11918 = vmul.f32 %v10011, %v11708
  %v11919 = vmul.f32 %v10339, %v11708
  %v11920 = vmul.f32 %v9241, %v11713
  %v11921 = vmul.f32 %v9243, %v11713
  %v11922 = vmul.f32 %v9627, %v11713
  %v11923 = vmul.f32 %v9629, %v11713
  %v11924 = vmul.f32 %v10013, %v11713
  %v11925 = vmul.f32 %v10015, %v11713
  %v11926 = vmul.f32 %v10342, %v11713
  %v11927 = vmul.f32 %v9247, %v11718
  %v11928 = vmul.f32 %v9249, %v11718
  %v11929 = vmul.f32 %v9633, %v11718
  %v11930 = vmul.f32 %v9635, %v11718
  %v11931 = vmul.f32 %v10019, %v11718
  %v11932 = vmul.f32 %v10021, %v11718
  %v11933 = vmul.f32 %v10347, %v11718
  %v11934 = vmul.f32 %v9251, %v11723
  %v11935 = vmul.f32 %v9253, %v11723
  %v11936 = vmul.f32 %v9637, %v11723
  %v11937 = vmul.f32 %v9639, %v11723
  %v11938 = vmul.f32 %v10023, %v11723
  %v11939 = vmul.f32 %v10025, %v11723
  %v11940 = vmul.f32 %v10350, %v11723
  %v11941 = vmul.f32 %v9257, %v11728
  %v11942 = vmul.f32 %v9259, %v11728
  %v11943 = vmul.f32 %v9643, %v11728
  %v11944 = vmul.f32 %v9645, %v11728
  %v11945 = vmul.f32 %v10029, %v11728
  %v11946 = vmul.f32 %v10031, %v11728
  %v11947 = vmul.f32 %v10355, %v11728
  %v11948 = vmul.f32 %v9261, %v11733
  %v11949 = vmul.f32 %v9263, %v11733
  %v11950 = vmul.f32 %v9647, %v11733
  %v11951 = vmul.f32 %v9649, %v11733
  %v11952 = vmul.f32 %v10033, %v11733
  %v11953 = vmul.f32 %v10035, %v11733
  %v11954 = vmul.f32 %v10358, %v11733
  %v11955 = vmul.f32 %v9267, %v11738
  %v11956 = vmul.f32 %v9269, %v11738
  %v11957 = vmul.f32 %v9653, %v11738
  %v11958 = vmul.f32 %v9655, %v11738
  %v11959 = vmul.f32 %v10039, %v11738
  %v11960 = vmul.f32 %v10041, %v11738
  %v11961 = vmul.f32 %v10363, %v11738
  %v11962 = vmul.f32 %v9271, %v11743
  %v11963 = vmul.f32 %v9273, %v11743
  %v11964 = vmul.f32 %v9657, %v11743
  %v11965 = vmul.f32 %v9659, %v11743
  %v11966 = vmul.f32 %v10043, %v11743
  %v11967 = vmul.f32 %v10045, %v11743
  %v11968 = vmul.f32 %v10366, %v11743
  %11970 = vset.pattern.permute.xlu0 3
  %11971 = vperm.xlu0 %11970, %v11553
  %v11972 = vpop.permute.xlu0 %11971
  %11975 = vset.pattern.permute.xlu0 3
  %11976 = vperm.xlu0 %11975, %v11554
  %v11977 = vpop.permute.xlu0 %11976
  %11980 = vset.pattern.permute.xlu0 3
  %11981 = vperm.xlu0 %11980, %v11555
  %v11982 = vpop.permute.xlu0 %11981
  %11985 = vset.pattern.permute.xlu0 3
  %11986 = vperm.xlu0 %11985, %v11556
  %v11987 = vpop.permute.xlu0 %11986
  %11990 = vset.pattern.permute.xlu0 3
  %11991 = vperm.xlu0 %11990, %v11557
  %v11992 = vpop.permute.xlu0 %11991
  %11995 = vset.pattern.permute.xlu0 3
  %11996 = vperm.xlu0 %11995, %v11558
  %v11997 = vpop.permute.xlu0 %11996
  %12000 = vset.pattern.permute.xlu0 3
  %12001 = vperm.xlu0 %12000, %v11559
  %v12002 = vpop.permute.xlu0 %12001
  %12005 = vset.pattern.permute.xlu0 3
  %12006 = vperm.xlu0 %12005, %v11560
  %v12007 = vpop.permute.xlu0 %12006
  %12010 = vset.pattern.permute.xlu0 3
  %12011 = vperm.xlu0 %12010, %v11561
  %v12012 = vpop.permute.xlu0 %12011
  %12015 = vset.pattern.permute.xlu0 3
  %12016 = vperm.xlu0 %12015, %v11562
  %v12017 = vpop.permute.xlu0 %12016
  %12020 = vset.pattern.permute.xlu0 3
  %12021 = vperm.xlu0 %12020, %v11563
  %v12022 = vpop.permute.xlu0 %12021
  %12025 = vset.pattern.permute.xlu0 3
  %12026 = vperm.xlu0 %12025, %v11564
  %v12027 = vpop.permute.xlu0 %12026
  %12030 = vset.pattern.permute.xlu0 3
  %12031 = vperm.xlu0 %12030, %v11565
  %v12032 = vpop.permute.xlu0 %12031
  %12035 = vset.pattern.permute.xlu0 3
  %12036 = vperm.xlu0 %12035, %v11566
  %v12037 = vpop.permute.xlu0 %12036
  %12040 = vset.pattern.permute.xlu0 3
  %12041 = vperm.xlu0 %12040, %v11567
  %v12042 = vpop.permute.xlu0 %12041
  %12045 = vset.pattern.permute.xlu0 3
  %12046 = vperm.xlu0 %12045, %v11568
  %v12047 = vpop.permute.xlu0 %12046
  %12050 = vset.pattern.permute.xlu0 3
  %12051 = vperm.xlu0 %12050, %v11569
  %v12052 = vpop.permute.xlu0 %12051
  %12055 = vset.pattern.permute.xlu0 3
  %12056 = vperm.xlu0 %12055, %v11570
  %v12057 = vpop.permute.xlu0 %12056
  %12060 = vset.pattern.permute.xlu0 3
  %12061 = vperm.xlu0 %12060, %v11571
  %v12062 = vpop.permute.xlu0 %12061
  %12065 = vset.pattern.permute.xlu0 3
  %12066 = vperm.xlu0 %12065, %v11572
  %v12067 = vpop.permute.xlu0 %12066
  %12070 = vset.pattern.permute.xlu0 3
  %12071 = vperm.xlu0 %12070, %v11573
  %v12072 = vpop.permute.xlu0 %12071
  %12075 = vset.pattern.permute.xlu0 3
  %12076 = vperm.xlu0 %12075, %v11574
  %v12077 = vpop.permute.xlu0 %12076
  %12080 = vset.pattern.permute.xlu0 3
  %12081 = vperm.xlu0 %12080, %v11575
  %v12082 = vpop.permute.xlu0 %12081
  %12085 = vset.pattern.permute.xlu0 3
  %12086 = vperm.xlu0 %12085, %v11576
  %v12087 = vpop.permute.xlu0 %12086
  %12090 = vset.pattern.permute.xlu0 3
  %12091 = vperm.xlu0 %12090, %v11577
  %v12092 = vpop.permute.xlu0 %12091
  %12095 = vset.pattern.permute.xlu0 3
  %12096 = vperm.xlu0 %12095, %v11578
  %v12097 = vpop.permute.xlu0 %12096
  %12100 = vset.pattern.permute.xlu0 3
  %12101 = vperm.xlu0 %12100, %v11579
  %v12102 = vpop.permute.xlu0 %12101
  %12105 = vset.pattern.permute.xlu0 3
  %12106 = vperm.xlu0 %12105, %v11580
  %v12107 = vpop.permute.xlu0 %12106
  %12110 = vset.pattern.permute.xlu0 3
  %12111 = vperm.xlu0 %12110, %v11581
  %v12112 = vpop.permute.xlu0 %12111
  %12115 = vset.pattern.permute.xlu0 3
  %12116 = vperm.xlu0 %12115, %v11582
  %v12117 = vpop.permute.xlu0 %12116
  %12120 = vset.pattern.permute.xlu0 3
  %12121 = vperm.xlu0 %12120, %v11583
  %v12122 = vpop.permute.xlu0 %12121
  %12125 = vset.pattern.permute.xlu0 3
  %12126 = vperm.xlu0 %12125, %v11584
  %v12127 = vpop.permute.xlu0 %12126
  %v12129 = vadd.f32 %v11745, %v11972
  %v12130 = vadd.f32 %v11746, %v11972
  %v12131 = vadd.f32 %v11747, %v11972
  %v12132 = vadd.f32 %v11748, %v11972
  %v12133 = vadd.f32 %v11749, %v11972
  %v12134 = vadd.f32 %v11750, %v11972
  %v12135 = vadd.f32 %v11751, %v11972
  %v12136 = vadd.f32 %v11752, %v11977
  %v12137 = vadd.f32 %v11753, %v11977
  %v12138 = vadd.f32 %v11754, %v11977
  %v12139 = vadd.f32 %v11755, %v11977
  %v12140 = vadd.f32 %v11756, %v11977
  %v12141 = vadd.f32 %v11757, %v11977
  %v12142 = vadd.f32 %v11758, %v11977
  %v12143 = vadd.f32 %v11759, %v11982
  %v12144 = vadd.f32 %v11760, %v11982
  %v12145 = vadd.f32 %v11761, %v11982
  %v12146 = vadd.f32 %v11762, %v11982
  %v12147 = vadd.f32 %v11763, %v11982
  %v12148 = vadd.f32 %v11764, %v11982
  %v12149 = vadd.f32 %v11765, %v11982
  %v12150 = vadd.f32 %v11766, %v11987
  %v12151 = vadd.f32 %v11767, %v11987
  %v12152 = vadd.f32 %v11768, %v11987
  %v12153 = vadd.f32 %v11769, %v11987
  %v12154 = vadd.f32 %v11770, %v11987
  %v12155 = vadd.f32 %v11771, %v11987
  %v12156 = vadd.f32 %v11772, %v11987
  %v12157 = vadd.f32 %v11773, %v11992
  %v12158 = vadd.f32 %v11774, %v11992
  %v12159 = vadd.f32 %v11775, %v11992
  %v12160 = vadd.f32 %v11776, %v11992
  %v12161 = vadd.f32 %v11777, %v11992
  %v12162 = vadd.f32 %v11778, %v11992
  %v12163 = vadd.f32 %v11779, %v11992
  %v12164 = vadd.f32 %v11780, %v11997
  %v12165 = vadd.f32 %v11781, %v11997
  %v12166 = vadd.f32 %v11782, %v11997
  %v12167 = vadd.f32 %v11783, %v11997
  %v12168 = vadd.f32 %v11784, %v11997
  %v12169 = vadd.f32 %v11785, %v11997
  %v12170 = vadd.f32 %v11786, %v11997
  %v12171 = vadd.f32 %v11787, %v12002
  %v12172 = vadd.f32 %v11788, %v12002
  %v12173 = vadd.f32 %v11789, %v12002
  %v12174 = vadd.f32 %v11790, %v12002
  %v12175 = vadd.f32 %v11791, %v12002
  %v12176 = vadd.f32 %v11792, %v12002
  %v12177 = vadd.f32 %v11793, %v12002
  %v12178 = vadd.f32 %v11794, %v12007
  %v12179 = vadd.f32 %v11795, %v12007
  %v12180 = vadd.f32 %v11796, %v12007
  %v12181 = vadd.f32 %v11797, %v12007
  %v12182 = vadd.f32 %v11798, %v12007
  %v12183 = vadd.f32 %v11799, %v12007
  %v12184 = vadd.f32 %v11800, %v12007
  %v12185 = vadd.f32 %v11801, %v12012
  %v12186 = vadd.f32 %v11802, %v12012
  %v12187 = vadd.f32 %v11803, %v12012
  %v12188 = vadd.f32 %v11804, %v12012
  %v12189 = vadd.f32 %v11805, %v12012
  %v12190 = vadd.f32 %v11806, %v12012
  %v12191 = vadd.f32 %v11807, %v12012
  %v12192 = vadd.f32 %v11808, %v12017
  %v12193 = vadd.f32 %v11809, %v12017
  %v12194 = vadd.f32 %v11810, %v12017
  %v12195 = vadd.f32 %v11811, %v12017
  %v12196 = vadd.f32 %v11812, %v12017
  %v12197 = vadd.f32 %v11813, %v12017
  %v12198 = vadd.f32 %v11814, %v12017
  %v12199 = vadd.f32 %v11815, %v12022
  %v12200 = vadd.f32 %v11816, %v12022
  %v12201 = vadd.f32 %v11817, %v12022
  %v12202 = vadd.f32 %v11818, %v12022
  %v12203 = vadd.f32 %v11819, %v12022
  %v12204 = vadd.f32 %v11820, %v12022
  %v12205 = vadd.f32 %v11821, %v12022
  %v12206 = vadd.f32 %v11822, %v12027
  %v12207 = vadd.f32 %v11823, %v12027
  %v12208 = vadd.f32 %v11824, %v12027
  %v12209 = vadd.f32 %v11825, %v12027
  %v12210 = vadd.f32 %v11826, %v12027
  %v12211 = vadd.f32 %v11827, %v12027
  %v12212 = vadd.f32 %v11828, %v12027
  %v12213 = vadd.f32 %v11829, %v12032
  %v12214 = vadd.f32 %v11830, %v12032
  %v12215 = vadd.f32 %v11831, %v12032
  %v12216 = vadd.f32 %v11832, %v12032
  %v12217 = vadd.f32 %v11833, %v12032
  %v12218 = vadd.f32 %v11834, %v12032
  %v12219 = vadd.f32 %v11835, %v12032
  %v12220 = vadd.f32 %v11836, %v12037
  %v12221 = vadd.f32 %v11837, %v12037
  %v12222 = vadd.f32 %v11838, %v12037
  %v12223 = vadd.f32 %v11839, %v12037
  %v12224 = vadd.f32 %v11840, %v12037
  %v12225 = vadd.f32 %v11841, %v12037
  %v12226 = vadd.f32 %v11842, %v12037
  %v12227 = vadd.f32 %v11843, %v12042
  %v12228 = vadd.f32 %v11844, %v12042
  %v12229 = vadd.f32 %v11845, %v12042
  %v12230 = vadd.f32 %v11846, %v12042
  %v12231 = vadd.f32 %v11847, %v12042
  %v12232 = vadd.f32 %v11848, %v12042
  %v12233 = vadd.f32 %v11849, %v12042
  %v12234 = vadd.f32 %v11850, %v12047
  %v12235 = vadd.f32 %v11851, %v12047
  %v12236 = vadd.f32 %v11852, %v12047
  %v12237 = vadd.f32 %v11853, %v12047
  %v12238 = vadd.f32 %v11854, %v12047
  %v12239 = vadd.f32 %v11855, %v12047
  %v12240 = vadd.f32 %v11856, %v12047
  %v12241 = vadd.f32 %v11857, %v12052
  %v12242 = vadd.f32 %v11858, %v12052
  %v12243 = vadd.f32 %v11859, %v12052
  %v12244 = vadd.f32 %v11860, %v12052
  %v12245 = vadd.f32 %v11861, %v12052
  %v12246 = vadd.f32 %v11862, %v12052
  %v12247 = vadd.f32 %v11863, %v12052
  %v12248 = vadd.f32 %v11864, %v12057
  %v12249 = vadd.f32 %v11865, %v12057
  %v12250 = vadd.f32 %v11866, %v12057
  %v12251 = vadd.f32 %v11867, %v12057
  %v12252 = vadd.f32 %v11868, %v12057
  %v12253 = vadd.f32 %v11869, %v12057
  %v12254 = vadd.f32 %v11870, %v12057
  %v12255 = vadd.f32 %v11871, %v12062
  %v12256 = vadd.f32 %v11872, %v12062
  %v12257 = vadd.f32 %v11873, %v12062
  %v12258 = vadd.f32 %v11874, %v12062
  %v12259 = vadd.f32 %v11875, %v12062
  %v12260 = vadd.f32 %v11876, %v12062
  %v12261 = vadd.f32 %v11877, %v12062
  %v12262 = vadd.f32 %v11878, %v12067
  %v12263 = vadd.f32 %v11879, %v12067
  %v12264 = vadd.f32 %v11880, %v12067
  %v12265 = vadd.f32 %v11881, %v12067
  %v12266 = vadd.f32 %v11882, %v12067
  %v12267 = vadd.f32 %v11883, %v12067
  %v12268 = vadd.f32 %v11884, %v12067
  %v12269 = vadd.f32 %v11885, %v12072
  %v12270 = vadd.f32 %v11886, %v12072
  %v12271 = vadd.f32 %v11887, %v12072
  %v12272 = vadd.f32 %v11888, %v12072
  %v12273 = vadd.f32 %v11889, %v12072
  %v12274 = vadd.f32 %v11890, %v12072
  %v12275 = vadd.f32 %v11891, %v12072
  %v12276 = vadd.f32 %v11892, %v12077
  %v12277 = vadd.f32 %v11893, %v12077
  %v12278 = vadd.f32 %v11894, %v12077
  %v12279 = vadd.f32 %v11895, %v12077
  %v12280 = vadd.f32 %v11896, %v12077
  %v12281 = vadd.f32 %v11897, %v12077
  %v12282 = vadd.f32 %v11898, %v12077
  %v12283 = vadd.f32 %v11899, %v12082
  %v12284 = vadd.f32 %v11900, %v12082
  %v12285 = vadd.f32 %v11901, %v12082
  %v12286 = vadd.f32 %v11902, %v12082
  %v12287 = vadd.f32 %v11903, %v12082
  %v12288 = vadd.f32 %v11904, %v12082
  %v12289 = vadd.f32 %v11905, %v12082
  %v12290 = vadd.f32 %v11906, %v12087
  %v12291 = vadd.f32 %v11907, %v12087
  %v12292 = vadd.f32 %v11908, %v12087
  %v12293 = vadd.f32 %v11909, %v12087
  %v12294 = vadd.f32 %v11910, %v12087
  %v12295 = vadd.f32 %v11911, %v12087
  %v12296 = vadd.f32 %v11912, %v12087
  %v12297 = vadd.f32 %v11913, %v12092
  %v12298 = vadd.f32 %v11914, %v12092
  %v12299 = vadd.f32 %v11915, %v12092
  %v12300 = vadd.f32 %v11916, %v12092
  %v12301 = vadd.f32 %v11917, %v12092
  %v12302 = vadd.f32 %v11918, %v12092
  %v12303 = vadd.f32 %v11919, %v12092
  %v12304 = vadd.f32 %v11920, %v12097
  %v12305 = vadd.f32 %v11921, %v12097
  %v12306 = vadd.f32 %v11922, %v12097
  %v12307 = vadd.f32 %v11923, %v12097
  %v12308 = vadd.f32 %v11924, %v12097
  %v12309 = vadd.f32 %v11925, %v12097
  %v12310 = vadd.f32 %v11926, %v12097
  %v12311 = vadd.f32 %v11927, %v12102
  %v12312 = vadd.f32 %v11928, %v12102
  %v12313 = vadd.f32 %v11929, %v12102
  %v12314 = vadd.f32 %v11930, %v12102
  %v12315 = vadd.f32 %v11931, %v12102
  %v12316 = vadd.f32 %v11932, %v12102
  %v12317 = vadd.f32 %v11933, %v12102
  %v12318 = vadd.f32 %v11934, %v12107
  %v12319 = vadd.f32 %v11935, %v12107
  %v12320 = vadd.f32 %v11936, %v12107
  %v12321 = vadd.f32 %v11937, %v12107
  %v12322 = vadd.f32 %v11938, %v12107
  %v12323 = vadd.f32 %v11939, %v12107
  %v12324 = vadd.f32 %v11940, %v12107
  %v12325 = vadd.f32 %v11941, %v12112
  %v12326 = vadd.f32 %v11942, %v12112
  %v12327 = vadd.f32 %v11943, %v12112
  %v12328 = vadd.f32 %v11944, %v12112
  %v12329 = vadd.f32 %v11945, %v12112
  %v12330 = vadd.f32 %v11946, %v12112
  %v12331 = vadd.f32 %v11947, %v12112
  %v12332 = vadd.f32 %v11948, %v12117
  %v12333 = vadd.f32 %v11949, %v12117
  %v12334 = vadd.f32 %v11950, %v12117
  %v12335 = vadd.f32 %v11951, %v12117
  %v12336 = vadd.f32 %v11952, %v12117
  %v12337 = vadd.f32 %v11953, %v12117
  %v12338 = vadd.f32 %v11954, %v12117
  %v12339 = vadd.f32 %v11955, %v12122
  %v12340 = vadd.f32 %v11956, %v12122
  %v12341 = vadd.f32 %v11957, %v12122
  %v12342 = vadd.f32 %v11958, %v12122
  %v12343 = vadd.f32 %v11959, %v12122
  %v12344 = vadd.f32 %v11960, %v12122
  %v12345 = vadd.f32 %v11961, %v12122
  %v12346 = vadd.f32 %v11962, %v12127
  %v12347 = vadd.f32 %v11963, %v12127
  %v12348 = vadd.f32 %v11964, %v12127
  %v12349 = vadd.f32 %v11965, %v12127
  %v12350 = vadd.f32 %v11966, %v12127
  %v12351 = vadd.f32 %v11967, %v12127
  %v12352 = vadd.f32 %v11968, %v12127
  %12353 = vst [vmem:[%s5] sm:$0xff] %v12129
  %12354 = vst [vmem:[%s5 + $0x8] sm:$0xff] %v12130
  %12355 = vst [vmem:[%s5 + $0x10] sm:$0xff] %v12131
  %12356 = vst [vmem:[%s5 + $0x18] sm:$0xff] %v12132
  %12357 = vst [vmem:[%s5 + $0x20] sm:$0xff] %v12133
  %12358 = vst [vmem:[%s5 + $0x28] sm:$0xff] %v12134
  %12359 = vst.msk [vmem:[%s5 + $0x30] sm:$0xff] %vm2965, %v12135
  %12360 = vst [vmem:[%s5 + $0x38] sm:$0xff] %v12136
  %12361 = vst [vmem:[%s5 + $0x40] sm:$0xff] %v12137
  %12362 = vst [vmem:[%s5 + $0x48] sm:$0xff] %v12138
  %12363 = vst [vmem:[%s5 + $0x50] sm:$0xff] %v12139
  %12364 = vst [vmem:[%s5 + $0x58] sm:$0xff] %v12140
  %12365 = vst [vmem:[%s5 + $0x60] sm:$0xff] %v12141
  %12366 = vst.msk [vmem:[%s5 + $0x68] sm:$0xff] %vm2965, %v12142
  %12367 = vst [vmem:[%s5 + $0x70] sm:$0xff] %v12143
  %12368 = vst [vmem:[%s5 + $0x78] sm:$0xff] %v12144
  %12369 = vst [vmem:[%s5 + $0x80] sm:$0xff] %v12145
  %12370 = vst [vmem:[%s5 + $0x88] sm:$0xff] %v12146
  %12371 = vst [vmem:[%s5 + $0x90] sm:$0xff] %v12147
  %12372 = vst [vmem:[%s5 + $0x98] sm:$0xff] %v12148
  %12373 = vst.msk [vmem:[%s5 + $0xa0] sm:$0xff] %vm2965, %v12149
  %12374 = vst [vmem:[%s5 + $0xa8] sm:$0xff] %v12150
  %12375 = vst [vmem:[%s5 + $0xb0] sm:$0xff] %v12151
  %12376 = vst [vmem:[%s5 + $0xb8] sm:$0xff] %v12152
  %12377 = vst [vmem:[%s5 + $0xc0] sm:$0xff] %v12153
  %12378 = vst [vmem:[%s5 + $0xc8] sm:$0xff] %v12154
  %12379 = vst [vmem:[%s5 + $0xd0] sm:$0xff] %v12155
  %12380 = vst.msk [vmem:[%s5 + $0xd8] sm:$0xff] %vm2965, %v12156
  %12381 = vst [vmem:[%s5 + $0xe0] sm:$0xff] %v12157
  %12382 = vst [vmem:[%s5 + $0xe8] sm:$0xff] %v12158
  %12383 = vst [vmem:[%s5 + $0xf0] sm:$0xff] %v12159
  %12384 = vst [vmem:[%s5 + $0xf8] sm:$0xff] %v12160
  %12385 = vst [vmem:[%s5 + $0x100] sm:$0xff] %v12161
  %12386 = vst [vmem:[%s5 + $0x108] sm:$0xff] %v12162
  %12387 = vst.msk [vmem:[%s5 + $0x110] sm:$0xff] %vm2965, %v12163
  %12388 = vst [vmem:[%s5 + $0x118] sm:$0xff] %v12164
  %12389 = vst [vmem:[%s5 + $0x120] sm:$0xff] %v12165
  %12390 = vst [vmem:[%s5 + $0x128] sm:$0xff] %v12166
  %12391 = vst [vmem:[%s5 + $0x130] sm:$0xff] %v12167
  %12392 = vst [vmem:[%s5 + $0x138] sm:$0xff] %v12168
  %12393 = vst [vmem:[%s5 + $0x140] sm:$0xff] %v12169
  %12394 = vst.msk [vmem:[%s5 + $0x148] sm:$0xff] %vm2965, %v12170
  %12395 = vst [vmem:[%s5 + $0x150] sm:$0xff] %v12171
  %12396 = vst [vmem:[%s5 + $0x158] sm:$0xff] %v12172
  %12397 = vst [vmem:[%s5 + $0x160] sm:$0xff] %v12173
  %12398 = vst [vmem:[%s5 + $0x168] sm:$0xff] %v12174
  %12399 = vst [vmem:[%s5 + $0x170] sm:$0xff] %v12175
  %12400 = vst [vmem:[%s5 + $0x178] sm:$0xff] %v12176
  %12401 = vst.msk [vmem:[%s5 + $0x180] sm:$0xff] %vm2965, %v12177
  %12402 = vst [vmem:[%s5 + $0x188] sm:$0xff] %v12178
  %12403 = vst [vmem:[%s5 + $0x190] sm:$0xff] %v12179
  %12404 = vst [vmem:[%s5 + $0x198] sm:$0xff] %v12180
  %12405 = vst [vmem:[%s5 + $0x1a0] sm:$0xff] %v12181
  %12406 = vst [vmem:[%s5 + $0x1a8] sm:$0xff] %v12182
  %12407 = vst [vmem:[%s5 + $0x1b0] sm:$0xff] %v12183
  %12408 = vst.msk [vmem:[%s5 + $0x1b8] sm:$0xff] %vm2965, %v12184
  %12409 = vst [vmem:[%s5 + $0x1c0] sm:$0xff] %v12185
  %12410 = vst [vmem:[%s5 + $0x1c8] sm:$0xff] %v12186
  %12411 = vst [vmem:[%s5 + $0x1d0] sm:$0xff] %v12187
  %12412 = vst [vmem:[%s5 + $0x1d8] sm:$0xff] %v12188
  %12413 = vst [vmem:[%s5 + $0x1e0] sm:$0xff] %v12189
  %12414 = vst [vmem:[%s5 + $0x1e8] sm:$0xff] %v12190
  %12415 = vst.msk [vmem:[%s5 + $0x1f0] sm:$0xff] %vm2965, %v12191
  %12416 = vst [vmem:[%s5 + $0x1f8] sm:$0xff] %v12192
  %12417 = vst [vmem:[%s5 + $0x200] sm:$0xff] %v12193
  %12418 = vst [vmem:[%s5 + $0x208] sm:$0xff] %v12194
  %12419 = vst [vmem:[%s5 + $0x210] sm:$0xff] %v12195
  %12420 = vst [vmem:[%s5 + $0x218] sm:$0xff] %v12196
  %12421 = vst [vmem:[%s5 + $0x220] sm:$0xff] %v12197
  %12422 = vst.msk [vmem:[%s5 + $0x228] sm:$0xff] %vm2965, %v12198
  %12423 = vst [vmem:[%s5 + $0x230] sm:$0xff] %v12199
  %12424 = vst [vmem:[%s5 + $0x238] sm:$0xff] %v12200
  %12425 = vst [vmem:[%s5 + $0x240] sm:$0xff] %v12201
  %12426 = vst [vmem:[%s5 + $0x248] sm:$0xff] %v12202
  %12427 = vst [vmem:[%s5 + $0x250] sm:$0xff] %v12203
  %12428 = vst [vmem:[%s5 + $0x258] sm:$0xff] %v12204
  %12429 = vst.msk [vmem:[%s5 + $0x260] sm:$0xff] %vm2965, %v12205
  %12430 = vst [vmem:[%s5 + $0x268] sm:$0xff] %v12206
  %12431 = vst [vmem:[%s5 + $0x270] sm:$0xff] %v12207
  %12432 = vst [vmem:[%s5 + $0x278] sm:$0xff] %v12208
  %12433 = vst [vmem:[%s5 + $0x280] sm:$0xff] %v12209
  %12434 = vst [vmem:[%s5 + $0x288] sm:$0xff] %v12210
  %12435 = vst [vmem:[%s5 + $0x290] sm:$0xff] %v12211
  %12436 = vst.msk [vmem:[%s5 + $0x298] sm:$0xff] %vm2965, %v12212
  %12437 = vst [vmem:[%s5 + $0x2a0] sm:$0xff] %v12213
  %12438 = vst [vmem:[%s5 + $0x2a8] sm:$0xff] %v12214
  %12439 = vst [vmem:[%s5 + $0x2b0] sm:$0xff] %v12215
  %12440 = vst [vmem:[%s5 + $0x2b8] sm:$0xff] %v12216
  %12441 = vst [vmem:[%s5 + $0x2c0] sm:$0xff] %v12217
  %12442 = vst [vmem:[%s5 + $0x2c8] sm:$0xff] %v12218
  %12443 = vst.msk [vmem:[%s5 + $0x2d0] sm:$0xff] %vm2965, %v12219
  %12444 = vst [vmem:[%s5 + $0x2d8] sm:$0xff] %v12220
  %12445 = vst [vmem:[%s5 + $0x2e0] sm:$0xff] %v12221
  %12446 = vst [vmem:[%s5 + $0x2e8] sm:$0xff] %v12222
  %12447 = vst [vmem:[%s5 + $0x2f0] sm:$0xff] %v12223
  %12448 = vst [vmem:[%s5 + $0x2f8] sm:$0xff] %v12224
  %12449 = vst [vmem:[%s5 + $0x300] sm:$0xff] %v12225
  %12450 = vst.msk [vmem:[%s5 + $0x308] sm:$0xff] %vm2965, %v12226
  %12451 = vst [vmem:[%s5 + $0x310] sm:$0xff] %v12227
  %12452 = vst [vmem:[%s5 + $0x318] sm:$0xff] %v12228
  %12453 = vst [vmem:[%s5 + $0x320] sm:$0xff] %v12229
  %12454 = vst [vmem:[%s5 + $0x328] sm:$0xff] %v12230
  %12455 = vst [vmem:[%s5 + $0x330] sm:$0xff] %v12231
  %12456 = vst [vmem:[%s5 + $0x338] sm:$0xff] %v12232
  %12457 = vst.msk [vmem:[%s5 + $0x340] sm:$0xff] %vm2965, %v12233
  %12458 = vst [vmem:[%s5 + $0x348] sm:$0xff] %v12234
  %12459 = vst [vmem:[%s5 + $0x350] sm:$0xff] %v12235
  %12460 = vst [vmem:[%s5 + $0x358] sm:$0xff] %v12236
  %12461 = vst [vmem:[%s5 + $0x360] sm:$0xff] %v12237
  %12462 = vst [vmem:[%s5 + $0x368] sm:$0xff] %v12238
  %12463 = vst [vmem:[%s5 + $0x370] sm:$0xff] %v12239
  %12464 = vst.msk [vmem:[%s5 + $0x378] sm:$0xff] %vm2965, %v12240
  %12465 = vst [vmem:[%s5 + $0x380] sm:$0xff] %v12241
  %12466 = vst [vmem:[%s5 + $0x388] sm:$0xff] %v12242
  %12467 = vst [vmem:[%s5 + $0x390] sm:$0xff] %v12243
  %12468 = vst [vmem:[%s5 + $0x398] sm:$0xff] %v12244
  %12469 = vst [vmem:[%s5 + $0x3a0] sm:$0xff] %v12245
  %12470 = vst [vmem:[%s5 + $0x3a8] sm:$0xff] %v12246
  %12471 = vst.msk [vmem:[%s5 + $0x3b0] sm:$0xff] %vm2965, %v12247
  %12472 = vst [vmem:[%s5 + $0x3b8] sm:$0xff] %v12248
  %12473 = vst [vmem:[%s5 + $0x3c0] sm:$0xff] %v12249
  %12474 = vst [vmem:[%s5 + $0x3c8] sm:$0xff] %v12250
  %12475 = vst [vmem:[%s5 + $0x3d0] sm:$0xff] %v12251
  %12476 = vst [vmem:[%s5 + $0x3d8] sm:$0xff] %v12252
  %12477 = vst [vmem:[%s5 + $0x3e0] sm:$0xff] %v12253
  %12478 = vst.msk [vmem:[%s5 + $0x3e8] sm:$0xff] %vm2965, %v12254
  %12479 = vst [vmem:[%s5 + $0x3f0] sm:$0xff] %v12255
  %12480 = vst [vmem:[%s5 + $0x3f8] sm:$0xff] %v12256
  %12481 = vst [vmem:[%s5 + $0x400] sm:$0xff] %v12257
  %12482 = vst [vmem:[%s5 + $0x408] sm:$0xff] %v12258
  %12483 = vst [vmem:[%s5 + $0x410] sm:$0xff] %v12259
  %12484 = vst [vmem:[%s5 + $0x418] sm:$0xff] %v12260
  %12485 = vst.msk [vmem:[%s5 + $0x420] sm:$0xff] %vm2965, %v12261
  %12486 = vst [vmem:[%s5 + $0x428] sm:$0xff] %v12262
  %12487 = vst [vmem:[%s5 + $0x430] sm:$0xff] %v12263
  %12488 = vst [vmem:[%s5 + $0x438] sm:$0xff] %v12264
  %12489 = vst [vmem:[%s5 + $0x440] sm:$0xff] %v12265
  %12490 = vst [vmem:[%s5 + $0x448] sm:$0xff] %v12266
  %12491 = vst [vmem:[%s5 + $0x450] sm:$0xff] %v12267
  %12492 = vst.msk [vmem:[%s5 + $0x458] sm:$0xff] %vm2965, %v12268
  %12493 = vst [vmem:[%s5 + $0x460] sm:$0xff] %v12269
  %12494 = vst [vmem:[%s5 + $0x468] sm:$0xff] %v12270
  %12495 = vst [vmem:[%s5 + $0x470] sm:$0xff] %v12271
  %12496 = vst [vmem:[%s5 + $0x478] sm:$0xff] %v12272
  %12497 = vst [vmem:[%s5 + $0x480] sm:$0xff] %v12273
  %12498 = vst [vmem:[%s5 + $0x488] sm:$0xff] %v12274
  %12499 = vst.msk [vmem:[%s5 + $0x490] sm:$0xff] %vm2965, %v12275
  %12500 = vst [vmem:[%s5 + $0x498] sm:$0xff] %v12276
  %12501 = vst [vmem:[%s5 + $0x4a0] sm:$0xff] %v12277
  %12502 = vst [vmem:[%s5 + $0x4a8] sm:$0xff] %v12278
  %12503 = vst [vmem:[%s5 + $0x4b0] sm:$0xff] %v12279
  %12504 = vst [vmem:[%s5 + $0x4b8] sm:$0xff] %v12280
  %12505 = vst [vmem:[%s5 + $0x4c0] sm:$0xff] %v12281
  %12506 = vst.msk [vmem:[%s5 + $0x4c8] sm:$0xff] %vm2965, %v12282
  %12507 = vst [vmem:[%s5 + $0x4d0] sm:$0xff] %v12283
  %12508 = vst [vmem:[%s5 + $0x4d8] sm:$0xff] %v12284
  %12509 = vst [vmem:[%s5 + $0x4e0] sm:$0xff] %v12285
  %12510 = vst [vmem:[%s5 + $0x4e8] sm:$0xff] %v12286
  %12511 = vst [vmem:[%s5 + $0x4f0] sm:$0xff] %v12287
  %12512 = vst [vmem:[%s5 + $0x4f8] sm:$0xff] %v12288
  %12513 = vst.msk [vmem:[%s5 + $0x500] sm:$0xff] %vm2965, %v12289
  %12514 = vst [vmem:[%s5 + $0x508] sm:$0xff] %v12290
  %12515 = vst [vmem:[%s5 + $0x510] sm:$0xff] %v12291
  %12516 = vst [vmem:[%s5 + $0x518] sm:$0xff] %v12292
  %12517 = vst [vmem:[%s5 + $0x520] sm:$0xff] %v12293
  %12518 = vst [vmem:[%s5 + $0x528] sm:$0xff] %v12294
  %12519 = vst [vmem:[%s5 + $0x530] sm:$0xff] %v12295
  %12520 = vst.msk [vmem:[%s5 + $0x538] sm:$0xff] %vm2965, %v12296
  %12521 = vst [vmem:[%s5 + $0x540] sm:$0xff] %v12297
  %12522 = vst [vmem:[%s5 + $0x548] sm:$0xff] %v12298
  %12523 = vst [vmem:[%s5 + $0x550] sm:$0xff] %v12299
  %12524 = vst [vmem:[%s5 + $0x558] sm:$0xff] %v12300
  %12525 = vst [vmem:[%s5 + $0x560] sm:$0xff] %v12301
  %12526 = vst [vmem:[%s5 + $0x568] sm:$0xff] %v12302
  %12527 = vst.msk [vmem:[%s5 + $0x570] sm:$0xff] %vm2965, %v12303
  %12528 = vst [vmem:[%s5 + $0x578] sm:$0xff] %v12304
  %12529 = vst [vmem:[%s5 + $0x580] sm:$0xff] %v12305
  %12530 = vst [vmem:[%s5 + $0x588] sm:$0xff] %v12306
  %12531 = vst [vmem:[%s5 + $0x590] sm:$0xff] %v12307
  %12532 = vst [vmem:[%s5 + $0x598] sm:$0xff] %v12308
  %12533 = vst [vmem:[%s5 + $0x5a0] sm:$0xff] %v12309
  %12534 = vst.msk [vmem:[%s5 + $0x5a8] sm:$0xff] %vm2965, %v12310
  %12535 = vst [vmem:[%s5 + $0x5b0] sm:$0xff] %v12311
  %12536 = vst [vmem:[%s5 + $0x5b8] sm:$0xff] %v12312
  %12537 = vst [vmem:[%s5 + $0x5c0] sm:$0xff] %v12313
  %12538 = vst [vmem:[%s5 + $0x5c8] sm:$0xff] %v12314
  %12539 = vst [vmem:[%s5 + $0x5d0] sm:$0xff] %v12315
  %12540 = vst [vmem:[%s5 + $0x5d8] sm:$0xff] %v12316
  %12541 = vst.msk [vmem:[%s5 + $0x5e0] sm:$0xff] %vm2965, %v12317
  %12542 = vst [vmem:[%s5 + $0x5e8] sm:$0xff] %v12318
  %12543 = vst [vmem:[%s5 + $0x5f0] sm:$0xff] %v12319
  %12544 = vst [vmem:[%s5 + $0x5f8] sm:$0xff] %v12320
  %12545 = vst [vmem:[%s5 + $0x600] sm:$0xff] %v12321
  %12546 = vst [vmem:[%s5 + $0x608] sm:$0xff] %v12322
  %12547 = vst [vmem:[%s5 + $0x610] sm:$0xff] %v12323
  %12548 = vst.msk [vmem:[%s5 + $0x618] sm:$0xff] %vm2965, %v12324
  %12549 = vst [vmem:[%s5 + $0x620] sm:$0xff] %v12325
  %12550 = vst [vmem:[%s5 + $0x628] sm:$0xff] %v12326
  %12551 = vst [vmem:[%s5 + $0x630] sm:$0xff] %v12327
  %12552 = vst [vmem:[%s5 + $0x638] sm:$0xff] %v12328
  %12553 = vst [vmem:[%s5 + $0x640] sm:$0xff] %v12329
  %12554 = vst [vmem:[%s5 + $0x648] sm:$0xff] %v12330
  %12555 = vst.msk [vmem:[%s5 + $0x650] sm:$0xff] %vm2965, %v12331
  %12556 = vst [vmem:[%s5 + $0x658] sm:$0xff] %v12332
  %12557 = vst [vmem:[%s5 + $0x660] sm:$0xff] %v12333
  %12558 = vst [vmem:[%s5 + $0x668] sm:$0xff] %v12334
  %12559 = vst [vmem:[%s5 + $0x670] sm:$0xff] %v12335
  %12560 = vst [vmem:[%s5 + $0x678] sm:$0xff] %v12336
  %12561 = vst [vmem:[%s5 + $0x680] sm:$0xff] %v12337
  %12562 = vst.msk [vmem:[%s5 + $0x688] sm:$0xff] %vm2965, %v12338
  %12563 = vst [vmem:[%s5 + $0x690] sm:$0xff] %v12339
  %12564 = vst [vmem:[%s5 + $0x698] sm:$0xff] %v12340
  %12565 = vst [vmem:[%s5 + $0x6a0] sm:$0xff] %v12341
  %12566 = vst [vmem:[%s5 + $0x6a8] sm:$0xff] %v12342
  %12567 = vst [vmem:[%s5 + $0x6b0] sm:$0xff] %v12343
  %12568 = vst [vmem:[%s5 + $0x6b8] sm:$0xff] %v12344
  %12569 = vst.msk [vmem:[%s5 + $0x6c0] sm:$0xff] %vm2965, %v12345
  %12570 = vst [vmem:[%s5 + $0x6c8] sm:$0xff] %v12346
  %12571 = vst [vmem:[%s5 + $0x6d0] sm:$0xff] %v12347
  %12572 = vst [vmem:[%s5 + $0x6d8] sm:$0xff] %v12348
  %12573 = vst [vmem:[%s5 + $0x6e0] sm:$0xff] %v12349
  %12574 = vst [vmem:[%s5 + $0x6e8] sm:$0xff] %v12350
  %12575 = vst [vmem:[%s5 + $0x6f0] sm:$0xff] %v12351
  %12576 = vst.msk [vmem:[%s5 + $0x6f8] sm:$0xff] %vm2965, %v12352
  // Predicated region
  $region82: #{tpu_custom_call.1} parent=0 // pred_check
    _
  $region83: #{tpu_custom_call.1} parent=0 // pred_check_branch
    %12578 = sbr.rel (0) target = $region85
  $region84: #{tpu_custom_call.1} parent=0 // pred_region
    _
  $region85: #{tpu_custom_call.1} parent=0 // pred_fallthru
    _
  // Predicated region
  $region86: #{tpu_custom_call.1} parent=0 // pred_check
    _
  $region87: #{tpu_custom_call.1} parent=0 // pred_check_branch
    %12580 = sbr.rel (0) target = $region89
  $region88: #{tpu_custom_call.1} parent=0 // pred_region
    _
  $region89: #{tpu_custom_call.1} parent=0 // pred_fallthru
    _
  %12581 = vsyncmov [#allocation4]
  %s12582 = vpop.sfrf %12581
  %p12583 = scmp.eq.s32.totalorder %s12582, 0
  %p12584 = pneg %p12583
  %12586 = shalt.err (%p12584)
  %s12587 = scalar_lea.sflag [#allocation4], 1
  %12588 = vsyncmov %s12587
  %s12589 = vpop.sfrf %12588
  %p12590 = scmp.eq.s32.totalorder %s12589, 0
  %p12591 = pneg %p12590
  %12593 = shalt.err (%p12591)

</llo_original>
